<compile_context>
chip_gen: v7x
topology: tpu7x:2x2x1
jax: 0.10.0
libtpu: 0.0.40
codegen_flags: <defaults>
</compile_context>

<pallas_src>
import functools
import math

import jax
import jax.numpy as jnp
from jax import lax
from jax.experimental import pallas as pl
from jax.experimental.pallas import tpu as pltpu


def _mha_kernel(xq_ref, xk_ref, xv_ref, bias_ref,
                wq_ref, bq_ref, wk_ref, bk_ref, wv_ref, bv_ref,
                wo_ref, bo_ref,
                out_ref, ctx_ref, *, num_head, head_size, scale):
    # Block shapes:
    #   xq_ref (1, BQ, D)    xk_ref/xv_ref (1, S, D)    bias_ref (1, BQ, S) bf16 additive
    #   wq/wk/wv/wo (D, D)   bq/bk/bv/bo (1, D) f32
    #   out_ref (1, BQ, D)   ctx_ref (BQ, D) f32 VMEM scratch
    cdt = xq_ref.dtype                      # compute dtype for MXU operands
    dh = head_size

    xq = xq_ref[0]                          # (BQ, D)
    xk = xk_ref[0]                          # (S, D)
    xv = xv_ref[0]                          # (S, D)
    bias = bias_ref[0]                      # (BQ, S) additive (0 or -1e30)

    # Fused full-width QKV projections: contraction = D = 128 (full MXU fill),
    # computed once per (b, q-tile) step for all heads.
    q_all = jnp.dot(xq, wq_ref[...], preferred_element_type=jnp.float32) + bq_ref[...]
    k_all = jnp.dot(xk, wk_ref[...], preferred_element_type=jnp.float32) + bk_ref[...]
    v_all = jnp.dot(xv, wv_ref[...], preferred_element_type=jnp.float32) + bv_ref[...]

    q_c = q_all.astype(cdt)                 # (BQ, D)
    k_c = k_all.astype(cdt)                 # (S, D)
    v_c = v_all.astype(cdt)                 # (S, D)

    # Short unrolled head loop (num_head is a trace-time constant).
    for h in range(num_head):
        lo, hi = h * dh, (h + 1) * dh
        qh = q_c[:, lo:hi]                  # (BQ, dh)
        kh = k_c[:, lo:hi]                  # (S, dh)
        vh = v_c[:, lo:hi]                  # (S, dh)

        # q @ k^T without materialising a transpose: contract last dims of both.
        s = lax.dot_general(qh, kh,
                            dimension_numbers=(((1,), (1,)), ((), ())),
                            preferred_element_type=jnp.float32)      # (BQ, S)
        s = s * scale + bias                # additive mask (0 / -1e30), f32

        # Softmax with deferred normalisation (stats stay f32).
        m = jnp.max(s, axis=-1, keepdims=True)
        e = jnp.exp(s - m)
        denom = jnp.sum(e, axis=-1, keepdims=True)
        ctx = jnp.dot(e.astype(cdt), vh, preferred_element_type=jnp.float32)  # (BQ, dh)
        ctx = ctx * pl.reciprocal(denom, approx=True)

        ctx_ref[:, lo:hi] = ctx             # concat-over-heads into (BQ, D) buffer

    # Single full-width output projection (contraction = D = 128), lane-dense store.
    out = jnp.dot(ctx_ref[...].astype(cdt), wo_ref[...],
                  preferred_element_type=jnp.float32) + bo_ref[...]
    out_ref[0] = out.astype(out_ref.dtype)


def multi_head_attention(xq, xk, xv, mask, params, *, num_head, head_size,
                         block_q=256, compute_dtype=jnp.float32):
    """xq/xk/xv: (B, S, D) float32.  mask: (B, S, S) int (0 = masked).  Returns (B, S, D)."""
    wq, bq, wk, bk, wv, bv, wo, bo = params
    B, S, D = xq.shape
    H, dh = num_head, head_size
    assert H * dh == D
    block_q = min(block_q, S)
    assert S % block_q == 0

    cdt = compute_dtype
    xq_c, xk_c, xv_c = (a.astype(cdt) for a in (xq, xk, xv))
    wq_c, wk_c, wv_c, wo_c = (w.astype(cdt) for w in (wq, wk, wv, wo))
    bq_r, bk_r, bv_r, bo_r = (b.reshape(1, D).astype(jnp.float32)
                              for b in (bq, bk, bv, bo))
    # Additive mask bias (bf16: representable -1e30, half the bytes of int32).
    bias = jnp.where(mask == 0, jnp.float32(-1e30), jnp.float32(0.0)).astype(jnp.bfloat16)

    grid = (B, S // block_q)
    kernel = functools.partial(_mha_kernel, num_head=H, head_size=dh,
                               scale=float(dh) ** -0.5)

    full_w_spec = pl.BlockSpec((D, D), lambda b, qi: (0, 0))
    row_b_spec = pl.BlockSpec((1, D), lambda b, qi: (0, 0))

    return pl.pallas_call(
        kernel,
        out_shape=jax.ShapeDtypeStruct((B, S, D), xq.dtype),
        grid_spec=pltpu.PrefetchScalarGridSpec(
            num_scalar_prefetch=0,
            grid=grid,
            in_specs=[
                pl.BlockSpec((1, block_q, D), lambda b, qi: (b, qi, 0)),  # xq tile
                pl.BlockSpec((1, S, D),       lambda b, qi: (b, 0, 0)),   # xk (resident per b)
                pl.BlockSpec((1, S, D),       lambda b, qi: (b, 0, 0)),   # xv (resident per b)
                pl.BlockSpec((1, block_q, S), lambda b, qi: (b, qi, 0)),  # additive mask bias
                full_w_spec, row_b_spec,                                  # Wq, bq
                full_w_spec, row_b_spec,                                  # Wk, bk
                full_w_spec, row_b_spec,                                  # Wv, bv
                full_w_spec, row_b_spec,                                  # W_proj, b_proj
            ],
            out_specs=pl.BlockSpec((1, block_q, D), lambda b, qi: (b, qi, 0)),
            scratch_shapes=[pltpu.VMEM((block_q, D), jnp.float32)],
        ),
        compiler_params=pltpu.CompilerParams(
            dimension_semantics=("parallel", "parallel"),
        ),
    )(xq_c, xk_c, xv_c, bias, wq_c, bq_r, wk_c, bk_r, wv_c, bv_r, wo_c, bo_r)


def _mha_reference(xq, xk, xv, mask, params, *, num_head, head_size):
    """Pure-JAX reference (intended semantics of the PyTorch module, eval mode)."""
    wq, bq, wk, bk, wv, bv, wo, bo = params
    B, S, D = xq.shape
    q = (xq @ wq + bq).reshape(B, S, num_head, head_size).transpose(0, 2, 1, 3)
    k = (xk @ wk + bk).reshape(B, S, num_head, head_size).transpose(0, 2, 1, 3)
    v = (xv @ wv + bv).reshape(B, S, num_head, head_size).transpose(0, 2, 1, 3)
    s = jnp.einsum("bhqd,bhkd->bhqk", q, k) * head_size ** -0.5
    s = jnp.where(mask[:, None, :, :] == 0, -jnp.inf, s)
    p = jax.nn.softmax(s, axis=-1)
    ctx = jnp.einsum("bhqk,bhkd->bhqd", p, v)
    ctx = ctx.transpose(0, 2, 1, 3).reshape(B, S, D)
    return ctx @ wo + bo


if __name__ == "__main__":
    d_model, num_head, head_size = 128, 4, 32
    batch, seq = 2, 256

    key = jax.random.PRNGKey(0)
    keys = jax.random.split(key, 12)
    bound = 1.0 / math.sqrt(d_model)   # nn.Linear default init scale

    def uni(k, shape):
        return jax.random.uniform(k, shape, jnp.float32, -bound, bound)

    wq, wk, wv, wo = (uni(keys[i], (d_model, d_model)) for i in range(4))
    bq, bk, bv, bo = (uni(keys[4 + i], (d_model,)) for i in range(4))
    params = (wq, bq, wk, bk, wv, bv, wo, bo)

    xq = jax.random.normal(keys[8], (batch, seq, d_model), jnp.float32)
    xk = jax.random.normal(keys[9], (batch, seq, d_model), jnp.float32)
    xv = jax.random.normal(keys[10], (batch, seq, d_model), jnp.float32)
    # Causal mask: 1 = attend, 0 = masked; broadcast over batch (and heads inside).
    mask = jnp.broadcast_to(jnp.tril(jnp.ones((seq, seq), jnp.int32)), (batch, seq, seq))

    ref = _mha_reference(xq, xk, xv, mask, params,
                         num_head=num_head, head_size=head_size)

    # f32 MXU operands (v5e-friendly, exact-ish): tight tolerance vs reference.
    out = multi_head_attention(xq, xk, xv, mask, params,
                               num_head=num_head, head_size=head_size)
    out = jax.block_until_ready(out)
    assert out.shape == (batch, seq, d_model)
    assert jnp.allclose(out, ref, atol=1e-2, rtol=1e-2), \
        f"f32 max abs err = {float(jnp.max(jnp.abs(out - ref)))}"

    # bf16 MXU operands (v6e/v7x full-rate path), f32 stats/accumulation: loose check.
    out_bf16 = multi_head_attention(xq, xk, xv, mask, params,
                                    num_head=num_head, head_size=head_size,
                                    compute_dtype=jnp.bfloat16)
    out_bf16 = jax.block_until_ready(out_bf16)
    assert jnp.allclose(out_bf16, ref, atol=1e-1, rtol=1e-1), \
        f"bf16 max abs err = {float(jnp.max(jnp.abs(out_bf16 - ref)))}"

    print("KERNEL_OK")
</pallas_src>

<mosaic_0001>
module attributes {stable_mosaic.version = 11 : i64} {
  func.func @_mha_kernel(%arg0: i32, %arg1: i32, %arg2: memref<1x256x128xf32, #tpu.memory_space<vmem>>, %arg3: memref<1x256x128xf32, #tpu.memory_space<vmem>>, %arg4: memref<1x256x128xf32, #tpu.memory_space<vmem>>, %arg5: memref<1x256x256xbf16, #tpu.memory_space<vmem>>, %arg6: memref<128x128xf32, #tpu.memory_space<vmem>>, %arg7: memref<1x128xf32, #tpu.memory_space<vmem>>, %arg8: memref<128x128xf32, #tpu.memory_space<vmem>>, %arg9: memref<1x128xf32, #tpu.memory_space<vmem>>, %arg10: memref<128x128xf32, #tpu.memory_space<vmem>>, %arg11: memref<1x128xf32, #tpu.memory_space<vmem>>, %arg12: memref<128x128xf32, #tpu.memory_space<vmem>>, %arg13: memref<1x128xf32, #tpu.memory_space<vmem>>, %arg14: memref<1x256x128xf32, #tpu.memory_space<vmem>>, %arg15: memref<256x128xf32, #tpu.memory_space<vmem>>) attributes {dimension_semantics = [#tpu.dimension_semantics<parallel>, #tpu.dimension_semantics<parallel>], iteration_bounds = array<i64: 2, 1>, scalar_prefetch = 0 : i64, scratch_operands = 1 : i64, tpu.core_type = #tpu.core_type<tc>, window_params = [{transform_indices = @transform_0, window_bounds = array<i64: 1, 256, 128>}, {transform_indices = @transform_1, window_bounds = array<i64: 1, 256, 128>}, {transform_indices = @transform_2, window_bounds = array<i64: 1, 256, 128>}, {transform_indices = @transform_3, window_bounds = array<i64: 1, 256, 256>}, {pipeline_mode = #tpu.pipeline_mode<synchronous>, transform_indices = @transform_4, window_bounds = array<i64: 128, 128>}, {pipeline_mode = #tpu.pipeline_mode<synchronous>, transform_indices = @transform_5, window_bounds = array<i64: 1, 128>}, {pipeline_mode = #tpu.pipeline_mode<synchronous>, transform_indices = @transform_6, window_bounds = array<i64: 128, 128>}, {pipeline_mode = #tpu.pipeline_mode<synchronous>, transform_indices = @transform_7, window_bounds = array<i64: 1, 128>}, {pipeline_mode = #tpu.pipeline_mode<synchronous>, transform_indices = @transform_8, window_bounds = array<i64: 128, 128>}, {pipeline_mode = #tpu.pipeline_mode<synchronous>, transform_indices = @transform_9, window_bounds = array<i64: 1, 128>}, {pipeline_mode = #tpu.pipeline_mode<synchronous>, transform_indices = @transform_10, window_bounds = array<i64: 128, 128>}, {pipeline_mode = #tpu.pipeline_mode<synchronous>, transform_indices = @transform_11, window_bounds = array<i64: 1, 128>}, {transform_indices = @transform_12, window_bounds = array<i64: 1, 256, 128>}]} {
    %c0 = arith.constant 0 : index
    %c0_0 = arith.constant 0 : index
    %c0_1 = arith.constant 0 : index
    %0 = vector.load %arg2[%c0, %c0_0, %c0_1] : memref<1x256x128xf32, #tpu.memory_space<vmem>>, vector<1x256x128xf32>
    %1 = vector.shape_cast %0 : vector<1x256x128xf32> to vector<256x128xf32>
    %c0_2 = arith.constant 0 : index
    %c0_3 = arith.constant 0 : index
    %c0_4 = arith.constant 0 : index
    %2 = vector.load %arg3[%c0_2, %c0_3, %c0_4] : memref<1x256x128xf32, #tpu.memory_space<vmem>>, vector<1x256x128xf32>
    %3 = vector.shape_cast %2 : vector<1x256x128xf32> to vector<256x128xf32>
    %c0_5 = arith.constant 0 : index
    %c0_6 = arith.constant 0 : index
    %c0_7 = arith.constant 0 : index
    %4 = vector.load %arg4[%c0_5, %c0_6, %c0_7] : memref<1x256x128xf32, #tpu.memory_space<vmem>>, vector<1x256x128xf32>
    %5 = vector.shape_cast %4 : vector<1x256x128xf32> to vector<256x128xf32>
    %c0_8 = arith.constant 0 : index
    %c0_9 = arith.constant 0 : index
    %c0_10 = arith.constant 0 : index
    %6 = vector.load %arg5[%c0_8, %c0_9, %c0_10] : memref<1x256x256xbf16, #tpu.memory_space<vmem>>, vector<1x256x256xbf16>
    %7 = vector.shape_cast %6 : vector<1x256x256xbf16> to vector<256x256xbf16>
    %c0_11 = arith.constant 0 : index
    %c0_12 = arith.constant 0 : index
    %8 = vector.load %arg6[%c0_11, %c0_12] : memref<128x128xf32, #tpu.memory_space<vmem>>, vector<128x128xf32>
    %cst = arith.constant dense<0.000000e+00> : vector<256x128xf32>
    %9 = tpu.matmul %1, %8, %cst {dimension_numbers = #tpu.dot_dimension_numbers<[1], [0], [0], [1], [0, 0, 1, 1], [], []>} : vector<256x128xf32>, vector<128x128xf32>, vector<256x128xf32> -> vector<256x128xf32>
    %c0_13 = arith.constant 0 : index
    %c0_14 = arith.constant 0 : index
    %10 = vector.load %arg7[%c0_13, %c0_14] : memref<1x128xf32, #tpu.memory_space<vmem>>, vector<1x128xf32>
    %11 = vector.broadcast %10 : vector<1x128xf32> to vector<256x128xf32>
    %12 = arith.addf %9, %11 : vector<256x128xf32>
    %c0_15 = arith.constant 0 : index
    %c0_16 = arith.constant 0 : index
    %13 = vector.load %arg8[%c0_15, %c0_16] : memref<128x128xf32, #tpu.memory_space<vmem>>, vector<128x128xf32>
    %cst_17 = arith.constant dense<0.000000e+00> : vector<256x128xf32>
    %14 = tpu.matmul %3, %13, %cst_17 {dimension_numbers = #tpu.dot_dimension_numbers<[1], [0], [0], [1], [0, 0, 1, 1], [], []>} : vector<256x128xf32>, vector<128x128xf32>, vector<256x128xf32> -> vector<256x128xf32>
    %c0_18 = arith.constant 0 : index
    %c0_19 = arith.constant 0 : index
    %15 = vector.load %arg9[%c0_18, %c0_19] : memref<1x128xf32, #tpu.memory_space<vmem>>, vector<1x128xf32>
    %16 = vector.broadcast %15 : vector<1x128xf32> to vector<256x128xf32>
    %17 = arith.addf %14, %16 : vector<256x128xf32>
    %c0_20 = arith.constant 0 : index
    %c0_21 = arith.constant 0 : index
    %18 = vector.load %arg10[%c0_20, %c0_21] : memref<128x128xf32, #tpu.memory_space<vmem>>, vector<128x128xf32>
    %cst_22 = arith.constant dense<0.000000e+00> : vector<256x128xf32>
    %19 = tpu.matmul %5, %18, %cst_22 {dimension_numbers = #tpu.dot_dimension_numbers<[1], [0], [0], [1], [0, 0, 1, 1], [], []>} : vector<256x128xf32>, vector<128x128xf32>, vector<256x128xf32> -> vector<256x128xf32>
    %c0_23 = arith.constant 0 : index
    %c0_24 = arith.constant 0 : index
    %20 = vector.load %arg11[%c0_23, %c0_24] : memref<1x128xf32, #tpu.memory_space<vmem>>, vector<1x128xf32>
    %21 = vector.broadcast %20 : vector<1x128xf32> to vector<256x128xf32>
    %22 = arith.addf %19, %21 : vector<256x128xf32>
    %23 = vector.extract_strided_slice %12 {offsets = [0, 0], sizes = [256, 32], strides = [1, 1]} : vector<256x128xf32> to vector<256x32xf32>
    %24 = vector.extract_strided_slice %17 {offsets = [0, 0], sizes = [256, 32], strides = [1, 1]} : vector<256x128xf32> to vector<256x32xf32>
    %25 = vector.extract_strided_slice %22 {offsets = [0, 0], sizes = [256, 32], strides = [1, 1]} : vector<256x128xf32> to vector<256x32xf32>
    %cst_25 = arith.constant dense<0.000000e+00> : vector<256x256xf32>
    %26 = tpu.matmul %23, %24, %cst_25 {dimension_numbers = #tpu.dot_dimension_numbers<[1], [1], [0], [0], [0, 0, 1, 0], [], []>} : vector<256x32xf32>, vector<256x32xf32>, vector<256x256xf32> -> vector<256x256xf32>
    %cst_26 = arith.constant 0.176776692 : f32
    %27 = vector.broadcast %cst_26 : f32 to vector<256x256xf32>
    %28 = arith.mulf %26, %27 : vector<256x256xf32>
    %29 = arith.extf %7 : vector<256x256xbf16> to vector<256x256xf32>
    %30 = arith.addf %28, %29 : vector<256x256xf32>
    %cst_27 = arith.constant dense<0xFF800000> : vector<256xf32>
    %31 = vector.multi_reduction <maximumf>, %30, %cst_27 [1] : vector<256x256xf32> to vector<256xf32>
    %32 = vector.shape_cast %31 : vector<256xf32> to vector<256x1xf32>
    %33 = vector.broadcast %32 : vector<256x1xf32> to vector<256x256xf32>
    %34 = arith.subf %30, %33 : vector<256x256xf32>
    %35 = math.exp %34 : vector<256x256xf32>
    %cst_28 = arith.constant dense<0.000000e+00> : vector<256xf32>
    %36 = vector.multi_reduction <add>, %35, %cst_28 [1] : vector<256x256xf32> to vector<256xf32>
    %37 = vector.shape_cast %36 : vector<256xf32> to vector<256x1xf32>
    %cst_29 = arith.constant dense<0.000000e+00> : vector<256x32xf32>
    %38 = tpu.matmul %35, %25, %cst_29 {dimension_numbers = #tpu.dot_dimension_numbers<[1], [0], [0], [1], [0, 0, 1, 1], [], []>} : vector<256x256xf32>, vector<256x32xf32>, vector<256x32xf32> -> vector<256x32xf32>
    %39 = tpu.reciprocal %37 {approx = true} : vector<256x1xf32> -> vector<256x1xf32>
    %40 = vector.broadcast %39 : vector<256x1xf32> to vector<256x32xf32>
    %41 = arith.mulf %38, %40 : vector<256x32xf32>
    %c0_30 = arith.constant 0 : index
    %c0_31 = arith.constant 0 : index
    %42 = vector.load %arg15[%c0_30, %c0_31] : memref<256x128xf32, #tpu.memory_space<vmem>>, vector<256x32xf32>
    tpu.vector_store %arg15[%c0_30, %c0_31], %41 {strides = array<i32>} : memref<256x128xf32, #tpu.memory_space<vmem>>, vector<256x32xf32>,
    %43 = vector.extract_strided_slice %12 {offsets = [0, 32], sizes = [256, 32], strides = [1, 1]} : vector<256x128xf32> to vector<256x32xf32>
    %44 = vector.extract_strided_slice %17 {offsets = [0, 32], sizes = [256, 32], strides = [1, 1]} : vector<256x128xf32> to vector<256x32xf32>
    %45 = vector.extract_strided_slice %22 {offsets = [0, 32], sizes = [256, 32], strides = [1, 1]} : vector<256x128xf32> to vector<256x32xf32>
    %cst_32 = arith.constant dense<0.000000e+00> : vector<256x256xf32>
    %46 = tpu.matmul %43, %44, %cst_32 {dimension_numbers = #tpu.dot_dimension_numbers<[1], [1], [0], [0], [0, 0, 1, 0], [], []>} : vector<256x32xf32>, vector<256x32xf32>, vector<256x256xf32> -> vector<256x256xf32>
    %cst_33 = arith.constant 0.176776692 : f32
    %47 = vector.broadcast %cst_33 : f32 to vector<256x256xf32>
    %48 = arith.mulf %46, %47 : vector<256x256xf32>
    %49 = arith.extf %7 : vector<256x256xbf16> to vector<256x256xf32>
    %50 = arith.addf %48, %49 : vector<256x256xf32>
    %cst_34 = arith.constant dense<0xFF800000> : vector<256xf32>
    %51 = vector.multi_reduction <maximumf>, %50, %cst_34 [1] : vector<256x256xf32> to vector<256xf32>
    %52 = vector.shape_cast %51 : vector<256xf32> to vector<256x1xf32>
    %53 = vector.broadcast %52 : vector<256x1xf32> to vector<256x256xf32>
    %54 = arith.subf %50, %53 : vector<256x256xf32>
    %55 = math.exp %54 : vector<256x256xf32>
    %cst_35 = arith.constant dense<0.000000e+00> : vector<256xf32>
    %56 = vector.multi_reduction <add>, %55, %cst_35 [1] : vector<256x256xf32> to vector<256xf32>
    %57 = vector.shape_cast %56 : vector<256xf32> to vector<256x1xf32>
    %cst_36 = arith.constant dense<0.000000e+00> : vector<256x32xf32>
    %58 = tpu.matmul %55, %45, %cst_36 {dimension_numbers = #tpu.dot_dimension_numbers<[1], [0], [0], [1], [0, 0, 1, 1], [], []>} : vector<256x256xf32>, vector<256x32xf32>, vector<256x32xf32> -> vector<256x32xf32>
    %59 = tpu.reciprocal %57 {approx = true} : vector<256x1xf32> -> vector<256x1xf32>
    %60 = vector.broadcast %59 : vector<256x1xf32> to vector<256x32xf32>
    %61 = arith.mulf %58, %60 : vector<256x32xf32>
    %c0_37 = arith.constant 0 : index
    %c32 = arith.constant 32 : index
    %62 = vector.load %arg15[%c0_37, %c32] : memref<256x128xf32, #tpu.memory_space<vmem>>, vector<256x32xf32>
    tpu.vector_store %arg15[%c0_37, %c32], %61 {strides = array<i32>} : memref<256x128xf32, #tpu.memory_space<vmem>>, vector<256x32xf32>,
    %63 = vector.extract_strided_slice %12 {offsets = [0, 64], sizes = [256, 32], strides = [1, 1]} : vector<256x128xf32> to vector<256x32xf32>
    %64 = vector.extract_strided_slice %17 {offsets = [0, 64], sizes = [256, 32], strides = [1, 1]} : vector<256x128xf32> to vector<256x32xf32>
    %65 = vector.extract_strided_slice %22 {offsets = [0, 64], sizes = [256, 32], strides = [1, 1]} : vector<256x128xf32> to vector<256x32xf32>
    %cst_38 = arith.constant dense<0.000000e+00> : vector<256x256xf32>
    %66 = tpu.matmul %63, %64, %cst_38 {dimension_numbers = #tpu.dot_dimension_numbers<[1], [1], [0], [0], [0, 0, 1, 0], [], []>} : vector<256x32xf32>, vector<256x32xf32>, vector<256x256xf32> -> vector<256x256xf32>
    %cst_39 = arith.constant 0.176776692 : f32
    %67 = vector.broadcast %cst_39 : f32 to vector<256x256xf32>
    %68 = arith.mulf %66, %67 : vector<256x256xf32>
    %69 = arith.extf %7 : vector<256x256xbf16> to vector<256x256xf32>
    %70 = arith.addf %68, %69 : vector<256x256xf32>
    %cst_40 = arith.constant dense<0xFF800000> : vector<256xf32>
    %71 = vector.multi_reduction <maximumf>, %70, %cst_40 [1] : vector<256x256xf32> to vector<256xf32>
    %72 = vector.shape_cast %71 : vector<256xf32> to vector<256x1xf32>
    %73 = vector.broadcast %72 : vector<256x1xf32> to vector<256x256xf32>
    %74 = arith.subf %70, %73 : vector<256x256xf32>
    %75 = math.exp %74 : vector<256x256xf32>
    %cst_41 = arith.constant dense<0.000000e+00> : vector<256xf32>
    %76 = vector.multi_reduction <add>, %75, %cst_41 [1] : vector<256x256xf32> to vector<256xf32>
    %77 = vector.shape_cast %76 : vector<256xf32> to vector<256x1xf32>
    %cst_42 = arith.constant dense<0.000000e+00> : vector<256x32xf32>
    %78 = tpu.matmul %75, %65, %cst_42 {dimension_numbers = #tpu.dot_dimension_numbers<[1], [0], [0], [1], [0, 0, 1, 1], [], []>} : vector<256x256xf32>, vector<256x32xf32>, vector<256x32xf32> -> vector<256x32xf32>
    %79 = tpu.reciprocal %77 {approx = true} : vector<256x1xf32> -> vector<256x1xf32>
    %80 = vector.broadcast %79 : vector<256x1xf32> to vector<256x32xf32>
    %81 = arith.mulf %78, %80 : vector<256x32xf32>
    %c0_43 = arith.constant 0 : index
    %c64 = arith.constant 64 : index
    %82 = vector.load %arg15[%c0_43, %c64] : memref<256x128xf32, #tpu.memory_space<vmem>>, vector<256x32xf32>
    tpu.vector_store %arg15[%c0_43, %c64], %81 {strides = array<i32>} : memref<256x128xf32, #tpu.memory_space<vmem>>, vector<256x32xf32>,
    %83 = vector.extract_strided_slice %12 {offsets = [0, 96], sizes = [256, 32], strides = [1, 1]} : vector<256x128xf32> to vector<256x32xf32>
    %84 = vector.extract_strided_slice %17 {offsets = [0, 96], sizes = [256, 32], strides = [1, 1]} : vector<256x128xf32> to vector<256x32xf32>
    %85 = vector.extract_strided_slice %22 {offsets = [0, 96], sizes = [256, 32], strides = [1, 1]} : vector<256x128xf32> to vector<256x32xf32>
    %cst_44 = arith.constant dense<0.000000e+00> : vector<256x256xf32>
    %86 = tpu.matmul %83, %84, %cst_44 {dimension_numbers = #tpu.dot_dimension_numbers<[1], [1], [0], [0], [0, 0, 1, 0], [], []>} : vector<256x32xf32>, vector<256x32xf32>, vector<256x256xf32> -> vector<256x256xf32>
    %cst_45 = arith.constant 0.176776692 : f32
    %87 = vector.broadcast %cst_45 : f32 to vector<256x256xf32>
    %88 = arith.mulf %86, %87 : vector<256x256xf32>
    %89 = arith.extf %7 : vector<256x256xbf16> to vector<256x256xf32>
    %90 = arith.addf %88, %89 : vector<256x256xf32>
    %cst_46 = arith.constant dense<0xFF800000> : vector<256xf32>
    %91 = vector.multi_reduction <maximumf>, %90, %cst_46 [1] : vector<256x256xf32> to vector<256xf32>
    %92 = vector.shape_cast %91 : vector<256xf32> to vector<256x1xf32>
    %93 = vector.broadcast %92 : vector<256x1xf32> to vector<256x256xf32>
    %94 = arith.subf %90, %93 : vector<256x256xf32>
    %95 = math.exp %94 : vector<256x256xf32>
    %cst_47 = arith.constant dense<0.000000e+00> : vector<256xf32>
    %96 = vector.multi_reduction <add>, %95, %cst_47 [1] : vector<256x256xf32> to vector<256xf32>
    %97 = vector.shape_cast %96 : vector<256xf32> to vector<256x1xf32>
    %cst_48 = arith.constant dense<0.000000e+00> : vector<256x32xf32>
    %98 = tpu.matmul %95, %85, %cst_48 {dimension_numbers = #tpu.dot_dimension_numbers<[1], [0], [0], [1], [0, 0, 1, 1], [], []>} : vector<256x256xf32>, vector<256x32xf32>, vector<256x32xf32> -> vector<256x32xf32>
    %99 = tpu.reciprocal %97 {approx = true} : vector<256x1xf32> -> vector<256x1xf32>
    %100 = vector.broadcast %99 : vector<256x1xf32> to vector<256x32xf32>
    %101 = arith.mulf %98, %100 : vector<256x32xf32>
    %c0_49 = arith.constant 0 : index
    %c96 = arith.constant 96 : index
    %102 = vector.load %arg15[%c0_49, %c96] : memref<256x128xf32, #tpu.memory_space<vmem>>, vector<256x32xf32>
    tpu.vector_store %arg15[%c0_49, %c96], %101 {strides = array<i32>} : memref<256x128xf32, #tpu.memory_space<vmem>>, vector<256x32xf32>,
    %c0_50 = arith.constant 0 : index
    %c0_51 = arith.constant 0 : index
    %103 = vector.load %arg15[%c0_50, %c0_51] : memref<256x128xf32, #tpu.memory_space<vmem>>, vector<256x128xf32>
    %c0_52 = arith.constant 0 : index
    %c0_53 = arith.constant 0 : index
    %104 = vector.load %arg12[%c0_52, %c0_53] : memref<128x128xf32, #tpu.memory_space<vmem>>, vector<128x128xf32>
    %cst_54 = arith.constant dense<0.000000e+00> : vector<256x128xf32>
    %105 = tpu.matmul %103, %104, %cst_54 {dimension_numbers = #tpu.dot_dimension_numbers<[1], [0], [0], [1], [0, 0, 1, 1], [], []>} : vector<256x128xf32>, vector<128x128xf32>, vector<256x128xf32> -> vector<256x128xf32>
    %c0_55 = arith.constant 0 : index
    %c0_56 = arith.constant 0 : index
    %106 = vector.load %arg13[%c0_55, %c0_56] : memref<1x128xf32, #tpu.memory_space<vmem>>, vector<1x128xf32>
    %107 = vector.broadcast %106 : vector<1x128xf32> to vector<256x128xf32>
    %108 = arith.addf %105, %107 : vector<256x128xf32>
    %c0_57 = arith.constant 0 : index
    %c0_58 = arith.constant 0 : index
    %c0_59 = arith.constant 0 : index
    %109 = vector.load %arg14[%c0_57, %c0_58, %c0_59] : memref<1x256x128xf32, #tpu.memory_space<vmem>>, vector<1x256x128xf32>
    %110 = vector.shape_cast %109 : vector<1x256x128xf32> to vector<256x128xf32>
    %111 = vector.shape_cast %108 : vector<256x128xf32> to vector<1x256x128xf32>
    tpu.vector_store %arg14[%c0_57, %c0_58, %c0_59], %111 {strides = array<i32>} : memref<1x256x128xf32, #tpu.memory_space<vmem>>, vector<1x256x128xf32>,
    return
  }
  func.func @transform_0(%arg0: i32, %arg1: i32) -> (i32, i32, i32) {
    %c0_i32 = arith.constant 0 : i32
    %c0_i32_0 = arith.constant 0 : i32
    return %arg0, %arg1, %c0_i32 : i32, i32, i32
  }
  func.func @transform_1(%arg0: i32, %arg1: i32) -> (i32, i32, i32) {
    %c0_i32 = arith.constant 0 : i32
    %c0_i32_0 = arith.constant 0 : i32
    %c0_i32_1 = arith.constant 0 : i32
    return %arg0, %c0_i32, %c0_i32_0 : i32, i32, i32
  }
  func.func @transform_2(%arg0: i32, %arg1: i32) -> (i32, i32, i32) {
    %c0_i32 = arith.constant 0 : i32
    %c0_i32_0 = arith.constant 0 : i32
    %c0_i32_1 = arith.constant 0 : i32
    return %arg0, %c0_i32, %c0_i32_0 : i32, i32, i32
  }
  func.func @transform_3(%arg0: i32, %arg1: i32) -> (i32, i32, i32) {
    %c0_i32 = arith.constant 0 : i32
    %c0_i32_0 = arith.constant 0 : i32
    return %arg0, %arg1, %c0_i32 : i32, i32, i32
  }
  func.func @transform_4(%arg0: i32, %arg1: i32) -> (i32, i32) {
    %c0_i32 = arith.constant 0 : i32
    %c0_i32_0 = arith.constant 0 : i32
    %c0_i32_1 = arith.constant 0 : i32
    return %c0_i32, %c0_i32_0 : i32, i32
  }
  func.func @transform_5(%arg0: i32, %arg1: i32) -> (i32, i32) {
    %c0_i32 = arith.constant 0 : i32
    %c0_i32_0 = arith.constant 0 : i32
    %c0_i32_1 = arith.constant 0 : i32
    return %c0_i32, %c0_i32_0 : i32, i32
  }
  func.func @transform_6(%arg0: i32, %arg1: i32) -> (i32, i32) {
    %c0_i32 = arith.constant 0 : i32
    %c0_i32_0 = arith.constant 0 : i32
    %c0_i32_1 = arith.constant 0 : i32
    return %c0_i32, %c0_i32_0 : i32, i32
  }
  func.func @transform_7(%arg0: i32, %arg1: i32) -> (i32, i32) {
    %c0_i32 = arith.constant 0 : i32
    %c0_i32_0 = arith.constant 0 : i32
    %c0_i32_1 = arith.constant 0 : i32
    return %c0_i32, %c0_i32_0 : i32, i32
  }
  func.func @transform_8(%arg0: i32, %arg1: i32) -> (i32, i32) {
    %c0_i32 = arith.constant 0 : i32
    %c0_i32_0 = arith.constant 0 : i32
    %c0_i32_1 = arith.constant 0 : i32
    return %c0_i32, %c0_i32_0 : i32, i32
  }
  func.func @transform_9(%arg0: i32, %arg1: i32) -> (i32, i32) {
    %c0_i32 = arith.constant 0 : i32
    %c0_i32_0 = arith.constant 0 : i32
    %c0_i32_1 = arith.constant 0 : i32
    return %c0_i32, %c0_i32_0 : i32, i32
  }
  func.func @transform_10(%arg0: i32, %arg1: i32) -> (i32, i32) {
    %c0_i32 = arith.constant 0 : i32
    %c0_i32_0 = arith.constant 0 : i32
    %c0_i32_1 = arith.constant 0 : i32
    return %c0_i32, %c0_i32_0 : i32, i32
  }
  func.func @transform_11(%arg0: i32, %arg1: i32) -> (i32, i32) {
    %c0_i32 = arith.constant 0 : i32
    %c0_i32_0 = arith.constant 0 : i32
    %c0_i32_1 = arith.constant 0 : i32
    return %c0_i32, %c0_i32_0 : i32, i32
  }
  func.func @transform_12(%arg0: i32, %arg1: i32) -> (i32, i32, i32) {
    %c0_i32 = arith.constant 0 : i32
    %c0_i32_0 = arith.constant 0 : i32
    return %arg0, %arg1, %c0_i32 : i32, i32, i32
  }
}

</mosaic_0001>

<llo_original>
// kernel: tpu_custom_call.1
$region0: #{tpu_custom_call.1}
  #allocation0 [shape = 'u32[]', space=smem, size = 0x4, offset = 0x4, fixed_abs, tag = 'smem constant byte address 0x4 - core index']
  #allocation1 [shape = 'u32[144,128]{1,0:T(1,128)}', space=vmem, size = 0x12000, scoped, tag = 'internal scratch']
  #allocation2 [shape = 'f32[256,128]{1,0:T(8,128)}', space=vmem, size = 0x20000, scoped, tag = 'scratch operand']
  %s0 = inlined_call_operand.hbm [shape: f32[2,256,128], index: 0, kind: input, shape index: {}]
  %s1 = inlined_call_operand.hbm [shape: f32[2,256,128], index: 1, kind: input, shape index: {}]
  %s2 = inlined_call_operand.hbm [shape: f32[2,256,128], index: 2, kind: input, shape index: {}]
  %s3 = inlined_call_operand.hbm [shape: bf16[2,256,256], index: 3, kind: input, shape index: {}]
  %s4 = inlined_call_operand.hbm [shape: f32[128,128], index: 4, kind: input, shape index: {}]
  %s5 = inlined_call_operand.vmem [shape: f32[1,128], index: 5, kind: input, shape index: {}]
  %s6 = inlined_call_operand.hbm [shape: f32[128,128], index: 6, kind: input, shape index: {}]
  %s7 = inlined_call_operand.vmem [shape: f32[1,128], index: 7, kind: input, shape index: {}]
  %s8 = inlined_call_operand.hbm [shape: f32[128,128], index: 8, kind: input, shape index: {}]
  %s9 = inlined_call_operand.vmem [shape: f32[1,128], index: 9, kind: input, shape index: {}]
  %s10 = inlined_call_operand.hbm [shape: f32[128,128], index: 10, kind: input, shape index: {}]
  %s11 = inlined_call_operand.vmem [shape: f32[1,128], index: 11, kind: input, shape index: {}]
  %s12 = inlined_call_operand.hbm [shape: f32[2,256,128], index: 12, kind: output, shape index: {}]
  %s13 = sld [smem:[#allocation0]]
  $region113: #{tpu_custom_call.1} parent=0
    _
  %s15 = ssub.s32 1, %s13
  %s16 = scalar_select 0, %s15, %s13
  $region1: #{tpu_custom_call.1} parent=0
    #allocation3 [shape = 'u8[262144]{0}', space=vmem, size = 0x40000, scoped, tag = 'input window, operand 0']
    #allocation4 [shape = 's32[2]{0}', space=sflag, size = 0x8, scoped, tag = 'scoped memory for tpu_custom_call.1']
    #allocation5 [shape = 's32[2]{0}', space=sflag, size = 0x8, scoped, tag = 'scoped memory for tpu_custom_call.1']
    #allocation6 [shape = 'u8[262144]{0}', space=vmem, size = 0x40000, scoped, tag = 'input window, operand 1']
    #allocation7 [shape = 's32[2]{0}', space=sflag, size = 0x8, scoped, tag = 'scoped memory for tpu_custom_call.1']
    #allocation8 [shape = 'u8[262144]{0}', space=vmem, size = 0x40000, scoped, tag = 'input window, operand 2']
    #allocation9 [shape = 'u8[262144]{0}', space=vmem, size = 0x40000, scoped, tag = 'input window, operand 3']
    #allocation10 [shape = 's32[2]{0}', space=sflag, size = 0x8, scoped, tag = 'scoped memory for tpu_custom_call.1']
    #allocation11 [shape = 'u8[65536]{0}', space=vmem, size = 0x10000, scoped, tag = 'input window, operand 4, single buffered']
    #allocation12 [shape = 'u8[65536]{0}', space=vmem, size = 0x10000, scoped, tag = 'input window, operand 6, single buffered']
    #allocation13 [shape = 's32[1]{0}', space=sflag, size = 0x4, scoped, tag = 'scoped memory for tpu_custom_call.1']
    #allocation14 [shape = 'u8[65536]{0}', space=vmem, size = 0x10000, scoped, tag = 'input window, operand 8, single buffered']
    #allocation15 [shape = 'u8[65536]{0}', space=vmem, size = 0x10000, scoped, tag = 'input window, operand 10, single buffered']
    #allocation16 [shape = 's32[1]{0}', space=sflag, size = 0x4, scoped, tag = 'scoped memory for tpu_custom_call.1']
    #allocation17 [shape = 'u8[262144]{0}', space=vmem, size = 0x40000, scoped, tag = 'output window, operand 0']
    %17 = vsyncpa [#allocation4], 0
    %s18 = scalar_lea.sflag [#allocation4], 1
    %19 = vsyncpa %s18, 0
    %20 = vsyncpa [#allocation7], 0
    %s21 = scalar_lea.sflag [#allocation7], 1
    %22 = vsyncpa %s21, 0
    %23 = vsyncpa [#allocation10], 0
    %s24 = scalar_lea.sflag [#allocation10], 1
    %25 = vsyncpa %s24, 0
    %26 = vsyncpa [#allocation13], 0
    %27 = vsyncpa [#allocation16], 0
    %28 = vsyncpa [#allocation5], 0
    %s29 = scalar_lea.sflag [#allocation5], 1
    %30 = vsyncpa %s29, 0
    loop: start=0, step=1, limit=4
    $region2: #{tpu_custom_call.1} parent=1 // loop_pre_header
      _
    $region3: #{tpu_custom_call.1} parent=1 // loop_header
      %s32 = sphi 0, %s36
      %p33 = scmp.ge.s32.totalorder %s32, 4
      %s39 = sphi 0, %s51
      %s40 = sphi 0, %s47
      %s41 = sphi 0, %s39
      %s42 = sphi 0, %s40
      %s43 = sphi 0, %s41
      %s44 = sphi 0, %s42
      %s56 = sphi 0, %s58
      %s59 = sphi 0, %s56
      %s60 = sphi 0, %s59
      %s76 = sphi 0, %s60
      %s82 = sphi 0, %s84
      %s85 = sphi 0, %s82
      %s86 = sphi 0, %s85
      %s102 = sphi 0, %s86
      %s108 = sphi 0, %s110
      %s111 = sphi 0, %s108
      %s112 = sphi 0, %s111
      %s128 = sphi 0, %s112
      %s136 = sphi 0, %s138
      %s139 = sphi 0, %s136
      %s140 = sphi 0, %s139
      %s156 = sphi 0, %s140
      %s160 = sphi 0, %s160
      %s162 = sphi 0, %s160
      %s163 = sphi 0, %s162
      %s177 = sphi 0, %s163
      %s181 = sphi 0, %s181
      %s183 = sphi 0, %s181
      %s184 = sphi 0, %s183
      %s198 = sphi 0, %s184
      %s202 = sphi 0, %s202
      %s204 = sphi 0, %s202
      %s205 = sphi 0, %s204
      %s219 = sphi 0, %s205
      %s223 = sphi 0, %s223
      %s225 = sphi 0, %s223
      %s226 = sphi 0, %s225
      %s240 = sphi 0, %s226
      %s244 = sphi 0, %s244
      %s246 = sphi 0, %s244
      %s247 = sphi 0, %s246
      %s261 = sphi 0, %s247
      %s265 = sphi 0, %s265
      %s267 = sphi 0, %s265
      %s268 = sphi 0, %s267
      %s282 = sphi 0, %s268
      %s286 = sphi 0, %s286
      %s288 = sphi 0, %s286
      %s289 = sphi 0, %s288
      %s303 = sphi 0, %s289
      %s307 = sphi 0, %s307
      %s309 = sphi 0, %s307
      %s310 = sphi 0, %s309
      %s324 = sphi 0, %s310
      %s332 = sphi 0, %s334
      %s335 = sphi 0, %s332
      %s336 = sphi 0, %s335
      %s352 = sphi 0, %s336
    $region4: #{tpu_custom_call.1} parent=1 // loop_header_branch
      %35 = sbr.rel (%p33) target = $region8
    $region5: #{tpu_custom_call.1} parent=1 // loop_body
      %s37 = ssub.s32 %s32, 1
      %s38 = ssub.s32 %s32, 2
      %s45 = sadd.s32 1, %s40
      %p46 = scmp.ge.s32.totalorder %s45, 1
      %s47 = scalar_select %p46, 0, %s45
      %s48 = sadd.s32 1, %s39
      %s49 = scalar_select %p46, %s48, %s39
      %p50 = scmp.ge.s32.totalorder %s49, 2
      %s51 = scalar_select %p50, 0, %s49
      %s52 = ssub.s32 %s39, %s51
      %s53 = ssub.s32 %s40, %s47
      %s54 = sor.u32 %s52, %s53
      %p55 = scmp.eq.s32.totalorder %s54, 0
      %s57 = sadd.s32 %s56, 1
      %s58 = scalar_select %p55, %s56, %s57
      %p61 = pneg %p55
      %p62 = scmp.eq.s32.totalorder %s32, 1
      %p63 = por %p61, %p62
      %p64 = scmp.ne.s32.totalorder %s56, %s59
      %p65 = scmp.eq.s32.totalorder %s32, 0
      %p66 = por %p64, %p65
      %p67 = scmp.ne.s32.totalorder %s56, %s59
      %p68 = scmp.eq.s32.totalorder %s37, 1
      %p69 = por %p67, %p68
      %p70 = scmp.ne.s32.totalorder %s59, %s60
      %p71 = scmp.eq.s32.totalorder %s37, 0
      %p72 = por %p70, %p71
      %p73 = scmp.ne.s32.totalorder %s59, %s60
      %p74 = scmp.eq.s32.totalorder %s38, 1
      %p75 = por %p73, %p74
      %p77 = scmp.ne.s32.totalorder %s60, %s76
      %p78 = scmp.eq.s32.totalorder %s38, 0
      %p79 = por %p77, %p78
      %s80 = ssub.s32 %s39, %s51
      %p81 = scmp.eq.s32.totalorder %s80, 0
      %s83 = sadd.s32 %s82, 1
      %s84 = scalar_select %p81, %s82, %s83
      %p87 = pneg %p81
      %p88 = scmp.eq.s32.totalorder %s32, 1
      %p89 = por %p87, %p88
      %p90 = scmp.ne.s32.totalorder %s82, %s85
      %p91 = scmp.eq.s32.totalorder %s32, 0
      %p92 = por %p90, %p91
      %p93 = scmp.ne.s32.totalorder %s82, %s85
      %p94 = scmp.eq.s32.totalorder %s37, 1
      %p95 = por %p93, %p94
      %p96 = scmp.ne.s32.totalorder %s85, %s86
      %p97 = scmp.eq.s32.totalorder %s37, 0
      %p98 = por %p96, %p97
      %p99 = scmp.ne.s32.totalorder %s85, %s86
      %p100 = scmp.eq.s32.totalorder %s38, 1
      %p101 = por %p99, %p100
      %p103 = scmp.ne.s32.totalorder %s86, %s102
      %p104 = scmp.eq.s32.totalorder %s38, 0
      %p105 = por %p103, %p104
      %s106 = ssub.s32 %s39, %s51
      %p107 = scmp.eq.s32.totalorder %s106, 0
      %s109 = sadd.s32 %s108, 1
      %s110 = scalar_select %p107, %s108, %s109
      %p113 = pneg %p107
      %p114 = scmp.eq.s32.totalorder %s32, 1
      %p115 = por %p113, %p114
      %p116 = scmp.ne.s32.totalorder %s108, %s111
      %p117 = scmp.eq.s32.totalorder %s32, 0
      %p118 = por %p116, %p117
      %p119 = scmp.ne.s32.totalorder %s108, %s111
      %p120 = scmp.eq.s32.totalorder %s37, 1
      %p121 = por %p119, %p120
      %p122 = scmp.ne.s32.totalorder %s111, %s112
      %p123 = scmp.eq.s32.totalorder %s37, 0
      %p124 = por %p122, %p123
      %p125 = scmp.ne.s32.totalorder %s111, %s112
      %p126 = scmp.eq.s32.totalorder %s38, 1
      %p127 = por %p125, %p126
      %p129 = scmp.ne.s32.totalorder %s112, %s128
      %p130 = scmp.eq.s32.totalorder %s38, 0
      %p131 = por %p129, %p130
      %s132 = ssub.s32 %s39, %s51
      %s133 = ssub.s32 %s40, %s47
      %s134 = sor.u32 %s132, %s133
      %p135 = scmp.eq.s32.totalorder %s134, 0
      %s137 = sadd.s32 %s136, 1
      %s138 = scalar_select %p135, %s136, %s137
      %p141 = pneg %p135
      %p142 = scmp.eq.s32.totalorder %s32, 1
      %p143 = por %p141, %p142
      %p144 = scmp.ne.s32.totalorder %s136, %s139
      %p145 = scmp.eq.s32.totalorder %s32, 0
      %p146 = por %p144, %p145
      %p147 = scmp.ne.s32.totalorder %s136, %s139
      %p148 = scmp.eq.s32.totalorder %s37, 1
      %p149 = por %p147, %p148
      %p150 = scmp.ne.s32.totalorder %s139, %s140
      %p151 = scmp.eq.s32.totalorder %s37, 0
      %p152 = por %p150, %p151
      %p153 = scmp.ne.s32.totalorder %s139, %s140
      %p154 = scmp.eq.s32.totalorder %s38, 1
      %p155 = por %p153, %p154
      %p157 = scmp.ne.s32.totalorder %s140, %s156
      %p158 = scmp.eq.s32.totalorder %s38, 0
      %p159 = por %p157, %p158
      %s161 = sadd.s32 %s160, 1
      %p164 = scmp.eq.s32.totalorder %s32, 1
      %p165 = scmp.ne.s32.totalorder %s160, %s162
      %p166 = scmp.eq.s32.totalorder %s32, 0
      %p167 = por %p165, %p166
      %p168 = scmp.ne.s32.totalorder %s160, %s162
      %p169 = scmp.eq.s32.totalorder %s37, 1
      %p170 = por %p168, %p169
      %p171 = scmp.ne.s32.totalorder %s162, %s163
      %p172 = scmp.eq.s32.totalorder %s37, 0
      %p173 = por %p171, %p172
      %p174 = scmp.ne.s32.totalorder %s162, %s163
      %p175 = scmp.eq.s32.totalorder %s38, 1
      %p176 = por %p174, %p175
      %p178 = scmp.ne.s32.totalorder %s163, %s177
      %p179 = scmp.eq.s32.totalorder %s38, 0
      %p180 = por %p178, %p179
      %s182 = sadd.s32 %s181, 1
      %p185 = scmp.eq.s32.totalorder %s32, 1
      %p186 = scmp.ne.s32.totalorder %s181, %s183
      %p187 = scmp.eq.s32.totalorder %s32, 0
      %p188 = por %p186, %p187
      %p189 = scmp.ne.s32.totalorder %s181, %s183
      %p190 = scmp.eq.s32.totalorder %s37, 1
      %p191 = por %p189, %p190
      %p192 = scmp.ne.s32.totalorder %s183, %s184
      %p193 = scmp.eq.s32.totalorder %s37, 0
      %p194 = por %p192, %p193
      %p195 = scmp.ne.s32.totalorder %s183, %s184
      %p196 = scmp.eq.s32.totalorder %s38, 1
      %p197 = por %p195, %p196
      %p199 = scmp.ne.s32.totalorder %s184, %s198
      %p200 = scmp.eq.s32.totalorder %s38, 0
      %p201 = por %p199, %p200
      %s203 = sadd.s32 %s202, 1
      %p206 = scmp.eq.s32.totalorder %s32, 1
      %p207 = scmp.ne.s32.totalorder %s202, %s204
      %p208 = scmp.eq.s32.totalorder %s32, 0
      %p209 = por %p207, %p208
      %p210 = scmp.ne.s32.totalorder %s202, %s204
      %p211 = scmp.eq.s32.totalorder %s37, 1
      %p212 = por %p210, %p211
      %p213 = scmp.ne.s32.totalorder %s204, %s205
      %p214 = scmp.eq.s32.totalorder %s37, 0
      %p215 = por %p213, %p214
      %p216 = scmp.ne.s32.totalorder %s204, %s205
      %p217 = scmp.eq.s32.totalorder %s38, 1
      %p218 = por %p216, %p217
      %p220 = scmp.ne.s32.totalorder %s205, %s219
      %p221 = scmp.eq.s32.totalorder %s38, 0
      %p222 = por %p220, %p221
      %s224 = sadd.s32 %s223, 1
      %p227 = scmp.eq.s32.totalorder %s32, 1
      %p228 = scmp.ne.s32.totalorder %s223, %s225
      %p229 = scmp.eq.s32.totalorder %s32, 0
      %p230 = por %p228, %p229
      %p231 = scmp.ne.s32.totalorder %s223, %s225
      %p232 = scmp.eq.s32.totalorder %s37, 1
      %p233 = por %p231, %p232
      %p234 = scmp.ne.s32.totalorder %s225, %s226
      %p235 = scmp.eq.s32.totalorder %s37, 0
      %p236 = por %p234, %p235
      %p237 = scmp.ne.s32.totalorder %s225, %s226
      %p238 = scmp.eq.s32.totalorder %s38, 1
      %p239 = por %p237, %p238
      %p241 = scmp.ne.s32.totalorder %s226, %s240
      %p242 = scmp.eq.s32.totalorder %s38, 0
      %p243 = por %p241, %p242
      %s245 = sadd.s32 %s244, 1
      %p248 = scmp.eq.s32.totalorder %s32, 1
      %p249 = scmp.ne.s32.totalorder %s244, %s246
      %p250 = scmp.eq.s32.totalorder %s32, 0
      %p251 = por %p249, %p250
      %p252 = scmp.ne.s32.totalorder %s244, %s246
      %p253 = scmp.eq.s32.totalorder %s37, 1
      %p254 = por %p252, %p253
      %p255 = scmp.ne.s32.totalorder %s246, %s247
      %p256 = scmp.eq.s32.totalorder %s37, 0
      %p257 = por %p255, %p256
      %p258 = scmp.ne.s32.totalorder %s246, %s247
      %p259 = scmp.eq.s32.totalorder %s38, 1
      %p260 = por %p258, %p259
      %p262 = scmp.ne.s32.totalorder %s247, %s261
      %p263 = scmp.eq.s32.totalorder %s38, 0
      %p264 = por %p262, %p263
      %s266 = sadd.s32 %s265, 1
      %p269 = scmp.eq.s32.totalorder %s32, 1
      %p270 = scmp.ne.s32.totalorder %s265, %s267
      %p271 = scmp.eq.s32.totalorder %s32, 0
      %p272 = por %p270, %p271
      %p273 = scmp.ne.s32.totalorder %s265, %s267
      %p274 = scmp.eq.s32.totalorder %s37, 1
      %p275 = por %p273, %p274
      %p276 = scmp.ne.s32.totalorder %s267, %s268
      %p277 = scmp.eq.s32.totalorder %s37, 0
      %p278 = por %p276, %p277
      %p279 = scmp.ne.s32.totalorder %s267, %s268
      %p280 = scmp.eq.s32.totalorder %s38, 1
      %p281 = por %p279, %p280
      %p283 = scmp.ne.s32.totalorder %s268, %s282
      %p284 = scmp.eq.s32.totalorder %s38, 0
      %p285 = por %p283, %p284
      %s287 = sadd.s32 %s286, 1
      %p290 = scmp.eq.s32.totalorder %s32, 1
      %p291 = scmp.ne.s32.totalorder %s286, %s288
      %p292 = scmp.eq.s32.totalorder %s32, 0
      %p293 = por %p291, %p292
      %p294 = scmp.ne.s32.totalorder %s286, %s288
      %p295 = scmp.eq.s32.totalorder %s37, 1
      %p296 = por %p294, %p295
      %p297 = scmp.ne.s32.totalorder %s288, %s289
      %p298 = scmp.eq.s32.totalorder %s37, 0
      %p299 = por %p297, %p298
      %p300 = scmp.ne.s32.totalorder %s288, %s289
      %p301 = scmp.eq.s32.totalorder %s38, 1
      %p302 = por %p300, %p301
      %p304 = scmp.ne.s32.totalorder %s289, %s303
      %p305 = scmp.eq.s32.totalorder %s38, 0
      %p306 = por %p304, %p305
      %s308 = sadd.s32 %s307, 1
      %p311 = scmp.eq.s32.totalorder %s32, 1
      %p312 = scmp.ne.s32.totalorder %s307, %s309
      %p313 = scmp.eq.s32.totalorder %s32, 0
      %p314 = por %p312, %p313
      %p315 = scmp.ne.s32.totalorder %s307, %s309
      %p316 = scmp.eq.s32.totalorder %s37, 1
      %p317 = por %p315, %p316
      %p318 = scmp.ne.s32.totalorder %s309, %s310
      %p319 = scmp.eq.s32.totalorder %s37, 0
      %p320 = por %p318, %p319
      %p321 = scmp.ne.s32.totalorder %s309, %s310
      %p322 = scmp.eq.s32.totalorder %s38, 1
      %p323 = por %p321, %p322
      %p325 = scmp.ne.s32.totalorder %s310, %s324
      %p326 = scmp.eq.s32.totalorder %s38, 0
      %p327 = por %p325, %p326
      %s328 = ssub.s32 %s39, %s51
      %s329 = ssub.s32 %s40, %s47
      %s330 = sor.u32 %s328, %s329
      %p331 = scmp.eq.s32.totalorder %s330, 0
      %s333 = sadd.s32 %s332, 1
      %s334 = scalar_select %p331, %s332, %s333
      %p337 = pneg %p331
      %p338 = scmp.eq.s32.totalorder %s32, 1
      %p339 = por %p337, %p338
      %p340 = scmp.ne.s32.totalorder %s332, %s335
      %p341 = scmp.eq.s32.totalorder %s32, 0
      %p342 = por %p340, %p341
      %p343 = scmp.ne.s32.totalorder %s332, %s335
      %p344 = scmp.eq.s32.totalorder %s37, 1
      %p345 = por %p343, %p344
      %p346 = scmp.ne.s32.totalorder %s335, %s336
      %p347 = scmp.eq.s32.totalorder %s37, 0
      %p348 = por %p346, %p347
      %p349 = scmp.ne.s32.totalorder %s335, %s336
      %p350 = scmp.eq.s32.totalorder %s38, 1
      %p351 = por %p349, %p350
      %p353 = scmp.ne.s32.totalorder %s336, %s352
      %p354 = scmp.eq.s32.totalorder %s38, 0
      %p355 = por %p353, %p354
      %p356 = scmp.le.s32.totalorder 1, %s32
      %p357 = scmp.lt.s32.totalorder %s32, 3
      %p358 = pnand %p356, %p357
      %p359 = pneg %p358
      // Predicated region
      $region9: #{tpu_custom_call.1} parent=5 // pred_check
        _
      $region10: #{tpu_custom_call.1} parent=5 // pred_check_branch
        %361 = sbr.rel (%p358) target = $region12
      $region11: #{tpu_custom_call.1} parent=5 // pred_region
        %s362 = ssub.s32 %s32, 1
        // Predicated region
        $region13: #{tpu_custom_call.1} parent=11 // pred_check
          %p363 = pneg %p173
        $region14: #{tpu_custom_call.1} parent=11 // pred_check_branch
          %365 = sbr.rel (%p363) target = $region16
        $region15: #{tpu_custom_call.1} parent=11 // pred_region
          %s367 = ssub.s32 2048, 2048
          %368 = vsyncadd [#allocation10], %s367
          %s369 = sshll.u32 [#allocation11], 4
          %s370 = int_to_ptr.vmem [resolvable:$true] %s369
          %375 = dma.hbm_to_vmem [thread:$0]  %s4, 2048, %s370, [#allocation10], 128, 128, 8
        $region16: #{tpu_custom_call.1} parent=11 // pred_fallthru
          _
        // Predicated region
        $region17: #{tpu_custom_call.1} parent=11 // pred_check
          %p376 = pneg %p194
        $region18: #{tpu_custom_call.1} parent=11 // pred_check_branch
          %378 = sbr.rel (%p376) target = $region20
        $region19: #{tpu_custom_call.1} parent=11 // pred_region
          _
        $region20: #{tpu_custom_call.1} parent=11 // pred_fallthru
          _
        // Predicated region
        $region21: #{tpu_custom_call.1} parent=11 // pred_check
          %p379 = pneg %p215
        $region22: #{tpu_custom_call.1} parent=11 // pred_check_branch
          %381 = sbr.rel (%p379) target = $region24
        $region23: #{tpu_custom_call.1} parent=11 // pred_region
          %s383 = ssub.s32 2048, 2048
          %384 = vsyncadd [#allocation13], %s383
          %s385 = sshll.u32 [#allocation12], 4
          %s386 = int_to_ptr.vmem [resolvable:$true] %s385
          %391 = dma.hbm_to_vmem [thread:$0]  %s6, 2048, %s386, [#allocation13], 128, 128, 8
        $region24: #{tpu_custom_call.1} parent=11 // pred_fallthru
          _
        // Predicated region
        $region25: #{tpu_custom_call.1} parent=11 // pred_check
          %p392 = pneg %p236
        $region26: #{tpu_custom_call.1} parent=11 // pred_check_branch
          %394 = sbr.rel (%p392) target = $region28
        $region27: #{tpu_custom_call.1} parent=11 // pred_region
          _
        $region28: #{tpu_custom_call.1} parent=11 // pred_fallthru
          _
        // Predicated region
        $region29: #{tpu_custom_call.1} parent=11 // pred_check
          %p395 = pneg %p257
        $region30: #{tpu_custom_call.1} parent=11 // pred_check_branch
          %397 = sbr.rel (%p395) target = $region32
        $region31: #{tpu_custom_call.1} parent=11 // pred_region
          %s399 = ssub.s32 2048, 2048
          %400 = vsyncadd [#allocation13], %s399
          %s401 = sshll.u32 [#allocation14], 4
          %s402 = int_to_ptr.vmem [resolvable:$true] %s401
          %407 = dma.hbm_to_vmem [thread:$0]  %s8, 2048, %s402, [#allocation13], 128, 128, 8
        $region32: #{tpu_custom_call.1} parent=11 // pred_fallthru
          _
        // Predicated region
        $region33: #{tpu_custom_call.1} parent=11 // pred_check
          %p408 = pneg %p278
        $region34: #{tpu_custom_call.1} parent=11 // pred_check_branch
          %410 = sbr.rel (%p408) target = $region36
        $region35: #{tpu_custom_call.1} parent=11 // pred_region
          _
        $region36: #{tpu_custom_call.1} parent=11 // pred_fallthru
          _
        // Predicated region
        $region37: #{tpu_custom_call.1} parent=11 // pred_check
          %p411 = pneg %p299
        $region38: #{tpu_custom_call.1} parent=11 // pred_check_branch
          %413 = sbr.rel (%p411) target = $region40
        $region39: #{tpu_custom_call.1} parent=11 // pred_region
          %s415 = ssub.s32 2048, 2048
          %416 = vsyncadd [#allocation16], %s415
          %s417 = sshll.u32 [#allocation15], 4
          %s418 = int_to_ptr.vmem [resolvable:$true] %s417
          %423 = dma.hbm_to_vmem [thread:$0]  %s10, 2048, %s418, [#allocation16], 128, 128, 8
        $region40: #{tpu_custom_call.1} parent=11 // pred_fallthru
          _
        // Predicated region
        $region41: #{tpu_custom_call.1} parent=11 // pred_check
          %p424 = pneg %p320
        $region42: #{tpu_custom_call.1} parent=11 // pred_check_branch
          %426 = sbr.rel (%p424) target = $region44
        $region43: #{tpu_custom_call.1} parent=11 // pred_region
          _
        $region44: #{tpu_custom_call.1} parent=11 // pred_fallthru
          _
      $region12: #{tpu_custom_call.1} parent=5 // pred_fallthru
        _
      %p427 = scmp.lt.s32.totalorder %s32, 2
      // Predicated region
      $region45: #{tpu_custom_call.1} parent=5 // pred_check
        %p428 = pneg %p427
      $region46: #{tpu_custom_call.1} parent=5 // pred_check_branch
        %430 = sbr.rel (%p428) target = $region48
      $region47: #{tpu_custom_call.1} parent=5 // pred_region
        // Predicated region
        $region49: #{tpu_custom_call.1} parent=47 // pred_check
          %p431 = pneg %p66
        $region50: #{tpu_custom_call.1} parent=47 // pred_check_branch
          %433 = sbr.rel (%p431) target = $region52
        $region51: #{tpu_custom_call.1} parent=47 // pred_region
          %s434 = sand.u32 %s56, 1
          %s435 = scalar_lea.sflag [#allocation4], %s434
          %s436 = sand.u32 %s56, 1
          %s437 = smul.addr %s436, 256
          %s438 = scalar_lea.vmem [#allocation3], %s437
          %s439 = smul.u32 32, %s40
          %s441 = ssub.s32 4096, 4096
          %442 = vsyncadd %s435, %s441
          %s443 = smul.addr %s39, 32
          %s444 = sadd.s32 %s439, %s443
          %s445 = smul.addr %s444, 128
          %s446 = scalar_lea.hbm %s0, %s445
          %s447 = sshll.u32 %s438, 4
          %s448 = int_to_ptr.vmem [resolvable:$true] %s447
          %453 = dma.hbm_to_vmem [thread:$0]  %s446, 4096, %s448, %s435, 128, 128, 8
        $region52: #{tpu_custom_call.1} parent=47 // pred_fallthru
          _
        // Predicated region
        $region53: #{tpu_custom_call.1} parent=47 // pred_check
          %p454 = pneg %p92
        $region54: #{tpu_custom_call.1} parent=47 // pred_check_branch
          %456 = sbr.rel (%p454) target = $region56
        $region55: #{tpu_custom_call.1} parent=47 // pred_region
          %s457 = sand.u32 %s32, 1
          %s458 = scalar_lea.sflag [#allocation7], %s457
          %s459 = sand.u32 %s82, 1
          %s460 = smul.addr %s459, 256
          %s461 = scalar_lea.vmem [#allocation6], %s460
          %s463 = ssub.s32 4096, 4096
          %464 = vsyncadd %s458, %s463
          %s465 = smul.addr %s39, 32
          %s466 = smul.addr %s465, 128
          %s467 = scalar_lea.hbm %s1, %s466
          %s468 = sshll.u32 %s461, 4
          %s469 = int_to_ptr.vmem [resolvable:$true] %s468
          %474 = dma.hbm_to_vmem [thread:$0]  %s467, 4096, %s469, %s458, 128, 128, 8
        $region56: #{tpu_custom_call.1} parent=47 // pred_fallthru
          _
        // Predicated region
        $region57: #{tpu_custom_call.1} parent=47 // pred_check
          %p475 = pneg %p118
        $region58: #{tpu_custom_call.1} parent=47 // pred_check_branch
          %477 = sbr.rel (%p475) target = $region60
        $region59: #{tpu_custom_call.1} parent=47 // pred_region
          %s478 = sand.u32 %s32, 1
          %s479 = scalar_lea.sflag [#allocation7], %s478
          %s480 = sand.u32 %s108, 1
          %s481 = smul.addr %s480, 256
          %s482 = scalar_lea.vmem [#allocation8], %s481
          %s484 = ssub.s32 4096, 4096
          %485 = vsyncadd %s479, %s484
          %s486 = smul.addr %s39, 32
          %s487 = smul.addr %s486, 128
          %s488 = scalar_lea.hbm %s2, %s487
          %s489 = sshll.u32 %s482, 4
          %s490 = int_to_ptr.vmem [resolvable:$true] %s489
          %495 = dma.hbm_to_vmem [thread:$0]  %s488, 4096, %s490, %s479, 128, 128, 8
        $region60: #{tpu_custom_call.1} parent=47 // pred_fallthru
          _
        // Predicated region
        $region61: #{tpu_custom_call.1} parent=47 // pred_check
          %p496 = pneg %p146
        $region62: #{tpu_custom_call.1} parent=47 // pred_check_branch
          %498 = sbr.rel (%p496) target = $region64
        $region63: #{tpu_custom_call.1} parent=47 // pred_region
          %s499 = sand.u32 %s32, 1
          %s500 = scalar_lea.sflag [#allocation10], %s499
          %s501 = sand.u32 %s136, 1
          %s502 = smul.addr %s501, 256
          %s503 = scalar_lea.vmem [#allocation9], %s502
          %s504 = smul.u32 32, %s40
          %s506 = ssub.s32 4096, 4096
          %507 = vsyncadd %s500, %s506
          %s508 = smul.addr %s504, 2
          %s509 = smul.addr %s39, 64
          %s510 = sadd.s32 %s508, %s509
          %s511 = smul.addr %s510, 64
          %s512 = scalar_lea.hbm %s3, %s511
          %s513 = sshll.u32 %s503, 4
          %s514 = int_to_ptr.vmem [resolvable:$true] %s513
          %519 = dma.hbm_to_vmem [thread:$0]  %s512, 4096, %s514, %s500, 128, 128, 8
        $region64: #{tpu_custom_call.1} parent=47 // pred_fallthru
          _
      $region48: #{tpu_custom_call.1} parent=5 // pred_fallthru
        _
      %p520 = scmp.le.s32.totalorder 1, %s32
      %p521 = scmp.lt.s32.totalorder %s32, 3
      %p522 = pnand %p520, %p521
      %p523 = pneg %p522
      // Predicated region
      $region65: #{tpu_custom_call.1} parent=5 // pred_check
        _
      $region66: #{tpu_custom_call.1} parent=5 // pred_check_branch
        %525 = sbr.rel (%p522) target = $region68
      $region67: #{tpu_custom_call.1} parent=5 // pred_region
        %s526 = ssub.s32 %s32, 1
        %s527 = sand.u32 %s59, 1
        %s528 = scalar_lea.sflag [#allocation4], %s527
        %s529 = sand.u32 %s59, 1
        %s530 = smul.addr %s529, 256
        %s531 = scalar_lea.vmem [#allocation3], %s530
        // Predicated region
        $region69: #{tpu_custom_call.1} parent=67 // pred_check
          %p532 = pneg %p72
        $region70: #{tpu_custom_call.1} parent=67 // pred_check_branch
          %534 = sbr.rel (%p532) target = $region72
        $region71: #{tpu_custom_call.1} parent=67 // pred_region
          %535 = dma.done %s528, 4096
        $region72: #{tpu_custom_call.1} parent=67 // pred_fallthru
          _
        %s536 = sand.u32 %s37, 1
        %s537 = scalar_lea.sflag [#allocation7], %s536
        %s538 = sand.u32 %s85, 1
        %s539 = smul.addr %s538, 256
        %s540 = scalar_lea.vmem [#allocation6], %s539
        // Predicated region
        $region73: #{tpu_custom_call.1} parent=67 // pred_check
          %p541 = pneg %p98
        $region74: #{tpu_custom_call.1} parent=67 // pred_check_branch
          %543 = sbr.rel (%p541) target = $region76
        $region75: #{tpu_custom_call.1} parent=67 // pred_region
          %544 = dma.done %s537, 4096
        $region76: #{tpu_custom_call.1} parent=67 // pred_fallthru
          _
        %s545 = sand.u32 %s37, 1
        %s546 = scalar_lea.sflag [#allocation7], %s545
        %s547 = sand.u32 %s111, 1
        %s548 = smul.addr %s547, 256
        %s549 = scalar_lea.vmem [#allocation8], %s548
        // Predicated region
        $region77: #{tpu_custom_call.1} parent=67 // pred_check
          %p550 = pneg %p124
        $region78: #{tpu_custom_call.1} parent=67 // pred_check_branch
          %552 = sbr.rel (%p550) target = $region80
        $region79: #{tpu_custom_call.1} parent=67 // pred_region
          %553 = dma.done %s546, 4096
        $region80: #{tpu_custom_call.1} parent=67 // pred_fallthru
          _
        %s554 = sand.u32 %s37, 1
        %s555 = scalar_lea.sflag [#allocation10], %s554
        %s556 = sand.u32 %s139, 1
        %s557 = smul.addr %s556, 256
        %s558 = scalar_lea.vmem [#allocation9], %s557
        // Predicated region
        $region81: #{tpu_custom_call.1} parent=67 // pred_check
          %p559 = pneg %p152
        $region82: #{tpu_custom_call.1} parent=67 // pred_check_branch
          %561 = sbr.rel (%p559) target = $region84
        $region83: #{tpu_custom_call.1} parent=67 // pred_region
          %562 = dma.done %s555, 4096
        $region84: #{tpu_custom_call.1} parent=67 // pred_fallthru
          _
        // Predicated region
        $region85: #{tpu_custom_call.1} parent=67 // pred_check
          %p563 = pneg %p173
        $region86: #{tpu_custom_call.1} parent=67 // pred_check_branch
          %565 = sbr.rel (%p563) target = $region88
        $region87: #{tpu_custom_call.1} parent=67 // pred_region
          %566 = dma.done [#allocation10], 2048
        $region88: #{tpu_custom_call.1} parent=67 // pred_fallthru
          _
        // Predicated region
        $region89: #{tpu_custom_call.1} parent=67 // pred_check
          %p567 = pneg %p215
        $region90: #{tpu_custom_call.1} parent=67 // pred_check_branch
          %569 = sbr.rel (%p567) target = $region92
        $region91: #{tpu_custom_call.1} parent=67 // pred_region
          %570 = dma.done [#allocation13], 2048
        $region92: #{tpu_custom_call.1} parent=67 // pred_fallthru
          _
        // Predicated region
        $region93: #{tpu_custom_call.1} parent=67 // pred_check
          %p571 = pneg %p257
        $region94: #{tpu_custom_call.1} parent=67 // pred_check_branch
          %573 = sbr.rel (%p571) target = $region96
        $region95: #{tpu_custom_call.1} parent=67 // pred_region
          %574 = dma.done [#allocation13], 2048
        $region96: #{tpu_custom_call.1} parent=67 // pred_fallthru
          _
        // Predicated region
        $region97: #{tpu_custom_call.1} parent=67 // pred_check
          %p575 = pneg %p299
        $region98: #{tpu_custom_call.1} parent=67 // pred_check_branch
          %577 = sbr.rel (%p575) target = $region100
        $region99: #{tpu_custom_call.1} parent=67 // pred_region
          %578 = dma.done [#allocation16], 2048
        $region100: #{tpu_custom_call.1} parent=67 // pred_fallthru
          _
        %s579 = sand.u32 %s59, 1
        %s580 = scalar_lea.sflag [#allocation4], %s579
        %s581 = sand.u32 %s59, 1
        %s582 = smul.addr %s581, 256
        %s583 = scalar_lea.vmem [#allocation3], %s582
        %p584 = pneg %p72
        %p585 = pneg %p69
        %s586 = sand.u32 %s37, 1
        %s587 = scalar_lea.sflag [#allocation7], %s586
        %s588 = sand.u32 %s85, 1
        %s589 = smul.addr %s588, 256
        %s590 = scalar_lea.vmem [#allocation6], %s589
        %p591 = pneg %p98
        %p592 = pneg %p95
        %s593 = sand.u32 %s37, 1
        %s594 = scalar_lea.sflag [#allocation7], %s593
        %s595 = sand.u32 %s111, 1
        %s596 = smul.addr %s595, 256
        %s597 = scalar_lea.vmem [#allocation8], %s596
        %p598 = pneg %p124
        %p599 = pneg %p121
        %s600 = sand.u32 %s37, 1
        %s601 = scalar_lea.sflag [#allocation10], %s600
        %s602 = sand.u32 %s139, 1
        %s603 = smul.addr %s602, 256
        %s604 = scalar_lea.vmem [#allocation9], %s603
        %p605 = pneg %p152
        %p606 = pneg %p149
        %p607 = pneg %p173
        %p608 = pneg %p170
        %p609 = pneg %p194
        %p610 = pneg %p191
        %p611 = pneg %p215
        %p612 = pneg %p212
        %p613 = pneg %p236
        %p614 = pneg %p233
        %p615 = pneg %p257
        %p616 = pneg %p254
        %p617 = pneg %p278
        %p618 = pneg %p275
        %p619 = pneg %p299
        %p620 = pneg %p296
        %p621 = pneg %p320
        %p622 = pneg %p317
        %p623 = pneg %p348
        %p624 = pneg %p345
        %s625 = sand.u32 %s335, 1
        %s626 = scalar_lea.sflag [#allocation5], %s625
        %s627 = sand.u32 %s335, 1
        %s628 = smul.addr %s627, 256
        %s629 = scalar_lea.vmem [#allocation17], %s628
        %s630 = smul.u32 32, %s42
        %s631 = smul.u32 32, %s42
        %s632 = smul.u32 32, %s42
        %v633 = vld [vmem:[%s531] sm:$0xff]
        %v634 = vld [vmem:[%s531 + $0x8] sm:$0xff]
        %v635 = vld [vmem:[%s531 + $0x10] sm:$0xff]
        %v636 = vld [vmem:[%s531 + $0x18] sm:$0xff]
        %v637 = vld [vmem:[%s531 + $0x20] sm:$0xff]
        %v638 = vld [vmem:[%s531 + $0x28] sm:$0xff]
        %v639 = vld [vmem:[%s531 + $0x30] sm:$0xff]
        %v640 = vld [vmem:[%s531 + $0x38] sm:$0xff]
        %v641 = vld [vmem:[%s531 + $0x40] sm:$0xff]
        %v642 = vld [vmem:[%s531 + $0x48] sm:$0xff]
        %v643 = vld [vmem:[%s531 + $0x50] sm:$0xff]
        %v644 = vld [vmem:[%s531 + $0x58] sm:$0xff]
        %v645 = vld [vmem:[%s531 + $0x60] sm:$0xff]
        %v646 = vld [vmem:[%s531 + $0x68] sm:$0xff]
        %v647 = vld [vmem:[%s531 + $0x70] sm:$0xff]
        %v648 = vld [vmem:[%s531 + $0x78] sm:$0xff]
        %v649 = vld [vmem:[%s531 + $0x80] sm:$0xff]
        %v650 = vld [vmem:[%s531 + $0x88] sm:$0xff]
        %v651 = vld [vmem:[%s531 + $0x90] sm:$0xff]
        %v652 = vld [vmem:[%s531 + $0x98] sm:$0xff]
        %v653 = vld [vmem:[%s531 + $0xa0] sm:$0xff]
        %v654 = vld [vmem:[%s531 + $0xa8] sm:$0xff]
        %v655 = vld [vmem:[%s531 + $0xb0] sm:$0xff]
        %v656 = vld [vmem:[%s531 + $0xb8] sm:$0xff]
        %v657 = vld [vmem:[%s531 + $0xc0] sm:$0xff]
        %v658 = vld [vmem:[%s531 + $0xc8] sm:$0xff]
        %v659 = vld [vmem:[%s531 + $0xd0] sm:$0xff]
        %v660 = vld [vmem:[%s531 + $0xd8] sm:$0xff]
        %v661 = vld [vmem:[%s531 + $0xe0] sm:$0xff]
        %v662 = vld [vmem:[%s531 + $0xe8] sm:$0xff]
        %v663 = vld [vmem:[%s531 + $0xf0] sm:$0xff]
        %v664 = vld [vmem:[%s531 + $0xf8] sm:$0xff]
        %v665 = vld [vmem:[%s540] sm:$0xff]
        %v666 = vld [vmem:[%s540 + $0x8] sm:$0xff]
        %v667 = vld [vmem:[%s540 + $0x10] sm:$0xff]
        %v668 = vld [vmem:[%s540 + $0x18] sm:$0xff]
        %v669 = vld [vmem:[%s540 + $0x20] sm:$0xff]
        %v670 = vld [vmem:[%s540 + $0x28] sm:$0xff]
        %v671 = vld [vmem:[%s540 + $0x30] sm:$0xff]
        %v672 = vld [vmem:[%s540 + $0x38] sm:$0xff]
        %v673 = vld [vmem:[%s540 + $0x40] sm:$0xff]
        %v674 = vld [vmem:[%s540 + $0x48] sm:$0xff]
        %v675 = vld [vmem:[%s540 + $0x50] sm:$0xff]
        %v676 = vld [vmem:[%s540 + $0x58] sm:$0xff]
        %v677 = vld [vmem:[%s540 + $0x60] sm:$0xff]
        %v678 = vld [vmem:[%s540 + $0x68] sm:$0xff]
        %v679 = vld [vmem:[%s540 + $0x70] sm:$0xff]
        %v680 = vld [vmem:[%s540 + $0x78] sm:$0xff]
        %v681 = vld [vmem:[%s540 + $0x80] sm:$0xff]
        %v682 = vld [vmem:[%s540 + $0x88] sm:$0xff]
        %v683 = vld [vmem:[%s540 + $0x90] sm:$0xff]
        %v684 = vld [vmem:[%s540 + $0x98] sm:$0xff]
        %v685 = vld [vmem:[%s540 + $0xa0] sm:$0xff]
        %v686 = vld [vmem:[%s540 + $0xa8] sm:$0xff]
        %v687 = vld [vmem:[%s540 + $0xb0] sm:$0xff]
        %v688 = vld [vmem:[%s540 + $0xb8] sm:$0xff]
        %v689 = vld [vmem:[%s540 + $0xc0] sm:$0xff]
        %v690 = vld [vmem:[%s540 + $0xc8] sm:$0xff]
        %v691 = vld [vmem:[%s540 + $0xd0] sm:$0xff]
        %v692 = vld [vmem:[%s540 + $0xd8] sm:$0xff]
        %v693 = vld [vmem:[%s540 + $0xe0] sm:$0xff]
        %v694 = vld [vmem:[%s540 + $0xe8] sm:$0xff]
        %v695 = vld [vmem:[%s540 + $0xf0] sm:$0xff]
        %v696 = vld [vmem:[%s540 + $0xf8] sm:$0xff]
        %v697 = vld [vmem:[%s549] sm:$0xff]
        %v698 = vld [vmem:[%s549 + $0x8] sm:$0xff]
        %v699 = vld [vmem:[%s549 + $0x10] sm:$0xff]
        %v700 = vld [vmem:[%s549 + $0x18] sm:$0xff]
        %v701 = vld [vmem:[%s549 + $0x20] sm:$0xff]
        %v702 = vld [vmem:[%s549 + $0x28] sm:$0xff]
        %v703 = vld [vmem:[%s549 + $0x30] sm:$0xff]
        %v704 = vld [vmem:[%s549 + $0x38] sm:$0xff]
        %v705 = vld [vmem:[%s549 + $0x40] sm:$0xff]
        %v706 = vld [vmem:[%s549 + $0x48] sm:$0xff]
        %v707 = vld [vmem:[%s549 + $0x50] sm:$0xff]
        %v708 = vld [vmem:[%s549 + $0x58] sm:$0xff]
        %v709 = vld [vmem:[%s549 + $0x60] sm:$0xff]
        %v710 = vld [vmem:[%s549 + $0x68] sm:$0xff]
        %v711 = vld [vmem:[%s549 + $0x70] sm:$0xff]
        %v712 = vld [vmem:[%s549 + $0x78] sm:$0xff]
        %v713 = vld [vmem:[%s549 + $0x80] sm:$0xff]
        %v714 = vld [vmem:[%s549 + $0x88] sm:$0xff]
        %v715 = vld [vmem:[%s549 + $0x90] sm:$0xff]
        %v716 = vld [vmem:[%s549 + $0x98] sm:$0xff]
        %v717 = vld [vmem:[%s549 + $0xa0] sm:$0xff]
        %v718 = vld [vmem:[%s549 + $0xa8] sm:$0xff]
        %v719 = vld [vmem:[%s549 + $0xb0] sm:$0xff]
        %v720 = vld [vmem:[%s549 + $0xb8] sm:$0xff]
        %v721 = vld [vmem:[%s549 + $0xc0] sm:$0xff]
        %v722 = vld [vmem:[%s549 + $0xc8] sm:$0xff]
        %v723 = vld [vmem:[%s549 + $0xd0] sm:$0xff]
        %v724 = vld [vmem:[%s549 + $0xd8] sm:$0xff]
        %v725 = vld [vmem:[%s549 + $0xe0] sm:$0xff]
        %v726 = vld [vmem:[%s549 + $0xe8] sm:$0xff]
        %v727 = vld [vmem:[%s549 + $0xf0] sm:$0xff]
        %v728 = vld [vmem:[%s549 + $0xf8] sm:$0xff]
        %v729 = vld [vmem:[%s558] sm:$0xff]
        %v730 = vld [vmem:[%s558 + $0x8] sm:$0xff]
        %v731 = vld [vmem:[%s558 + $0x10] sm:$0xff]
        %v732 = vld [vmem:[%s558 + $0x18] sm:$0xff]
        %v733 = vld [vmem:[%s558 + $0x20] sm:$0xff]
        %v734 = vld [vmem:[%s558 + $0x28] sm:$0xff]
        %v735 = vld [vmem:[%s558 + $0x30] sm:$0xff]
        %v736 = vld [vmem:[%s558 + $0x38] sm:$0xff]
        %v737 = vld [vmem:[%s558 + $0x40] sm:$0xff]
        %v738 = vld [vmem:[%s558 + $0x48] sm:$0xff]
        %v739 = vld [vmem:[%s558 + $0x50] sm:$0xff]
        %v740 = vld [vmem:[%s558 + $0x58] sm:$0xff]
        %v741 = vld [vmem:[%s558 + $0x60] sm:$0xff]
        %v742 = vld [vmem:[%s558 + $0x68] sm:$0xff]
        %v743 = vld [vmem:[%s558 + $0x70] sm:$0xff]
        %v744 = vld [vmem:[%s558 + $0x78] sm:$0xff]
        %v745 = vld [vmem:[%s558 + $0x80] sm:$0xff]
        %v746 = vld [vmem:[%s558 + $0x88] sm:$0xff]
        %v747 = vld [vmem:[%s558 + $0x90] sm:$0xff]
        %v748 = vld [vmem:[%s558 + $0x98] sm:$0xff]
        %v749 = vld [vmem:[%s558 + $0xa0] sm:$0xff]
        %v750 = vld [vmem:[%s558 + $0xa8] sm:$0xff]
        %v751 = vld [vmem:[%s558 + $0xb0] sm:$0xff]
        %v752 = vld [vmem:[%s558 + $0xb8] sm:$0xff]
        %v753 = vld [vmem:[%s558 + $0xc0] sm:$0xff]
        %v754 = vld [vmem:[%s558 + $0xc8] sm:$0xff]
        %v755 = vld [vmem:[%s558 + $0xd0] sm:$0xff]
        %v756 = vld [vmem:[%s558 + $0xd8] sm:$0xff]
        %v757 = vld [vmem:[%s558 + $0xe0] sm:$0xff]
        %v758 = vld [vmem:[%s558 + $0xe8] sm:$0xff]
        %v759 = vld [vmem:[%s558 + $0xf0] sm:$0xff]
        %v760 = vld [vmem:[%s558 + $0xf8] sm:$0xff]
        %v761 = vld [vmem:[#allocation11] sm:$0xff]
        %v762 = vld [vmem:[#allocation11 + $0x8] sm:$0xff]
        %v763 = vld [vmem:[#allocation11 + $0x10] sm:$0xff]
        %v764 = vld [vmem:[#allocation11 + $0x18] sm:$0xff]
        %v765 = vld [vmem:[#allocation11 + $0x20] sm:$0xff]
        %v766 = vld [vmem:[#allocation11 + $0x28] sm:$0xff]
        %v767 = vld [vmem:[#allocation11 + $0x30] sm:$0xff]
        %v768 = vld [vmem:[#allocation11 + $0x38] sm:$0xff]
        %v769 = vld [vmem:[#allocation11 + $0x40] sm:$0xff]
        %v770 = vld [vmem:[#allocation11 + $0x48] sm:$0xff]
        %v771 = vld [vmem:[#allocation11 + $0x50] sm:$0xff]
        %v772 = vld [vmem:[#allocation11 + $0x58] sm:$0xff]
        %v773 = vld [vmem:[#allocation11 + $0x60] sm:$0xff]
        %v774 = vld [vmem:[#allocation11 + $0x68] sm:$0xff]
        %v775 = vld [vmem:[#allocation11 + $0x70] sm:$0xff]
        %v776 = vld [vmem:[#allocation11 + $0x78] sm:$0xff]
        %v777 = vld [vmem:[%s5] sm:$0x1]
        %v779 = vlaneseq
        %v780 = vshrl.u32 %v779, 7
        %v781 = vsub.s32 0, %v780
        %v782 = vrot.slane %v777, %v781
        %784 = vmatprep.subr.mxu0 0.0
        %785 = vmatpush1.msra.mxu0 %v761
        %786 = vmatprep.subr.mxu0 0.0
        %787 = vmatpush1.msra.mxu0 %v762
        %788 = vmatprep.subr.mxu0 0.0
        %789 = vmatpush1.msra.mxu0 %v763
        %790 = vmatprep.subr.mxu0 0.0
        %791 = vmatpush1.msra.mxu0 %v764
        %792 = vmatprep.subr.mxu0 0.0
        %793 = vmatpush1.msra.mxu0 %v765
        %794 = vmatprep.subr.mxu0 0.0
        %795 = vmatpush1.msra.mxu0 %v766
        %796 = vmatprep.subr.mxu0 0.0
        %797 = vmatpush1.msra.mxu0 %v767
        %798 = vmatprep.subr.mxu0 0.0
        %799 = vmatpush1.msra.mxu0 %v768
        %800 = vmatprep.subr.mxu0 0.0
        %801 = vmatpush1.msra.mxu0 %v769
        %802 = vmatprep.subr.mxu0 0.0
        %803 = vmatpush1.msra.mxu0 %v770
        %804 = vmatprep.subr.mxu0 0.0
        %805 = vmatpush1.msra.mxu0 %v771
        %806 = vmatprep.subr.mxu0 0.0
        %807 = vmatpush1.msra.mxu0 %v772
        %808 = vmatprep.subr.mxu0 0.0
        %809 = vmatpush1.msra.mxu0 %v773
        %810 = vmatprep.subr.mxu0 0.0
        %811 = vmatpush1.msra.mxu0 %v774
        %812 = vmatprep.subr.mxu0 0.0
        %813 = vmatpush1.msra.mxu0 %v775
        %814 = vmatprep.subr.mxu0 0.0
        %815 = vmatpush1.msra.mxu0 %v776
        %816 = vmatprep.subr.mxu0 0.0
        %817 = vmatpush1.msra.mxu0 0.0
        %818 = vmatprep.subr.mxu0 0.0
        %819 = vmatpush1.msra.mxu0 0.0
        %820 = vmatprep.subr.mxu0 0.0
        %821 = vmatpush1.msra.mxu0 0.0
        %822 = vmatprep.subr.mxu0 0.0
        %823 = vmatpush1.msra.mxu0 0.0
        %824 = vmatprep.subr.mxu0 0.0
        %825 = vmatpush1.msra.mxu0 0.0
        %826 = vmatprep.subr.mxu0 0.0
        %827 = vmatpush1.msra.mxu0 0.0
        %828 = vmatprep.subr.mxu0 0.0
        %829 = vmatpush1.msra.mxu0 0.0
        %830 = vmatprep.subr.mxu0 0.0
        %831 = vmatpush1.msra.mxu0 0.0
        %832 = vmatprep.subr.mxu0 0.0
        %833 = vmatpush1.msra.mxu0 0.0
        %834 = vmatprep.subr.mxu0 0.0
        %835 = vmatpush1.msra.mxu0 0.0
        %836 = vmatprep.subr.mxu0 0.0
        %837 = vmatpush1.msra.mxu0 0.0
        %838 = vmatprep.subr.mxu0 0.0
        %839 = vmatpush1.msra.mxu0 0.0
        %840 = vmatprep.subr.mxu0 0.0
        %841 = vmatpush1.msra.mxu0 0.0
        %842 = vmatprep.subr.mxu0 0.0
        %843 = vmatpush1.msra.mxu0 0.0
        %844 = vmatprep.subr.mxu0 0.0
        %845 = vmatpush1.msra.mxu0 0.0
        %846 = vmatprep.subr.mxu0 0.0
        %847 = vmatpush1.msra.mxu0 0.0
        %848 = vmatprep.mubr.f32.mxu0 0.0
        %849 = vmatmul.mubr.f32.gmra.mrb[0].mxu0 %v633
        %v850 = vpop.f32.mrb[0].mxu0
        %v851 = vadd.f32 %v782, %v850
        %v852 = vpop.f32.mrb[0].mxu0
        %853 = vmatprep.mubr.f32.mxu0 0.0
        %854 = vmatmul.mubr.f32.gmra.mrb[0].mxu0 %v634
        %v855 = vpop.f32.mrb[0].mxu0
        %v856 = vadd.f32 %v782, %v855
        %v857 = vpop.f32.mrb[0].mxu0
        %858 = vmatprep.mubr.f32.mxu0 0.0
        %859 = vmatmul.mubr.f32.gmra.mrb[0].mxu0 %v635
        %v860 = vpop.f32.mrb[0].mxu0
        %v861 = vadd.f32 %v782, %v860
        %v862 = vpop.f32.mrb[0].mxu0
        %863 = vmatprep.mubr.f32.mxu0 0.0
        %864 = vmatmul.mubr.f32.gmra.mrb[0].mxu0 %v636
        %v865 = vpop.f32.mrb[0].mxu0
        %v866 = vadd.f32 %v782, %v865
        %v867 = vpop.f32.mrb[0].mxu0
        %868 = vmatprep.mubr.f32.mxu0 0.0
        %869 = vmatmul.mubr.f32.gmra.mrb[0].mxu0 %v637
        %v870 = vpop.f32.mrb[0].mxu0
        %v871 = vadd.f32 %v782, %v870
        %v872 = vpop.f32.mrb[0].mxu0
        %873 = vmatprep.mubr.f32.mxu0 0.0
        %874 = vmatmul.mubr.f32.gmra.mrb[0].mxu0 %v638
        %v875 = vpop.f32.mrb[0].mxu0
        %v876 = vadd.f32 %v782, %v875
        %v877 = vpop.f32.mrb[0].mxu0
        %878 = vmatprep.mubr.f32.mxu0 0.0
        %879 = vmatmul.mubr.f32.gmra.mrb[0].mxu0 %v639
        %v880 = vpop.f32.mrb[0].mxu0
        %v881 = vadd.f32 %v782, %v880
        %v882 = vpop.f32.mrb[0].mxu0
        %883 = vmatprep.mubr.f32.mxu0 0.0
        %884 = vmatmul.mubr.f32.gmra.mrb[0].mxu0 %v640
        %v885 = vpop.f32.mrb[0].mxu0
        %v886 = vadd.f32 %v782, %v885
        %v887 = vpop.f32.mrb[0].mxu0
        %888 = vmatprep.mubr.f32.mxu0 0.0
        %889 = vmatmul.mubr.f32.gmra.mrb[0].mxu0 %v641
        %v890 = vpop.f32.mrb[0].mxu0
        %v891 = vadd.f32 %v782, %v890
        %v892 = vpop.f32.mrb[0].mxu0
        %893 = vmatprep.mubr.f32.mxu0 0.0
        %894 = vmatmul.mubr.f32.gmra.mrb[0].mxu0 %v642
        %v895 = vpop.f32.mrb[0].mxu0
        %v896 = vadd.f32 %v782, %v895
        %v897 = vpop.f32.mrb[0].mxu0
        %898 = vmatprep.mubr.f32.mxu0 0.0
        %899 = vmatmul.mubr.f32.gmra.mrb[0].mxu0 %v643
        %v900 = vpop.f32.mrb[0].mxu0
        %v901 = vadd.f32 %v782, %v900
        %v902 = vpop.f32.mrb[0].mxu0
        %903 = vmatprep.mubr.f32.mxu0 0.0
        %904 = vmatmul.mubr.f32.gmra.mrb[0].mxu0 %v644
        %v905 = vpop.f32.mrb[0].mxu0
        %v906 = vadd.f32 %v782, %v905
        %v907 = vpop.f32.mrb[0].mxu0
        %908 = vmatprep.mubr.f32.mxu0 0.0
        %909 = vmatmul.mubr.f32.gmra.mrb[0].mxu0 %v645
        %v910 = vpop.f32.mrb[0].mxu0
        %v911 = vadd.f32 %v782, %v910
        %v912 = vpop.f32.mrb[0].mxu0
        %913 = vmatprep.mubr.f32.mxu0 0.0
        %914 = vmatmul.mubr.f32.gmra.mrb[0].mxu0 %v646
        %v915 = vpop.f32.mrb[0].mxu0
        %v916 = vadd.f32 %v782, %v915
        %v917 = vpop.f32.mrb[0].mxu0
        %918 = vmatprep.mubr.f32.mxu0 0.0
        %919 = vmatmul.mubr.f32.gmra.mrb[0].mxu0 %v647
        %v920 = vpop.f32.mrb[0].mxu0
        %v921 = vadd.f32 %v782, %v920
        %v922 = vpop.f32.mrb[0].mxu0
        %923 = vmatprep.mubr.f32.mxu0 0.0
        %924 = vmatmul.mubr.f32.gmra.mrb[0].mxu0 %v648
        %v925 = vpop.f32.mrb[0].mxu0
        %v926 = vadd.f32 %v782, %v925
        %v927 = vpop.f32.mrb[0].mxu0
        %928 = vmatprep.mubr.f32.mxu0 0.0
        %929 = vmatmul.mubr.f32.gmra.mrb[0].mxu0 %v649
        %v930 = vpop.f32.mrb[0].mxu0
        %v931 = vadd.f32 %v782, %v930
        %v932 = vpop.f32.mrb[0].mxu0
        %933 = vmatprep.mubr.f32.mxu0 0.0
        %934 = vmatmul.mubr.f32.gmra.mrb[0].mxu0 %v650
        %v935 = vpop.f32.mrb[0].mxu0
        %v936 = vadd.f32 %v782, %v935
        %v937 = vpop.f32.mrb[0].mxu0
        %938 = vmatprep.mubr.f32.mxu0 0.0
        %939 = vmatmul.mubr.f32.gmra.mrb[0].mxu0 %v651
        %v940 = vpop.f32.mrb[0].mxu0
        %v941 = vadd.f32 %v782, %v940
        %v942 = vpop.f32.mrb[0].mxu0
        %943 = vmatprep.mubr.f32.mxu0 0.0
        %944 = vmatmul.mubr.f32.gmra.mrb[0].mxu0 %v652
        %v945 = vpop.f32.mrb[0].mxu0
        %v946 = vadd.f32 %v782, %v945
        %v947 = vpop.f32.mrb[0].mxu0
        %948 = vmatprep.mubr.f32.mxu0 0.0
        %949 = vmatmul.mubr.f32.gmra.mrb[0].mxu0 %v653
        %v950 = vpop.f32.mrb[0].mxu0
        %v951 = vadd.f32 %v782, %v950
        %v952 = vpop.f32.mrb[0].mxu0
        %953 = vmatprep.mubr.f32.mxu0 0.0
        %954 = vmatmul.mubr.f32.gmra.mrb[0].mxu0 %v654
        %v955 = vpop.f32.mrb[0].mxu0
        %v956 = vadd.f32 %v782, %v955
        %v957 = vpop.f32.mrb[0].mxu0
        %958 = vmatprep.mubr.f32.mxu0 0.0
        %959 = vmatmul.mubr.f32.gmra.mrb[0].mxu0 %v655
        %v960 = vpop.f32.mrb[0].mxu0
        %v961 = vadd.f32 %v782, %v960
        %v962 = vpop.f32.mrb[0].mxu0
        %963 = vmatprep.mubr.f32.mxu0 0.0
        %964 = vmatmul.mubr.f32.gmra.mrb[0].mxu0 %v656
        %v965 = vpop.f32.mrb[0].mxu0
        %v966 = vadd.f32 %v782, %v965
        %v967 = vpop.f32.mrb[0].mxu0
        %968 = vmatprep.mubr.f32.mxu0 0.0
        %969 = vmatmul.mubr.f32.gmra.mrb[0].mxu0 %v657
        %v970 = vpop.f32.mrb[0].mxu0
        %v971 = vadd.f32 %v782, %v970
        %v972 = vpop.f32.mrb[0].mxu0
        %973 = vmatprep.mubr.f32.mxu0 0.0
        %974 = vmatmul.mubr.f32.gmra.mrb[0].mxu0 %v658
        %v975 = vpop.f32.mrb[0].mxu0
        %v976 = vadd.f32 %v782, %v975
        %v977 = vpop.f32.mrb[0].mxu0
        %978 = vmatprep.mubr.f32.mxu0 0.0
        %979 = vmatmul.mubr.f32.gmra.mrb[0].mxu0 %v659
        %v980 = vpop.f32.mrb[0].mxu0
        %v981 = vadd.f32 %v782, %v980
        %v982 = vpop.f32.mrb[0].mxu0
        %983 = vmatprep.mubr.f32.mxu0 0.0
        %984 = vmatmul.mubr.f32.gmra.mrb[0].mxu0 %v660
        %v985 = vpop.f32.mrb[0].mxu0
        %v986 = vadd.f32 %v782, %v985
        %v987 = vpop.f32.mrb[0].mxu0
        %988 = vmatprep.mubr.f32.mxu0 0.0
        %989 = vmatmul.mubr.f32.gmra.mrb[0].mxu0 %v661
        %v990 = vpop.f32.mrb[0].mxu0
        %v991 = vadd.f32 %v782, %v990
        %v992 = vpop.f32.mrb[0].mxu0
        %993 = vmatprep.mubr.f32.mxu0 0.0
        %994 = vmatmul.mubr.f32.gmra.mrb[0].mxu0 %v662
        %v995 = vpop.f32.mrb[0].mxu0
        %v996 = vadd.f32 %v782, %v995
        %v997 = vpop.f32.mrb[0].mxu0
        %998 = vmatprep.mubr.f32.mxu0 0.0
        %999 = vmatmul.mubr.f32.gmra.mrb[0].mxu0 %v663
        %v1000 = vpop.f32.mrb[0].mxu0
        %v1001 = vadd.f32 %v782, %v1000
        %v1002 = vpop.f32.mrb[0].mxu0
        %1003 = vmatprep.mubr.f32.mxu0 0.0
        %1004 = vmatmul.mubr.f32.gmra.mrb[0].mxu0 %v664
        %v1005 = vpop.f32.mrb[0].mxu0
        %v1006 = vadd.f32 %v782, %v1005
        %v1007 = vpop.f32.mrb[0].mxu0
        %1008 = vdwg.mxu0
        %v1009 = vld [vmem:[#allocation12] sm:$0xff]
        %v1010 = vld [vmem:[#allocation12 + $0x8] sm:$0xff]
        %v1011 = vld [vmem:[#allocation12 + $0x10] sm:$0xff]
        %v1012 = vld [vmem:[#allocation12 + $0x18] sm:$0xff]
        %v1013 = vld [vmem:[#allocation12 + $0x20] sm:$0xff]
        %v1014 = vld [vmem:[#allocation12 + $0x28] sm:$0xff]
        %v1015 = vld [vmem:[#allocation12 + $0x30] sm:$0xff]
        %v1016 = vld [vmem:[#allocation12 + $0x38] sm:$0xff]
        %v1017 = vld [vmem:[#allocation12 + $0x40] sm:$0xff]
        %v1018 = vld [vmem:[#allocation12 + $0x48] sm:$0xff]
        %v1019 = vld [vmem:[#allocation12 + $0x50] sm:$0xff]
        %v1020 = vld [vmem:[#allocation12 + $0x58] sm:$0xff]
        %v1021 = vld [vmem:[#allocation12 + $0x60] sm:$0xff]
        %v1022 = vld [vmem:[#allocation12 + $0x68] sm:$0xff]
        %v1023 = vld [vmem:[#allocation12 + $0x70] sm:$0xff]
        %v1024 = vld [vmem:[#allocation12 + $0x78] sm:$0xff]
        %v1025 = vld [vmem:[%s7] sm:$0x1]
        %v1027 = vlaneseq
        %v1028 = vshrl.u32 %v1027, 7
        %v1029 = vsub.s32 0, %v1028
        %v1030 = vrot.slane %v1025, %v1029
        %1032 = vmatprep.subr.mxu0 0.0
        %1033 = vmatpush1.msra.mxu0 %v1009
        %1034 = vmatprep.subr.mxu0 0.0
        %1035 = vmatpush1.msra.mxu0 %v1010
        %1036 = vmatprep.subr.mxu0 0.0
        %1037 = vmatpush1.msra.mxu0 %v1011
        %1038 = vmatprep.subr.mxu0 0.0
        %1039 = vmatpush1.msra.mxu0 %v1012
        %1040 = vmatprep.subr.mxu0 0.0
        %1041 = vmatpush1.msra.mxu0 %v1013
        %1042 = vmatprep.subr.mxu0 0.0
        %1043 = vmatpush1.msra.mxu0 %v1014
        %1044 = vmatprep.subr.mxu0 0.0
        %1045 = vmatpush1.msra.mxu0 %v1015
        %1046 = vmatprep.subr.mxu0 0.0
        %1047 = vmatpush1.msra.mxu0 %v1016
        %1048 = vmatprep.subr.mxu0 0.0
        %1049 = vmatpush1.msra.mxu0 %v1017
        %1050 = vmatprep.subr.mxu0 0.0
        %1051 = vmatpush1.msra.mxu0 %v1018
        %1052 = vmatprep.subr.mxu0 0.0
        %1053 = vmatpush1.msra.mxu0 %v1019
        %1054 = vmatprep.subr.mxu0 0.0
        %1055 = vmatpush1.msra.mxu0 %v1020
        %1056 = vmatprep.subr.mxu0 0.0
        %1057 = vmatpush1.msra.mxu0 %v1021
        %1058 = vmatprep.subr.mxu0 0.0
        %1059 = vmatpush1.msra.mxu0 %v1022
        %1060 = vmatprep.subr.mxu0 0.0
        %1061 = vmatpush1.msra.mxu0 %v1023
        %1062 = vmatprep.subr.mxu0 0.0
        %1063 = vmatpush1.msra.mxu0 %v1024
        %1064 = vmatprep.subr.mxu0 0.0
        %1065 = vmatpush1.msra.mxu0 0.0
        %1066 = vmatprep.subr.mxu0 0.0
        %1067 = vmatpush1.msra.mxu0 0.0
        %1068 = vmatprep.subr.mxu0 0.0
        %1069 = vmatpush1.msra.mxu0 0.0
        %1070 = vmatprep.subr.mxu0 0.0
        %1071 = vmatpush1.msra.mxu0 0.0
        %1072 = vmatprep.subr.mxu0 0.0
        %1073 = vmatpush1.msra.mxu0 0.0
        %1074 = vmatprep.subr.mxu0 0.0
        %1075 = vmatpush1.msra.mxu0 0.0
        %1076 = vmatprep.subr.mxu0 0.0
        %1077 = vmatpush1.msra.mxu0 0.0
        %1078 = vmatprep.subr.mxu0 0.0
        %1079 = vmatpush1.msra.mxu0 0.0
        %1080 = vmatprep.subr.mxu0 0.0
        %1081 = vmatpush1.msra.mxu0 0.0
        %1082 = vmatprep.subr.mxu0 0.0
        %1083 = vmatpush1.msra.mxu0 0.0
        %1084 = vmatprep.subr.mxu0 0.0
        %1085 = vmatpush1.msra.mxu0 0.0
        %1086 = vmatprep.subr.mxu0 0.0
        %1087 = vmatpush1.msra.mxu0 0.0
        %1088 = vmatprep.subr.mxu0 0.0
        %1089 = vmatpush1.msra.mxu0 0.0
        %1090 = vmatprep.subr.mxu0 0.0
        %1091 = vmatpush1.msra.mxu0 0.0
        %1092 = vmatprep.subr.mxu0 0.0
        %1093 = vmatpush1.msra.mxu0 0.0
        %1094 = vmatprep.subr.mxu0 0.0
        %1095 = vmatpush1.msra.mxu0 0.0
        %1096 = vmatprep.mubr.f32.mxu0 0.0
        %1097 = vmatmul.mubr.f32.gmra.mrb[0].mxu0 %v665
        %v1098 = vpop.f32.mrb[0].mxu0
        %v1099 = vadd.f32 %v1030, %v1098
        %v1100 = vpop.f32.mrb[0].mxu0
        %1101 = vmatprep.mubr.f32.mxu0 0.0
        %1102 = vmatmul.mubr.f32.gmra.mrb[0].mxu0 %v666
        %v1103 = vpop.f32.mrb[0].mxu0
        %v1104 = vadd.f32 %v1030, %v1103
        %v1105 = vpop.f32.mrb[0].mxu0
        %1106 = vmatprep.mubr.f32.mxu0 0.0
        %1107 = vmatmul.mubr.f32.gmra.mrb[0].mxu0 %v667
        %v1108 = vpop.f32.mrb[0].mxu0
        %v1109 = vadd.f32 %v1030, %v1108
        %v1110 = vpop.f32.mrb[0].mxu0
        %1111 = vmatprep.mubr.f32.mxu0 0.0
        %1112 = vmatmul.mubr.f32.gmra.mrb[0].mxu0 %v668
        %v1113 = vpop.f32.mrb[0].mxu0
        %v1114 = vadd.f32 %v1030, %v1113
        %v1115 = vpop.f32.mrb[0].mxu0
        %1116 = vmatprep.mubr.f32.mxu0 0.0
        %1117 = vmatmul.mubr.f32.gmra.mrb[0].mxu0 %v669
        %v1118 = vpop.f32.mrb[0].mxu0
        %v1119 = vadd.f32 %v1030, %v1118
        %v1120 = vpop.f32.mrb[0].mxu0
        %1121 = vmatprep.mubr.f32.mxu0 0.0
        %1122 = vmatmul.mubr.f32.gmra.mrb[0].mxu0 %v670
        %v1123 = vpop.f32.mrb[0].mxu0
        %v1124 = vadd.f32 %v1030, %v1123
        %v1125 = vpop.f32.mrb[0].mxu0
        %1126 = vmatprep.mubr.f32.mxu0 0.0
        %1127 = vmatmul.mubr.f32.gmra.mrb[0].mxu0 %v671
        %v1128 = vpop.f32.mrb[0].mxu0
        %v1129 = vadd.f32 %v1030, %v1128
        %v1130 = vpop.f32.mrb[0].mxu0
        %1131 = vmatprep.mubr.f32.mxu0 0.0
        %1132 = vmatmul.mubr.f32.gmra.mrb[0].mxu0 %v672
        %v1133 = vpop.f32.mrb[0].mxu0
        %v1134 = vadd.f32 %v1030, %v1133
        %v1135 = vpop.f32.mrb[0].mxu0
        %1136 = vmatprep.mubr.f32.mxu0 0.0
        %1137 = vmatmul.mubr.f32.gmra.mrb[0].mxu0 %v673
        %v1138 = vpop.f32.mrb[0].mxu0
        %v1139 = vadd.f32 %v1030, %v1138
        %v1140 = vpop.f32.mrb[0].mxu0
        %1141 = vmatprep.mubr.f32.mxu0 0.0
        %1142 = vmatmul.mubr.f32.gmra.mrb[0].mxu0 %v674
        %v1143 = vpop.f32.mrb[0].mxu0
        %v1144 = vadd.f32 %v1030, %v1143
        %v1145 = vpop.f32.mrb[0].mxu0
        %1146 = vmatprep.mubr.f32.mxu0 0.0
        %1147 = vmatmul.mubr.f32.gmra.mrb[0].mxu0 %v675
        %v1148 = vpop.f32.mrb[0].mxu0
        %v1149 = vadd.f32 %v1030, %v1148
        %v1150 = vpop.f32.mrb[0].mxu0
        %1151 = vmatprep.mubr.f32.mxu0 0.0
        %1152 = vmatmul.mubr.f32.gmra.mrb[0].mxu0 %v676
        %v1153 = vpop.f32.mrb[0].mxu0
        %v1154 = vadd.f32 %v1030, %v1153
        %v1155 = vpop.f32.mrb[0].mxu0
        %1156 = vmatprep.mubr.f32.mxu0 0.0
        %1157 = vmatmul.mubr.f32.gmra.mrb[0].mxu0 %v677
        %v1158 = vpop.f32.mrb[0].mxu0
        %v1159 = vadd.f32 %v1030, %v1158
        %v1160 = vpop.f32.mrb[0].mxu0
        %1161 = vmatprep.mubr.f32.mxu0 0.0
        %1162 = vmatmul.mubr.f32.gmra.mrb[0].mxu0 %v678
        %v1163 = vpop.f32.mrb[0].mxu0
        %v1164 = vadd.f32 %v1030, %v1163
        %v1165 = vpop.f32.mrb[0].mxu0
        %1166 = vmatprep.mubr.f32.mxu0 0.0
        %1167 = vmatmul.mubr.f32.gmra.mrb[0].mxu0 %v679
        %v1168 = vpop.f32.mrb[0].mxu0
        %v1169 = vadd.f32 %v1030, %v1168
        %v1170 = vpop.f32.mrb[0].mxu0
        %1171 = vmatprep.mubr.f32.mxu0 0.0
        %1172 = vmatmul.mubr.f32.gmra.mrb[0].mxu0 %v680
        %v1173 = vpop.f32.mrb[0].mxu0
        %v1174 = vadd.f32 %v1030, %v1173
        %v1175 = vpop.f32.mrb[0].mxu0
        %1176 = vmatprep.mubr.f32.mxu0 0.0
        %1177 = vmatmul.mubr.f32.gmra.mrb[0].mxu0 %v681
        %v1178 = vpop.f32.mrb[0].mxu0
        %v1179 = vadd.f32 %v1030, %v1178
        %v1180 = vpop.f32.mrb[0].mxu0
        %1181 = vmatprep.mubr.f32.mxu0 0.0
        %1182 = vmatmul.mubr.f32.gmra.mrb[0].mxu0 %v682
        %v1183 = vpop.f32.mrb[0].mxu0
        %v1184 = vadd.f32 %v1030, %v1183
        %v1185 = vpop.f32.mrb[0].mxu0
        %1186 = vmatprep.mubr.f32.mxu0 0.0
        %1187 = vmatmul.mubr.f32.gmra.mrb[0].mxu0 %v683
        %v1188 = vpop.f32.mrb[0].mxu0
        %v1189 = vadd.f32 %v1030, %v1188
        %v1190 = vpop.f32.mrb[0].mxu0
        %1191 = vmatprep.mubr.f32.mxu0 0.0
        %1192 = vmatmul.mubr.f32.gmra.mrb[0].mxu0 %v684
        %v1193 = vpop.f32.mrb[0].mxu0
        %v1194 = vadd.f32 %v1030, %v1193
        %v1195 = vpop.f32.mrb[0].mxu0
        %1196 = vmatprep.mubr.f32.mxu0 0.0
        %1197 = vmatmul.mubr.f32.gmra.mrb[0].mxu0 %v685
        %v1198 = vpop.f32.mrb[0].mxu0
        %v1199 = vadd.f32 %v1030, %v1198
        %v1200 = vpop.f32.mrb[0].mxu0
        %1201 = vmatprep.mubr.f32.mxu0 0.0
        %1202 = vmatmul.mubr.f32.gmra.mrb[0].mxu0 %v686
        %v1203 = vpop.f32.mrb[0].mxu0
        %v1204 = vadd.f32 %v1030, %v1203
        %v1205 = vpop.f32.mrb[0].mxu0
        %1206 = vmatprep.mubr.f32.mxu0 0.0
        %1207 = vmatmul.mubr.f32.gmra.mrb[0].mxu0 %v687
        %v1208 = vpop.f32.mrb[0].mxu0
        %v1209 = vadd.f32 %v1030, %v1208
        %v1210 = vpop.f32.mrb[0].mxu0
        %1211 = vmatprep.mubr.f32.mxu0 0.0
        %1212 = vmatmul.mubr.f32.gmra.mrb[0].mxu0 %v688
        %v1213 = vpop.f32.mrb[0].mxu0
        %v1214 = vadd.f32 %v1030, %v1213
        %v1215 = vpop.f32.mrb[0].mxu0
        %1216 = vmatprep.mubr.f32.mxu0 0.0
        %1217 = vmatmul.mubr.f32.gmra.mrb[0].mxu0 %v689
        %v1218 = vpop.f32.mrb[0].mxu0
        %v1219 = vadd.f32 %v1030, %v1218
        %v1220 = vpop.f32.mrb[0].mxu0
        %1221 = vmatprep.mubr.f32.mxu0 0.0
        %1222 = vmatmul.mubr.f32.gmra.mrb[0].mxu0 %v690
        %v1223 = vpop.f32.mrb[0].mxu0
        %v1224 = vadd.f32 %v1030, %v1223
        %v1225 = vpop.f32.mrb[0].mxu0
        %1226 = vmatprep.mubr.f32.mxu0 0.0
        %1227 = vmatmul.mubr.f32.gmra.mrb[0].mxu0 %v691
        %v1228 = vpop.f32.mrb[0].mxu0
        %v1229 = vadd.f32 %v1030, %v1228
        %v1230 = vpop.f32.mrb[0].mxu0
        %1231 = vmatprep.mubr.f32.mxu0 0.0
        %1232 = vmatmul.mubr.f32.gmra.mrb[0].mxu0 %v692
        %v1233 = vpop.f32.mrb[0].mxu0
        %v1234 = vadd.f32 %v1030, %v1233
        %v1235 = vpop.f32.mrb[0].mxu0
        %1236 = vmatprep.mubr.f32.mxu0 0.0
        %1237 = vmatmul.mubr.f32.gmra.mrb[0].mxu0 %v693
        %v1238 = vpop.f32.mrb[0].mxu0
        %v1239 = vadd.f32 %v1030, %v1238
        %v1240 = vpop.f32.mrb[0].mxu0
        %1241 = vmatprep.mubr.f32.mxu0 0.0
        %1242 = vmatmul.mubr.f32.gmra.mrb[0].mxu0 %v694
        %v1243 = vpop.f32.mrb[0].mxu0
        %v1244 = vadd.f32 %v1030, %v1243
        %v1245 = vpop.f32.mrb[0].mxu0
        %1246 = vmatprep.mubr.f32.mxu0 0.0
        %1247 = vmatmul.mubr.f32.gmra.mrb[0].mxu0 %v695
        %v1248 = vpop.f32.mrb[0].mxu0
        %v1249 = vadd.f32 %v1030, %v1248
        %v1250 = vpop.f32.mrb[0].mxu0
        %1251 = vmatprep.mubr.f32.mxu0 0.0
        %1252 = vmatmul.mubr.f32.gmra.mrb[0].mxu0 %v696
        %v1253 = vpop.f32.mrb[0].mxu0
        %v1254 = vadd.f32 %v1030, %v1253
        %v1255 = vpop.f32.mrb[0].mxu0
        %1256 = vdwg.mxu0
        %v1257 = vld [vmem:[#allocation14] sm:$0xff]
        %v1258 = vld [vmem:[#allocation14 + $0x8] sm:$0xff]
        %v1259 = vld [vmem:[#allocation14 + $0x10] sm:$0xff]
        %v1260 = vld [vmem:[#allocation14 + $0x18] sm:$0xff]
        %v1261 = vld [vmem:[#allocation14 + $0x20] sm:$0xff]
        %v1262 = vld [vmem:[#allocation14 + $0x28] sm:$0xff]
        %v1263 = vld [vmem:[#allocation14 + $0x30] sm:$0xff]
        %v1264 = vld [vmem:[#allocation14 + $0x38] sm:$0xff]
        %v1265 = vld [vmem:[#allocation14 + $0x40] sm:$0xff]
        %v1266 = vld [vmem:[#allocation14 + $0x48] sm:$0xff]
        %v1267 = vld [vmem:[#allocation14 + $0x50] sm:$0xff]
        %v1268 = vld [vmem:[#allocation14 + $0x58] sm:$0xff]
        %v1269 = vld [vmem:[#allocation14 + $0x60] sm:$0xff]
        %v1270 = vld [vmem:[#allocation14 + $0x68] sm:$0xff]
        %v1271 = vld [vmem:[#allocation14 + $0x70] sm:$0xff]
        %v1272 = vld [vmem:[#allocation14 + $0x78] sm:$0xff]
        %v1273 = vld [vmem:[%s9] sm:$0x1]
        %v1275 = vlaneseq
        %v1276 = vshrl.u32 %v1275, 7
        %v1277 = vsub.s32 0, %v1276
        %v1278 = vrot.slane %v1273, %v1277
        %1280 = vmatprep.subr.mxu0 0.0
        %1281 = vmatpush1.msra.mxu0 %v1257
        %1282 = vmatprep.subr.mxu0 0.0
        %1283 = vmatpush1.msra.mxu0 %v1258
        %1284 = vmatprep.subr.mxu0 0.0
        %1285 = vmatpush1.msra.mxu0 %v1259
        %1286 = vmatprep.subr.mxu0 0.0
        %1287 = vmatpush1.msra.mxu0 %v1260
        %1288 = vmatprep.subr.mxu0 0.0
        %1289 = vmatpush1.msra.mxu0 %v1261
        %1290 = vmatprep.subr.mxu0 0.0
        %1291 = vmatpush1.msra.mxu0 %v1262
        %1292 = vmatprep.subr.mxu0 0.0
        %1293 = vmatpush1.msra.mxu0 %v1263
        %1294 = vmatprep.subr.mxu0 0.0
        %1295 = vmatpush1.msra.mxu0 %v1264
        %1296 = vmatprep.subr.mxu0 0.0
        %1297 = vmatpush1.msra.mxu0 %v1265
        %1298 = vmatprep.subr.mxu0 0.0
        %1299 = vmatpush1.msra.mxu0 %v1266
        %1300 = vmatprep.subr.mxu0 0.0
        %1301 = vmatpush1.msra.mxu0 %v1267
        %1302 = vmatprep.subr.mxu0 0.0
        %1303 = vmatpush1.msra.mxu0 %v1268
        %1304 = vmatprep.subr.mxu0 0.0
        %1305 = vmatpush1.msra.mxu0 %v1269
        %1306 = vmatprep.subr.mxu0 0.0
        %1307 = vmatpush1.msra.mxu0 %v1270
        %1308 = vmatprep.subr.mxu0 0.0
        %1309 = vmatpush1.msra.mxu0 %v1271
        %1310 = vmatprep.subr.mxu0 0.0
        %1311 = vmatpush1.msra.mxu0 %v1272
        %1312 = vmatprep.subr.mxu0 0.0
        %1313 = vmatpush1.msra.mxu0 0.0
        %1314 = vmatprep.subr.mxu0 0.0
        %1315 = vmatpush1.msra.mxu0 0.0
        %1316 = vmatprep.subr.mxu0 0.0
        %1317 = vmatpush1.msra.mxu0 0.0
        %1318 = vmatprep.subr.mxu0 0.0
        %1319 = vmatpush1.msra.mxu0 0.0
        %1320 = vmatprep.subr.mxu0 0.0
        %1321 = vmatpush1.msra.mxu0 0.0
        %1322 = vmatprep.subr.mxu0 0.0
        %1323 = vmatpush1.msra.mxu0 0.0
        %1324 = vmatprep.subr.mxu0 0.0
        %1325 = vmatpush1.msra.mxu0 0.0
        %1326 = vmatprep.subr.mxu0 0.0
        %1327 = vmatpush1.msra.mxu0 0.0
        %1328 = vmatprep.subr.mxu0 0.0
        %1329 = vmatpush1.msra.mxu0 0.0
        %1330 = vmatprep.subr.mxu0 0.0
        %1331 = vmatpush1.msra.mxu0 0.0
        %1332 = vmatprep.subr.mxu0 0.0
        %1333 = vmatpush1.msra.mxu0 0.0
        %1334 = vmatprep.subr.mxu0 0.0
        %1335 = vmatpush1.msra.mxu0 0.0
        %1336 = vmatprep.subr.mxu0 0.0
        %1337 = vmatpush1.msra.mxu0 0.0
        %1338 = vmatprep.subr.mxu0 0.0
        %1339 = vmatpush1.msra.mxu0 0.0
        %1340 = vmatprep.subr.mxu0 0.0
        %1341 = vmatpush1.msra.mxu0 0.0
        %1342 = vmatprep.subr.mxu0 0.0
        %1343 = vmatpush1.msra.mxu0 0.0
        %1344 = vmatprep.mubr.f32.mxu0 0.0
        %1345 = vmatmul.mubr.f32.gmra.mrb[0].mxu0 %v697
        %v1346 = vpop.f32.mrb[0].mxu0
        %v1347 = vadd.f32 %v1278, %v1346
        %v1348 = vpop.f32.mrb[0].mxu0
        %1349 = vmatprep.mubr.f32.mxu0 0.0
        %1350 = vmatmul.mubr.f32.gmra.mrb[0].mxu0 %v698
        %v1351 = vpop.f32.mrb[0].mxu0
        %v1352 = vadd.f32 %v1278, %v1351
        %v1353 = vpop.f32.mrb[0].mxu0
        %1354 = vmatprep.mubr.f32.mxu0 0.0
        %1355 = vmatmul.mubr.f32.gmra.mrb[0].mxu0 %v699
        %v1356 = vpop.f32.mrb[0].mxu0
        %v1357 = vadd.f32 %v1278, %v1356
        %v1358 = vpop.f32.mrb[0].mxu0
        %1359 = vmatprep.mubr.f32.mxu0 0.0
        %1360 = vmatmul.mubr.f32.gmra.mrb[0].mxu0 %v700
        %v1361 = vpop.f32.mrb[0].mxu0
        %v1362 = vadd.f32 %v1278, %v1361
        %v1363 = vpop.f32.mrb[0].mxu0
        %1364 = vmatprep.mubr.f32.mxu0 0.0
        %1365 = vmatmul.mubr.f32.gmra.mrb[0].mxu0 %v701
        %v1366 = vpop.f32.mrb[0].mxu0
        %v1367 = vadd.f32 %v1278, %v1366
        %v1368 = vpop.f32.mrb[0].mxu0
        %1369 = vmatprep.mubr.f32.mxu0 0.0
        %1370 = vmatmul.mubr.f32.gmra.mrb[0].mxu0 %v702
        %v1371 = vpop.f32.mrb[0].mxu0
        %v1372 = vadd.f32 %v1278, %v1371
        %v1373 = vpop.f32.mrb[0].mxu0
        %1374 = vmatprep.mubr.f32.mxu0 0.0
        %1375 = vmatmul.mubr.f32.gmra.mrb[0].mxu0 %v703
        %v1376 = vpop.f32.mrb[0].mxu0
        %v1377 = vadd.f32 %v1278, %v1376
        %v1378 = vpop.f32.mrb[0].mxu0
        %1379 = vmatprep.mubr.f32.mxu0 0.0
        %1380 = vmatmul.mubr.f32.gmra.mrb[0].mxu0 %v704
        %v1381 = vpop.f32.mrb[0].mxu0
        %v1382 = vadd.f32 %v1278, %v1381
        %v1383 = vpop.f32.mrb[0].mxu0
        %1384 = vmatprep.mubr.f32.mxu0 0.0
        %1385 = vmatmul.mubr.f32.gmra.mrb[0].mxu0 %v705
        %v1386 = vpop.f32.mrb[0].mxu0
        %v1387 = vadd.f32 %v1278, %v1386
        %v1388 = vpop.f32.mrb[0].mxu0
        %1389 = vmatprep.mubr.f32.mxu0 0.0
        %1390 = vmatmul.mubr.f32.gmra.mrb[0].mxu0 %v706
        %v1391 = vpop.f32.mrb[0].mxu0
        %v1392 = vadd.f32 %v1278, %v1391
        %v1393 = vpop.f32.mrb[0].mxu0
        %1394 = vmatprep.mubr.f32.mxu0 0.0
        %1395 = vmatmul.mubr.f32.gmra.mrb[0].mxu0 %v707
        %v1396 = vpop.f32.mrb[0].mxu0
        %v1397 = vadd.f32 %v1278, %v1396
        %v1398 = vpop.f32.mrb[0].mxu0
        %1399 = vmatprep.mubr.f32.mxu0 0.0
        %1400 = vmatmul.mubr.f32.gmra.mrb[0].mxu0 %v708
        %v1401 = vpop.f32.mrb[0].mxu0
        %v1402 = vadd.f32 %v1278, %v1401
        %v1403 = vpop.f32.mrb[0].mxu0
        %1404 = vmatprep.mubr.f32.mxu0 0.0
        %1405 = vmatmul.mubr.f32.gmra.mrb[0].mxu0 %v709
        %v1406 = vpop.f32.mrb[0].mxu0
        %v1407 = vadd.f32 %v1278, %v1406
        %v1408 = vpop.f32.mrb[0].mxu0
        %1409 = vmatprep.mubr.f32.mxu0 0.0
        %1410 = vmatmul.mubr.f32.gmra.mrb[0].mxu0 %v710
        %v1411 = vpop.f32.mrb[0].mxu0
        %v1412 = vadd.f32 %v1278, %v1411
        %v1413 = vpop.f32.mrb[0].mxu0
        %1414 = vmatprep.mubr.f32.mxu0 0.0
        %1415 = vmatmul.mubr.f32.gmra.mrb[0].mxu0 %v711
        %v1416 = vpop.f32.mrb[0].mxu0
        %v1417 = vadd.f32 %v1278, %v1416
        %v1418 = vpop.f32.mrb[0].mxu0
        %1419 = vmatprep.mubr.f32.mxu0 0.0
        %1420 = vmatmul.mubr.f32.gmra.mrb[0].mxu0 %v712
        %v1421 = vpop.f32.mrb[0].mxu0
        %v1422 = vadd.f32 %v1278, %v1421
        %v1423 = vpop.f32.mrb[0].mxu0
        %1424 = vmatprep.mubr.f32.mxu0 0.0
        %1425 = vmatmul.mubr.f32.gmra.mrb[0].mxu0 %v713
        %v1426 = vpop.f32.mrb[0].mxu0
        %v1427 = vadd.f32 %v1278, %v1426
        %v1428 = vpop.f32.mrb[0].mxu0
        %1429 = vmatprep.mubr.f32.mxu0 0.0
        %1430 = vmatmul.mubr.f32.gmra.mrb[0].mxu0 %v714
        %v1431 = vpop.f32.mrb[0].mxu0
        %v1432 = vadd.f32 %v1278, %v1431
        %v1433 = vpop.f32.mrb[0].mxu0
        %1434 = vmatprep.mubr.f32.mxu0 0.0
        %1435 = vmatmul.mubr.f32.gmra.mrb[0].mxu0 %v715
        %v1436 = vpop.f32.mrb[0].mxu0
        %v1437 = vadd.f32 %v1278, %v1436
        %v1438 = vpop.f32.mrb[0].mxu0
        %1439 = vmatprep.mubr.f32.mxu0 0.0
        %1440 = vmatmul.mubr.f32.gmra.mrb[0].mxu0 %v716
        %v1441 = vpop.f32.mrb[0].mxu0
        %v1442 = vadd.f32 %v1278, %v1441
        %v1443 = vpop.f32.mrb[0].mxu0
        %1444 = vmatprep.mubr.f32.mxu0 0.0
        %1445 = vmatmul.mubr.f32.gmra.mrb[0].mxu0 %v717
        %v1446 = vpop.f32.mrb[0].mxu0
        %v1447 = vadd.f32 %v1278, %v1446
        %v1448 = vpop.f32.mrb[0].mxu0
        %1449 = vmatprep.mubr.f32.mxu0 0.0
        %1450 = vmatmul.mubr.f32.gmra.mrb[0].mxu0 %v718
        %v1451 = vpop.f32.mrb[0].mxu0
        %v1452 = vadd.f32 %v1278, %v1451
        %v1453 = vpop.f32.mrb[0].mxu0
        %1454 = vmatprep.mubr.f32.mxu0 0.0
        %1455 = vmatmul.mubr.f32.gmra.mrb[0].mxu0 %v719
        %v1456 = vpop.f32.mrb[0].mxu0
        %v1457 = vadd.f32 %v1278, %v1456
        %v1458 = vpop.f32.mrb[0].mxu0
        %1459 = vmatprep.mubr.f32.mxu0 0.0
        %1460 = vmatmul.mubr.f32.gmra.mrb[0].mxu0 %v720
        %v1461 = vpop.f32.mrb[0].mxu0
        %v1462 = vadd.f32 %v1278, %v1461
        %v1463 = vpop.f32.mrb[0].mxu0
        %1464 = vmatprep.mubr.f32.mxu0 0.0
        %1465 = vmatmul.mubr.f32.gmra.mrb[0].mxu0 %v721
        %v1466 = vpop.f32.mrb[0].mxu0
        %v1467 = vadd.f32 %v1278, %v1466
        %v1468 = vpop.f32.mrb[0].mxu0
        %1469 = vmatprep.mubr.f32.mxu0 0.0
        %1470 = vmatmul.mubr.f32.gmra.mrb[0].mxu0 %v722
        %v1471 = vpop.f32.mrb[0].mxu0
        %v1472 = vadd.f32 %v1278, %v1471
        %v1473 = vpop.f32.mrb[0].mxu0
        %1474 = vmatprep.mubr.f32.mxu0 0.0
        %1475 = vmatmul.mubr.f32.gmra.mrb[0].mxu0 %v723
        %v1476 = vpop.f32.mrb[0].mxu0
        %v1477 = vadd.f32 %v1278, %v1476
        %v1478 = vpop.f32.mrb[0].mxu0
        %1479 = vmatprep.mubr.f32.mxu0 0.0
        %1480 = vmatmul.mubr.f32.gmra.mrb[0].mxu0 %v724
        %v1481 = vpop.f32.mrb[0].mxu0
        %v1482 = vadd.f32 %v1278, %v1481
        %v1483 = vpop.f32.mrb[0].mxu0
        %1484 = vmatprep.mubr.f32.mxu0 0.0
        %1485 = vmatmul.mubr.f32.gmra.mrb[0].mxu0 %v725
        %v1486 = vpop.f32.mrb[0].mxu0
        %v1487 = vadd.f32 %v1278, %v1486
        %v1488 = vpop.f32.mrb[0].mxu0
        %1489 = vmatprep.mubr.f32.mxu0 0.0
        %1490 = vmatmul.mubr.f32.gmra.mrb[0].mxu0 %v726
        %v1491 = vpop.f32.mrb[0].mxu0
        %v1492 = vadd.f32 %v1278, %v1491
        %v1493 = vpop.f32.mrb[0].mxu0
        %1494 = vmatprep.mubr.f32.mxu0 0.0
        %1495 = vmatmul.mubr.f32.gmra.mrb[0].mxu0 %v727
        %v1496 = vpop.f32.mrb[0].mxu0
        %v1497 = vadd.f32 %v1278, %v1496
        %v1498 = vpop.f32.mrb[0].mxu0
        %1499 = vmatprep.mubr.f32.mxu0 0.0
        %1500 = vmatmul.mubr.f32.gmra.mrb[0].mxu0 %v728
        %v1501 = vpop.f32.mrb[0].mxu0
        %v1502 = vadd.f32 %v1278, %v1501
        %v1503 = vpop.f32.mrb[0].mxu0
        %1504 = vdwg.mxu0
        %vm1505 = vcmask 261120
        %v1507 = vsel %vm1505, %v851, 0
        %v1510 = vsel %vm1505, %v856, 0
        %v1513 = vsel %vm1505, %v861, 0
        %v1516 = vsel %vm1505, %v866, 0
        %v1519 = vsel %vm1505, %v871, 0
        %v1522 = vsel %vm1505, %v876, 0
        %v1525 = vsel %vm1505, %v881, 0
        %v1528 = vsel %vm1505, %v886, 0
        %v1531 = vsel %vm1505, %v891, 0
        %v1534 = vsel %vm1505, %v896, 0
        %v1537 = vsel %vm1505, %v901, 0
        %v1540 = vsel %vm1505, %v906, 0
        %v1543 = vsel %vm1505, %v911, 0
        %v1546 = vsel %vm1505, %v916, 0
        %v1549 = vsel %vm1505, %v921, 0
        %v1552 = vsel %vm1505, %v926, 0
        %v1555 = vsel %vm1505, %v931, 0
        %v1558 = vsel %vm1505, %v936, 0
        %v1561 = vsel %vm1505, %v941, 0
        %v1564 = vsel %vm1505, %v946, 0
        %v1567 = vsel %vm1505, %v951, 0
        %v1570 = vsel %vm1505, %v956, 0
        %v1573 = vsel %vm1505, %v961, 0
        %v1576 = vsel %vm1505, %v966, 0
        %v1579 = vsel %vm1505, %v971, 0
        %v1582 = vsel %vm1505, %v976, 0
        %v1585 = vsel %vm1505, %v981, 0
        %v1588 = vsel %vm1505, %v986, 0
        %v1591 = vsel %vm1505, %v991, 0
        %v1594 = vsel %vm1505, %v996, 0
        %v1597 = vsel %vm1505, %v1001, 0
        %v1600 = vsel %vm1505, %v1006, 0
        %v1603 = vsel %vm1505, %v1099, 0
        %v1606 = vsel %vm1505, %v1104, 0
        %v1609 = vsel %vm1505, %v1109, 0
        %v1612 = vsel %vm1505, %v1114, 0
        %v1615 = vsel %vm1505, %v1119, 0
        %v1618 = vsel %vm1505, %v1124, 0
        %v1621 = vsel %vm1505, %v1129, 0
        %v1624 = vsel %vm1505, %v1134, 0
        %v1627 = vsel %vm1505, %v1139, 0
        %v1630 = vsel %vm1505, %v1144, 0
        %v1633 = vsel %vm1505, %v1149, 0
        %v1636 = vsel %vm1505, %v1154, 0
        %v1639 = vsel %vm1505, %v1159, 0
        %v1642 = vsel %vm1505, %v1164, 0
        %v1645 = vsel %vm1505, %v1169, 0
        %v1648 = vsel %vm1505, %v1174, 0
        %v1651 = vsel %vm1505, %v1179, 0
        %v1654 = vsel %vm1505, %v1184, 0
        %v1657 = vsel %vm1505, %v1189, 0
        %v1660 = vsel %vm1505, %v1194, 0
        %v1663 = vsel %vm1505, %v1199, 0
        %v1666 = vsel %vm1505, %v1204, 0
        %v1669 = vsel %vm1505, %v1209, 0
        %v1672 = vsel %vm1505, %v1214, 0
        %v1675 = vsel %vm1505, %v1219, 0
        %v1678 = vsel %vm1505, %v1224, 0
        %v1681 = vsel %vm1505, %v1229, 0
        %v1684 = vsel %vm1505, %v1234, 0
        %v1687 = vsel %vm1505, %v1239, 0
        %v1690 = vsel %vm1505, %v1244, 0
        %v1693 = vsel %vm1505, %v1249, 0
        %v1696 = vsel %vm1505, %v1254, 0
        %1698 = vmatprep.subr.mxu0 0.0
        %1699 = vmatpush1.xpose.msra.mxu0 %v1603
        %1700 = vmatprep.subr.mxu0 0.0
        %1701 = vmatpush1.xpose.msra.mxu0 %v1606
        %1702 = vmatprep.subr.mxu0 0.0
        %1703 = vmatpush1.xpose.msra.mxu0 %v1609
        %1704 = vmatprep.subr.mxu0 0.0
        %1705 = vmatpush1.xpose.msra.mxu0 %v1612
        %1706 = vmatprep.subr.mxu0 0.0
        %1707 = vmatpush1.xpose.msra.mxu0 %v1615
        %1708 = vmatprep.subr.mxu0 0.0
        %1709 = vmatpush1.xpose.msra.mxu0 %v1618
        %1710 = vmatprep.subr.mxu0 0.0
        %1711 = vmatpush1.xpose.msra.mxu0 %v1621
        %1712 = vmatprep.subr.mxu0 0.0
        %1713 = vmatpush1.xpose.msra.mxu0 %v1624
        %1714 = vmatprep.subr.mxu0 0.0
        %1715 = vmatpush1.xpose.msra.mxu0 %v1627
        %1716 = vmatprep.subr.mxu0 0.0
        %1717 = vmatpush1.xpose.msra.mxu0 %v1630
        %1718 = vmatprep.subr.mxu0 0.0
        %1719 = vmatpush1.xpose.msra.mxu0 %v1633
        %1720 = vmatprep.subr.mxu0 0.0
        %1721 = vmatpush1.xpose.msra.mxu0 %v1636
        %1722 = vmatprep.subr.mxu0 0.0
        %1723 = vmatpush1.xpose.msra.mxu0 %v1639
        %1724 = vmatprep.subr.mxu0 0.0
        %1725 = vmatpush1.xpose.msra.mxu0 %v1642
        %1726 = vmatprep.subr.mxu0 0.0
        %1727 = vmatpush1.xpose.msra.mxu0 %v1645
        %1728 = vmatprep.subr.mxu0 0.0
        %1729 = vmatpush1.xpose.msra.mxu0 %v1648
        %1730 = vmatprep.subr.mxu0 0.0
        %1731 = vmatpush1.xpose.msra.mxu0 %v1651
        %1732 = vmatprep.subr.mxu0 0.0
        %1733 = vmatpush1.xpose.msra.mxu0 %v1654
        %1734 = vmatprep.subr.mxu0 0.0
        %1735 = vmatpush1.xpose.msra.mxu0 %v1657
        %1736 = vmatprep.subr.mxu0 0.0
        %1737 = vmatpush1.xpose.msra.mxu0 %v1660
        %1738 = vmatprep.subr.mxu0 0.0
        %1739 = vmatpush1.xpose.msra.mxu0 %v1663
        %1740 = vmatprep.subr.mxu0 0.0
        %1741 = vmatpush1.xpose.msra.mxu0 %v1666
        %1742 = vmatprep.subr.mxu0 0.0
        %1743 = vmatpush1.xpose.msra.mxu0 %v1669
        %1744 = vmatprep.subr.mxu0 0.0
        %1745 = vmatpush1.xpose.msra.mxu0 %v1672
        %1746 = vmatprep.subr.mxu0 0.0
        %1747 = vmatpush1.xpose.msra.mxu0 %v1675
        %1748 = vmatprep.subr.mxu0 0.0
        %1749 = vmatpush1.xpose.msra.mxu0 %v1678
        %1750 = vmatprep.subr.mxu0 0.0
        %1751 = vmatpush1.xpose.msra.mxu0 %v1681
        %1752 = vmatprep.subr.mxu0 0.0
        %1753 = vmatpush1.xpose.msra.mxu0 %v1684
        %1754 = vmatprep.subr.mxu0 0.0
        %1755 = vmatpush1.xpose.msra.mxu0 %v1687
        %1756 = vmatprep.subr.mxu0 0.0
        %1757 = vmatpush1.xpose.msra.mxu0 %v1690
        %1758 = vmatprep.subr.mxu0 0.0
        %1759 = vmatpush1.xpose.msra.mxu0 %v1693
        %1760 = vmatprep.subr.mxu0 0.0
        %1761 = vmatpush1.xpose.msra.mxu0 %v1696
        %1762 = vmatprep.mubr.f32.mxu0 0.0
        %1763 = vmatmul.mubr.f32.gmra.mrb[0].mxu0 %v1507
        %v1764 = vpop.f32.mrb[0].mxu0
        %v1765 = vadd.f32 0.0, %v1764
        %v1766 = vpop.f32.mrb[0].mxu0
        %v1767 = vadd.f32 0.0, %v1766
        %1768 = vmatprep.mubr.f32.mxu0 0.0
        %1769 = vmatmul.mubr.f32.gmra.mrb[0].mxu0 %v1510
        %v1770 = vpop.f32.mrb[0].mxu0
        %v1771 = vadd.f32 0.0, %v1770
        %v1772 = vpop.f32.mrb[0].mxu0
        %v1773 = vadd.f32 0.0, %v1772
        %1774 = vmatprep.mubr.f32.mxu0 0.0
        %1775 = vmatmul.mubr.f32.gmra.mrb[0].mxu0 %v1513
        %v1776 = vpop.f32.mrb[0].mxu0
        %v1777 = vadd.f32 0.0, %v1776
        %v1778 = vpop.f32.mrb[0].mxu0
        %v1779 = vadd.f32 0.0, %v1778
        %1780 = vmatprep.mubr.f32.mxu0 0.0
        %1781 = vmatmul.mubr.f32.gmra.mrb[0].mxu0 %v1516
        %v1782 = vpop.f32.mrb[0].mxu0
        %v1783 = vadd.f32 0.0, %v1782
        %v1784 = vpop.f32.mrb[0].mxu0
        %v1785 = vadd.f32 0.0, %v1784
        %1786 = vmatprep.mubr.f32.mxu0 0.0
        %1787 = vmatmul.mubr.f32.gmra.mrb[0].mxu0 %v1519
        %v1788 = vpop.f32.mrb[0].mxu0
        %v1789 = vadd.f32 0.0, %v1788
        %v1790 = vpop.f32.mrb[0].mxu0
        %v1791 = vadd.f32 0.0, %v1790
        %1792 = vmatprep.mubr.f32.mxu0 0.0
        %1793 = vmatmul.mubr.f32.gmra.mrb[0].mxu0 %v1522
        %v1794 = vpop.f32.mrb[0].mxu0
        %v1795 = vadd.f32 0.0, %v1794
        %v1796 = vpop.f32.mrb[0].mxu0
        %v1797 = vadd.f32 0.0, %v1796
        %1798 = vmatprep.mubr.f32.mxu0 0.0
        %1799 = vmatmul.mubr.f32.gmra.mrb[0].mxu0 %v1525
        %v1800 = vpop.f32.mrb[0].mxu0
        %v1801 = vadd.f32 0.0, %v1800
        %v1802 = vpop.f32.mrb[0].mxu0
        %v1803 = vadd.f32 0.0, %v1802
        %1804 = vmatprep.mubr.f32.mxu0 0.0
        %1805 = vmatmul.mubr.f32.gmra.mrb[0].mxu0 %v1528
        %v1806 = vpop.f32.mrb[0].mxu0
        %v1807 = vadd.f32 0.0, %v1806
        %v1808 = vpop.f32.mrb[0].mxu0
        %v1809 = vadd.f32 0.0, %v1808
        %1810 = vmatprep.mubr.f32.mxu0 0.0
        %1811 = vmatmul.mubr.f32.gmra.mrb[0].mxu0 %v1531
        %v1812 = vpop.f32.mrb[0].mxu0
        %v1813 = vadd.f32 0.0, %v1812
        %v1814 = vpop.f32.mrb[0].mxu0
        %v1815 = vadd.f32 0.0, %v1814
        %1816 = vmatprep.mubr.f32.mxu0 0.0
        %1817 = vmatmul.mubr.f32.gmra.mrb[0].mxu0 %v1534
        %v1818 = vpop.f32.mrb[0].mxu0
        %v1819 = vadd.f32 0.0, %v1818
        %v1820 = vpop.f32.mrb[0].mxu0
        %v1821 = vadd.f32 0.0, %v1820
        %1822 = vmatprep.mubr.f32.mxu0 0.0
        %1823 = vmatmul.mubr.f32.gmra.mrb[0].mxu0 %v1537
        %v1824 = vpop.f32.mrb[0].mxu0
        %v1825 = vadd.f32 0.0, %v1824
        %v1826 = vpop.f32.mrb[0].mxu0
        %v1827 = vadd.f32 0.0, %v1826
        %1828 = vmatprep.mubr.f32.mxu0 0.0
        %1829 = vmatmul.mubr.f32.gmra.mrb[0].mxu0 %v1540
        %v1830 = vpop.f32.mrb[0].mxu0
        %v1831 = vadd.f32 0.0, %v1830
        %v1832 = vpop.f32.mrb[0].mxu0
        %v1833 = vadd.f32 0.0, %v1832
        %1834 = vmatprep.mubr.f32.mxu0 0.0
        %1835 = vmatmul.mubr.f32.gmra.mrb[0].mxu0 %v1543
        %v1836 = vpop.f32.mrb[0].mxu0
        %v1837 = vadd.f32 0.0, %v1836
        %v1838 = vpop.f32.mrb[0].mxu0
        %v1839 = vadd.f32 0.0, %v1838
        %1840 = vmatprep.mubr.f32.mxu0 0.0
        %1841 = vmatmul.mubr.f32.gmra.mrb[0].mxu0 %v1546
        %v1842 = vpop.f32.mrb[0].mxu0
        %v1843 = vadd.f32 0.0, %v1842
        %v1844 = vpop.f32.mrb[0].mxu0
        %v1845 = vadd.f32 0.0, %v1844
        %1846 = vmatprep.mubr.f32.mxu0 0.0
        %1847 = vmatmul.mubr.f32.gmra.mrb[0].mxu0 %v1549
        %v1848 = vpop.f32.mrb[0].mxu0
        %v1849 = vadd.f32 0.0, %v1848
        %v1850 = vpop.f32.mrb[0].mxu0
        %v1851 = vadd.f32 0.0, %v1850
        %1852 = vmatprep.mubr.f32.mxu0 0.0
        %1853 = vmatmul.mubr.f32.gmra.mrb[0].mxu0 %v1552
        %v1854 = vpop.f32.mrb[0].mxu0
        %v1855 = vadd.f32 0.0, %v1854
        %v1856 = vpop.f32.mrb[0].mxu0
        %v1857 = vadd.f32 0.0, %v1856
        %1858 = vmatprep.mubr.f32.mxu0 0.0
        %1859 = vmatmul.mubr.f32.gmra.mrb[0].mxu0 %v1555
        %v1860 = vpop.f32.mrb[0].mxu0
        %v1861 = vadd.f32 0.0, %v1860
        %v1862 = vpop.f32.mrb[0].mxu0
        %v1863 = vadd.f32 0.0, %v1862
        %1864 = vmatprep.mubr.f32.mxu0 0.0
        %1865 = vmatmul.mubr.f32.gmra.mrb[0].mxu0 %v1558
        %v1866 = vpop.f32.mrb[0].mxu0
        %v1867 = vadd.f32 0.0, %v1866
        %v1868 = vpop.f32.mrb[0].mxu0
        %v1869 = vadd.f32 0.0, %v1868
        %1870 = vmatprep.mubr.f32.mxu0 0.0
        %1871 = vmatmul.mubr.f32.gmra.mrb[0].mxu0 %v1561
        %v1872 = vpop.f32.mrb[0].mxu0
        %v1873 = vadd.f32 0.0, %v1872
        %v1874 = vpop.f32.mrb[0].mxu0
        %v1875 = vadd.f32 0.0, %v1874
        %1876 = vmatprep.mubr.f32.mxu0 0.0
        %1877 = vmatmul.mubr.f32.gmra.mrb[0].mxu0 %v1564
        %v1878 = vpop.f32.mrb[0].mxu0
        %v1879 = vadd.f32 0.0, %v1878
        %v1880 = vpop.f32.mrb[0].mxu0
        %v1881 = vadd.f32 0.0, %v1880
        %1882 = vmatprep.mubr.f32.mxu0 0.0
        %1883 = vmatmul.mubr.f32.gmra.mrb[0].mxu0 %v1567
        %v1884 = vpop.f32.mrb[0].mxu0
        %v1885 = vadd.f32 0.0, %v1884
        %v1886 = vpop.f32.mrb[0].mxu0
        %v1887 = vadd.f32 0.0, %v1886
        %1888 = vmatprep.mubr.f32.mxu0 0.0
        %1889 = vmatmul.mubr.f32.gmra.mrb[0].mxu0 %v1570
        %v1890 = vpop.f32.mrb[0].mxu0
        %v1891 = vadd.f32 0.0, %v1890
        %v1892 = vpop.f32.mrb[0].mxu0
        %v1893 = vadd.f32 0.0, %v1892
        %1894 = vmatprep.mubr.f32.mxu0 0.0
        %1895 = vmatmul.mubr.f32.gmra.mrb[0].mxu0 %v1573
        %v1896 = vpop.f32.mrb[0].mxu0
        %v1897 = vadd.f32 0.0, %v1896
        %v1898 = vpop.f32.mrb[0].mxu0
        %v1899 = vadd.f32 0.0, %v1898
        %1900 = vmatprep.mubr.f32.mxu0 0.0
        %1901 = vmatmul.mubr.f32.gmra.mrb[0].mxu0 %v1576
        %v1902 = vpop.f32.mrb[0].mxu0
        %v1903 = vadd.f32 0.0, %v1902
        %v1904 = vpop.f32.mrb[0].mxu0
        %v1905 = vadd.f32 0.0, %v1904
        %1906 = vmatprep.mubr.f32.mxu0 0.0
        %1907 = vmatmul.mubr.f32.gmra.mrb[0].mxu0 %v1579
        %v1908 = vpop.f32.mrb[0].mxu0
        %v1909 = vadd.f32 0.0, %v1908
        %v1910 = vpop.f32.mrb[0].mxu0
        %v1911 = vadd.f32 0.0, %v1910
        %1912 = vmatprep.mubr.f32.mxu0 0.0
        %1913 = vmatmul.mubr.f32.gmra.mrb[0].mxu0 %v1582
        %v1914 = vpop.f32.mrb[0].mxu0
        %v1915 = vadd.f32 0.0, %v1914
        %v1916 = vpop.f32.mrb[0].mxu0
        %v1917 = vadd.f32 0.0, %v1916
        %1918 = vmatprep.mubr.f32.mxu0 0.0
        %1919 = vmatmul.mubr.f32.gmra.mrb[0].mxu0 %v1585
        %v1920 = vpop.f32.mrb[0].mxu0
        %v1921 = vadd.f32 0.0, %v1920
        %v1922 = vpop.f32.mrb[0].mxu0
        %v1923 = vadd.f32 0.0, %v1922
        %1924 = vmatprep.mubr.f32.mxu0 0.0
        %1925 = vmatmul.mubr.f32.gmra.mrb[0].mxu0 %v1588
        %v1926 = vpop.f32.mrb[0].mxu0
        %v1927 = vadd.f32 0.0, %v1926
        %v1928 = vpop.f32.mrb[0].mxu0
        %v1929 = vadd.f32 0.0, %v1928
        %1930 = vmatprep.mubr.f32.mxu0 0.0
        %1931 = vmatmul.mubr.f32.gmra.mrb[0].mxu0 %v1591
        %v1932 = vpop.f32.mrb[0].mxu0
        %v1933 = vadd.f32 0.0, %v1932
        %v1934 = vpop.f32.mrb[0].mxu0
        %v1935 = vadd.f32 0.0, %v1934
        %1936 = vmatprep.mubr.f32.mxu0 0.0
        %1937 = vmatmul.mubr.f32.gmra.mrb[0].mxu0 %v1594
        %v1938 = vpop.f32.mrb[0].mxu0
        %v1939 = vadd.f32 0.0, %v1938
        %v1940 = vpop.f32.mrb[0].mxu0
        %v1941 = vadd.f32 0.0, %v1940
        %1942 = vmatprep.mubr.f32.mxu0 0.0
        %1943 = vmatmul.mubr.f32.gmra.mrb[0].mxu0 %v1597
        %v1944 = vpop.f32.mrb[0].mxu0
        %v1945 = vadd.f32 0.0, %v1944
        %v1946 = vpop.f32.mrb[0].mxu0
        %v1947 = vadd.f32 0.0, %v1946
        %1948 = vmatprep.mubr.f32.mxu0 0.0
        %1949 = vmatmul.mubr.f32.gmra.mrb[0].mxu0 %v1600
        %v1950 = vpop.f32.mrb[0].mxu0
        %v1951 = vadd.f32 0.0, %v1950
        %v1952 = vpop.f32.mrb[0].mxu0
        %v1953 = vadd.f32 0.0, %v1952
        %1954 = vdwg.mxu0
        %v1955 = vmul.f32 %v1765, 0.17677669
        %v1956 = vmul.f32 %v1767, 0.17677669
        %v1957 = vmul.f32 %v1771, 0.17677669
        %v1958 = vmul.f32 %v1773, 0.17677669
        %v1959 = vmul.f32 %v1777, 0.17677669
        %v1960 = vmul.f32 %v1779, 0.17677669
        %v1961 = vmul.f32 %v1783, 0.17677669
        %v1962 = vmul.f32 %v1785, 0.17677669
        %v1963 = vmul.f32 %v1789, 0.17677669
        %v1964 = vmul.f32 %v1791, 0.17677669
        %v1965 = vmul.f32 %v1795, 0.17677669
        %v1966 = vmul.f32 %v1797, 0.17677669
        %v1967 = vmul.f32 %v1801, 0.17677669
        %v1968 = vmul.f32 %v1803, 0.17677669
        %v1969 = vmul.f32 %v1807, 0.17677669
        %v1970 = vmul.f32 %v1809, 0.17677669
        %v1971 = vmul.f32 %v1813, 0.17677669
        %v1972 = vmul.f32 %v1815, 0.17677669
        %v1973 = vmul.f32 %v1819, 0.17677669
        %v1974 = vmul.f32 %v1821, 0.17677669
        %v1975 = vmul.f32 %v1825, 0.17677669
        %v1976 = vmul.f32 %v1827, 0.17677669
        %v1977 = vmul.f32 %v1831, 0.17677669
        %v1978 = vmul.f32 %v1833, 0.17677669
        %v1979 = vmul.f32 %v1837, 0.17677669
        %v1980 = vmul.f32 %v1839, 0.17677669
        %v1981 = vmul.f32 %v1843, 0.17677669
        %v1982 = vmul.f32 %v1845, 0.17677669
        %v1983 = vmul.f32 %v1849, 0.17677669
        %v1984 = vmul.f32 %v1851, 0.17677669
        %v1985 = vmul.f32 %v1855, 0.17677669
        %v1986 = vmul.f32 %v1857, 0.17677669
        %v1987 = vmul.f32 %v1861, 0.17677669
        %v1988 = vmul.f32 %v1863, 0.17677669
        %v1989 = vmul.f32 %v1867, 0.17677669
        %v1990 = vmul.f32 %v1869, 0.17677669
        %v1991 = vmul.f32 %v1873, 0.17677669
        %v1992 = vmul.f32 %v1875, 0.17677669
        %v1993 = vmul.f32 %v1879, 0.17677669
        %v1994 = vmul.f32 %v1881, 0.17677669
        %v1995 = vmul.f32 %v1885, 0.17677669
        %v1996 = vmul.f32 %v1887, 0.17677669
        %v1997 = vmul.f32 %v1891, 0.17677669
        %v1998 = vmul.f32 %v1893, 0.17677669
        %v1999 = vmul.f32 %v1897, 0.17677669
        %v2000 = vmul.f32 %v1899, 0.17677669
        %v2001 = vmul.f32 %v1903, 0.17677669
        %v2002 = vmul.f32 %v1905, 0.17677669
        %v2003 = vmul.f32 %v1909, 0.17677669
        %v2004 = vmul.f32 %v1911, 0.17677669
        %v2005 = vmul.f32 %v1915, 0.17677669
        %v2006 = vmul.f32 %v1917, 0.17677669
        %v2007 = vmul.f32 %v1921, 0.17677669
        %v2008 = vmul.f32 %v1923, 0.17677669
        %v2009 = vmul.f32 %v1927, 0.17677669
        %v2010 = vmul.f32 %v1929, 0.17677669
        %v2011 = vmul.f32 %v1933, 0.17677669
        %v2012 = vmul.f32 %v1935, 0.17677669
        %v2013 = vmul.f32 %v1939, 0.17677669
        %v2014 = vmul.f32 %v1941, 0.17677669
        %v2015 = vmul.f32 %v1945, 0.17677669
        %v2016 = vmul.f32 %v1947, 0.17677669
        %v2017 = vmul.f32 %v1951, 0.17677669
        %v2018 = vmul.f32 %v1953, 0.17677669
        %v2019 = vunpack.c.l.bf16 %v729
        %v2020 = vunpack.c.h.bf16 %v729
        %v2021 = vunpack.c.l.bf16 %v730
        %v2022 = vunpack.c.h.bf16 %v730
        %v2023 = vunpack.c.l.bf16 %v731
        %v2024 = vunpack.c.h.bf16 %v731
        %v2025 = vunpack.c.l.bf16 %v732
        %v2026 = vunpack.c.h.bf16 %v732
        %v2027 = vunpack.c.l.bf16 %v733
        %v2028 = vunpack.c.h.bf16 %v733
        %v2029 = vunpack.c.l.bf16 %v734
        %v2030 = vunpack.c.h.bf16 %v734
        %v2031 = vunpack.c.l.bf16 %v735
        %v2032 = vunpack.c.h.bf16 %v735
        %v2033 = vunpack.c.l.bf16 %v736
        %v2034 = vunpack.c.h.bf16 %v736
        %v2035 = vunpack.c.l.bf16 %v737
        %v2036 = vunpack.c.h.bf16 %v737
        %v2037 = vunpack.c.l.bf16 %v738
        %v2038 = vunpack.c.h.bf16 %v738
        %v2039 = vunpack.c.l.bf16 %v739
        %v2040 = vunpack.c.h.bf16 %v739
        %v2041 = vunpack.c.l.bf16 %v740
        %v2042 = vunpack.c.h.bf16 %v740
        %v2043 = vunpack.c.l.bf16 %v741
        %v2044 = vunpack.c.h.bf16 %v741
        %v2045 = vunpack.c.l.bf16 %v742
        %v2046 = vunpack.c.h.bf16 %v742
        %v2047 = vunpack.c.l.bf16 %v743
        %v2048 = vunpack.c.h.bf16 %v743
        %v2049 = vunpack.c.l.bf16 %v744
        %v2050 = vunpack.c.h.bf16 %v744
        %v2051 = vunpack.c.l.bf16 %v745
        %v2052 = vunpack.c.h.bf16 %v745
        %v2053 = vunpack.c.l.bf16 %v746
        %v2054 = vunpack.c.h.bf16 %v746
        %v2055 = vunpack.c.l.bf16 %v747
        %v2056 = vunpack.c.h.bf16 %v747
        %v2057 = vunpack.c.l.bf16 %v748
        %v2058 = vunpack.c.h.bf16 %v748
        %v2059 = vunpack.c.l.bf16 %v749
        %v2060 = vunpack.c.h.bf16 %v749
        %v2061 = vunpack.c.l.bf16 %v750
        %v2062 = vunpack.c.h.bf16 %v750
        %v2063 = vunpack.c.l.bf16 %v751
        %v2064 = vunpack.c.h.bf16 %v751
        %v2065 = vunpack.c.l.bf16 %v752
        %v2066 = vunpack.c.h.bf16 %v752
        %v2067 = vunpack.c.l.bf16 %v753
        %v2068 = vunpack.c.h.bf16 %v753
        %v2069 = vunpack.c.l.bf16 %v754
        %v2070 = vunpack.c.h.bf16 %v754
        %v2071 = vunpack.c.l.bf16 %v755
        %v2072 = vunpack.c.h.bf16 %v755
        %v2073 = vunpack.c.l.bf16 %v756
        %v2074 = vunpack.c.h.bf16 %v756
        %v2075 = vunpack.c.l.bf16 %v757
        %v2076 = vunpack.c.h.bf16 %v757
        %v2077 = vunpack.c.l.bf16 %v758
        %v2078 = vunpack.c.h.bf16 %v758
        %v2079 = vunpack.c.l.bf16 %v759
        %v2080 = vunpack.c.h.bf16 %v759
        %v2081 = vunpack.c.l.bf16 %v760
        %v2082 = vunpack.c.h.bf16 %v760
        %v2083 = vadd.f32 %v1955, %v2019
        %v2084 = vadd.f32 %v1956, %v2020
        %v2085 = vadd.f32 %v1957, %v2021
        %v2086 = vadd.f32 %v1958, %v2022
        %v2087 = vadd.f32 %v1959, %v2023
        %v2088 = vadd.f32 %v1960, %v2024
        %v2089 = vadd.f32 %v1961, %v2025
        %v2090 = vadd.f32 %v1962, %v2026
        %v2091 = vadd.f32 %v1963, %v2027
        %v2092 = vadd.f32 %v1964, %v2028
        %v2093 = vadd.f32 %v1965, %v2029
        %v2094 = vadd.f32 %v1966, %v2030
        %v2095 = vadd.f32 %v1967, %v2031
        %v2096 = vadd.f32 %v1968, %v2032
        %v2097 = vadd.f32 %v1969, %v2033
        %v2098 = vadd.f32 %v1970, %v2034
        %v2099 = vadd.f32 %v1971, %v2035
        %v2100 = vadd.f32 %v1972, %v2036
        %v2101 = vadd.f32 %v1973, %v2037
        %v2102 = vadd.f32 %v1974, %v2038
        %v2103 = vadd.f32 %v1975, %v2039
        %v2104 = vadd.f32 %v1976, %v2040
        %v2105 = vadd.f32 %v1977, %v2041
        %v2106 = vadd.f32 %v1978, %v2042
        %v2107 = vadd.f32 %v1979, %v2043
        %v2108 = vadd.f32 %v1980, %v2044
        %v2109 = vadd.f32 %v1981, %v2045
        %v2110 = vadd.f32 %v1982, %v2046
        %v2111 = vadd.f32 %v1983, %v2047
        %v2112 = vadd.f32 %v1984, %v2048
        %v2113 = vadd.f32 %v1985, %v2049
        %v2114 = vadd.f32 %v1986, %v2050
        %v2115 = vadd.f32 %v1987, %v2051
        %v2116 = vadd.f32 %v1988, %v2052
        %v2117 = vadd.f32 %v1989, %v2053
        %v2118 = vadd.f32 %v1990, %v2054
        %v2119 = vadd.f32 %v1991, %v2055
        %v2120 = vadd.f32 %v1992, %v2056
        %v2121 = vadd.f32 %v1993, %v2057
        %v2122 = vadd.f32 %v1994, %v2058
        %v2123 = vadd.f32 %v1995, %v2059
        %v2124 = vadd.f32 %v1996, %v2060
        %v2125 = vadd.f32 %v1997, %v2061
        %v2126 = vadd.f32 %v1998, %v2062
        %v2127 = vadd.f32 %v1999, %v2063
        %v2128 = vadd.f32 %v2000, %v2064
        %v2129 = vadd.f32 %v2001, %v2065
        %v2130 = vadd.f32 %v2002, %v2066
        %v2131 = vadd.f32 %v2003, %v2067
        %v2132 = vadd.f32 %v2004, %v2068
        %v2133 = vadd.f32 %v2005, %v2069
        %v2134 = vadd.f32 %v2006, %v2070
        %v2135 = vadd.f32 %v2007, %v2071
        %v2136 = vadd.f32 %v2008, %v2072
        %v2137 = vadd.f32 %v2009, %v2073
        %v2138 = vadd.f32 %v2010, %v2074
        %v2139 = vadd.f32 %v2011, %v2075
        %v2140 = vadd.f32 %v2012, %v2076
        %v2141 = vadd.f32 %v2013, %v2077
        %v2142 = vadd.f32 %v2014, %v2078
        %v2143 = vadd.f32 %v2015, %v2079
        %v2144 = vadd.f32 %v2016, %v2080
        %v2145 = vadd.f32 %v2017, %v2081
        %v2146 = vadd.f32 %v2018, %v2082
        %v2147 = vmax.f32 %v2083, %v2084
        %2148 = vmax.xlane.f32.xlu0 %v2147
        %v2149 = vpop.xlane.xlu0 %2148
        %v2150 = vmax.f32 %v2085, %v2086
        %2151 = vmax.xlane.f32.xlu0 %v2150
        %v2152 = vpop.xlane.xlu0 %2151
        %v2153 = vmax.f32 %v2087, %v2088
        %2154 = vmax.xlane.f32.xlu0 %v2153
        %v2155 = vpop.xlane.xlu0 %2154
        %v2156 = vmax.f32 %v2089, %v2090
        %2157 = vmax.xlane.f32.xlu0 %v2156
        %v2158 = vpop.xlane.xlu0 %2157
        %v2159 = vmax.f32 %v2091, %v2092
        %2160 = vmax.xlane.f32.xlu0 %v2159
        %v2161 = vpop.xlane.xlu0 %2160
        %v2162 = vmax.f32 %v2093, %v2094
        %2163 = vmax.xlane.f32.xlu0 %v2162
        %v2164 = vpop.xlane.xlu0 %2163
        %v2165 = vmax.f32 %v2095, %v2096
        %2166 = vmax.xlane.f32.xlu0 %v2165
        %v2167 = vpop.xlane.xlu0 %2166
        %v2168 = vmax.f32 %v2097, %v2098
        %2169 = vmax.xlane.f32.xlu0 %v2168
        %v2170 = vpop.xlane.xlu0 %2169
        %v2171 = vmax.f32 %v2099, %v2100
        %2172 = vmax.xlane.f32.xlu0 %v2171
        %v2173 = vpop.xlane.xlu0 %2172
        %v2174 = vmax.f32 %v2101, %v2102
        %2175 = vmax.xlane.f32.xlu0 %v2174
        %v2176 = vpop.xlane.xlu0 %2175
        %v2177 = vmax.f32 %v2103, %v2104
        %2178 = vmax.xlane.f32.xlu0 %v2177
        %v2179 = vpop.xlane.xlu0 %2178
        %v2180 = vmax.f32 %v2105, %v2106
        %2181 = vmax.xlane.f32.xlu0 %v2180
        %v2182 = vpop.xlane.xlu0 %2181
        %v2183 = vmax.f32 %v2107, %v2108
        %2184 = vmax.xlane.f32.xlu0 %v2183
        %v2185 = vpop.xlane.xlu0 %2184
        %v2186 = vmax.f32 %v2109, %v2110
        %2187 = vmax.xlane.f32.xlu0 %v2186
        %v2188 = vpop.xlane.xlu0 %2187
        %v2189 = vmax.f32 %v2111, %v2112
        %2190 = vmax.xlane.f32.xlu0 %v2189
        %v2191 = vpop.xlane.xlu0 %2190
        %v2192 = vmax.f32 %v2113, %v2114
        %2193 = vmax.xlane.f32.xlu0 %v2192
        %v2194 = vpop.xlane.xlu0 %2193
        %v2195 = vmax.f32 %v2115, %v2116
        %2196 = vmax.xlane.f32.xlu0 %v2195
        %v2197 = vpop.xlane.xlu0 %2196
        %v2198 = vmax.f32 %v2117, %v2118
        %2199 = vmax.xlane.f32.xlu0 %v2198
        %v2200 = vpop.xlane.xlu0 %2199
        %v2201 = vmax.f32 %v2119, %v2120
        %2202 = vmax.xlane.f32.xlu0 %v2201
        %v2203 = vpop.xlane.xlu0 %2202
        %v2204 = vmax.f32 %v2121, %v2122
        %2205 = vmax.xlane.f32.xlu0 %v2204
        %v2206 = vpop.xlane.xlu0 %2205
        %v2207 = vmax.f32 %v2123, %v2124
        %2208 = vmax.xlane.f32.xlu0 %v2207
        %v2209 = vpop.xlane.xlu0 %2208
        %v2210 = vmax.f32 %v2125, %v2126
        %2211 = vmax.xlane.f32.xlu0 %v2210
        %v2212 = vpop.xlane.xlu0 %2211
        %v2213 = vmax.f32 %v2127, %v2128
        %2214 = vmax.xlane.f32.xlu0 %v2213
        %v2215 = vpop.xlane.xlu0 %2214
        %v2216 = vmax.f32 %v2129, %v2130
        %2217 = vmax.xlane.f32.xlu0 %v2216
        %v2218 = vpop.xlane.xlu0 %2217
        %v2219 = vmax.f32 %v2131, %v2132
        %2220 = vmax.xlane.f32.xlu0 %v2219
        %v2221 = vpop.xlane.xlu0 %2220
        %v2222 = vmax.f32 %v2133, %v2134
        %2223 = vmax.xlane.f32.xlu0 %v2222
        %v2224 = vpop.xlane.xlu0 %2223
        %v2225 = vmax.f32 %v2135, %v2136
        %2226 = vmax.xlane.f32.xlu0 %v2225
        %v2227 = vpop.xlane.xlu0 %2226
        %v2228 = vmax.f32 %v2137, %v2138
        %2229 = vmax.xlane.f32.xlu0 %v2228
        %v2230 = vpop.xlane.xlu0 %2229
        %v2231 = vmax.f32 %v2139, %v2140
        %2232 = vmax.xlane.f32.xlu0 %v2231
        %v2233 = vpop.xlane.xlu0 %2232
        %v2234 = vmax.f32 %v2141, %v2142
        %2235 = vmax.xlane.f32.xlu0 %v2234
        %v2236 = vpop.xlane.xlu0 %2235
        %v2237 = vmax.f32 %v2143, %v2144
        %2238 = vmax.xlane.f32.xlu0 %v2237
        %v2239 = vpop.xlane.xlu0 %2238
        %v2240 = vmax.f32 %v2145, %v2146
        %2241 = vmax.xlane.f32.xlu0 %v2240
        %v2242 = vpop.xlane.xlu0 %2241
        %v2243 = vsub.f32 %v2083, %v2149
        %v2244 = vsub.f32 %v2084, %v2149
        %v2245 = vsub.f32 %v2085, %v2152
        %v2246 = vsub.f32 %v2086, %v2152
        %v2247 = vsub.f32 %v2087, %v2155
        %v2248 = vsub.f32 %v2088, %v2155
        %v2249 = vsub.f32 %v2089, %v2158
        %v2250 = vsub.f32 %v2090, %v2158
        %v2251 = vsub.f32 %v2091, %v2161
        %v2252 = vsub.f32 %v2092, %v2161
        %v2253 = vsub.f32 %v2093, %v2164
        %v2254 = vsub.f32 %v2094, %v2164
        %v2255 = vsub.f32 %v2095, %v2167
        %v2256 = vsub.f32 %v2096, %v2167
        %v2257 = vsub.f32 %v2097, %v2170
        %v2258 = vsub.f32 %v2098, %v2170
        %v2259 = vsub.f32 %v2099, %v2173
        %v2260 = vsub.f32 %v2100, %v2173
        %v2261 = vsub.f32 %v2101, %v2176
        %v2262 = vsub.f32 %v2102, %v2176
        %v2263 = vsub.f32 %v2103, %v2179
        %v2264 = vsub.f32 %v2104, %v2179
        %v2265 = vsub.f32 %v2105, %v2182
        %v2266 = vsub.f32 %v2106, %v2182
        %v2267 = vsub.f32 %v2107, %v2185
        %v2268 = vsub.f32 %v2108, %v2185
        %v2269 = vsub.f32 %v2109, %v2188
        %v2270 = vsub.f32 %v2110, %v2188
        %v2271 = vsub.f32 %v2111, %v2191
        %v2272 = vsub.f32 %v2112, %v2191
        %v2273 = vsub.f32 %v2113, %v2194
        %v2274 = vsub.f32 %v2114, %v2194
        %v2275 = vsub.f32 %v2115, %v2197
        %v2276 = vsub.f32 %v2116, %v2197
        %v2277 = vsub.f32 %v2117, %v2200
        %v2278 = vsub.f32 %v2118, %v2200
        %v2279 = vsub.f32 %v2119, %v2203
        %v2280 = vsub.f32 %v2120, %v2203
        %v2281 = vsub.f32 %v2121, %v2206
        %v2282 = vsub.f32 %v2122, %v2206
        %v2283 = vsub.f32 %v2123, %v2209
        %v2284 = vsub.f32 %v2124, %v2209
        %v2285 = vsub.f32 %v2125, %v2212
        %v2286 = vsub.f32 %v2126, %v2212
        %v2287 = vsub.f32 %v2127, %v2215
        %v2288 = vsub.f32 %v2128, %v2215
        %v2289 = vsub.f32 %v2129, %v2218
        %v2290 = vsub.f32 %v2130, %v2218
        %v2291 = vsub.f32 %v2131, %v2221
        %v2292 = vsub.f32 %v2132, %v2221
        %v2293 = vsub.f32 %v2133, %v2224
        %v2294 = vsub.f32 %v2134, %v2224
        %v2295 = vsub.f32 %v2135, %v2227
        %v2296 = vsub.f32 %v2136, %v2227
        %v2297 = vsub.f32 %v2137, %v2230
        %v2298 = vsub.f32 %v2138, %v2230
        %v2299 = vsub.f32 %v2139, %v2233
        %v2300 = vsub.f32 %v2140, %v2233
        %v2301 = vsub.f32 %v2141, %v2236
        %v2302 = vsub.f32 %v2142, %v2236
        %v2303 = vsub.f32 %v2143, %v2239
        %v2304 = vsub.f32 %v2144, %v2239
        %v2305 = vsub.f32 %v2145, %v2242
        %v2306 = vsub.f32 %v2146, %v2242
        %v2307 = vmul.f32 %v2243, 1.442695
        %v2308 = vpow.pop %v2307
        %v2309 = vmul.f32 %v2244, 1.442695
        %v2310 = vpow.pop %v2309
        %v2311 = vmul.f32 %v2245, 1.442695
        %v2312 = vpow.pop %v2311
        %v2313 = vmul.f32 %v2246, 1.442695
        %v2314 = vpow.pop %v2313
        %v2315 = vmul.f32 %v2247, 1.442695
        %v2316 = vpow.pop %v2315
        %v2317 = vmul.f32 %v2248, 1.442695
        %v2318 = vpow.pop %v2317
        %v2319 = vmul.f32 %v2249, 1.442695
        %v2320 = vpow.pop %v2319
        %v2321 = vmul.f32 %v2250, 1.442695
        %v2322 = vpow.pop %v2321
        %v2323 = vmul.f32 %v2251, 1.442695
        %v2324 = vpow.pop %v2323
        %v2325 = vmul.f32 %v2252, 1.442695
        %v2326 = vpow.pop %v2325
        %v2327 = vmul.f32 %v2253, 1.442695
        %v2328 = vpow.pop %v2327
        %v2329 = vmul.f32 %v2254, 1.442695
        %v2330 = vpow.pop %v2329
        %v2331 = vmul.f32 %v2255, 1.442695
        %v2332 = vpow.pop %v2331
        %v2333 = vmul.f32 %v2256, 1.442695
        %v2334 = vpow.pop %v2333
        %v2335 = vmul.f32 %v2257, 1.442695
        %v2336 = vpow.pop %v2335
        %v2337 = vmul.f32 %v2258, 1.442695
        %v2338 = vpow.pop %v2337
        %v2339 = vmul.f32 %v2259, 1.442695
        %v2340 = vpow.pop %v2339
        %v2341 = vmul.f32 %v2260, 1.442695
        %v2342 = vpow.pop %v2341
        %v2343 = vmul.f32 %v2261, 1.442695
        %v2344 = vpow.pop %v2343
        %v2345 = vmul.f32 %v2262, 1.442695
        %v2346 = vpow.pop %v2345
        %v2347 = vmul.f32 %v2263, 1.442695
        %v2348 = vpow.pop %v2347
        %v2349 = vmul.f32 %v2264, 1.442695
        %v2350 = vpow.pop %v2349
        %v2351 = vmul.f32 %v2265, 1.442695
        %v2352 = vpow.pop %v2351
        %v2353 = vmul.f32 %v2266, 1.442695
        %v2354 = vpow.pop %v2353
        %v2355 = vmul.f32 %v2267, 1.442695
        %v2356 = vpow.pop %v2355
        %v2357 = vmul.f32 %v2268, 1.442695
        %v2358 = vpow.pop %v2357
        %v2359 = vmul.f32 %v2269, 1.442695
        %v2360 = vpow.pop %v2359
        %v2361 = vmul.f32 %v2270, 1.442695
        %v2362 = vpow.pop %v2361
        %v2363 = vmul.f32 %v2271, 1.442695
        %v2364 = vpow.pop %v2363
        %v2365 = vmul.f32 %v2272, 1.442695
        %v2366 = vpow.pop %v2365
        %v2367 = vmul.f32 %v2273, 1.442695
        %v2368 = vpow.pop %v2367
        %v2369 = vmul.f32 %v2274, 1.442695
        %v2370 = vpow.pop %v2369
        %v2371 = vmul.f32 %v2275, 1.442695
        %v2372 = vpow.pop %v2371
        %v2373 = vmul.f32 %v2276, 1.442695
        %v2374 = vpow.pop %v2373
        %v2375 = vmul.f32 %v2277, 1.442695
        %v2376 = vpow.pop %v2375
        %v2377 = vmul.f32 %v2278, 1.442695
        %v2378 = vpow.pop %v2377
        %v2379 = vmul.f32 %v2279, 1.442695
        %v2380 = vpow.pop %v2379
        %v2381 = vmul.f32 %v2280, 1.442695
        %v2382 = vpow.pop %v2381
        %v2383 = vmul.f32 %v2281, 1.442695
        %v2384 = vpow.pop %v2383
        %v2385 = vmul.f32 %v2282, 1.442695
        %v2386 = vpow.pop %v2385
        %v2387 = vmul.f32 %v2283, 1.442695
        %v2388 = vpow.pop %v2387
        %v2389 = vmul.f32 %v2284, 1.442695
        %v2390 = vpow.pop %v2389
        %v2391 = vmul.f32 %v2285, 1.442695
        %v2392 = vpow.pop %v2391
        %v2393 = vmul.f32 %v2286, 1.442695
        %v2394 = vpow.pop %v2393
        %v2395 = vmul.f32 %v2287, 1.442695
        %v2396 = vpow.pop %v2395
        %v2397 = vmul.f32 %v2288, 1.442695
        %v2398 = vpow.pop %v2397
        %v2399 = vmul.f32 %v2289, 1.442695
        %v2400 = vpow.pop %v2399
        %v2401 = vmul.f32 %v2290, 1.442695
        %v2402 = vpow.pop %v2401
        %v2403 = vmul.f32 %v2291, 1.442695
        %v2404 = vpow.pop %v2403
        %v2405 = vmul.f32 %v2292, 1.442695
        %v2406 = vpow.pop %v2405
        %v2407 = vmul.f32 %v2293, 1.442695
        %v2408 = vpow.pop %v2407
        %v2409 = vmul.f32 %v2294, 1.442695
        %v2410 = vpow.pop %v2409
        %v2411 = vmul.f32 %v2295, 1.442695
        %v2412 = vpow.pop %v2411
        %v2413 = vmul.f32 %v2296, 1.442695
        %v2414 = vpow.pop %v2413
        %v2415 = vmul.f32 %v2297, 1.442695
        %v2416 = vpow.pop %v2415
        %v2417 = vmul.f32 %v2298, 1.442695
        %v2418 = vpow.pop %v2417
        %v2419 = vmul.f32 %v2299, 1.442695
        %v2420 = vpow.pop %v2419
        %v2421 = vmul.f32 %v2300, 1.442695
        %v2422 = vpow.pop %v2421
        %v2423 = vmul.f32 %v2301, 1.442695
        %v2424 = vpow.pop %v2423
        %v2425 = vmul.f32 %v2302, 1.442695
        %v2426 = vpow.pop %v2425
        %v2427 = vmul.f32 %v2303, 1.442695
        %v2428 = vpow.pop %v2427
        %v2429 = vmul.f32 %v2304, 1.442695
        %v2430 = vpow.pop %v2429
        %v2431 = vmul.f32 %v2305, 1.442695
        %v2432 = vpow.pop %v2431
        %v2433 = vmul.f32 %v2306, 1.442695
        %v2434 = vpow.pop %v2433
        %v2435 = vadd.f32 %v2308, %v2310
        %2436 = vadd.xlane.f32.xlu0 %v2435
        %v2437 = vpop.xlane.xlu0 %2436
        %v2438 = vadd.f32 %v2312, %v2314
        %2439 = vadd.xlane.f32.xlu0 %v2438
        %v2440 = vpop.xlane.xlu0 %2439
        %v2441 = vadd.f32 %v2316, %v2318
        %2442 = vadd.xlane.f32.xlu0 %v2441
        %v2443 = vpop.xlane.xlu0 %2442
        %v2444 = vadd.f32 %v2320, %v2322
        %2445 = vadd.xlane.f32.xlu0 %v2444
        %v2446 = vpop.xlane.xlu0 %2445
        %v2447 = vadd.f32 %v2324, %v2326
        %2448 = vadd.xlane.f32.xlu0 %v2447
        %v2449 = vpop.xlane.xlu0 %2448
        %v2450 = vadd.f32 %v2328, %v2330
        %2451 = vadd.xlane.f32.xlu0 %v2450
        %v2452 = vpop.xlane.xlu0 %2451
        %v2453 = vadd.f32 %v2332, %v2334
        %2454 = vadd.xlane.f32.xlu0 %v2453
        %v2455 = vpop.xlane.xlu0 %2454
        %v2456 = vadd.f32 %v2336, %v2338
        %2457 = vadd.xlane.f32.xlu0 %v2456
        %v2458 = vpop.xlane.xlu0 %2457
        %v2459 = vadd.f32 %v2340, %v2342
        %2460 = vadd.xlane.f32.xlu0 %v2459
        %v2461 = vpop.xlane.xlu0 %2460
        %v2462 = vadd.f32 %v2344, %v2346
        %2463 = vadd.xlane.f32.xlu0 %v2462
        %v2464 = vpop.xlane.xlu0 %2463
        %v2465 = vadd.f32 %v2348, %v2350
        %2466 = vadd.xlane.f32.xlu0 %v2465
        %v2467 = vpop.xlane.xlu0 %2466
        %v2468 = vadd.f32 %v2352, %v2354
        %2469 = vadd.xlane.f32.xlu0 %v2468
        %v2470 = vpop.xlane.xlu0 %2469
        %v2471 = vadd.f32 %v2356, %v2358
        %2472 = vadd.xlane.f32.xlu0 %v2471
        %v2473 = vpop.xlane.xlu0 %2472
        %v2474 = vadd.f32 %v2360, %v2362
        %2475 = vadd.xlane.f32.xlu0 %v2474
        %v2476 = vpop.xlane.xlu0 %2475
        %v2477 = vadd.f32 %v2364, %v2366
        %2478 = vadd.xlane.f32.xlu0 %v2477
        %v2479 = vpop.xlane.xlu0 %2478
        %v2480 = vadd.f32 %v2368, %v2370
        %2481 = vadd.xlane.f32.xlu0 %v2480
        %v2482 = vpop.xlane.xlu0 %2481
        %v2483 = vadd.f32 %v2372, %v2374
        %2484 = vadd.xlane.f32.xlu0 %v2483
        %v2485 = vpop.xlane.xlu0 %2484
        %v2486 = vadd.f32 %v2376, %v2378
        %2487 = vadd.xlane.f32.xlu0 %v2486
        %v2488 = vpop.xlane.xlu0 %2487
        %v2489 = vadd.f32 %v2380, %v2382
        %2490 = vadd.xlane.f32.xlu0 %v2489
        %v2491 = vpop.xlane.xlu0 %2490
        %v2492 = vadd.f32 %v2384, %v2386
        %2493 = vadd.xlane.f32.xlu0 %v2492
        %v2494 = vpop.xlane.xlu0 %2493
        %v2495 = vadd.f32 %v2388, %v2390
        %2496 = vadd.xlane.f32.xlu0 %v2495
        %v2497 = vpop.xlane.xlu0 %2496
        %v2498 = vadd.f32 %v2392, %v2394
        %2499 = vadd.xlane.f32.xlu0 %v2498
        %v2500 = vpop.xlane.xlu0 %2499
        %v2501 = vadd.f32 %v2396, %v2398
        %2502 = vadd.xlane.f32.xlu0 %v2501
        %v2503 = vpop.xlane.xlu0 %2502
        %v2504 = vadd.f32 %v2400, %v2402
        %2505 = vadd.xlane.f32.xlu0 %v2504
        %v2506 = vpop.xlane.xlu0 %2505
        %v2507 = vadd.f32 %v2404, %v2406
        %2508 = vadd.xlane.f32.xlu0 %v2507
        %v2509 = vpop.xlane.xlu0 %2508
        %v2510 = vadd.f32 %v2408, %v2410
        %2511 = vadd.xlane.f32.xlu0 %v2510
        %v2512 = vpop.xlane.xlu0 %2511
        %v2513 = vadd.f32 %v2412, %v2414
        %2514 = vadd.xlane.f32.xlu0 %v2513
        %v2515 = vpop.xlane.xlu0 %2514
        %v2516 = vadd.f32 %v2416, %v2418
        %2517 = vadd.xlane.f32.xlu0 %v2516
        %v2518 = vpop.xlane.xlu0 %2517
        %v2519 = vadd.f32 %v2420, %v2422
        %2520 = vadd.xlane.f32.xlu0 %v2519
        %v2521 = vpop.xlane.xlu0 %2520
        %v2522 = vadd.f32 %v2424, %v2426
        %2523 = vadd.xlane.f32.xlu0 %v2522
        %v2524 = vpop.xlane.xlu0 %2523
        %v2525 = vadd.f32 %v2428, %v2430
        %2526 = vadd.xlane.f32.xlu0 %v2525
        %v2527 = vpop.xlane.xlu0 %2526
        %v2528 = vadd.f32 %v2432, %v2434
        %2529 = vadd.xlane.f32.xlu0 %v2528
        %v2530 = vpop.xlane.xlu0 %2529
        %2531 = vmatprep.subr.mxu0 0.0
        %2532 = vmatpush1.msra.mxu0 %v1347
        %2533 = vmatprep.subr.mxu0 0.0
        %2534 = vmatpush1.msra.mxu0 %v1352
        %2535 = vmatprep.subr.mxu0 0.0
        %2536 = vmatpush1.msra.mxu0 %v1357
        %2537 = vmatprep.subr.mxu0 0.0
        %2538 = vmatpush1.msra.mxu0 %v1362
        %2539 = vmatprep.subr.mxu0 0.0
        %2540 = vmatpush1.msra.mxu0 %v1367
        %2541 = vmatprep.subr.mxu0 0.0
        %2542 = vmatpush1.msra.mxu0 %v1372
        %2543 = vmatprep.subr.mxu0 0.0
        %2544 = vmatpush1.msra.mxu0 %v1377
        %2545 = vmatprep.subr.mxu0 0.0
        %2546 = vmatpush1.msra.mxu0 %v1382
        %2547 = vmatprep.subr.mxu0 0.0
        %2548 = vmatpush1.msra.mxu0 %v1387
        %2549 = vmatprep.subr.mxu0 0.0
        %2550 = vmatpush1.msra.mxu0 %v1392
        %2551 = vmatprep.subr.mxu0 0.0
        %2552 = vmatpush1.msra.mxu0 %v1397
        %2553 = vmatprep.subr.mxu0 0.0
        %2554 = vmatpush1.msra.mxu0 %v1402
        %2555 = vmatprep.subr.mxu0 0.0
        %2556 = vmatpush1.msra.mxu0 %v1407
        %2557 = vmatprep.subr.mxu0 0.0
        %2558 = vmatpush1.msra.mxu0 %v1412
        %2559 = vmatprep.subr.mxu0 0.0
        %2560 = vmatpush1.msra.mxu0 %v1417
        %2561 = vmatprep.subr.mxu0 0.0
        %2562 = vmatpush1.msra.mxu0 %v1422
        %2563 = vmatprep.subr.mxu0 0.0
        %2564 = vmatpush1.msra.mxu0 %v1427
        %2565 = vmatprep.subr.mxu0 0.0
        %2566 = vmatpush1.msra.mxu0 %v1432
        %2567 = vmatprep.subr.mxu0 0.0
        %2568 = vmatpush1.msra.mxu0 %v1437
        %2569 = vmatprep.subr.mxu0 0.0
        %2570 = vmatpush1.msra.mxu0 %v1442
        %2571 = vmatprep.subr.mxu0 0.0
        %2572 = vmatpush1.msra.mxu0 %v1447
        %2573 = vmatprep.subr.mxu0 0.0
        %2574 = vmatpush1.msra.mxu0 %v1452
        %2575 = vmatprep.subr.mxu0 0.0
        %2576 = vmatpush1.msra.mxu0 %v1457
        %2577 = vmatprep.subr.mxu0 0.0
        %2578 = vmatpush1.msra.mxu0 %v1462
        %2579 = vmatprep.subr.mxu0 0.0
        %2580 = vmatpush1.msra.mxu0 %v1467
        %2581 = vmatprep.subr.mxu0 0.0
        %2582 = vmatpush1.msra.mxu0 %v1472
        %2583 = vmatprep.subr.mxu0 0.0
        %2584 = vmatpush1.msra.mxu0 %v1477
        %2585 = vmatprep.subr.mxu0 0.0
        %2586 = vmatpush1.msra.mxu0 %v1482
        %2587 = vmatprep.subr.mxu0 0.0
        %2588 = vmatpush1.msra.mxu0 %v1487
        %2589 = vmatprep.subr.mxu0 0.0
        %2590 = vmatpush1.msra.mxu0 %v1492
        %2591 = vmatprep.subr.mxu0 0.0
        %2592 = vmatpush1.msra.mxu0 %v1497
        %2593 = vmatprep.subr.mxu0 0.0
        %2594 = vmatpush1.msra.mxu0 %v1502
        %2595 = vmatprep.mubr.f32.mxu0 %v2310
        %2596 = vmatmul.mubr.f32.gmra.mrb[0].mxu0 %v2308
        %v2597 = vpop.f32.mrb[0].mxu0
        %v2598 = vadd.f32 0.0, %v2597
        %v2599 = vpop.f32.mrb[0].mxu0
        %2600 = vmatprep.mubr.f32.mxu0 %v2314
        %2601 = vmatmul.mubr.f32.gmra.mrb[0].mxu0 %v2312
        %v2602 = vpop.f32.mrb[0].mxu0
        %v2603 = vadd.f32 0.0, %v2602
        %v2604 = vpop.f32.mrb[0].mxu0
        %2605 = vmatprep.mubr.f32.mxu0 %v2318
        %2606 = vmatmul.mubr.f32.gmra.mrb[0].mxu0 %v2316
        %v2607 = vpop.f32.mrb[0].mxu0
        %v2608 = vadd.f32 0.0, %v2607
        %v2609 = vpop.f32.mrb[0].mxu0
        %2610 = vmatprep.mubr.f32.mxu0 %v2322
        %2611 = vmatmul.mubr.f32.gmra.mrb[0].mxu0 %v2320
        %v2612 = vpop.f32.mrb[0].mxu0
        %v2613 = vadd.f32 0.0, %v2612
        %v2614 = vpop.f32.mrb[0].mxu0
        %2615 = vmatprep.mubr.f32.mxu0 %v2326
        %2616 = vmatmul.mubr.f32.gmra.mrb[0].mxu0 %v2324
        %v2617 = vpop.f32.mrb[0].mxu0
        %v2618 = vadd.f32 0.0, %v2617
        %v2619 = vpop.f32.mrb[0].mxu0
        %2620 = vmatprep.mubr.f32.mxu0 %v2330
        %2621 = vmatmul.mubr.f32.gmra.mrb[0].mxu0 %v2328
        %v2622 = vpop.f32.mrb[0].mxu0
        %v2623 = vadd.f32 0.0, %v2622
        %v2624 = vpop.f32.mrb[0].mxu0
        %2625 = vmatprep.mubr.f32.mxu0 %v2334
        %2626 = vmatmul.mubr.f32.gmra.mrb[0].mxu0 %v2332
        %v2627 = vpop.f32.mrb[0].mxu0
        %v2628 = vadd.f32 0.0, %v2627
        %v2629 = vpop.f32.mrb[0].mxu0
        %2630 = vmatprep.mubr.f32.mxu0 %v2338
        %2631 = vmatmul.mubr.f32.gmra.mrb[0].mxu0 %v2336
        %v2632 = vpop.f32.mrb[0].mxu0
        %v2633 = vadd.f32 0.0, %v2632
        %v2634 = vpop.f32.mrb[0].mxu0
        %2635 = vmatprep.mubr.f32.mxu0 %v2342
        %2636 = vmatmul.mubr.f32.gmra.mrb[0].mxu0 %v2340
        %v2637 = vpop.f32.mrb[0].mxu0
        %v2638 = vadd.f32 0.0, %v2637
        %v2639 = vpop.f32.mrb[0].mxu0
        %2640 = vmatprep.mubr.f32.mxu0 %v2346
        %2641 = vmatmul.mubr.f32.gmra.mrb[0].mxu0 %v2344
        %v2642 = vpop.f32.mrb[0].mxu0
        %v2643 = vadd.f32 0.0, %v2642
        %v2644 = vpop.f32.mrb[0].mxu0
        %2645 = vmatprep.mubr.f32.mxu0 %v2350
        %2646 = vmatmul.mubr.f32.gmra.mrb[0].mxu0 %v2348
        %v2647 = vpop.f32.mrb[0].mxu0
        %v2648 = vadd.f32 0.0, %v2647
        %v2649 = vpop.f32.mrb[0].mxu0
        %2650 = vmatprep.mubr.f32.mxu0 %v2354
        %2651 = vmatmul.mubr.f32.gmra.mrb[0].mxu0 %v2352
        %v2652 = vpop.f32.mrb[0].mxu0
        %v2653 = vadd.f32 0.0, %v2652
        %v2654 = vpop.f32.mrb[0].mxu0
        %2655 = vmatprep.mubr.f32.mxu0 %v2358
        %2656 = vmatmul.mubr.f32.gmra.mrb[0].mxu0 %v2356
        %v2657 = vpop.f32.mrb[0].mxu0
        %v2658 = vadd.f32 0.0, %v2657
        %v2659 = vpop.f32.mrb[0].mxu0
        %2660 = vmatprep.mubr.f32.mxu0 %v2362
        %2661 = vmatmul.mubr.f32.gmra.mrb[0].mxu0 %v2360
        %v2662 = vpop.f32.mrb[0].mxu0
        %v2663 = vadd.f32 0.0, %v2662
        %v2664 = vpop.f32.mrb[0].mxu0
        %2665 = vmatprep.mubr.f32.mxu0 %v2366
        %2666 = vmatmul.mubr.f32.gmra.mrb[0].mxu0 %v2364
        %v2667 = vpop.f32.mrb[0].mxu0
        %v2668 = vadd.f32 0.0, %v2667
        %v2669 = vpop.f32.mrb[0].mxu0
        %2670 = vmatprep.mubr.f32.mxu0 %v2370
        %2671 = vmatmul.mubr.f32.gmra.mrb[0].mxu0 %v2368
        %v2672 = vpop.f32.mrb[0].mxu0
        %v2673 = vadd.f32 0.0, %v2672
        %v2674 = vpop.f32.mrb[0].mxu0
        %2675 = vmatprep.mubr.f32.mxu0 %v2374
        %2676 = vmatmul.mubr.f32.gmra.mrb[0].mxu0 %v2372
        %v2677 = vpop.f32.mrb[0].mxu0
        %v2678 = vadd.f32 0.0, %v2677
        %v2679 = vpop.f32.mrb[0].mxu0
        %2680 = vmatprep.mubr.f32.mxu0 %v2378
        %2681 = vmatmul.mubr.f32.gmra.mrb[0].mxu0 %v2376
        %v2682 = vpop.f32.mrb[0].mxu0
        %v2683 = vadd.f32 0.0, %v2682
        %v2684 = vpop.f32.mrb[0].mxu0
        %2685 = vmatprep.mubr.f32.mxu0 %v2382
        %2686 = vmatmul.mubr.f32.gmra.mrb[0].mxu0 %v2380
        %v2687 = vpop.f32.mrb[0].mxu0
        %v2688 = vadd.f32 0.0, %v2687
        %v2689 = vpop.f32.mrb[0].mxu0
        %2690 = vmatprep.mubr.f32.mxu0 %v2386
        %2691 = vmatmul.mubr.f32.gmra.mrb[0].mxu0 %v2384
        %v2692 = vpop.f32.mrb[0].mxu0
        %v2693 = vadd.f32 0.0, %v2692
        %v2694 = vpop.f32.mrb[0].mxu0
        %2695 = vmatprep.mubr.f32.mxu0 %v2390
        %2696 = vmatmul.mubr.f32.gmra.mrb[0].mxu0 %v2388
        %v2697 = vpop.f32.mrb[0].mxu0
        %v2698 = vadd.f32 0.0, %v2697
        %v2699 = vpop.f32.mrb[0].mxu0
        %2700 = vmatprep.mubr.f32.mxu0 %v2394
        %2701 = vmatmul.mubr.f32.gmra.mrb[0].mxu0 %v2392
        %v2702 = vpop.f32.mrb[0].mxu0
        %v2703 = vadd.f32 0.0, %v2702
        %v2704 = vpop.f32.mrb[0].mxu0
        %2705 = vmatprep.mubr.f32.mxu0 %v2398
        %2706 = vmatmul.mubr.f32.gmra.mrb[0].mxu0 %v2396
        %v2707 = vpop.f32.mrb[0].mxu0
        %v2708 = vadd.f32 0.0, %v2707
        %v2709 = vpop.f32.mrb[0].mxu0
        %2710 = vmatprep.mubr.f32.mxu0 %v2402
        %2711 = vmatmul.mubr.f32.gmra.mrb[0].mxu0 %v2400
        %v2712 = vpop.f32.mrb[0].mxu0
        %v2713 = vadd.f32 0.0, %v2712
        %v2714 = vpop.f32.mrb[0].mxu0
        %2715 = vmatprep.mubr.f32.mxu0 %v2406
        %2716 = vmatmul.mubr.f32.gmra.mrb[0].mxu0 %v2404
        %v2717 = vpop.f32.mrb[0].mxu0
        %v2718 = vadd.f32 0.0, %v2717
        %v2719 = vpop.f32.mrb[0].mxu0
        %2720 = vmatprep.mubr.f32.mxu0 %v2410
        %2721 = vmatmul.mubr.f32.gmra.mrb[0].mxu0 %v2408
        %v2722 = vpop.f32.mrb[0].mxu0
        %v2723 = vadd.f32 0.0, %v2722
        %v2724 = vpop.f32.mrb[0].mxu0
        %2725 = vmatprep.mubr.f32.mxu0 %v2414
        %2726 = vmatmul.mubr.f32.gmra.mrb[0].mxu0 %v2412
        %v2727 = vpop.f32.mrb[0].mxu0
        %v2728 = vadd.f32 0.0, %v2727
        %v2729 = vpop.f32.mrb[0].mxu0
        %2730 = vmatprep.mubr.f32.mxu0 %v2418
        %2731 = vmatmul.mubr.f32.gmra.mrb[0].mxu0 %v2416
        %v2732 = vpop.f32.mrb[0].mxu0
        %v2733 = vadd.f32 0.0, %v2732
        %v2734 = vpop.f32.mrb[0].mxu0
        %2735 = vmatprep.mubr.f32.mxu0 %v2422
        %2736 = vmatmul.mubr.f32.gmra.mrb[0].mxu0 %v2420
        %v2737 = vpop.f32.mrb[0].mxu0
        %v2738 = vadd.f32 0.0, %v2737
        %v2739 = vpop.f32.mrb[0].mxu0
        %2740 = vmatprep.mubr.f32.mxu0 %v2426
        %2741 = vmatmul.mubr.f32.gmra.mrb[0].mxu0 %v2424
        %v2742 = vpop.f32.mrb[0].mxu0
        %v2743 = vadd.f32 0.0, %v2742
        %v2744 = vpop.f32.mrb[0].mxu0
        %2745 = vmatprep.mubr.f32.mxu0 %v2430
        %2746 = vmatmul.mubr.f32.gmra.mrb[0].mxu0 %v2428
        %v2747 = vpop.f32.mrb[0].mxu0
        %v2748 = vadd.f32 0.0, %v2747
        %v2749 = vpop.f32.mrb[0].mxu0
        %2750 = vmatprep.mubr.f32.mxu0 %v2434
        %2751 = vmatmul.mubr.f32.gmra.mrb[0].mxu0 %v2432
        %v2752 = vpop.f32.mrb[0].mxu0
        %v2753 = vadd.f32 0.0, %v2752
        %v2754 = vpop.f32.mrb[0].mxu0
        %2755 = vdwg.mxu0
        %v2756 = vrcp.pop %v2437
        %v2757 = vrcp.pop %v2440
        %v2758 = vrcp.pop %v2443
        %v2759 = vrcp.pop %v2446
        %v2760 = vrcp.pop %v2449
        %v2761 = vrcp.pop %v2452
        %v2762 = vrcp.pop %v2455
        %v2763 = vrcp.pop %v2458
        %v2764 = vrcp.pop %v2461
        %v2765 = vrcp.pop %v2464
        %v2766 = vrcp.pop %v2467
        %v2767 = vrcp.pop %v2470
        %v2768 = vrcp.pop %v2473
        %v2769 = vrcp.pop %v2476
        %v2770 = vrcp.pop %v2479
        %v2771 = vrcp.pop %v2482
        %v2772 = vrcp.pop %v2485
        %v2773 = vrcp.pop %v2488
        %v2774 = vrcp.pop %v2491
        %v2775 = vrcp.pop %v2494
        %v2776 = vrcp.pop %v2497
        %v2777 = vrcp.pop %v2500
        %v2778 = vrcp.pop %v2503
        %v2779 = vrcp.pop %v2506
        %v2780 = vrcp.pop %v2509
        %v2781 = vrcp.pop %v2512
        %v2782 = vrcp.pop %v2515
        %v2783 = vrcp.pop %v2518
        %v2784 = vrcp.pop %v2521
        %v2785 = vrcp.pop %v2524
        %v2786 = vrcp.pop %v2527
        %v2787 = vrcp.pop %v2530
        %v2788 = vmul.f32 %v2598, %v2756
        %v2789 = vmul.f32 %v2603, %v2757
        %v2790 = vmul.f32 %v2608, %v2758
        %v2791 = vmul.f32 %v2613, %v2759
        %v2792 = vmul.f32 %v2618, %v2760
        %v2793 = vmul.f32 %v2623, %v2761
        %v2794 = vmul.f32 %v2628, %v2762
        %v2795 = vmul.f32 %v2633, %v2763
        %v2796 = vmul.f32 %v2638, %v2764
        %v2797 = vmul.f32 %v2643, %v2765
        %v2798 = vmul.f32 %v2648, %v2766
        %v2799 = vmul.f32 %v2653, %v2767
        %v2800 = vmul.f32 %v2658, %v2768
        %v2801 = vmul.f32 %v2663, %v2769
        %v2802 = vmul.f32 %v2668, %v2770
        %v2803 = vmul.f32 %v2673, %v2771
        %v2804 = vmul.f32 %v2678, %v2772
        %v2805 = vmul.f32 %v2683, %v2773
        %v2806 = vmul.f32 %v2688, %v2774
        %v2807 = vmul.f32 %v2693, %v2775
        %v2808 = vmul.f32 %v2698, %v2776
        %v2809 = vmul.f32 %v2703, %v2777
        %v2810 = vmul.f32 %v2708, %v2778
        %v2811 = vmul.f32 %v2713, %v2779
        %v2812 = vmul.f32 %v2718, %v2780
        %v2813 = vmul.f32 %v2723, %v2781
        %v2814 = vmul.f32 %v2728, %v2782
        %v2815 = vmul.f32 %v2733, %v2783
        %v2816 = vmul.f32 %v2738, %v2784
        %v2817 = vmul.f32 %v2743, %v2785
        %v2818 = vmul.f32 %v2748, %v2786
        %v2819 = vmul.f32 %v2753, %v2787
        %2820 = vst.msk [vmem:[#allocation2] sm:$0xff] %vm1505, %v2788
        %2821 = vst.msk [vmem:[#allocation2 + $0x8] sm:$0xff] %vm1505, %v2789
        %2822 = vst.msk [vmem:[#allocation2 + $0x10] sm:$0xff] %vm1505, %v2790
        %2823 = vst.msk [vmem:[#allocation2 + $0x18] sm:$0xff] %vm1505, %v2791
        %2824 = vst.msk [vmem:[#allocation2 + $0x20] sm:$0xff] %vm1505, %v2792
        %2825 = vst.msk [vmem:[#allocation2 + $0x28] sm:$0xff] %vm1505, %v2793
        %2826 = vst.msk [vmem:[#allocation2 + $0x30] sm:$0xff] %vm1505, %v2794
        %2827 = vst.msk [vmem:[#allocation2 + $0x38] sm:$0xff] %vm1505, %v2795
        %2828 = vst.msk [vmem:[#allocation2 + $0x40] sm:$0xff] %vm1505, %v2796
        %2829 = vst.msk [vmem:[#allocation2 + $0x48] sm:$0xff] %vm1505, %v2797
        %2830 = vst.msk [vmem:[#allocation2 + $0x50] sm:$0xff] %vm1505, %v2798
        %2831 = vst.msk [vmem:[#allocation2 + $0x58] sm:$0xff] %vm1505, %v2799
        %2832 = vst.msk [vmem:[#allocation2 + $0x60] sm:$0xff] %vm1505, %v2800
        %2833 = vst.msk [vmem:[#allocation2 + $0x68] sm:$0xff] %vm1505, %v2801
        %2834 = vst.msk [vmem:[#allocation2 + $0x70] sm:$0xff] %vm1505, %v2802
        %2835 = vst.msk [vmem:[#allocation2 + $0x78] sm:$0xff] %vm1505, %v2803
        %2836 = vst.msk [vmem:[#allocation2 + $0x80] sm:$0xff] %vm1505, %v2804
        %2837 = vst.msk [vmem:[#allocation2 + $0x88] sm:$0xff] %vm1505, %v2805
        %2838 = vst.msk [vmem:[#allocation2 + $0x90] sm:$0xff] %vm1505, %v2806
        %2839 = vst.msk [vmem:[#allocation2 + $0x98] sm:$0xff] %vm1505, %v2807
        %2840 = vst.msk [vmem:[#allocation2 + $0xa0] sm:$0xff] %vm1505, %v2808
        %2841 = vst.msk [vmem:[#allocation2 + $0xa8] sm:$0xff] %vm1505, %v2809
        %2842 = vst.msk [vmem:[#allocation2 + $0xb0] sm:$0xff] %vm1505, %v2810
        %2843 = vst.msk [vmem:[#allocation2 + $0xb8] sm:$0xff] %vm1505, %v2811
        %2844 = vst.msk [vmem:[#allocation2 + $0xc0] sm:$0xff] %vm1505, %v2812
        %2845 = vst.msk [vmem:[#allocation2 + $0xc8] sm:$0xff] %vm1505, %v2813
        %2846 = vst.msk [vmem:[#allocation2 + $0xd0] sm:$0xff] %vm1505, %v2814
        %2847 = vst.msk [vmem:[#allocation2 + $0xd8] sm:$0xff] %vm1505, %v2815
        %2848 = vst.msk [vmem:[#allocation2 + $0xe0] sm:$0xff] %vm1505, %v2816
        %2849 = vst.msk [vmem:[#allocation2 + $0xe8] sm:$0xff] %vm1505, %v2817
        %2850 = vst.msk [vmem:[#allocation2 + $0xf0] sm:$0xff] %vm1505, %v2818
        %2851 = vst.msk [vmem:[#allocation2 + $0xf8] sm:$0xff] %vm1505, %v2819
        %2852 = vrot.lane.b32.xlu0 %v851, 96
        %v2853 = vpop.permute.xlu0 %2852
        %2854 = vrot.lane.b32.xlu0 %v856, 96
        %v2855 = vpop.permute.xlu0 %2854
        %2856 = vrot.lane.b32.xlu0 %v861, 96
        %v2857 = vpop.permute.xlu0 %2856
        %2858 = vrot.lane.b32.xlu0 %v866, 96
        %v2859 = vpop.permute.xlu0 %2858
        %2860 = vrot.lane.b32.xlu0 %v871, 96
        %v2861 = vpop.permute.xlu0 %2860
        %2862 = vrot.lane.b32.xlu0 %v876, 96
        %v2863 = vpop.permute.xlu0 %2862
        %2864 = vrot.lane.b32.xlu0 %v881, 96
        %v2865 = vpop.permute.xlu0 %2864
        %2866 = vrot.lane.b32.xlu0 %v886, 96
        %v2867 = vpop.permute.xlu0 %2866
        %2868 = vrot.lane.b32.xlu0 %v891, 96
        %v2869 = vpop.permute.xlu0 %2868
        %2870 = vrot.lane.b32.xlu0 %v896, 96
        %v2871 = vpop.permute.xlu0 %2870
        %2872 = vrot.lane.b32.xlu0 %v901, 96
        %v2873 = vpop.permute.xlu0 %2872
        %2874 = vrot.lane.b32.xlu0 %v906, 96
        %v2875 = vpop.permute.xlu0 %2874
        %2876 = vrot.lane.b32.xlu0 %v911, 96
        %v2877 = vpop.permute.xlu0 %2876
        %2878 = vrot.lane.b32.xlu0 %v916, 96
        %v2879 = vpop.permute.xlu0 %2878
        %2880 = vrot.lane.b32.xlu0 %v921, 96
        %v2881 = vpop.permute.xlu0 %2880
        %2882 = vrot.lane.b32.xlu0 %v926, 96
        %v2883 = vpop.permute.xlu0 %2882
        %2884 = vrot.lane.b32.xlu0 %v931, 96
        %v2885 = vpop.permute.xlu0 %2884
        %2886 = vrot.lane.b32.xlu0 %v936, 96
        %v2887 = vpop.permute.xlu0 %2886
        %2888 = vrot.lane.b32.xlu0 %v941, 96
        %v2889 = vpop.permute.xlu0 %2888
        %2890 = vrot.lane.b32.xlu0 %v946, 96
        %v2891 = vpop.permute.xlu0 %2890
        %2892 = vrot.lane.b32.xlu0 %v951, 96
        %v2893 = vpop.permute.xlu0 %2892
        %2894 = vrot.lane.b32.xlu0 %v956, 96
        %v2895 = vpop.permute.xlu0 %2894
        %2896 = vrot.lane.b32.xlu0 %v961, 96
        %v2897 = vpop.permute.xlu0 %2896
        %2898 = vrot.lane.b32.xlu0 %v966, 96
        %v2899 = vpop.permute.xlu0 %2898
        %2900 = vrot.lane.b32.xlu0 %v971, 96
        %v2901 = vpop.permute.xlu0 %2900
        %2902 = vrot.lane.b32.xlu0 %v976, 96
        %v2903 = vpop.permute.xlu0 %2902
        %2904 = vrot.lane.b32.xlu0 %v981, 96
        %v2905 = vpop.permute.xlu0 %2904
        %2906 = vrot.lane.b32.xlu0 %v986, 96
        %v2907 = vpop.permute.xlu0 %2906
        %2908 = vrot.lane.b32.xlu0 %v991, 96
        %v2909 = vpop.permute.xlu0 %2908
        %2910 = vrot.lane.b32.xlu0 %v996, 96
        %v2911 = vpop.permute.xlu0 %2910
        %2912 = vrot.lane.b32.xlu0 %v1001, 96
        %v2913 = vpop.permute.xlu0 %2912
        %2914 = vrot.lane.b32.xlu0 %v1006, 96
        %v2915 = vpop.permute.xlu0 %2914
        %2916 = vrot.lane.b32.xlu0 %v1099, 96
        %v2917 = vpop.permute.xlu0 %2916
        %2918 = vrot.lane.b32.xlu0 %v1104, 96
        %v2919 = vpop.permute.xlu0 %2918
        %2920 = vrot.lane.b32.xlu0 %v1109, 96
        %v2921 = vpop.permute.xlu0 %2920
        %2922 = vrot.lane.b32.xlu0 %v1114, 96
        %v2923 = vpop.permute.xlu0 %2922
        %2924 = vrot.lane.b32.xlu0 %v1119, 96
        %v2925 = vpop.permute.xlu0 %2924
        %2926 = vrot.lane.b32.xlu0 %v1124, 96
        %v2927 = vpop.permute.xlu0 %2926
        %2928 = vrot.lane.b32.xlu0 %v1129, 96
        %v2929 = vpop.permute.xlu0 %2928
        %2930 = vrot.lane.b32.xlu0 %v1134, 96
        %v2931 = vpop.permute.xlu0 %2930
        %2932 = vrot.lane.b32.xlu0 %v1139, 96
        %v2933 = vpop.permute.xlu0 %2932
        %2934 = vrot.lane.b32.xlu0 %v1144, 96
        %v2935 = vpop.permute.xlu0 %2934
        %2936 = vrot.lane.b32.xlu0 %v1149, 96
        %v2937 = vpop.permute.xlu0 %2936
        %2938 = vrot.lane.b32.xlu0 %v1154, 96
        %v2939 = vpop.permute.xlu0 %2938
        %2940 = vrot.lane.b32.xlu0 %v1159, 96
        %v2941 = vpop.permute.xlu0 %2940
        %2942 = vrot.lane.b32.xlu0 %v1164, 96
        %v2943 = vpop.permute.xlu0 %2942
        %2944 = vrot.lane.b32.xlu0 %v1169, 96
        %v2945 = vpop.permute.xlu0 %2944
        %2946 = vrot.lane.b32.xlu0 %v1174, 96
        %v2947 = vpop.permute.xlu0 %2946
        %2948 = vrot.lane.b32.xlu0 %v1179, 96
        %v2949 = vpop.permute.xlu0 %2948
        %2950 = vrot.lane.b32.xlu0 %v1184, 96
        %v2951 = vpop.permute.xlu0 %2950
        %2952 = vrot.lane.b32.xlu0 %v1189, 96
        %v2953 = vpop.permute.xlu0 %2952
        %2954 = vrot.lane.b32.xlu0 %v1194, 96
        %v2955 = vpop.permute.xlu0 %2954
        %2956 = vrot.lane.b32.xlu0 %v1199, 96
        %v2957 = vpop.permute.xlu0 %2956
        %2958 = vrot.lane.b32.xlu0 %v1204, 96
        %v2959 = vpop.permute.xlu0 %2958
        %2960 = vrot.lane.b32.xlu0 %v1209, 96
        %v2961 = vpop.permute.xlu0 %2960
        %2962 = vrot.lane.b32.xlu0 %v1214, 96
        %v2963 = vpop.permute.xlu0 %2962
        %2964 = vrot.lane.b32.xlu0 %v1219, 96
        %v2965 = vpop.permute.xlu0 %2964
        %2966 = vrot.lane.b32.xlu0 %v1224, 96
        %v2967 = vpop.permute.xlu0 %2966
        %2968 = vrot.lane.b32.xlu0 %v1229, 96
        %v2969 = vpop.permute.xlu0 %2968
        %2970 = vrot.lane.b32.xlu0 %v1234, 96
        %v2971 = vpop.permute.xlu0 %2970
        %2972 = vrot.lane.b32.xlu0 %v1239, 96
        %v2973 = vpop.permute.xlu0 %2972
        %2974 = vrot.lane.b32.xlu0 %v1244, 96
        %v2975 = vpop.permute.xlu0 %2974
        %2976 = vrot.lane.b32.xlu0 %v1249, 96
        %v2977 = vpop.permute.xlu0 %2976
        %2978 = vrot.lane.b32.xlu0 %v1254, 96
        %v2979 = vpop.permute.xlu0 %2978
        %v2980 = vsel %vm1505, %v2853, 0
        %v2982 = vsel %vm1505, %v2855, 0
        %v2984 = vsel %vm1505, %v2857, 0
        %v2986 = vsel %vm1505, %v2859, 0
        %v2988 = vsel %vm1505, %v2861, 0
        %v2990 = vsel %vm1505, %v2863, 0
        %v2992 = vsel %vm1505, %v2865, 0
        %v2994 = vsel %vm1505, %v2867, 0
        %v2996 = vsel %vm1505, %v2869, 0
        %v2998 = vsel %vm1505, %v2871, 0
        %v3000 = vsel %vm1505, %v2873, 0
        %v3002 = vsel %vm1505, %v2875, 0
        %v3004 = vsel %vm1505, %v2877, 0
        %v3006 = vsel %vm1505, %v2879, 0
        %v3008 = vsel %vm1505, %v2881, 0
        %v3010 = vsel %vm1505, %v2883, 0
        %v3012 = vsel %vm1505, %v2885, 0
        %v3014 = vsel %vm1505, %v2887, 0
        %v3016 = vsel %vm1505, %v2889, 0
        %v3018 = vsel %vm1505, %v2891, 0
        %v3020 = vsel %vm1505, %v2893, 0
        %v3022 = vsel %vm1505, %v2895, 0
        %v3024 = vsel %vm1505, %v2897, 0
        %v3026 = vsel %vm1505, %v2899, 0
        %v3028 = vsel %vm1505, %v2901, 0
        %v3030 = vsel %vm1505, %v2903, 0
        %v3032 = vsel %vm1505, %v2905, 0
        %v3034 = vsel %vm1505, %v2907, 0
        %v3036 = vsel %vm1505, %v2909, 0
        %v3038 = vsel %vm1505, %v2911, 0
        %v3040 = vsel %vm1505, %v2913, 0
        %v3042 = vsel %vm1505, %v2915, 0
        %v3044 = vsel %vm1505, %v2917, 0
        %v3046 = vsel %vm1505, %v2919, 0
        %v3048 = vsel %vm1505, %v2921, 0
        %v3050 = vsel %vm1505, %v2923, 0
        %v3052 = vsel %vm1505, %v2925, 0
        %v3054 = vsel %vm1505, %v2927, 0
        %v3056 = vsel %vm1505, %v2929, 0
        %v3058 = vsel %vm1505, %v2931, 0
        %v3060 = vsel %vm1505, %v2933, 0
        %v3062 = vsel %vm1505, %v2935, 0
        %v3064 = vsel %vm1505, %v2937, 0
        %v3066 = vsel %vm1505, %v2939, 0
        %v3068 = vsel %vm1505, %v2941, 0
        %v3070 = vsel %vm1505, %v2943, 0
        %v3072 = vsel %vm1505, %v2945, 0
        %v3074 = vsel %vm1505, %v2947, 0
        %v3076 = vsel %vm1505, %v2949, 0
        %v3078 = vsel %vm1505, %v2951, 0
        %v3080 = vsel %vm1505, %v2953, 0
        %v3082 = vsel %vm1505, %v2955, 0
        %v3084 = vsel %vm1505, %v2957, 0
        %v3086 = vsel %vm1505, %v2959, 0
        %v3088 = vsel %vm1505, %v2961, 0
        %v3090 = vsel %vm1505, %v2963, 0
        %v3092 = vsel %vm1505, %v2965, 0
        %v3094 = vsel %vm1505, %v2967, 0
        %v3096 = vsel %vm1505, %v2969, 0
        %v3098 = vsel %vm1505, %v2971, 0
        %v3100 = vsel %vm1505, %v2973, 0
        %v3102 = vsel %vm1505, %v2975, 0
        %v3104 = vsel %vm1505, %v2977, 0
        %v3106 = vsel %vm1505, %v2979, 0
        %3108 = vmatprep.subr.mxu0 0.0
        %3109 = vmatpush1.xpose.msra.mxu0 %v3044
        %3110 = vmatprep.subr.mxu0 0.0
        %3111 = vmatpush1.xpose.msra.mxu0 %v3046
        %3112 = vmatprep.subr.mxu0 0.0
        %3113 = vmatpush1.xpose.msra.mxu0 %v3048
        %3114 = vmatprep.subr.mxu0 0.0
        %3115 = vmatpush1.xpose.msra.mxu0 %v3050
        %3116 = vmatprep.subr.mxu0 0.0
        %3117 = vmatpush1.xpose.msra.mxu0 %v3052
        %3118 = vmatprep.subr.mxu0 0.0
        %3119 = vmatpush1.xpose.msra.mxu0 %v3054
        %3120 = vmatprep.subr.mxu0 0.0
        %3121 = vmatpush1.xpose.msra.mxu0 %v3056
        %3122 = vmatprep.subr.mxu0 0.0
        %3123 = vmatpush1.xpose.msra.mxu0 %v3058
        %3124 = vmatprep.subr.mxu0 0.0
        %3125 = vmatpush1.xpose.msra.mxu0 %v3060
        %3126 = vmatprep.subr.mxu0 0.0
        %3127 = vmatpush1.xpose.msra.mxu0 %v3062
        %3128 = vmatprep.subr.mxu0 0.0
        %3129 = vmatpush1.xpose.msra.mxu0 %v3064
        %3130 = vmatprep.subr.mxu0 0.0
        %3131 = vmatpush1.xpose.msra.mxu0 %v3066
        %3132 = vmatprep.subr.mxu0 0.0
        %3133 = vmatpush1.xpose.msra.mxu0 %v3068
        %3134 = vmatprep.subr.mxu0 0.0
        %3135 = vmatpush1.xpose.msra.mxu0 %v3070
        %3136 = vmatprep.subr.mxu0 0.0
        %3137 = vmatpush1.xpose.msra.mxu0 %v3072
        %3138 = vmatprep.subr.mxu0 0.0
        %3139 = vmatpush1.xpose.msra.mxu0 %v3074
        %3140 = vmatprep.subr.mxu0 0.0
        %3141 = vmatpush1.xpose.msra.mxu0 %v3076
        %3142 = vmatprep.subr.mxu0 0.0
        %3143 = vmatpush1.xpose.msra.mxu0 %v3078
        %3144 = vmatprep.subr.mxu0 0.0
        %3145 = vmatpush1.xpose.msra.mxu0 %v3080
        %3146 = vmatprep.subr.mxu0 0.0
        %3147 = vmatpush1.xpose.msra.mxu0 %v3082
        %3148 = vmatprep.subr.mxu0 0.0
        %3149 = vmatpush1.xpose.msra.mxu0 %v3084
        %3150 = vmatprep.subr.mxu0 0.0
        %3151 = vmatpush1.xpose.msra.mxu0 %v3086
        %3152 = vmatprep.subr.mxu0 0.0
        %3153 = vmatpush1.xpose.msra.mxu0 %v3088
        %3154 = vmatprep.subr.mxu0 0.0
        %3155 = vmatpush1.xpose.msra.mxu0 %v3090
        %3156 = vmatprep.subr.mxu0 0.0
        %3157 = vmatpush1.xpose.msra.mxu0 %v3092
        %3158 = vmatprep.subr.mxu0 0.0
        %3159 = vmatpush1.xpose.msra.mxu0 %v3094
        %3160 = vmatprep.subr.mxu0 0.0
        %3161 = vmatpush1.xpose.msra.mxu0 %v3096
        %3162 = vmatprep.subr.mxu0 0.0
        %3163 = vmatpush1.xpose.msra.mxu0 %v3098
        %3164 = vmatprep.subr.mxu0 0.0
        %3165 = vmatpush1.xpose.msra.mxu0 %v3100
        %3166 = vmatprep.subr.mxu0 0.0
        %3167 = vmatpush1.xpose.msra.mxu0 %v3102
        %3168 = vmatprep.subr.mxu0 0.0
        %3169 = vmatpush1.xpose.msra.mxu0 %v3104
        %3170 = vmatprep.subr.mxu0 0.0
        %3171 = vmatpush1.xpose.msra.mxu0 %v3106
        %3172 = vmatprep.mubr.f32.mxu0 0.0
        %3173 = vmatmul.mubr.f32.gmra.mrb[0].mxu0 %v2980
        %v3174 = vpop.f32.mrb[0].mxu0
        %v3175 = vadd.f32 0.0, %v3174
        %v3176 = vpop.f32.mrb[0].mxu0
        %v3177 = vadd.f32 0.0, %v3176
        %3178 = vmatprep.mubr.f32.mxu0 0.0
        %3179 = vmatmul.mubr.f32.gmra.mrb[0].mxu0 %v2982
        %v3180 = vpop.f32.mrb[0].mxu0
        %v3181 = vadd.f32 0.0, %v3180
        %v3182 = vpop.f32.mrb[0].mxu0
        %v3183 = vadd.f32 0.0, %v3182
        %3184 = vmatprep.mubr.f32.mxu0 0.0
        %3185 = vmatmul.mubr.f32.gmra.mrb[0].mxu0 %v2984
        %v3186 = vpop.f32.mrb[0].mxu0
        %v3187 = vadd.f32 0.0, %v3186
        %v3188 = vpop.f32.mrb[0].mxu0
        %v3189 = vadd.f32 0.0, %v3188
        %3190 = vmatprep.mubr.f32.mxu0 0.0
        %3191 = vmatmul.mubr.f32.gmra.mrb[0].mxu0 %v2986
        %v3192 = vpop.f32.mrb[0].mxu0
        %v3193 = vadd.f32 0.0, %v3192
        %v3194 = vpop.f32.mrb[0].mxu0
        %v3195 = vadd.f32 0.0, %v3194
        %3196 = vmatprep.mubr.f32.mxu0 0.0
        %3197 = vmatmul.mubr.f32.gmra.mrb[0].mxu0 %v2988
        %v3198 = vpop.f32.mrb[0].mxu0
        %v3199 = vadd.f32 0.0, %v3198
        %v3200 = vpop.f32.mrb[0].mxu0
        %v3201 = vadd.f32 0.0, %v3200
        %3202 = vmatprep.mubr.f32.mxu0 0.0
        %3203 = vmatmul.mubr.f32.gmra.mrb[0].mxu0 %v2990
        %v3204 = vpop.f32.mrb[0].mxu0
        %v3205 = vadd.f32 0.0, %v3204
        %v3206 = vpop.f32.mrb[0].mxu0
        %v3207 = vadd.f32 0.0, %v3206
        %3208 = vmatprep.mubr.f32.mxu0 0.0
        %3209 = vmatmul.mubr.f32.gmra.mrb[0].mxu0 %v2992
        %v3210 = vpop.f32.mrb[0].mxu0
        %v3211 = vadd.f32 0.0, %v3210
        %v3212 = vpop.f32.mrb[0].mxu0
        %v3213 = vadd.f32 0.0, %v3212
        %3214 = vmatprep.mubr.f32.mxu0 0.0
        %3215 = vmatmul.mubr.f32.gmra.mrb[0].mxu0 %v2994
        %v3216 = vpop.f32.mrb[0].mxu0
        %v3217 = vadd.f32 0.0, %v3216
        %v3218 = vpop.f32.mrb[0].mxu0
        %v3219 = vadd.f32 0.0, %v3218
        %3220 = vmatprep.mubr.f32.mxu0 0.0
        %3221 = vmatmul.mubr.f32.gmra.mrb[0].mxu0 %v2996
        %v3222 = vpop.f32.mrb[0].mxu0
        %v3223 = vadd.f32 0.0, %v3222
        %v3224 = vpop.f32.mrb[0].mxu0
        %v3225 = vadd.f32 0.0, %v3224
        %3226 = vmatprep.mubr.f32.mxu0 0.0
        %3227 = vmatmul.mubr.f32.gmra.mrb[0].mxu0 %v2998
        %v3228 = vpop.f32.mrb[0].mxu0
        %v3229 = vadd.f32 0.0, %v3228
        %v3230 = vpop.f32.mrb[0].mxu0
        %v3231 = vadd.f32 0.0, %v3230
        %3232 = vmatprep.mubr.f32.mxu0 0.0
        %3233 = vmatmul.mubr.f32.gmra.mrb[0].mxu0 %v3000
        %v3234 = vpop.f32.mrb[0].mxu0
        %v3235 = vadd.f32 0.0, %v3234
        %v3236 = vpop.f32.mrb[0].mxu0
        %v3237 = vadd.f32 0.0, %v3236
        %3238 = vmatprep.mubr.f32.mxu0 0.0
        %3239 = vmatmul.mubr.f32.gmra.mrb[0].mxu0 %v3002
        %v3240 = vpop.f32.mrb[0].mxu0
        %v3241 = vadd.f32 0.0, %v3240
        %v3242 = vpop.f32.mrb[0].mxu0
        %v3243 = vadd.f32 0.0, %v3242
        %3244 = vmatprep.mubr.f32.mxu0 0.0
        %3245 = vmatmul.mubr.f32.gmra.mrb[0].mxu0 %v3004
        %v3246 = vpop.f32.mrb[0].mxu0
        %v3247 = vadd.f32 0.0, %v3246
        %v3248 = vpop.f32.mrb[0].mxu0
        %v3249 = vadd.f32 0.0, %v3248
        %3250 = vmatprep.mubr.f32.mxu0 0.0
        %3251 = vmatmul.mubr.f32.gmra.mrb[0].mxu0 %v3006
        %v3252 = vpop.f32.mrb[0].mxu0
        %v3253 = vadd.f32 0.0, %v3252
        %v3254 = vpop.f32.mrb[0].mxu0
        %v3255 = vadd.f32 0.0, %v3254
        %3256 = vmatprep.mubr.f32.mxu0 0.0
        %3257 = vmatmul.mubr.f32.gmra.mrb[0].mxu0 %v3008
        %v3258 = vpop.f32.mrb[0].mxu0
        %v3259 = vadd.f32 0.0, %v3258
        %v3260 = vpop.f32.mrb[0].mxu0
        %v3261 = vadd.f32 0.0, %v3260
        %3262 = vmatprep.mubr.f32.mxu0 0.0
        %3263 = vmatmul.mubr.f32.gmra.mrb[0].mxu0 %v3010
        %v3264 = vpop.f32.mrb[0].mxu0
        %v3265 = vadd.f32 0.0, %v3264
        %v3266 = vpop.f32.mrb[0].mxu0
        %v3267 = vadd.f32 0.0, %v3266
        %3268 = vmatprep.mubr.f32.mxu0 0.0
        %3269 = vmatmul.mubr.f32.gmra.mrb[0].mxu0 %v3012
        %v3270 = vpop.f32.mrb[0].mxu0
        %v3271 = vadd.f32 0.0, %v3270
        %v3272 = vpop.f32.mrb[0].mxu0
        %v3273 = vadd.f32 0.0, %v3272
        %3274 = vmatprep.mubr.f32.mxu0 0.0
        %3275 = vmatmul.mubr.f32.gmra.mrb[0].mxu0 %v3014
        %v3276 = vpop.f32.mrb[0].mxu0
        %v3277 = vadd.f32 0.0, %v3276
        %v3278 = vpop.f32.mrb[0].mxu0
        %v3279 = vadd.f32 0.0, %v3278
        %3280 = vmatprep.mubr.f32.mxu0 0.0
        %3281 = vmatmul.mubr.f32.gmra.mrb[0].mxu0 %v3016
        %v3282 = vpop.f32.mrb[0].mxu0
        %v3283 = vadd.f32 0.0, %v3282
        %v3284 = vpop.f32.mrb[0].mxu0
        %v3285 = vadd.f32 0.0, %v3284
        %3286 = vmatprep.mubr.f32.mxu0 0.0
        %3287 = vmatmul.mubr.f32.gmra.mrb[0].mxu0 %v3018
        %v3288 = vpop.f32.mrb[0].mxu0
        %v3289 = vadd.f32 0.0, %v3288
        %v3290 = vpop.f32.mrb[0].mxu0
        %v3291 = vadd.f32 0.0, %v3290
        %3292 = vmatprep.mubr.f32.mxu0 0.0
        %3293 = vmatmul.mubr.f32.gmra.mrb[0].mxu0 %v3020
        %v3294 = vpop.f32.mrb[0].mxu0
        %v3295 = vadd.f32 0.0, %v3294
        %v3296 = vpop.f32.mrb[0].mxu0
        %v3297 = vadd.f32 0.0, %v3296
        %3298 = vmatprep.mubr.f32.mxu0 0.0
        %3299 = vmatmul.mubr.f32.gmra.mrb[0].mxu0 %v3022
        %v3300 = vpop.f32.mrb[0].mxu0
        %v3301 = vadd.f32 0.0, %v3300
        %v3302 = vpop.f32.mrb[0].mxu0
        %v3303 = vadd.f32 0.0, %v3302
        %3304 = vmatprep.mubr.f32.mxu0 0.0
        %3305 = vmatmul.mubr.f32.gmra.mrb[0].mxu0 %v3024
        %v3306 = vpop.f32.mrb[0].mxu0
        %v3307 = vadd.f32 0.0, %v3306
        %v3308 = vpop.f32.mrb[0].mxu0
        %v3309 = vadd.f32 0.0, %v3308
        %3310 = vmatprep.mubr.f32.mxu0 0.0
        %3311 = vmatmul.mubr.f32.gmra.mrb[0].mxu0 %v3026
        %v3312 = vpop.f32.mrb[0].mxu0
        %v3313 = vadd.f32 0.0, %v3312
        %v3314 = vpop.f32.mrb[0].mxu0
        %v3315 = vadd.f32 0.0, %v3314
        %3316 = vmatprep.mubr.f32.mxu0 0.0
        %3317 = vmatmul.mubr.f32.gmra.mrb[0].mxu0 %v3028
        %v3318 = vpop.f32.mrb[0].mxu0
        %v3319 = vadd.f32 0.0, %v3318
        %v3320 = vpop.f32.mrb[0].mxu0
        %v3321 = vadd.f32 0.0, %v3320
        %3322 = vmatprep.mubr.f32.mxu0 0.0
        %3323 = vmatmul.mubr.f32.gmra.mrb[0].mxu0 %v3030
        %v3324 = vpop.f32.mrb[0].mxu0
        %v3325 = vadd.f32 0.0, %v3324
        %v3326 = vpop.f32.mrb[0].mxu0
        %v3327 = vadd.f32 0.0, %v3326
        %3328 = vmatprep.mubr.f32.mxu0 0.0
        %3329 = vmatmul.mubr.f32.gmra.mrb[0].mxu0 %v3032
        %v3330 = vpop.f32.mrb[0].mxu0
        %v3331 = vadd.f32 0.0, %v3330
        %v3332 = vpop.f32.mrb[0].mxu0
        %v3333 = vadd.f32 0.0, %v3332
        %3334 = vmatprep.mubr.f32.mxu0 0.0
        %3335 = vmatmul.mubr.f32.gmra.mrb[0].mxu0 %v3034
        %v3336 = vpop.f32.mrb[0].mxu0
        %v3337 = vadd.f32 0.0, %v3336
        %v3338 = vpop.f32.mrb[0].mxu0
        %v3339 = vadd.f32 0.0, %v3338
        %3340 = vmatprep.mubr.f32.mxu0 0.0
        %3341 = vmatmul.mubr.f32.gmra.mrb[0].mxu0 %v3036
        %v3342 = vpop.f32.mrb[0].mxu0
        %v3343 = vadd.f32 0.0, %v3342
        %v3344 = vpop.f32.mrb[0].mxu0
        %v3345 = vadd.f32 0.0, %v3344
        %3346 = vmatprep.mubr.f32.mxu0 0.0
        %3347 = vmatmul.mubr.f32.gmra.mrb[0].mxu0 %v3038
        %v3348 = vpop.f32.mrb[0].mxu0
        %v3349 = vadd.f32 0.0, %v3348
        %v3350 = vpop.f32.mrb[0].mxu0
        %v3351 = vadd.f32 0.0, %v3350
        %3352 = vmatprep.mubr.f32.mxu0 0.0
        %3353 = vmatmul.mubr.f32.gmra.mrb[0].mxu0 %v3040
        %v3354 = vpop.f32.mrb[0].mxu0
        %v3355 = vadd.f32 0.0, %v3354
        %v3356 = vpop.f32.mrb[0].mxu0
        %v3357 = vadd.f32 0.0, %v3356
        %3358 = vmatprep.mubr.f32.mxu0 0.0
        %3359 = vmatmul.mubr.f32.gmra.mrb[0].mxu0 %v3042
        %v3360 = vpop.f32.mrb[0].mxu0
        %v3361 = vadd.f32 0.0, %v3360
        %v3362 = vpop.f32.mrb[0].mxu0
        %v3363 = vadd.f32 0.0, %v3362
        %3364 = vdwg.mxu0
        %v3365 = vmul.f32 %v3175, 0.17677669
        %v3366 = vmul.f32 %v3177, 0.17677669
        %v3367 = vmul.f32 %v3181, 0.17677669
        %v3368 = vmul.f32 %v3183, 0.17677669
        %v3369 = vmul.f32 %v3187, 0.17677669
        %v3370 = vmul.f32 %v3189, 0.17677669
        %v3371 = vmul.f32 %v3193, 0.17677669
        %v3372 = vmul.f32 %v3195, 0.17677669
        %v3373 = vmul.f32 %v3199, 0.17677669
        %v3374 = vmul.f32 %v3201, 0.17677669
        %v3375 = vmul.f32 %v3205, 0.17677669
        %v3376 = vmul.f32 %v3207, 0.17677669
        %v3377 = vmul.f32 %v3211, 0.17677669
        %v3378 = vmul.f32 %v3213, 0.17677669
        %v3379 = vmul.f32 %v3217, 0.17677669
        %v3380 = vmul.f32 %v3219, 0.17677669
        %v3381 = vmul.f32 %v3223, 0.17677669
        %v3382 = vmul.f32 %v3225, 0.17677669
        %v3383 = vmul.f32 %v3229, 0.17677669
        %v3384 = vmul.f32 %v3231, 0.17677669
        %v3385 = vmul.f32 %v3235, 0.17677669
        %v3386 = vmul.f32 %v3237, 0.17677669
        %v3387 = vmul.f32 %v3241, 0.17677669
        %v3388 = vmul.f32 %v3243, 0.17677669
        %v3389 = vmul.f32 %v3247, 0.17677669
        %v3390 = vmul.f32 %v3249, 0.17677669
        %v3391 = vmul.f32 %v3253, 0.17677669
        %v3392 = vmul.f32 %v3255, 0.17677669
        %v3393 = vmul.f32 %v3259, 0.17677669
        %v3394 = vmul.f32 %v3261, 0.17677669
        %v3395 = vmul.f32 %v3265, 0.17677669
        %v3396 = vmul.f32 %v3267, 0.17677669
        %v3397 = vmul.f32 %v3271, 0.17677669
        %v3398 = vmul.f32 %v3273, 0.17677669
        %v3399 = vmul.f32 %v3277, 0.17677669
        %v3400 = vmul.f32 %v3279, 0.17677669
        %v3401 = vmul.f32 %v3283, 0.17677669
        %v3402 = vmul.f32 %v3285, 0.17677669
        %v3403 = vmul.f32 %v3289, 0.17677669
        %v3404 = vmul.f32 %v3291, 0.17677669
        %v3405 = vmul.f32 %v3295, 0.17677669
        %v3406 = vmul.f32 %v3297, 0.17677669
        %v3407 = vmul.f32 %v3301, 0.17677669
        %v3408 = vmul.f32 %v3303, 0.17677669
        %v3409 = vmul.f32 %v3307, 0.17677669
        %v3410 = vmul.f32 %v3309, 0.17677669
        %v3411 = vmul.f32 %v3313, 0.17677669
        %v3412 = vmul.f32 %v3315, 0.17677669
        %v3413 = vmul.f32 %v3319, 0.17677669
        %v3414 = vmul.f32 %v3321, 0.17677669
        %v3415 = vmul.f32 %v3325, 0.17677669
        %v3416 = vmul.f32 %v3327, 0.17677669
        %v3417 = vmul.f32 %v3331, 0.17677669
        %v3418 = vmul.f32 %v3333, 0.17677669
        %v3419 = vmul.f32 %v3337, 0.17677669
        %v3420 = vmul.f32 %v3339, 0.17677669
        %v3421 = vmul.f32 %v3343, 0.17677669
        %v3422 = vmul.f32 %v3345, 0.17677669
        %v3423 = vmul.f32 %v3349, 0.17677669
        %v3424 = vmul.f32 %v3351, 0.17677669
        %v3425 = vmul.f32 %v3355, 0.17677669
        %v3426 = vmul.f32 %v3357, 0.17677669
        %v3427 = vmul.f32 %v3361, 0.17677669
        %v3428 = vmul.f32 %v3363, 0.17677669
        %v3429 = vadd.f32 %v3365, %v2019
        %v3430 = vadd.f32 %v3366, %v2020
        %v3431 = vadd.f32 %v3367, %v2021
        %v3432 = vadd.f32 %v3368, %v2022
        %v3433 = vadd.f32 %v3369, %v2023
        %v3434 = vadd.f32 %v3370, %v2024
        %v3435 = vadd.f32 %v3371, %v2025
        %v3436 = vadd.f32 %v3372, %v2026
        %v3437 = vadd.f32 %v3373, %v2027
        %v3438 = vadd.f32 %v3374, %v2028
        %v3439 = vadd.f32 %v3375, %v2029
        %v3440 = vadd.f32 %v3376, %v2030
        %v3441 = vadd.f32 %v3377, %v2031
        %v3442 = vadd.f32 %v3378, %v2032
        %v3443 = vadd.f32 %v3379, %v2033
        %v3444 = vadd.f32 %v3380, %v2034
        %v3445 = vadd.f32 %v3381, %v2035
        %v3446 = vadd.f32 %v3382, %v2036
        %v3447 = vadd.f32 %v3383, %v2037
        %v3448 = vadd.f32 %v3384, %v2038
        %v3449 = vadd.f32 %v3385, %v2039
        %v3450 = vadd.f32 %v3386, %v2040
        %v3451 = vadd.f32 %v3387, %v2041
        %v3452 = vadd.f32 %v3388, %v2042
        %v3453 = vadd.f32 %v3389, %v2043
        %v3454 = vadd.f32 %v3390, %v2044
        %v3455 = vadd.f32 %v3391, %v2045
        %v3456 = vadd.f32 %v3392, %v2046
        %v3457 = vadd.f32 %v3393, %v2047
        %v3458 = vadd.f32 %v3394, %v2048
        %v3459 = vadd.f32 %v3395, %v2049
        %v3460 = vadd.f32 %v3396, %v2050
        %v3461 = vadd.f32 %v3397, %v2051
        %v3462 = vadd.f32 %v3398, %v2052
        %v3463 = vadd.f32 %v3399, %v2053
        %v3464 = vadd.f32 %v3400, %v2054
        %v3465 = vadd.f32 %v3401, %v2055
        %v3466 = vadd.f32 %v3402, %v2056
        %v3467 = vadd.f32 %v3403, %v2057
        %v3468 = vadd.f32 %v3404, %v2058
        %v3469 = vadd.f32 %v3405, %v2059
        %v3470 = vadd.f32 %v3406, %v2060
        %v3471 = vadd.f32 %v3407, %v2061
        %v3472 = vadd.f32 %v3408, %v2062
        %v3473 = vadd.f32 %v3409, %v2063
        %v3474 = vadd.f32 %v3410, %v2064
        %v3475 = vadd.f32 %v3411, %v2065
        %v3476 = vadd.f32 %v3412, %v2066
        %v3477 = vadd.f32 %v3413, %v2067
        %v3478 = vadd.f32 %v3414, %v2068
        %v3479 = vadd.f32 %v3415, %v2069
        %v3480 = vadd.f32 %v3416, %v2070
        %v3481 = vadd.f32 %v3417, %v2071
        %v3482 = vadd.f32 %v3418, %v2072
        %v3483 = vadd.f32 %v3419, %v2073
        %v3484 = vadd.f32 %v3420, %v2074
        %v3485 = vadd.f32 %v3421, %v2075
        %v3486 = vadd.f32 %v3422, %v2076
        %v3487 = vadd.f32 %v3423, %v2077
        %v3488 = vadd.f32 %v3424, %v2078
        %v3489 = vadd.f32 %v3425, %v2079
        %v3490 = vadd.f32 %v3426, %v2080
        %v3491 = vadd.f32 %v3427, %v2081
        %v3492 = vadd.f32 %v3428, %v2082
        %v3493 = vmax.f32 %v3429, %v3430
        %3494 = vmax.xlane.f32.xlu0 %v3493
        %v3495 = vpop.xlane.xlu0 %3494
        %v3496 = vmax.f32 %v3431, %v3432
        %3497 = vmax.xlane.f32.xlu0 %v3496
        %v3498 = vpop.xlane.xlu0 %3497
        %v3499 = vmax.f32 %v3433, %v3434
        %3500 = vmax.xlane.f32.xlu0 %v3499
        %v3501 = vpop.xlane.xlu0 %3500
        %v3502 = vmax.f32 %v3435, %v3436
        %3503 = vmax.xlane.f32.xlu0 %v3502
        %v3504 = vpop.xlane.xlu0 %3503
        %v3505 = vmax.f32 %v3437, %v3438
        %3506 = vmax.xlane.f32.xlu0 %v3505
        %v3507 = vpop.xlane.xlu0 %3506
        %v3508 = vmax.f32 %v3439, %v3440
        %3509 = vmax.xlane.f32.xlu0 %v3508
        %v3510 = vpop.xlane.xlu0 %3509
        %v3511 = vmax.f32 %v3441, %v3442
        %3512 = vmax.xlane.f32.xlu0 %v3511
        %v3513 = vpop.xlane.xlu0 %3512
        %v3514 = vmax.f32 %v3443, %v3444
        %3515 = vmax.xlane.f32.xlu0 %v3514
        %v3516 = vpop.xlane.xlu0 %3515
        %v3517 = vmax.f32 %v3445, %v3446
        %3518 = vmax.xlane.f32.xlu0 %v3517
        %v3519 = vpop.xlane.xlu0 %3518
        %v3520 = vmax.f32 %v3447, %v3448
        %3521 = vmax.xlane.f32.xlu0 %v3520
        %v3522 = vpop.xlane.xlu0 %3521
        %v3523 = vmax.f32 %v3449, %v3450
        %3524 = vmax.xlane.f32.xlu0 %v3523
        %v3525 = vpop.xlane.xlu0 %3524
        %v3526 = vmax.f32 %v3451, %v3452
        %3527 = vmax.xlane.f32.xlu0 %v3526
        %v3528 = vpop.xlane.xlu0 %3527
        %v3529 = vmax.f32 %v3453, %v3454
        %3530 = vmax.xlane.f32.xlu0 %v3529
        %v3531 = vpop.xlane.xlu0 %3530
        %v3532 = vmax.f32 %v3455, %v3456
        %3533 = vmax.xlane.f32.xlu0 %v3532
        %v3534 = vpop.xlane.xlu0 %3533
        %v3535 = vmax.f32 %v3457, %v3458
        %3536 = vmax.xlane.f32.xlu0 %v3535
        %v3537 = vpop.xlane.xlu0 %3536
        %v3538 = vmax.f32 %v3459, %v3460
        %3539 = vmax.xlane.f32.xlu0 %v3538
        %v3540 = vpop.xlane.xlu0 %3539
        %v3541 = vmax.f32 %v3461, %v3462
        %3542 = vmax.xlane.f32.xlu0 %v3541
        %v3543 = vpop.xlane.xlu0 %3542
        %v3544 = vmax.f32 %v3463, %v3464
        %3545 = vmax.xlane.f32.xlu0 %v3544
        %v3546 = vpop.xlane.xlu0 %3545
        %v3547 = vmax.f32 %v3465, %v3466
        %3548 = vmax.xlane.f32.xlu0 %v3547
        %v3549 = vpop.xlane.xlu0 %3548
        %v3550 = vmax.f32 %v3467, %v3468
        %3551 = vmax.xlane.f32.xlu0 %v3550
        %v3552 = vpop.xlane.xlu0 %3551
        %v3553 = vmax.f32 %v3469, %v3470
        %3554 = vmax.xlane.f32.xlu0 %v3553
        %v3555 = vpop.xlane.xlu0 %3554
        %v3556 = vmax.f32 %v3471, %v3472
        %3557 = vmax.xlane.f32.xlu0 %v3556
        %v3558 = vpop.xlane.xlu0 %3557
        %v3559 = vmax.f32 %v3473, %v3474
        %3560 = vmax.xlane.f32.xlu0 %v3559
        %v3561 = vpop.xlane.xlu0 %3560
        %v3562 = vmax.f32 %v3475, %v3476
        %3563 = vmax.xlane.f32.xlu0 %v3562
        %v3564 = vpop.xlane.xlu0 %3563
        %v3565 = vmax.f32 %v3477, %v3478
        %3566 = vmax.xlane.f32.xlu0 %v3565
        %v3567 = vpop.xlane.xlu0 %3566
        %v3568 = vmax.f32 %v3479, %v3480
        %3569 = vmax.xlane.f32.xlu0 %v3568
        %v3570 = vpop.xlane.xlu0 %3569
        %v3571 = vmax.f32 %v3481, %v3482
        %3572 = vmax.xlane.f32.xlu0 %v3571
        %v3573 = vpop.xlane.xlu0 %3572
        %v3574 = vmax.f32 %v3483, %v3484
        %3575 = vmax.xlane.f32.xlu0 %v3574
        %v3576 = vpop.xlane.xlu0 %3575
        %v3577 = vmax.f32 %v3485, %v3486
        %3578 = vmax.xlane.f32.xlu0 %v3577
        %v3579 = vpop.xlane.xlu0 %3578
        %v3580 = vmax.f32 %v3487, %v3488
        %3581 = vmax.xlane.f32.xlu0 %v3580
        %v3582 = vpop.xlane.xlu0 %3581
        %v3583 = vmax.f32 %v3489, %v3490
        %3584 = vmax.xlane.f32.xlu0 %v3583
        %v3585 = vpop.xlane.xlu0 %3584
        %v3586 = vmax.f32 %v3491, %v3492
        %3587 = vmax.xlane.f32.xlu0 %v3586
        %v3588 = vpop.xlane.xlu0 %3587
        %v3589 = vsub.f32 %v3429, %v3495
        %v3590 = vsub.f32 %v3430, %v3495
        %v3591 = vsub.f32 %v3431, %v3498
        %v3592 = vsub.f32 %v3432, %v3498
        %v3593 = vsub.f32 %v3433, %v3501
        %v3594 = vsub.f32 %v3434, %v3501
        %v3595 = vsub.f32 %v3435, %v3504
        %v3596 = vsub.f32 %v3436, %v3504
        %v3597 = vsub.f32 %v3437, %v3507
        %v3598 = vsub.f32 %v3438, %v3507
        %v3599 = vsub.f32 %v3439, %v3510
        %v3600 = vsub.f32 %v3440, %v3510
        %v3601 = vsub.f32 %v3441, %v3513
        %v3602 = vsub.f32 %v3442, %v3513
        %v3603 = vsub.f32 %v3443, %v3516
        %v3604 = vsub.f32 %v3444, %v3516
        %v3605 = vsub.f32 %v3445, %v3519
        %v3606 = vsub.f32 %v3446, %v3519
        %v3607 = vsub.f32 %v3447, %v3522
        %v3608 = vsub.f32 %v3448, %v3522
        %v3609 = vsub.f32 %v3449, %v3525
        %v3610 = vsub.f32 %v3450, %v3525
        %v3611 = vsub.f32 %v3451, %v3528
        %v3612 = vsub.f32 %v3452, %v3528
        %v3613 = vsub.f32 %v3453, %v3531
        %v3614 = vsub.f32 %v3454, %v3531
        %v3615 = vsub.f32 %v3455, %v3534
        %v3616 = vsub.f32 %v3456, %v3534
        %v3617 = vsub.f32 %v3457, %v3537
        %v3618 = vsub.f32 %v3458, %v3537
        %v3619 = vsub.f32 %v3459, %v3540
        %v3620 = vsub.f32 %v3460, %v3540
        %v3621 = vsub.f32 %v3461, %v3543
        %v3622 = vsub.f32 %v3462, %v3543
        %v3623 = vsub.f32 %v3463, %v3546
        %v3624 = vsub.f32 %v3464, %v3546
        %v3625 = vsub.f32 %v3465, %v3549
        %v3626 = vsub.f32 %v3466, %v3549
        %v3627 = vsub.f32 %v3467, %v3552
        %v3628 = vsub.f32 %v3468, %v3552
        %v3629 = vsub.f32 %v3469, %v3555
        %v3630 = vsub.f32 %v3470, %v3555
        %v3631 = vsub.f32 %v3471, %v3558
        %v3632 = vsub.f32 %v3472, %v3558
        %v3633 = vsub.f32 %v3473, %v3561
        %v3634 = vsub.f32 %v3474, %v3561
        %v3635 = vsub.f32 %v3475, %v3564
        %v3636 = vsub.f32 %v3476, %v3564
        %v3637 = vsub.f32 %v3477, %v3567
        %v3638 = vsub.f32 %v3478, %v3567
        %v3639 = vsub.f32 %v3479, %v3570
        %v3640 = vsub.f32 %v3480, %v3570
        %v3641 = vsub.f32 %v3481, %v3573
        %v3642 = vsub.f32 %v3482, %v3573
        %v3643 = vsub.f32 %v3483, %v3576
        %v3644 = vsub.f32 %v3484, %v3576
        %v3645 = vsub.f32 %v3485, %v3579
        %v3646 = vsub.f32 %v3486, %v3579
        %v3647 = vsub.f32 %v3487, %v3582
        %v3648 = vsub.f32 %v3488, %v3582
        %v3649 = vsub.f32 %v3489, %v3585
        %v3650 = vsub.f32 %v3490, %v3585
        %v3651 = vsub.f32 %v3491, %v3588
        %v3652 = vsub.f32 %v3492, %v3588
        %v3653 = vmul.f32 %v3589, 1.442695
        %v3654 = vpow.pop %v3653
        %v3655 = vmul.f32 %v3590, 1.442695
        %v3656 = vpow.pop %v3655
        %v3657 = vmul.f32 %v3591, 1.442695
        %v3658 = vpow.pop %v3657
        %v3659 = vmul.f32 %v3592, 1.442695
        %v3660 = vpow.pop %v3659
        %v3661 = vmul.f32 %v3593, 1.442695
        %v3662 = vpow.pop %v3661
        %v3663 = vmul.f32 %v3594, 1.442695
        %v3664 = vpow.pop %v3663
        %v3665 = vmul.f32 %v3595, 1.442695
        %v3666 = vpow.pop %v3665
        %v3667 = vmul.f32 %v3596, 1.442695
        %v3668 = vpow.pop %v3667
        %v3669 = vmul.f32 %v3597, 1.442695
        %v3670 = vpow.pop %v3669
        %v3671 = vmul.f32 %v3598, 1.442695
        %v3672 = vpow.pop %v3671
        %v3673 = vmul.f32 %v3599, 1.442695
        %v3674 = vpow.pop %v3673
        %v3675 = vmul.f32 %v3600, 1.442695
        %v3676 = vpow.pop %v3675
        %v3677 = vmul.f32 %v3601, 1.442695
        %v3678 = vpow.pop %v3677
        %v3679 = vmul.f32 %v3602, 1.442695
        %v3680 = vpow.pop %v3679
        %v3681 = vmul.f32 %v3603, 1.442695
        %v3682 = vpow.pop %v3681
        %v3683 = vmul.f32 %v3604, 1.442695
        %v3684 = vpow.pop %v3683
        %v3685 = vmul.f32 %v3605, 1.442695
        %v3686 = vpow.pop %v3685
        %v3687 = vmul.f32 %v3606, 1.442695
        %v3688 = vpow.pop %v3687
        %v3689 = vmul.f32 %v3607, 1.442695
        %v3690 = vpow.pop %v3689
        %v3691 = vmul.f32 %v3608, 1.442695
        %v3692 = vpow.pop %v3691
        %v3693 = vmul.f32 %v3609, 1.442695
        %v3694 = vpow.pop %v3693
        %v3695 = vmul.f32 %v3610, 1.442695
        %v3696 = vpow.pop %v3695
        %v3697 = vmul.f32 %v3611, 1.442695
        %v3698 = vpow.pop %v3697
        %v3699 = vmul.f32 %v3612, 1.442695
        %v3700 = vpow.pop %v3699
        %v3701 = vmul.f32 %v3613, 1.442695
        %v3702 = vpow.pop %v3701
        %v3703 = vmul.f32 %v3614, 1.442695
        %v3704 = vpow.pop %v3703
        %v3705 = vmul.f32 %v3615, 1.442695
        %v3706 = vpow.pop %v3705
        %v3707 = vmul.f32 %v3616, 1.442695
        %v3708 = vpow.pop %v3707
        %v3709 = vmul.f32 %v3617, 1.442695
        %v3710 = vpow.pop %v3709
        %v3711 = vmul.f32 %v3618, 1.442695
        %v3712 = vpow.pop %v3711
        %v3713 = vmul.f32 %v3619, 1.442695
        %v3714 = vpow.pop %v3713
        %v3715 = vmul.f32 %v3620, 1.442695
        %v3716 = vpow.pop %v3715
        %v3717 = vmul.f32 %v3621, 1.442695
        %v3718 = vpow.pop %v3717
        %v3719 = vmul.f32 %v3622, 1.442695
        %v3720 = vpow.pop %v3719
        %v3721 = vmul.f32 %v3623, 1.442695
        %v3722 = vpow.pop %v3721
        %v3723 = vmul.f32 %v3624, 1.442695
        %v3724 = vpow.pop %v3723
        %v3725 = vmul.f32 %v3625, 1.442695
        %v3726 = vpow.pop %v3725
        %v3727 = vmul.f32 %v3626, 1.442695
        %v3728 = vpow.pop %v3727
        %v3729 = vmul.f32 %v3627, 1.442695
        %v3730 = vpow.pop %v3729
        %v3731 = vmul.f32 %v3628, 1.442695
        %v3732 = vpow.pop %v3731
        %v3733 = vmul.f32 %v3629, 1.442695
        %v3734 = vpow.pop %v3733
        %v3735 = vmul.f32 %v3630, 1.442695
        %v3736 = vpow.pop %v3735
        %v3737 = vmul.f32 %v3631, 1.442695
        %v3738 = vpow.pop %v3737
        %v3739 = vmul.f32 %v3632, 1.442695
        %v3740 = vpow.pop %v3739
        %v3741 = vmul.f32 %v3633, 1.442695
        %v3742 = vpow.pop %v3741
        %v3743 = vmul.f32 %v3634, 1.442695
        %v3744 = vpow.pop %v3743
        %v3745 = vmul.f32 %v3635, 1.442695
        %v3746 = vpow.pop %v3745
        %v3747 = vmul.f32 %v3636, 1.442695
        %v3748 = vpow.pop %v3747
        %v3749 = vmul.f32 %v3637, 1.442695
        %v3750 = vpow.pop %v3749
        %v3751 = vmul.f32 %v3638, 1.442695
        %v3752 = vpow.pop %v3751
        %v3753 = vmul.f32 %v3639, 1.442695
        %v3754 = vpow.pop %v3753
        %v3755 = vmul.f32 %v3640, 1.442695
        %v3756 = vpow.pop %v3755
        %v3757 = vmul.f32 %v3641, 1.442695
        %v3758 = vpow.pop %v3757
        %v3759 = vmul.f32 %v3642, 1.442695
        %v3760 = vpow.pop %v3759
        %v3761 = vmul.f32 %v3643, 1.442695
        %v3762 = vpow.pop %v3761
        %v3763 = vmul.f32 %v3644, 1.442695
        %v3764 = vpow.pop %v3763
        %v3765 = vmul.f32 %v3645, 1.442695
        %v3766 = vpow.pop %v3765
        %v3767 = vmul.f32 %v3646, 1.442695
        %v3768 = vpow.pop %v3767
        %v3769 = vmul.f32 %v3647, 1.442695
        %v3770 = vpow.pop %v3769
        %v3771 = vmul.f32 %v3648, 1.442695
        %v3772 = vpow.pop %v3771
        %v3773 = vmul.f32 %v3649, 1.442695
        %v3774 = vpow.pop %v3773
        %v3775 = vmul.f32 %v3650, 1.442695
        %v3776 = vpow.pop %v3775
        %v3777 = vmul.f32 %v3651, 1.442695
        %v3778 = vpow.pop %v3777
        %v3779 = vmul.f32 %v3652, 1.442695
        %v3780 = vpow.pop %v3779
        %v3781 = vadd.f32 %v3654, %v3656
        %3782 = vadd.xlane.f32.xlu0 %v3781
        %v3783 = vpop.xlane.xlu0 %3782
        %v3784 = vadd.f32 %v3658, %v3660
        %3785 = vadd.xlane.f32.xlu0 %v3784
        %v3786 = vpop.xlane.xlu0 %3785
        %v3787 = vadd.f32 %v3662, %v3664
        %3788 = vadd.xlane.f32.xlu0 %v3787
        %v3789 = vpop.xlane.xlu0 %3788
        %v3790 = vadd.f32 %v3666, %v3668
        %3791 = vadd.xlane.f32.xlu0 %v3790
        %v3792 = vpop.xlane.xlu0 %3791
        %v3793 = vadd.f32 %v3670, %v3672
        %3794 = vadd.xlane.f32.xlu0 %v3793
        %v3795 = vpop.xlane.xlu0 %3794
        %v3796 = vadd.f32 %v3674, %v3676
        %3797 = vadd.xlane.f32.xlu0 %v3796
        %v3798 = vpop.xlane.xlu0 %3797
        %v3799 = vadd.f32 %v3678, %v3680
        %3800 = vadd.xlane.f32.xlu0 %v3799
        %v3801 = vpop.xlane.xlu0 %3800
        %v3802 = vadd.f32 %v3682, %v3684
        %3803 = vadd.xlane.f32.xlu0 %v3802
        %v3804 = vpop.xlane.xlu0 %3803
        %v3805 = vadd.f32 %v3686, %v3688
        %3806 = vadd.xlane.f32.xlu0 %v3805
        %v3807 = vpop.xlane.xlu0 %3806
        %v3808 = vadd.f32 %v3690, %v3692
        %3809 = vadd.xlane.f32.xlu0 %v3808
        %v3810 = vpop.xlane.xlu0 %3809
        %v3811 = vadd.f32 %v3694, %v3696
        %3812 = vadd.xlane.f32.xlu0 %v3811
        %v3813 = vpop.xlane.xlu0 %3812
        %v3814 = vadd.f32 %v3698, %v3700
        %3815 = vadd.xlane.f32.xlu0 %v3814
        %v3816 = vpop.xlane.xlu0 %3815
        %v3817 = vadd.f32 %v3702, %v3704
        %3818 = vadd.xlane.f32.xlu0 %v3817
        %v3819 = vpop.xlane.xlu0 %3818
        %v3820 = vadd.f32 %v3706, %v3708
        %3821 = vadd.xlane.f32.xlu0 %v3820
        %v3822 = vpop.xlane.xlu0 %3821
        %v3823 = vadd.f32 %v3710, %v3712
        %3824 = vadd.xlane.f32.xlu0 %v3823
        %v3825 = vpop.xlane.xlu0 %3824
        %v3826 = vadd.f32 %v3714, %v3716
        %3827 = vadd.xlane.f32.xlu0 %v3826
        %v3828 = vpop.xlane.xlu0 %3827
        %v3829 = vadd.f32 %v3718, %v3720
        %3830 = vadd.xlane.f32.xlu0 %v3829
        %v3831 = vpop.xlane.xlu0 %3830
        %v3832 = vadd.f32 %v3722, %v3724
        %3833 = vadd.xlane.f32.xlu0 %v3832
        %v3834 = vpop.xlane.xlu0 %3833
        %v3835 = vadd.f32 %v3726, %v3728
        %3836 = vadd.xlane.f32.xlu0 %v3835
        %v3837 = vpop.xlane.xlu0 %3836
        %v3838 = vadd.f32 %v3730, %v3732
        %3839 = vadd.xlane.f32.xlu0 %v3838
        %v3840 = vpop.xlane.xlu0 %3839
        %v3841 = vadd.f32 %v3734, %v3736
        %3842 = vadd.xlane.f32.xlu0 %v3841
        %v3843 = vpop.xlane.xlu0 %3842
        %v3844 = vadd.f32 %v3738, %v3740
        %3845 = vadd.xlane.f32.xlu0 %v3844
        %v3846 = vpop.xlane.xlu0 %3845
        %v3847 = vadd.f32 %v3742, %v3744
        %3848 = vadd.xlane.f32.xlu0 %v3847
        %v3849 = vpop.xlane.xlu0 %3848
        %v3850 = vadd.f32 %v3746, %v3748
        %3851 = vadd.xlane.f32.xlu0 %v3850
        %v3852 = vpop.xlane.xlu0 %3851
        %v3853 = vadd.f32 %v3750, %v3752
        %3854 = vadd.xlane.f32.xlu0 %v3853
        %v3855 = vpop.xlane.xlu0 %3854
        %v3856 = vadd.f32 %v3754, %v3756
        %3857 = vadd.xlane.f32.xlu0 %v3856
        %v3858 = vpop.xlane.xlu0 %3857
        %v3859 = vadd.f32 %v3758, %v3760
        %3860 = vadd.xlane.f32.xlu0 %v3859
        %v3861 = vpop.xlane.xlu0 %3860
        %v3862 = vadd.f32 %v3762, %v3764
        %3863 = vadd.xlane.f32.xlu0 %v3862
        %v3864 = vpop.xlane.xlu0 %3863
        %v3865 = vadd.f32 %v3766, %v3768
        %3866 = vadd.xlane.f32.xlu0 %v3865
        %v3867 = vpop.xlane.xlu0 %3866
        %v3868 = vadd.f32 %v3770, %v3772
        %3869 = vadd.xlane.f32.xlu0 %v3868
        %v3870 = vpop.xlane.xlu0 %3869
        %v3871 = vadd.f32 %v3774, %v3776
        %3872 = vadd.xlane.f32.xlu0 %v3871
        %v3873 = vpop.xlane.xlu0 %3872
        %v3874 = vadd.f32 %v3778, %v3780
        %3875 = vadd.xlane.f32.xlu0 %v3874
        %v3876 = vpop.xlane.xlu0 %3875
        %3909 = vrot.lane.b32.xlu0 %v1347, 96
        %v3910 = vpop.permute.xlu0 %3909
        %3911 = vrot.lane.b32.xlu0 %v1352, 96
        %v3912 = vpop.permute.xlu0 %3911
        %3913 = vrot.lane.b32.xlu0 %v1357, 96
        %v3914 = vpop.permute.xlu0 %3913
        %3915 = vrot.lane.b32.xlu0 %v1362, 96
        %v3916 = vpop.permute.xlu0 %3915
        %3917 = vrot.lane.b32.xlu0 %v1367, 96
        %v3918 = vpop.permute.xlu0 %3917
        %3919 = vrot.lane.b32.xlu0 %v1372, 96
        %v3920 = vpop.permute.xlu0 %3919
        %3921 = vrot.lane.b32.xlu0 %v1377, 96
        %v3922 = vpop.permute.xlu0 %3921
        %3923 = vrot.lane.b32.xlu0 %v1382, 96
        %v3924 = vpop.permute.xlu0 %3923
        %3925 = vrot.lane.b32.xlu0 %v1387, 96
        %v3926 = vpop.permute.xlu0 %3925
        %3927 = vrot.lane.b32.xlu0 %v1392, 96
        %v3928 = vpop.permute.xlu0 %3927
        %3929 = vrot.lane.b32.xlu0 %v1397, 96
        %v3930 = vpop.permute.xlu0 %3929
        %3931 = vrot.lane.b32.xlu0 %v1402, 96
        %v3932 = vpop.permute.xlu0 %3931
        %3933 = vrot.lane.b32.xlu0 %v1407, 96
        %v3934 = vpop.permute.xlu0 %3933
        %3935 = vrot.lane.b32.xlu0 %v1412, 96
        %v3936 = vpop.permute.xlu0 %3935
        %3937 = vrot.lane.b32.xlu0 %v1417, 96
        %v3938 = vpop.permute.xlu0 %3937
        %3939 = vrot.lane.b32.xlu0 %v1422, 96
        %v3940 = vpop.permute.xlu0 %3939
        %3941 = vrot.lane.b32.xlu0 %v1427, 96
        %v3942 = vpop.permute.xlu0 %3941
        %3943 = vrot.lane.b32.xlu0 %v1432, 96
        %v3944 = vpop.permute.xlu0 %3943
        %3945 = vrot.lane.b32.xlu0 %v1437, 96
        %v3946 = vpop.permute.xlu0 %3945
        %3947 = vrot.lane.b32.xlu0 %v1442, 96
        %v3948 = vpop.permute.xlu0 %3947
        %3949 = vrot.lane.b32.xlu0 %v1447, 96
        %v3950 = vpop.permute.xlu0 %3949
        %3951 = vrot.lane.b32.xlu0 %v1452, 96
        %v3952 = vpop.permute.xlu0 %3951
        %3953 = vrot.lane.b32.xlu0 %v1457, 96
        %v3954 = vpop.permute.xlu0 %3953
        %3955 = vrot.lane.b32.xlu0 %v1462, 96
        %v3956 = vpop.permute.xlu0 %3955
        %3957 = vrot.lane.b32.xlu0 %v1467, 96
        %v3958 = vpop.permute.xlu0 %3957
        %3959 = vrot.lane.b32.xlu0 %v1472, 96
        %v3960 = vpop.permute.xlu0 %3959
        %3961 = vrot.lane.b32.xlu0 %v1477, 96
        %v3962 = vpop.permute.xlu0 %3961
        %3963 = vrot.lane.b32.xlu0 %v1482, 96
        %v3964 = vpop.permute.xlu0 %3963
        %3965 = vrot.lane.b32.xlu0 %v1487, 96
        %v3966 = vpop.permute.xlu0 %3965
        %3967 = vrot.lane.b32.xlu0 %v1492, 96
        %v3968 = vpop.permute.xlu0 %3967
        %3969 = vrot.lane.b32.xlu0 %v1497, 96
        %v3970 = vpop.permute.xlu0 %3969
        %3971 = vrot.lane.b32.xlu0 %v1502, 96
        %v3972 = vpop.permute.xlu0 %3971
        %4005 = vmatprep.subr.mxu0 0.0
        %4006 = vmatpush1.msra.mxu0 %v3910
        %4007 = vmatprep.subr.mxu0 0.0
        %4008 = vmatpush1.msra.mxu0 %v3912
        %4009 = vmatprep.subr.mxu0 0.0
        %4010 = vmatpush1.msra.mxu0 %v3914
        %4011 = vmatprep.subr.mxu0 0.0
        %4012 = vmatpush1.msra.mxu0 %v3916
        %4013 = vmatprep.subr.mxu0 0.0
        %4014 = vmatpush1.msra.mxu0 %v3918
        %4015 = vmatprep.subr.mxu0 0.0
        %4016 = vmatpush1.msra.mxu0 %v3920
        %4017 = vmatprep.subr.mxu0 0.0
        %4018 = vmatpush1.msra.mxu0 %v3922
        %4019 = vmatprep.subr.mxu0 0.0
        %4020 = vmatpush1.msra.mxu0 %v3924
        %4021 = vmatprep.subr.mxu0 0.0
        %4022 = vmatpush1.msra.mxu0 %v3926
        %4023 = vmatprep.subr.mxu0 0.0
        %4024 = vmatpush1.msra.mxu0 %v3928
        %4025 = vmatprep.subr.mxu0 0.0
        %4026 = vmatpush1.msra.mxu0 %v3930
        %4027 = vmatprep.subr.mxu0 0.0
        %4028 = vmatpush1.msra.mxu0 %v3932
        %4029 = vmatprep.subr.mxu0 0.0
        %4030 = vmatpush1.msra.mxu0 %v3934
        %4031 = vmatprep.subr.mxu0 0.0
        %4032 = vmatpush1.msra.mxu0 %v3936
        %4033 = vmatprep.subr.mxu0 0.0
        %4034 = vmatpush1.msra.mxu0 %v3938
        %4035 = vmatprep.subr.mxu0 0.0
        %4036 = vmatpush1.msra.mxu0 %v3940
        %4037 = vmatprep.subr.mxu0 0.0
        %4038 = vmatpush1.msra.mxu0 %v3942
        %4039 = vmatprep.subr.mxu0 0.0
        %4040 = vmatpush1.msra.mxu0 %v3944
        %4041 = vmatprep.subr.mxu0 0.0
        %4042 = vmatpush1.msra.mxu0 %v3946
        %4043 = vmatprep.subr.mxu0 0.0
        %4044 = vmatpush1.msra.mxu0 %v3948
        %4045 = vmatprep.subr.mxu0 0.0
        %4046 = vmatpush1.msra.mxu0 %v3950
        %4047 = vmatprep.subr.mxu0 0.0
        %4048 = vmatpush1.msra.mxu0 %v3952
        %4049 = vmatprep.subr.mxu0 0.0
        %4050 = vmatpush1.msra.mxu0 %v3954
        %4051 = vmatprep.subr.mxu0 0.0
        %4052 = vmatpush1.msra.mxu0 %v3956
        %4053 = vmatprep.subr.mxu0 0.0
        %4054 = vmatpush1.msra.mxu0 %v3958
        %4055 = vmatprep.subr.mxu0 0.0
        %4056 = vmatpush1.msra.mxu0 %v3960
        %4057 = vmatprep.subr.mxu0 0.0
        %4058 = vmatpush1.msra.mxu0 %v3962
        %4059 = vmatprep.subr.mxu0 0.0
        %4060 = vmatpush1.msra.mxu0 %v3964
        %4061 = vmatprep.subr.mxu0 0.0
        %4062 = vmatpush1.msra.mxu0 %v3966
        %4063 = vmatprep.subr.mxu0 0.0
        %4064 = vmatpush1.msra.mxu0 %v3968
        %4065 = vmatprep.subr.mxu0 0.0
        %4066 = vmatpush1.msra.mxu0 %v3970
        %4067 = vmatprep.subr.mxu0 0.0
        %4068 = vmatpush1.msra.mxu0 %v3972
        %4069 = vmatprep.mubr.f32.mxu0 %v3656
        %4070 = vmatmul.mubr.f32.gmra.mrb[0].mxu0 %v3654
        %v4071 = vpop.f32.mrb[0].mxu0
        %v4072 = vadd.f32 0.0, %v4071
        %v4073 = vpop.f32.mrb[0].mxu0
        %4074 = vmatprep.mubr.f32.mxu0 %v3660
        %4075 = vmatmul.mubr.f32.gmra.mrb[0].mxu0 %v3658
        %v4076 = vpop.f32.mrb[0].mxu0
        %v4077 = vadd.f32 0.0, %v4076
        %v4078 = vpop.f32.mrb[0].mxu0
        %4079 = vmatprep.mubr.f32.mxu0 %v3664
        %4080 = vmatmul.mubr.f32.gmra.mrb[0].mxu0 %v3662
        %v4081 = vpop.f32.mrb[0].mxu0
        %v4082 = vadd.f32 0.0, %v4081
        %v4083 = vpop.f32.mrb[0].mxu0
        %4084 = vmatprep.mubr.f32.mxu0 %v3668
        %4085 = vmatmul.mubr.f32.gmra.mrb[0].mxu0 %v3666
        %v4086 = vpop.f32.mrb[0].mxu0
        %v4087 = vadd.f32 0.0, %v4086
        %v4088 = vpop.f32.mrb[0].mxu0
        %4089 = vmatprep.mubr.f32.mxu0 %v3672
        %4090 = vmatmul.mubr.f32.gmra.mrb[0].mxu0 %v3670
        %v4091 = vpop.f32.mrb[0].mxu0
        %v4092 = vadd.f32 0.0, %v4091
        %v4093 = vpop.f32.mrb[0].mxu0
        %4094 = vmatprep.mubr.f32.mxu0 %v3676
        %4095 = vmatmul.mubr.f32.gmra.mrb[0].mxu0 %v3674
        %v4096 = vpop.f32.mrb[0].mxu0
        %v4097 = vadd.f32 0.0, %v4096
        %v4098 = vpop.f32.mrb[0].mxu0
        %4099 = vmatprep.mubr.f32.mxu0 %v3680
        %4100 = vmatmul.mubr.f32.gmra.mrb[0].mxu0 %v3678
        %v4101 = vpop.f32.mrb[0].mxu0
        %v4102 = vadd.f32 0.0, %v4101
        %v4103 = vpop.f32.mrb[0].mxu0
        %4104 = vmatprep.mubr.f32.mxu0 %v3684
        %4105 = vmatmul.mubr.f32.gmra.mrb[0].mxu0 %v3682
        %v4106 = vpop.f32.mrb[0].mxu0
        %v4107 = vadd.f32 0.0, %v4106
        %v4108 = vpop.f32.mrb[0].mxu0
        %4109 = vmatprep.mubr.f32.mxu0 %v3688
        %4110 = vmatmul.mubr.f32.gmra.mrb[0].mxu0 %v3686
        %v4111 = vpop.f32.mrb[0].mxu0
        %v4112 = vadd.f32 0.0, %v4111
        %v4113 = vpop.f32.mrb[0].mxu0
        %4114 = vmatprep.mubr.f32.mxu0 %v3692
        %4115 = vmatmul.mubr.f32.gmra.mrb[0].mxu0 %v3690
        %v4116 = vpop.f32.mrb[0].mxu0
        %v4117 = vadd.f32 0.0, %v4116
        %v4118 = vpop.f32.mrb[0].mxu0
        %4119 = vmatprep.mubr.f32.mxu0 %v3696
        %4120 = vmatmul.mubr.f32.gmra.mrb[0].mxu0 %v3694
        %v4121 = vpop.f32.mrb[0].mxu0
        %v4122 = vadd.f32 0.0, %v4121
        %v4123 = vpop.f32.mrb[0].mxu0
        %4124 = vmatprep.mubr.f32.mxu0 %v3700
        %4125 = vmatmul.mubr.f32.gmra.mrb[0].mxu0 %v3698
        %v4126 = vpop.f32.mrb[0].mxu0
        %v4127 = vadd.f32 0.0, %v4126
        %v4128 = vpop.f32.mrb[0].mxu0
        %4129 = vmatprep.mubr.f32.mxu0 %v3704
        %4130 = vmatmul.mubr.f32.gmra.mrb[0].mxu0 %v3702
        %v4131 = vpop.f32.mrb[0].mxu0
        %v4132 = vadd.f32 0.0, %v4131
        %v4133 = vpop.f32.mrb[0].mxu0
        %4134 = vmatprep.mubr.f32.mxu0 %v3708
        %4135 = vmatmul.mubr.f32.gmra.mrb[0].mxu0 %v3706
        %v4136 = vpop.f32.mrb[0].mxu0
        %v4137 = vadd.f32 0.0, %v4136
        %v4138 = vpop.f32.mrb[0].mxu0
        %4139 = vmatprep.mubr.f32.mxu0 %v3712
        %4140 = vmatmul.mubr.f32.gmra.mrb[0].mxu0 %v3710
        %v4141 = vpop.f32.mrb[0].mxu0
        %v4142 = vadd.f32 0.0, %v4141
        %v4143 = vpop.f32.mrb[0].mxu0
        %4144 = vmatprep.mubr.f32.mxu0 %v3716
        %4145 = vmatmul.mubr.f32.gmra.mrb[0].mxu0 %v3714
        %v4146 = vpop.f32.mrb[0].mxu0
        %v4147 = vadd.f32 0.0, %v4146
        %v4148 = vpop.f32.mrb[0].mxu0
        %4149 = vmatprep.mubr.f32.mxu0 %v3720
        %4150 = vmatmul.mubr.f32.gmra.mrb[0].mxu0 %v3718
        %v4151 = vpop.f32.mrb[0].mxu0
        %v4152 = vadd.f32 0.0, %v4151
        %v4153 = vpop.f32.mrb[0].mxu0
        %4154 = vmatprep.mubr.f32.mxu0 %v3724
        %4155 = vmatmul.mubr.f32.gmra.mrb[0].mxu0 %v3722
        %v4156 = vpop.f32.mrb[0].mxu0
        %v4157 = vadd.f32 0.0, %v4156
        %v4158 = vpop.f32.mrb[0].mxu0
        %4159 = vmatprep.mubr.f32.mxu0 %v3728
        %4160 = vmatmul.mubr.f32.gmra.mrb[0].mxu0 %v3726
        %v4161 = vpop.f32.mrb[0].mxu0
        %v4162 = vadd.f32 0.0, %v4161
        %v4163 = vpop.f32.mrb[0].mxu0
        %4164 = vmatprep.mubr.f32.mxu0 %v3732
        %4165 = vmatmul.mubr.f32.gmra.mrb[0].mxu0 %v3730
        %v4166 = vpop.f32.mrb[0].mxu0
        %v4167 = vadd.f32 0.0, %v4166
        %v4168 = vpop.f32.mrb[0].mxu0
        %4169 = vmatprep.mubr.f32.mxu0 %v3736
        %4170 = vmatmul.mubr.f32.gmra.mrb[0].mxu0 %v3734
        %v4171 = vpop.f32.mrb[0].mxu0
        %v4172 = vadd.f32 0.0, %v4171
        %v4173 = vpop.f32.mrb[0].mxu0
        %4174 = vmatprep.mubr.f32.mxu0 %v3740
        %4175 = vmatmul.mubr.f32.gmra.mrb[0].mxu0 %v3738
        %v4176 = vpop.f32.mrb[0].mxu0
        %v4177 = vadd.f32 0.0, %v4176
        %v4178 = vpop.f32.mrb[0].mxu0
        %4179 = vmatprep.mubr.f32.mxu0 %v3744
        %4180 = vmatmul.mubr.f32.gmra.mrb[0].mxu0 %v3742
        %v4181 = vpop.f32.mrb[0].mxu0
        %v4182 = vadd.f32 0.0, %v4181
        %v4183 = vpop.f32.mrb[0].mxu0
        %4184 = vmatprep.mubr.f32.mxu0 %v3748
        %4185 = vmatmul.mubr.f32.gmra.mrb[0].mxu0 %v3746
        %v4186 = vpop.f32.mrb[0].mxu0
        %v4187 = vadd.f32 0.0, %v4186
        %v4188 = vpop.f32.mrb[0].mxu0
        %4189 = vmatprep.mubr.f32.mxu0 %v3752
        %4190 = vmatmul.mubr.f32.gmra.mrb[0].mxu0 %v3750
        %v4191 = vpop.f32.mrb[0].mxu0
        %v4192 = vadd.f32 0.0, %v4191
        %v4193 = vpop.f32.mrb[0].mxu0
        %4194 = vmatprep.mubr.f32.mxu0 %v3756
        %4195 = vmatmul.mubr.f32.gmra.mrb[0].mxu0 %v3754
        %v4196 = vpop.f32.mrb[0].mxu0
        %v4197 = vadd.f32 0.0, %v4196
        %v4198 = vpop.f32.mrb[0].mxu0
        %4199 = vmatprep.mubr.f32.mxu0 %v3760
        %4200 = vmatmul.mubr.f32.gmra.mrb[0].mxu0 %v3758
        %v4201 = vpop.f32.mrb[0].mxu0
        %v4202 = vadd.f32 0.0, %v4201
        %v4203 = vpop.f32.mrb[0].mxu0
        %4204 = vmatprep.mubr.f32.mxu0 %v3764
        %4205 = vmatmul.mubr.f32.gmra.mrb[0].mxu0 %v3762
        %v4206 = vpop.f32.mrb[0].mxu0
        %v4207 = vadd.f32 0.0, %v4206
        %v4208 = vpop.f32.mrb[0].mxu0
        %4209 = vmatprep.mubr.f32.mxu0 %v3768
        %4210 = vmatmul.mubr.f32.gmra.mrb[0].mxu0 %v3766
        %v4211 = vpop.f32.mrb[0].mxu0
        %v4212 = vadd.f32 0.0, %v4211
        %v4213 = vpop.f32.mrb[0].mxu0
        %4214 = vmatprep.mubr.f32.mxu0 %v3772
        %4215 = vmatmul.mubr.f32.gmra.mrb[0].mxu0 %v3770
        %v4216 = vpop.f32.mrb[0].mxu0
        %v4217 = vadd.f32 0.0, %v4216
        %v4218 = vpop.f32.mrb[0].mxu0
        %4219 = vmatprep.mubr.f32.mxu0 %v3776
        %4220 = vmatmul.mubr.f32.gmra.mrb[0].mxu0 %v3774
        %v4221 = vpop.f32.mrb[0].mxu0
        %v4222 = vadd.f32 0.0, %v4221
        %v4223 = vpop.f32.mrb[0].mxu0
        %4224 = vmatprep.mubr.f32.mxu0 %v3780
        %4225 = vmatmul.mubr.f32.gmra.mrb[0].mxu0 %v3778
        %v4226 = vpop.f32.mrb[0].mxu0
        %v4227 = vadd.f32 0.0, %v4226
        %v4228 = vpop.f32.mrb[0].mxu0
        %4229 = vdwg.mxu0
        %v4230 = vrcp.pop %v3783
        %v4231 = vrcp.pop %v3786
        %v4232 = vrcp.pop %v3789
        %v4233 = vrcp.pop %v3792
        %v4234 = vrcp.pop %v3795
        %v4235 = vrcp.pop %v3798
        %v4236 = vrcp.pop %v3801
        %v4237 = vrcp.pop %v3804
        %v4238 = vrcp.pop %v3807
        %v4239 = vrcp.pop %v3810
        %v4240 = vrcp.pop %v3813
        %v4241 = vrcp.pop %v3816
        %v4242 = vrcp.pop %v3819
        %v4243 = vrcp.pop %v3822
        %v4244 = vrcp.pop %v3825
        %v4245 = vrcp.pop %v3828
        %v4246 = vrcp.pop %v3831
        %v4247 = vrcp.pop %v3834
        %v4248 = vrcp.pop %v3837
        %v4249 = vrcp.pop %v3840
        %v4250 = vrcp.pop %v3843
        %v4251 = vrcp.pop %v3846
        %v4252 = vrcp.pop %v3849
        %v4253 = vrcp.pop %v3852
        %v4254 = vrcp.pop %v3855
        %v4255 = vrcp.pop %v3858
        %v4256 = vrcp.pop %v3861
        %v4257 = vrcp.pop %v3864
        %v4258 = vrcp.pop %v3867
        %v4259 = vrcp.pop %v3870
        %v4260 = vrcp.pop %v3873
        %v4261 = vrcp.pop %v3876
        %v4262 = vmul.f32 %v4072, %v4230
        %v4263 = vmul.f32 %v4077, %v4231
        %v4264 = vmul.f32 %v4082, %v4232
        %v4265 = vmul.f32 %v4087, %v4233
        %v4266 = vmul.f32 %v4092, %v4234
        %v4267 = vmul.f32 %v4097, %v4235
        %v4268 = vmul.f32 %v4102, %v4236
        %v4269 = vmul.f32 %v4107, %v4237
        %v4270 = vmul.f32 %v4112, %v4238
        %v4271 = vmul.f32 %v4117, %v4239
        %v4272 = vmul.f32 %v4122, %v4240
        %v4273 = vmul.f32 %v4127, %v4241
        %v4274 = vmul.f32 %v4132, %v4242
        %v4275 = vmul.f32 %v4137, %v4243
        %v4276 = vmul.f32 %v4142, %v4244
        %v4277 = vmul.f32 %v4147, %v4245
        %v4278 = vmul.f32 %v4152, %v4246
        %v4279 = vmul.f32 %v4157, %v4247
        %v4280 = vmul.f32 %v4162, %v4248
        %v4281 = vmul.f32 %v4167, %v4249
        %v4282 = vmul.f32 %v4172, %v4250
        %v4283 = vmul.f32 %v4177, %v4251
        %v4284 = vmul.f32 %v4182, %v4252
        %v4285 = vmul.f32 %v4187, %v4253
        %v4286 = vmul.f32 %v4192, %v4254
        %v4287 = vmul.f32 %v4197, %v4255
        %v4288 = vmul.f32 %v4202, %v4256
        %v4289 = vmul.f32 %v4207, %v4257
        %v4290 = vmul.f32 %v4212, %v4258
        %v4291 = vmul.f32 %v4217, %v4259
        %v4292 = vmul.f32 %v4222, %v4260
        %v4293 = vmul.f32 %v4227, %v4261
        %4326 = vrot.lane.b32.xlu0 %v4262, 32
        %v4327 = vpop.permute.xlu0 %4326
        %4328 = vrot.lane.b32.xlu0 %v4263, 32
        %v4329 = vpop.permute.xlu0 %4328
        %4330 = vrot.lane.b32.xlu0 %v4264, 32
        %v4331 = vpop.permute.xlu0 %4330
        %4332 = vrot.lane.b32.xlu0 %v4265, 32
        %v4333 = vpop.permute.xlu0 %4332
        %4334 = vrot.lane.b32.xlu0 %v4266, 32
        %v4335 = vpop.permute.xlu0 %4334
        %4336 = vrot.lane.b32.xlu0 %v4267, 32
        %v4337 = vpop.permute.xlu0 %4336
        %4338 = vrot.lane.b32.xlu0 %v4268, 32
        %v4339 = vpop.permute.xlu0 %4338
        %4340 = vrot.lane.b32.xlu0 %v4269, 32
        %v4341 = vpop.permute.xlu0 %4340
        %4342 = vrot.lane.b32.xlu0 %v4270, 32
        %v4343 = vpop.permute.xlu0 %4342
        %4344 = vrot.lane.b32.xlu0 %v4271, 32
        %v4345 = vpop.permute.xlu0 %4344
        %4346 = vrot.lane.b32.xlu0 %v4272, 32
        %v4347 = vpop.permute.xlu0 %4346
        %4348 = vrot.lane.b32.xlu0 %v4273, 32
        %v4349 = vpop.permute.xlu0 %4348
        %4350 = vrot.lane.b32.xlu0 %v4274, 32
        %v4351 = vpop.permute.xlu0 %4350
        %4352 = vrot.lane.b32.xlu0 %v4275, 32
        %v4353 = vpop.permute.xlu0 %4352
        %4354 = vrot.lane.b32.xlu0 %v4276, 32
        %v4355 = vpop.permute.xlu0 %4354
        %4356 = vrot.lane.b32.xlu0 %v4277, 32
        %v4357 = vpop.permute.xlu0 %4356
        %4358 = vrot.lane.b32.xlu0 %v4278, 32
        %v4359 = vpop.permute.xlu0 %4358
        %4360 = vrot.lane.b32.xlu0 %v4279, 32
        %v4361 = vpop.permute.xlu0 %4360
        %4362 = vrot.lane.b32.xlu0 %v4280, 32
        %v4363 = vpop.permute.xlu0 %4362
        %4364 = vrot.lane.b32.xlu0 %v4281, 32
        %v4365 = vpop.permute.xlu0 %4364
        %4366 = vrot.lane.b32.xlu0 %v4282, 32
        %v4367 = vpop.permute.xlu0 %4366
        %4368 = vrot.lane.b32.xlu0 %v4283, 32
        %v4369 = vpop.permute.xlu0 %4368
        %4370 = vrot.lane.b32.xlu0 %v4284, 32
        %v4371 = vpop.permute.xlu0 %4370
        %4372 = vrot.lane.b32.xlu0 %v4285, 32
        %v4373 = vpop.permute.xlu0 %4372
        %4374 = vrot.lane.b32.xlu0 %v4286, 32
        %v4375 = vpop.permute.xlu0 %4374
        %4376 = vrot.lane.b32.xlu0 %v4287, 32
        %v4377 = vpop.permute.xlu0 %4376
        %4378 = vrot.lane.b32.xlu0 %v4288, 32
        %v4379 = vpop.permute.xlu0 %4378
        %4380 = vrot.lane.b32.xlu0 %v4289, 32
        %v4381 = vpop.permute.xlu0 %4380
        %4382 = vrot.lane.b32.xlu0 %v4290, 32
        %v4383 = vpop.permute.xlu0 %4382
        %4384 = vrot.lane.b32.xlu0 %v4291, 32
        %v4385 = vpop.permute.xlu0 %4384
        %4386 = vrot.lane.b32.xlu0 %v4292, 32
        %v4387 = vpop.permute.xlu0 %4386
        %4388 = vrot.lane.b32.xlu0 %v4293, 32
        %v4389 = vpop.permute.xlu0 %4388
        %vm4422 = vcmask 523520
        %4423 = vst.msk [vmem:[#allocation2] sm:$0xff] %vm4422, %v4327
        %4424 = vst.msk [vmem:[#allocation2 + $0x8] sm:$0xff] %vm4422, %v4329
        %4425 = vst.msk [vmem:[#allocation2 + $0x10] sm:$0xff] %vm4422, %v4331
        %4426 = vst.msk [vmem:[#allocation2 + $0x18] sm:$0xff] %vm4422, %v4333
        %4427 = vst.msk [vmem:[#allocation2 + $0x20] sm:$0xff] %vm4422, %v4335
        %4428 = vst.msk [vmem:[#allocation2 + $0x28] sm:$0xff] %vm4422, %v4337
        %4429 = vst.msk [vmem:[#allocation2 + $0x30] sm:$0xff] %vm4422, %v4339
        %4430 = vst.msk [vmem:[#allocation2 + $0x38] sm:$0xff] %vm4422, %v4341
        %4431 = vst.msk [vmem:[#allocation2 + $0x40] sm:$0xff] %vm4422, %v4343
        %4432 = vst.msk [vmem:[#allocation2 + $0x48] sm:$0xff] %vm4422, %v4345
        %4433 = vst.msk [vmem:[#allocation2 + $0x50] sm:$0xff] %vm4422, %v4347
        %4434 = vst.msk [vmem:[#allocation2 + $0x58] sm:$0xff] %vm4422, %v4349
        %4435 = vst.msk [vmem:[#allocation2 + $0x60] sm:$0xff] %vm4422, %v4351
        %4436 = vst.msk [vmem:[#allocation2 + $0x68] sm:$0xff] %vm4422, %v4353
        %4437 = vst.msk [vmem:[#allocation2 + $0x70] sm:$0xff] %vm4422, %v4355
        %4438 = vst.msk [vmem:[#allocation2 + $0x78] sm:$0xff] %vm4422, %v4357
        %4439 = vst.msk [vmem:[#allocation2 + $0x80] sm:$0xff] %vm4422, %v4359
        %4440 = vst.msk [vmem:[#allocation2 + $0x88] sm:$0xff] %vm4422, %v4361
        %4441 = vst.msk [vmem:[#allocation2 + $0x90] sm:$0xff] %vm4422, %v4363
        %4442 = vst.msk [vmem:[#allocation2 + $0x98] sm:$0xff] %vm4422, %v4365
        %4443 = vst.msk [vmem:[#allocation2 + $0xa0] sm:$0xff] %vm4422, %v4367
        %4444 = vst.msk [vmem:[#allocation2 + $0xa8] sm:$0xff] %vm4422, %v4369
        %4445 = vst.msk [vmem:[#allocation2 + $0xb0] sm:$0xff] %vm4422, %v4371
        %4446 = vst.msk [vmem:[#allocation2 + $0xb8] sm:$0xff] %vm4422, %v4373
        %4447 = vst.msk [vmem:[#allocation2 + $0xc0] sm:$0xff] %vm4422, %v4375
        %4448 = vst.msk [vmem:[#allocation2 + $0xc8] sm:$0xff] %vm4422, %v4377
        %4449 = vst.msk [vmem:[#allocation2 + $0xd0] sm:$0xff] %vm4422, %v4379
        %4450 = vst.msk [vmem:[#allocation2 + $0xd8] sm:$0xff] %vm4422, %v4381
        %4451 = vst.msk [vmem:[#allocation2 + $0xe0] sm:$0xff] %vm4422, %v4383
        %4452 = vst.msk [vmem:[#allocation2 + $0xe8] sm:$0xff] %vm4422, %v4385
        %4453 = vst.msk [vmem:[#allocation2 + $0xf0] sm:$0xff] %vm4422, %v4387
        %4454 = vst.msk [vmem:[#allocation2 + $0xf8] sm:$0xff] %vm4422, %v4389
        %4455 = vrot.lane.b32.xlu0 %v851, 64
        %v4456 = vpop.permute.xlu0 %4455
        %4457 = vrot.lane.b32.xlu0 %v856, 64
        %v4458 = vpop.permute.xlu0 %4457
        %4459 = vrot.lane.b32.xlu0 %v861, 64
        %v4460 = vpop.permute.xlu0 %4459
        %4461 = vrot.lane.b32.xlu0 %v866, 64
        %v4462 = vpop.permute.xlu0 %4461
        %4463 = vrot.lane.b32.xlu0 %v871, 64
        %v4464 = vpop.permute.xlu0 %4463
        %4465 = vrot.lane.b32.xlu0 %v876, 64
        %v4466 = vpop.permute.xlu0 %4465
        %4467 = vrot.lane.b32.xlu0 %v881, 64
        %v4468 = vpop.permute.xlu0 %4467
        %4469 = vrot.lane.b32.xlu0 %v886, 64
        %v4470 = vpop.permute.xlu0 %4469
        %4471 = vrot.lane.b32.xlu0 %v891, 64
        %v4472 = vpop.permute.xlu0 %4471
        %4473 = vrot.lane.b32.xlu0 %v896, 64
        %v4474 = vpop.permute.xlu0 %4473
        %4475 = vrot.lane.b32.xlu0 %v901, 64
        %v4476 = vpop.permute.xlu0 %4475
        %4477 = vrot.lane.b32.xlu0 %v906, 64
        %v4478 = vpop.permute.xlu0 %4477
        %4479 = vrot.lane.b32.xlu0 %v911, 64
        %v4480 = vpop.permute.xlu0 %4479
        %4481 = vrot.lane.b32.xlu0 %v916, 64
        %v4482 = vpop.permute.xlu0 %4481
        %4483 = vrot.lane.b32.xlu0 %v921, 64
        %v4484 = vpop.permute.xlu0 %4483
        %4485 = vrot.lane.b32.xlu0 %v926, 64
        %v4486 = vpop.permute.xlu0 %4485
        %4487 = vrot.lane.b32.xlu0 %v931, 64
        %v4488 = vpop.permute.xlu0 %4487
        %4489 = vrot.lane.b32.xlu0 %v936, 64
        %v4490 = vpop.permute.xlu0 %4489
        %4491 = vrot.lane.b32.xlu0 %v941, 64
        %v4492 = vpop.permute.xlu0 %4491
        %4493 = vrot.lane.b32.xlu0 %v946, 64
        %v4494 = vpop.permute.xlu0 %4493
        %4495 = vrot.lane.b32.xlu0 %v951, 64
        %v4496 = vpop.permute.xlu0 %4495
        %4497 = vrot.lane.b32.xlu0 %v956, 64
        %v4498 = vpop.permute.xlu0 %4497
        %4499 = vrot.lane.b32.xlu0 %v961, 64
        %v4500 = vpop.permute.xlu0 %4499
        %4501 = vrot.lane.b32.xlu0 %v966, 64
        %v4502 = vpop.permute.xlu0 %4501
        %4503 = vrot.lane.b32.xlu0 %v971, 64
        %v4504 = vpop.permute.xlu0 %4503
        %4505 = vrot.lane.b32.xlu0 %v976, 64
        %v4506 = vpop.permute.xlu0 %4505
        %4507 = vrot.lane.b32.xlu0 %v981, 64
        %v4508 = vpop.permute.xlu0 %4507
        %4509 = vrot.lane.b32.xlu0 %v986, 64
        %v4510 = vpop.permute.xlu0 %4509
        %4511 = vrot.lane.b32.xlu0 %v991, 64
        %v4512 = vpop.permute.xlu0 %4511
        %4513 = vrot.lane.b32.xlu0 %v996, 64
        %v4514 = vpop.permute.xlu0 %4513
        %4515 = vrot.lane.b32.xlu0 %v1001, 64
        %v4516 = vpop.permute.xlu0 %4515
        %4517 = vrot.lane.b32.xlu0 %v1006, 64
        %v4518 = vpop.permute.xlu0 %4517
        %4519 = vrot.lane.b32.xlu0 %v1099, 64
        %v4520 = vpop.permute.xlu0 %4519
        %4521 = vrot.lane.b32.xlu0 %v1104, 64
        %v4522 = vpop.permute.xlu0 %4521
        %4523 = vrot.lane.b32.xlu0 %v1109, 64
        %v4524 = vpop.permute.xlu0 %4523
        %4525 = vrot.lane.b32.xlu0 %v1114, 64
        %v4526 = vpop.permute.xlu0 %4525
        %4527 = vrot.lane.b32.xlu0 %v1119, 64
        %v4528 = vpop.permute.xlu0 %4527
        %4529 = vrot.lane.b32.xlu0 %v1124, 64
        %v4530 = vpop.permute.xlu0 %4529
        %4531 = vrot.lane.b32.xlu0 %v1129, 64
        %v4532 = vpop.permute.xlu0 %4531
        %4533 = vrot.lane.b32.xlu0 %v1134, 64
        %v4534 = vpop.permute.xlu0 %4533
        %4535 = vrot.lane.b32.xlu0 %v1139, 64
        %v4536 = vpop.permute.xlu0 %4535
        %4537 = vrot.lane.b32.xlu0 %v1144, 64
        %v4538 = vpop.permute.xlu0 %4537
        %4539 = vrot.lane.b32.xlu0 %v1149, 64
        %v4540 = vpop.permute.xlu0 %4539
        %4541 = vrot.lane.b32.xlu0 %v1154, 64
        %v4542 = vpop.permute.xlu0 %4541
        %4543 = vrot.lane.b32.xlu0 %v1159, 64
        %v4544 = vpop.permute.xlu0 %4543
        %4545 = vrot.lane.b32.xlu0 %v1164, 64
        %v4546 = vpop.permute.xlu0 %4545
        %4547 = vrot.lane.b32.xlu0 %v1169, 64
        %v4548 = vpop.permute.xlu0 %4547
        %4549 = vrot.lane.b32.xlu0 %v1174, 64
        %v4550 = vpop.permute.xlu0 %4549
        %4551 = vrot.lane.b32.xlu0 %v1179, 64
        %v4552 = vpop.permute.xlu0 %4551
        %4553 = vrot.lane.b32.xlu0 %v1184, 64
        %v4554 = vpop.permute.xlu0 %4553
        %4555 = vrot.lane.b32.xlu0 %v1189, 64
        %v4556 = vpop.permute.xlu0 %4555
        %4557 = vrot.lane.b32.xlu0 %v1194, 64
        %v4558 = vpop.permute.xlu0 %4557
        %4559 = vrot.lane.b32.xlu0 %v1199, 64
        %v4560 = vpop.permute.xlu0 %4559
        %4561 = vrot.lane.b32.xlu0 %v1204, 64
        %v4562 = vpop.permute.xlu0 %4561
        %4563 = vrot.lane.b32.xlu0 %v1209, 64
        %v4564 = vpop.permute.xlu0 %4563
        %4565 = vrot.lane.b32.xlu0 %v1214, 64
        %v4566 = vpop.permute.xlu0 %4565
        %4567 = vrot.lane.b32.xlu0 %v1219, 64
        %v4568 = vpop.permute.xlu0 %4567
        %4569 = vrot.lane.b32.xlu0 %v1224, 64
        %v4570 = vpop.permute.xlu0 %4569
        %4571 = vrot.lane.b32.xlu0 %v1229, 64
        %v4572 = vpop.permute.xlu0 %4571
        %4573 = vrot.lane.b32.xlu0 %v1234, 64
        %v4574 = vpop.permute.xlu0 %4573
        %4575 = vrot.lane.b32.xlu0 %v1239, 64
        %v4576 = vpop.permute.xlu0 %4575
        %4577 = vrot.lane.b32.xlu0 %v1244, 64
        %v4578 = vpop.permute.xlu0 %4577
        %4579 = vrot.lane.b32.xlu0 %v1249, 64
        %v4580 = vpop.permute.xlu0 %4579
        %4581 = vrot.lane.b32.xlu0 %v1254, 64
        %v4582 = vpop.permute.xlu0 %4581
        %v4583 = vsel %vm1505, %v4456, 0
        %v4585 = vsel %vm1505, %v4458, 0
        %v4587 = vsel %vm1505, %v4460, 0
        %v4589 = vsel %vm1505, %v4462, 0
        %v4591 = vsel %vm1505, %v4464, 0
        %v4593 = vsel %vm1505, %v4466, 0
        %v4595 = vsel %vm1505, %v4468, 0
        %v4597 = vsel %vm1505, %v4470, 0
        %v4599 = vsel %vm1505, %v4472, 0
        %v4601 = vsel %vm1505, %v4474, 0
        %v4603 = vsel %vm1505, %v4476, 0
        %v4605 = vsel %vm1505, %v4478, 0
        %v4607 = vsel %vm1505, %v4480, 0
        %v4609 = vsel %vm1505, %v4482, 0
        %v4611 = vsel %vm1505, %v4484, 0
        %v4613 = vsel %vm1505, %v4486, 0
        %v4615 = vsel %vm1505, %v4488, 0
        %v4617 = vsel %vm1505, %v4490, 0
        %v4619 = vsel %vm1505, %v4492, 0
        %v4621 = vsel %vm1505, %v4494, 0
        %v4623 = vsel %vm1505, %v4496, 0
        %v4625 = vsel %vm1505, %v4498, 0
        %v4627 = vsel %vm1505, %v4500, 0
        %v4629 = vsel %vm1505, %v4502, 0
        %v4631 = vsel %vm1505, %v4504, 0
        %v4633 = vsel %vm1505, %v4506, 0
        %v4635 = vsel %vm1505, %v4508, 0
        %v4637 = vsel %vm1505, %v4510, 0
        %v4639 = vsel %vm1505, %v4512, 0
        %v4641 = vsel %vm1505, %v4514, 0
        %v4643 = vsel %vm1505, %v4516, 0
        %v4645 = vsel %vm1505, %v4518, 0
        %v4647 = vsel %vm1505, %v4520, 0
        %v4649 = vsel %vm1505, %v4522, 0
        %v4651 = vsel %vm1505, %v4524, 0
        %v4653 = vsel %vm1505, %v4526, 0
        %v4655 = vsel %vm1505, %v4528, 0
        %v4657 = vsel %vm1505, %v4530, 0
        %v4659 = vsel %vm1505, %v4532, 0
        %v4661 = vsel %vm1505, %v4534, 0
        %v4663 = vsel %vm1505, %v4536, 0
        %v4665 = vsel %vm1505, %v4538, 0
        %v4667 = vsel %vm1505, %v4540, 0
        %v4669 = vsel %vm1505, %v4542, 0
        %v4671 = vsel %vm1505, %v4544, 0
        %v4673 = vsel %vm1505, %v4546, 0
        %v4675 = vsel %vm1505, %v4548, 0
        %v4677 = vsel %vm1505, %v4550, 0
        %v4679 = vsel %vm1505, %v4552, 0
        %v4681 = vsel %vm1505, %v4554, 0
        %v4683 = vsel %vm1505, %v4556, 0
        %v4685 = vsel %vm1505, %v4558, 0
        %v4687 = vsel %vm1505, %v4560, 0
        %v4689 = vsel %vm1505, %v4562, 0
        %v4691 = vsel %vm1505, %v4564, 0
        %v4693 = vsel %vm1505, %v4566, 0
        %v4695 = vsel %vm1505, %v4568, 0
        %v4697 = vsel %vm1505, %v4570, 0
        %v4699 = vsel %vm1505, %v4572, 0
        %v4701 = vsel %vm1505, %v4574, 0
        %v4703 = vsel %vm1505, %v4576, 0
        %v4705 = vsel %vm1505, %v4578, 0
        %v4707 = vsel %vm1505, %v4580, 0
        %v4709 = vsel %vm1505, %v4582, 0
        %4711 = vmatprep.subr.mxu0 0.0
        %4712 = vmatpush1.xpose.msra.mxu0 %v4647
        %4713 = vmatprep.subr.mxu0 0.0
        %4714 = vmatpush1.xpose.msra.mxu0 %v4649
        %4715 = vmatprep.subr.mxu0 0.0
        %4716 = vmatpush1.xpose.msra.mxu0 %v4651
        %4717 = vmatprep.subr.mxu0 0.0
        %4718 = vmatpush1.xpose.msra.mxu0 %v4653
        %4719 = vmatprep.subr.mxu0 0.0
        %4720 = vmatpush1.xpose.msra.mxu0 %v4655
        %4721 = vmatprep.subr.mxu0 0.0
        %4722 = vmatpush1.xpose.msra.mxu0 %v4657
        %4723 = vmatprep.subr.mxu0 0.0
        %4724 = vmatpush1.xpose.msra.mxu0 %v4659
        %4725 = vmatprep.subr.mxu0 0.0
        %4726 = vmatpush1.xpose.msra.mxu0 %v4661
        %4727 = vmatprep.subr.mxu0 0.0
        %4728 = vmatpush1.xpose.msra.mxu0 %v4663
        %4729 = vmatprep.subr.mxu0 0.0
        %4730 = vmatpush1.xpose.msra.mxu0 %v4665
        %4731 = vmatprep.subr.mxu0 0.0
        %4732 = vmatpush1.xpose.msra.mxu0 %v4667
        %4733 = vmatprep.subr.mxu0 0.0
        %4734 = vmatpush1.xpose.msra.mxu0 %v4669
        %4735 = vmatprep.subr.mxu0 0.0
        %4736 = vmatpush1.xpose.msra.mxu0 %v4671
        %4737 = vmatprep.subr.mxu0 0.0
        %4738 = vmatpush1.xpose.msra.mxu0 %v4673
        %4739 = vmatprep.subr.mxu0 0.0
        %4740 = vmatpush1.xpose.msra.mxu0 %v4675
        %4741 = vmatprep.subr.mxu0 0.0
        %4742 = vmatpush1.xpose.msra.mxu0 %v4677
        %4743 = vmatprep.subr.mxu0 0.0
        %4744 = vmatpush1.xpose.msra.mxu0 %v4679
        %4745 = vmatprep.subr.mxu0 0.0
        %4746 = vmatpush1.xpose.msra.mxu0 %v4681
        %4747 = vmatprep.subr.mxu0 0.0
        %4748 = vmatpush1.xpose.msra.mxu0 %v4683
        %4749 = vmatprep.subr.mxu0 0.0
        %4750 = vmatpush1.xpose.msra.mxu0 %v4685
        %4751 = vmatprep.subr.mxu0 0.0
        %4752 = vmatpush1.xpose.msra.mxu0 %v4687
        %4753 = vmatprep.subr.mxu0 0.0
        %4754 = vmatpush1.xpose.msra.mxu0 %v4689
        %4755 = vmatprep.subr.mxu0 0.0
        %4756 = vmatpush1.xpose.msra.mxu0 %v4691
        %4757 = vmatprep.subr.mxu0 0.0
        %4758 = vmatpush1.xpose.msra.mxu0 %v4693
        %4759 = vmatprep.subr.mxu0 0.0
        %4760 = vmatpush1.xpose.msra.mxu0 %v4695
        %4761 = vmatprep.subr.mxu0 0.0
        %4762 = vmatpush1.xpose.msra.mxu0 %v4697
        %4763 = vmatprep.subr.mxu0 0.0
        %4764 = vmatpush1.xpose.msra.mxu0 %v4699
        %4765 = vmatprep.subr.mxu0 0.0
        %4766 = vmatpush1.xpose.msra.mxu0 %v4701
        %4767 = vmatprep.subr.mxu0 0.0
        %4768 = vmatpush1.xpose.msra.mxu0 %v4703
        %4769 = vmatprep.subr.mxu0 0.0
        %4770 = vmatpush1.xpose.msra.mxu0 %v4705
        %4771 = vmatprep.subr.mxu0 0.0
        %4772 = vmatpush1.xpose.msra.mxu0 %v4707
        %4773 = vmatprep.subr.mxu0 0.0
        %4774 = vmatpush1.xpose.msra.mxu0 %v4709
        %4775 = vmatprep.mubr.f32.mxu0 0.0
        %4776 = vmatmul.mubr.f32.gmra.mrb[0].mxu0 %v4583
        %v4777 = vpop.f32.mrb[0].mxu0
        %v4778 = vadd.f32 0.0, %v4777
        %v4779 = vpop.f32.mrb[0].mxu0
        %v4780 = vadd.f32 0.0, %v4779
        %4781 = vmatprep.mubr.f32.mxu0 0.0
        %4782 = vmatmul.mubr.f32.gmra.mrb[0].mxu0 %v4585
        %v4783 = vpop.f32.mrb[0].mxu0
        %v4784 = vadd.f32 0.0, %v4783
        %v4785 = vpop.f32.mrb[0].mxu0
        %v4786 = vadd.f32 0.0, %v4785
        %4787 = vmatprep.mubr.f32.mxu0 0.0
        %4788 = vmatmul.mubr.f32.gmra.mrb[0].mxu0 %v4587
        %v4789 = vpop.f32.mrb[0].mxu0
        %v4790 = vadd.f32 0.0, %v4789
        %v4791 = vpop.f32.mrb[0].mxu0
        %v4792 = vadd.f32 0.0, %v4791
        %4793 = vmatprep.mubr.f32.mxu0 0.0
        %4794 = vmatmul.mubr.f32.gmra.mrb[0].mxu0 %v4589
        %v4795 = vpop.f32.mrb[0].mxu0
        %v4796 = vadd.f32 0.0, %v4795
        %v4797 = vpop.f32.mrb[0].mxu0
        %v4798 = vadd.f32 0.0, %v4797
        %4799 = vmatprep.mubr.f32.mxu0 0.0
        %4800 = vmatmul.mubr.f32.gmra.mrb[0].mxu0 %v4591
        %v4801 = vpop.f32.mrb[0].mxu0
        %v4802 = vadd.f32 0.0, %v4801
        %v4803 = vpop.f32.mrb[0].mxu0
        %v4804 = vadd.f32 0.0, %v4803
        %4805 = vmatprep.mubr.f32.mxu0 0.0
        %4806 = vmatmul.mubr.f32.gmra.mrb[0].mxu0 %v4593
        %v4807 = vpop.f32.mrb[0].mxu0
        %v4808 = vadd.f32 0.0, %v4807
        %v4809 = vpop.f32.mrb[0].mxu0
        %v4810 = vadd.f32 0.0, %v4809
        %4811 = vmatprep.mubr.f32.mxu0 0.0
        %4812 = vmatmul.mubr.f32.gmra.mrb[0].mxu0 %v4595
        %v4813 = vpop.f32.mrb[0].mxu0
        %v4814 = vadd.f32 0.0, %v4813
        %v4815 = vpop.f32.mrb[0].mxu0
        %v4816 = vadd.f32 0.0, %v4815
        %4817 = vmatprep.mubr.f32.mxu0 0.0
        %4818 = vmatmul.mubr.f32.gmra.mrb[0].mxu0 %v4597
        %v4819 = vpop.f32.mrb[0].mxu0
        %v4820 = vadd.f32 0.0, %v4819
        %v4821 = vpop.f32.mrb[0].mxu0
        %v4822 = vadd.f32 0.0, %v4821
        %4823 = vmatprep.mubr.f32.mxu0 0.0
        %4824 = vmatmul.mubr.f32.gmra.mrb[0].mxu0 %v4599
        %v4825 = vpop.f32.mrb[0].mxu0
        %v4826 = vadd.f32 0.0, %v4825
        %v4827 = vpop.f32.mrb[0].mxu0
        %v4828 = vadd.f32 0.0, %v4827
        %4829 = vmatprep.mubr.f32.mxu0 0.0
        %4830 = vmatmul.mubr.f32.gmra.mrb[0].mxu0 %v4601
        %v4831 = vpop.f32.mrb[0].mxu0
        %v4832 = vadd.f32 0.0, %v4831
        %v4833 = vpop.f32.mrb[0].mxu0
        %v4834 = vadd.f32 0.0, %v4833
        %4835 = vmatprep.mubr.f32.mxu0 0.0
        %4836 = vmatmul.mubr.f32.gmra.mrb[0].mxu0 %v4603
        %v4837 = vpop.f32.mrb[0].mxu0
        %v4838 = vadd.f32 0.0, %v4837
        %v4839 = vpop.f32.mrb[0].mxu0
        %v4840 = vadd.f32 0.0, %v4839
        %4841 = vmatprep.mubr.f32.mxu0 0.0
        %4842 = vmatmul.mubr.f32.gmra.mrb[0].mxu0 %v4605
        %v4843 = vpop.f32.mrb[0].mxu0
        %v4844 = vadd.f32 0.0, %v4843
        %v4845 = vpop.f32.mrb[0].mxu0
        %v4846 = vadd.f32 0.0, %v4845
        %4847 = vmatprep.mubr.f32.mxu0 0.0
        %4848 = vmatmul.mubr.f32.gmra.mrb[0].mxu0 %v4607
        %v4849 = vpop.f32.mrb[0].mxu0
        %v4850 = vadd.f32 0.0, %v4849
        %v4851 = vpop.f32.mrb[0].mxu0
        %v4852 = vadd.f32 0.0, %v4851
        %4853 = vmatprep.mubr.f32.mxu0 0.0
        %4854 = vmatmul.mubr.f32.gmra.mrb[0].mxu0 %v4609
        %v4855 = vpop.f32.mrb[0].mxu0
        %v4856 = vadd.f32 0.0, %v4855
        %v4857 = vpop.f32.mrb[0].mxu0
        %v4858 = vadd.f32 0.0, %v4857
        %4859 = vmatprep.mubr.f32.mxu0 0.0
        %4860 = vmatmul.mubr.f32.gmra.mrb[0].mxu0 %v4611
        %v4861 = vpop.f32.mrb[0].mxu0
        %v4862 = vadd.f32 0.0, %v4861
        %v4863 = vpop.f32.mrb[0].mxu0
        %v4864 = vadd.f32 0.0, %v4863
        %4865 = vmatprep.mubr.f32.mxu0 0.0
        %4866 = vmatmul.mubr.f32.gmra.mrb[0].mxu0 %v4613
        %v4867 = vpop.f32.mrb[0].mxu0
        %v4868 = vadd.f32 0.0, %v4867
        %v4869 = vpop.f32.mrb[0].mxu0
        %v4870 = vadd.f32 0.0, %v4869
        %4871 = vmatprep.mubr.f32.mxu0 0.0
        %4872 = vmatmul.mubr.f32.gmra.mrb[0].mxu0 %v4615
        %v4873 = vpop.f32.mrb[0].mxu0
        %v4874 = vadd.f32 0.0, %v4873
        %v4875 = vpop.f32.mrb[0].mxu0
        %v4876 = vadd.f32 0.0, %v4875
        %4877 = vmatprep.mubr.f32.mxu0 0.0
        %4878 = vmatmul.mubr.f32.gmra.mrb[0].mxu0 %v4617
        %v4879 = vpop.f32.mrb[0].mxu0
        %v4880 = vadd.f32 0.0, %v4879
        %v4881 = vpop.f32.mrb[0].mxu0
        %v4882 = vadd.f32 0.0, %v4881
        %4883 = vmatprep.mubr.f32.mxu0 0.0
        %4884 = vmatmul.mubr.f32.gmra.mrb[0].mxu0 %v4619
        %v4885 = vpop.f32.mrb[0].mxu0
        %v4886 = vadd.f32 0.0, %v4885
        %v4887 = vpop.f32.mrb[0].mxu0
        %v4888 = vadd.f32 0.0, %v4887
        %4889 = vmatprep.mubr.f32.mxu0 0.0
        %4890 = vmatmul.mubr.f32.gmra.mrb[0].mxu0 %v4621
        %v4891 = vpop.f32.mrb[0].mxu0
        %v4892 = vadd.f32 0.0, %v4891
        %v4893 = vpop.f32.mrb[0].mxu0
        %v4894 = vadd.f32 0.0, %v4893
        %4895 = vmatprep.mubr.f32.mxu0 0.0
        %4896 = vmatmul.mubr.f32.gmra.mrb[0].mxu0 %v4623
        %v4897 = vpop.f32.mrb[0].mxu0
        %v4898 = vadd.f32 0.0, %v4897
        %v4899 = vpop.f32.mrb[0].mxu0
        %v4900 = vadd.f32 0.0, %v4899
        %4901 = vmatprep.mubr.f32.mxu0 0.0
        %4902 = vmatmul.mubr.f32.gmra.mrb[0].mxu0 %v4625
        %v4903 = vpop.f32.mrb[0].mxu0
        %v4904 = vadd.f32 0.0, %v4903
        %v4905 = vpop.f32.mrb[0].mxu0
        %v4906 = vadd.f32 0.0, %v4905
        %4907 = vmatprep.mubr.f32.mxu0 0.0
        %4908 = vmatmul.mubr.f32.gmra.mrb[0].mxu0 %v4627
        %v4909 = vpop.f32.mrb[0].mxu0
        %v4910 = vadd.f32 0.0, %v4909
        %v4911 = vpop.f32.mrb[0].mxu0
        %v4912 = vadd.f32 0.0, %v4911
        %4913 = vmatprep.mubr.f32.mxu0 0.0
        %4914 = vmatmul.mubr.f32.gmra.mrb[0].mxu0 %v4629
        %v4915 = vpop.f32.mrb[0].mxu0
        %v4916 = vadd.f32 0.0, %v4915
        %v4917 = vpop.f32.mrb[0].mxu0
        %v4918 = vadd.f32 0.0, %v4917
        %4919 = vmatprep.mubr.f32.mxu0 0.0
        %4920 = vmatmul.mubr.f32.gmra.mrb[0].mxu0 %v4631
        %v4921 = vpop.f32.mrb[0].mxu0
        %v4922 = vadd.f32 0.0, %v4921
        %v4923 = vpop.f32.mrb[0].mxu0
        %v4924 = vadd.f32 0.0, %v4923
        %4925 = vmatprep.mubr.f32.mxu0 0.0
        %4926 = vmatmul.mubr.f32.gmra.mrb[0].mxu0 %v4633
        %v4927 = vpop.f32.mrb[0].mxu0
        %v4928 = vadd.f32 0.0, %v4927
        %v4929 = vpop.f32.mrb[0].mxu0
        %v4930 = vadd.f32 0.0, %v4929
        %4931 = vmatprep.mubr.f32.mxu0 0.0
        %4932 = vmatmul.mubr.f32.gmra.mrb[0].mxu0 %v4635
        %v4933 = vpop.f32.mrb[0].mxu0
        %v4934 = vadd.f32 0.0, %v4933
        %v4935 = vpop.f32.mrb[0].mxu0
        %v4936 = vadd.f32 0.0, %v4935
        %4937 = vmatprep.mubr.f32.mxu0 0.0
        %4938 = vmatmul.mubr.f32.gmra.mrb[0].mxu0 %v4637
        %v4939 = vpop.f32.mrb[0].mxu0
        %v4940 = vadd.f32 0.0, %v4939
        %v4941 = vpop.f32.mrb[0].mxu0
        %v4942 = vadd.f32 0.0, %v4941
        %4943 = vmatprep.mubr.f32.mxu0 0.0
        %4944 = vmatmul.mubr.f32.gmra.mrb[0].mxu0 %v4639
        %v4945 = vpop.f32.mrb[0].mxu0
        %v4946 = vadd.f32 0.0, %v4945
        %v4947 = vpop.f32.mrb[0].mxu0
        %v4948 = vadd.f32 0.0, %v4947
        %4949 = vmatprep.mubr.f32.mxu0 0.0
        %4950 = vmatmul.mubr.f32.gmra.mrb[0].mxu0 %v4641
        %v4951 = vpop.f32.mrb[0].mxu0
        %v4952 = vadd.f32 0.0, %v4951
        %v4953 = vpop.f32.mrb[0].mxu0
        %v4954 = vadd.f32 0.0, %v4953
        %4955 = vmatprep.mubr.f32.mxu0 0.0
        %4956 = vmatmul.mubr.f32.gmra.mrb[0].mxu0 %v4643
        %v4957 = vpop.f32.mrb[0].mxu0
        %v4958 = vadd.f32 0.0, %v4957
        %v4959 = vpop.f32.mrb[0].mxu0
        %v4960 = vadd.f32 0.0, %v4959
        %4961 = vmatprep.mubr.f32.mxu0 0.0
        %4962 = vmatmul.mubr.f32.gmra.mrb[0].mxu0 %v4645
        %v4963 = vpop.f32.mrb[0].mxu0
        %v4964 = vadd.f32 0.0, %v4963
        %v4965 = vpop.f32.mrb[0].mxu0
        %v4966 = vadd.f32 0.0, %v4965
        %4967 = vdwg.mxu0
        %v4968 = vmul.f32 %v4778, 0.17677669
        %v4969 = vmul.f32 %v4780, 0.17677669
        %v4970 = vmul.f32 %v4784, 0.17677669
        %v4971 = vmul.f32 %v4786, 0.17677669
        %v4972 = vmul.f32 %v4790, 0.17677669
        %v4973 = vmul.f32 %v4792, 0.17677669
        %v4974 = vmul.f32 %v4796, 0.17677669
        %v4975 = vmul.f32 %v4798, 0.17677669
        %v4976 = vmul.f32 %v4802, 0.17677669
        %v4977 = vmul.f32 %v4804, 0.17677669
        %v4978 = vmul.f32 %v4808, 0.17677669
        %v4979 = vmul.f32 %v4810, 0.17677669
        %v4980 = vmul.f32 %v4814, 0.17677669
        %v4981 = vmul.f32 %v4816, 0.17677669
        %v4982 = vmul.f32 %v4820, 0.17677669
        %v4983 = vmul.f32 %v4822, 0.17677669
        %v4984 = vmul.f32 %v4826, 0.17677669
        %v4985 = vmul.f32 %v4828, 0.17677669
        %v4986 = vmul.f32 %v4832, 0.17677669
        %v4987 = vmul.f32 %v4834, 0.17677669
        %v4988 = vmul.f32 %v4838, 0.17677669
        %v4989 = vmul.f32 %v4840, 0.17677669
        %v4990 = vmul.f32 %v4844, 0.17677669
        %v4991 = vmul.f32 %v4846, 0.17677669
        %v4992 = vmul.f32 %v4850, 0.17677669
        %v4993 = vmul.f32 %v4852, 0.17677669
        %v4994 = vmul.f32 %v4856, 0.17677669
        %v4995 = vmul.f32 %v4858, 0.17677669
        %v4996 = vmul.f32 %v4862, 0.17677669
        %v4997 = vmul.f32 %v4864, 0.17677669
        %v4998 = vmul.f32 %v4868, 0.17677669
        %v4999 = vmul.f32 %v4870, 0.17677669
        %v5000 = vmul.f32 %v4874, 0.17677669
        %v5001 = vmul.f32 %v4876, 0.17677669
        %v5002 = vmul.f32 %v4880, 0.17677669
        %v5003 = vmul.f32 %v4882, 0.17677669
        %v5004 = vmul.f32 %v4886, 0.17677669
        %v5005 = vmul.f32 %v4888, 0.17677669
        %v5006 = vmul.f32 %v4892, 0.17677669
        %v5007 = vmul.f32 %v4894, 0.17677669
        %v5008 = vmul.f32 %v4898, 0.17677669
        %v5009 = vmul.f32 %v4900, 0.17677669
        %v5010 = vmul.f32 %v4904, 0.17677669
        %v5011 = vmul.f32 %v4906, 0.17677669
        %v5012 = vmul.f32 %v4910, 0.17677669
        %v5013 = vmul.f32 %v4912, 0.17677669
        %v5014 = vmul.f32 %v4916, 0.17677669
        %v5015 = vmul.f32 %v4918, 0.17677669
        %v5016 = vmul.f32 %v4922, 0.17677669
        %v5017 = vmul.f32 %v4924, 0.17677669
        %v5018 = vmul.f32 %v4928, 0.17677669
        %v5019 = vmul.f32 %v4930, 0.17677669
        %v5020 = vmul.f32 %v4934, 0.17677669
        %v5021 = vmul.f32 %v4936, 0.17677669
        %v5022 = vmul.f32 %v4940, 0.17677669
        %v5023 = vmul.f32 %v4942, 0.17677669
        %v5024 = vmul.f32 %v4946, 0.17677669
        %v5025 = vmul.f32 %v4948, 0.17677669
        %v5026 = vmul.f32 %v4952, 0.17677669
        %v5027 = vmul.f32 %v4954, 0.17677669
        %v5028 = vmul.f32 %v4958, 0.17677669
        %v5029 = vmul.f32 %v4960, 0.17677669
        %v5030 = vmul.f32 %v4964, 0.17677669
        %v5031 = vmul.f32 %v4966, 0.17677669
        %v5032 = vadd.f32 %v4968, %v2019
        %v5033 = vadd.f32 %v4969, %v2020
        %v5034 = vadd.f32 %v4970, %v2021
        %v5035 = vadd.f32 %v4971, %v2022
        %v5036 = vadd.f32 %v4972, %v2023
        %v5037 = vadd.f32 %v4973, %v2024
        %v5038 = vadd.f32 %v4974, %v2025
        %v5039 = vadd.f32 %v4975, %v2026
        %v5040 = vadd.f32 %v4976, %v2027
        %v5041 = vadd.f32 %v4977, %v2028
        %v5042 = vadd.f32 %v4978, %v2029
        %v5043 = vadd.f32 %v4979, %v2030
        %v5044 = vadd.f32 %v4980, %v2031
        %v5045 = vadd.f32 %v4981, %v2032
        %v5046 = vadd.f32 %v4982, %v2033
        %v5047 = vadd.f32 %v4983, %v2034
        %v5048 = vadd.f32 %v4984, %v2035
        %v5049 = vadd.f32 %v4985, %v2036
        %v5050 = vadd.f32 %v4986, %v2037
        %v5051 = vadd.f32 %v4987, %v2038
        %v5052 = vadd.f32 %v4988, %v2039
        %v5053 = vadd.f32 %v4989, %v2040
        %v5054 = vadd.f32 %v4990, %v2041
        %v5055 = vadd.f32 %v4991, %v2042
        %v5056 = vadd.f32 %v4992, %v2043
        %v5057 = vadd.f32 %v4993, %v2044
        %v5058 = vadd.f32 %v4994, %v2045
        %v5059 = vadd.f32 %v4995, %v2046
        %v5060 = vadd.f32 %v4996, %v2047
        %v5061 = vadd.f32 %v4997, %v2048
        %v5062 = vadd.f32 %v4998, %v2049
        %v5063 = vadd.f32 %v4999, %v2050
        %v5064 = vadd.f32 %v5000, %v2051
        %v5065 = vadd.f32 %v5001, %v2052
        %v5066 = vadd.f32 %v5002, %v2053
        %v5067 = vadd.f32 %v5003, %v2054
        %v5068 = vadd.f32 %v5004, %v2055
        %v5069 = vadd.f32 %v5005, %v2056
        %v5070 = vadd.f32 %v5006, %v2057
        %v5071 = vadd.f32 %v5007, %v2058
        %v5072 = vadd.f32 %v5008, %v2059
        %v5073 = vadd.f32 %v5009, %v2060
        %v5074 = vadd.f32 %v5010, %v2061
        %v5075 = vadd.f32 %v5011, %v2062
        %v5076 = vadd.f32 %v5012, %v2063
        %v5077 = vadd.f32 %v5013, %v2064
        %v5078 = vadd.f32 %v5014, %v2065
        %v5079 = vadd.f32 %v5015, %v2066
        %v5080 = vadd.f32 %v5016, %v2067
        %v5081 = vadd.f32 %v5017, %v2068
        %v5082 = vadd.f32 %v5018, %v2069
        %v5083 = vadd.f32 %v5019, %v2070
        %v5084 = vadd.f32 %v5020, %v2071
        %v5085 = vadd.f32 %v5021, %v2072
        %v5086 = vadd.f32 %v5022, %v2073
        %v5087 = vadd.f32 %v5023, %v2074
        %v5088 = vadd.f32 %v5024, %v2075
        %v5089 = vadd.f32 %v5025, %v2076
        %v5090 = vadd.f32 %v5026, %v2077
        %v5091 = vadd.f32 %v5027, %v2078
        %v5092 = vadd.f32 %v5028, %v2079
        %v5093 = vadd.f32 %v5029, %v2080
        %v5094 = vadd.f32 %v5030, %v2081
        %v5095 = vadd.f32 %v5031, %v2082
        %v5096 = vmax.f32 %v5032, %v5033
        %5097 = vmax.xlane.f32.xlu0 %v5096
        %v5098 = vpop.xlane.xlu0 %5097
        %v5099 = vmax.f32 %v5034, %v5035
        %5100 = vmax.xlane.f32.xlu0 %v5099
        %v5101 = vpop.xlane.xlu0 %5100
        %v5102 = vmax.f32 %v5036, %v5037
        %5103 = vmax.xlane.f32.xlu0 %v5102
        %v5104 = vpop.xlane.xlu0 %5103
        %v5105 = vmax.f32 %v5038, %v5039
        %5106 = vmax.xlane.f32.xlu0 %v5105
        %v5107 = vpop.xlane.xlu0 %5106
        %v5108 = vmax.f32 %v5040, %v5041
        %5109 = vmax.xlane.f32.xlu0 %v5108
        %v5110 = vpop.xlane.xlu0 %5109
        %v5111 = vmax.f32 %v5042, %v5043
        %5112 = vmax.xlane.f32.xlu0 %v5111
        %v5113 = vpop.xlane.xlu0 %5112
        %v5114 = vmax.f32 %v5044, %v5045
        %5115 = vmax.xlane.f32.xlu0 %v5114
        %v5116 = vpop.xlane.xlu0 %5115
        %v5117 = vmax.f32 %v5046, %v5047
        %5118 = vmax.xlane.f32.xlu0 %v5117
        %v5119 = vpop.xlane.xlu0 %5118
        %v5120 = vmax.f32 %v5048, %v5049
        %5121 = vmax.xlane.f32.xlu0 %v5120
        %v5122 = vpop.xlane.xlu0 %5121
        %v5123 = vmax.f32 %v5050, %v5051
        %5124 = vmax.xlane.f32.xlu0 %v5123
        %v5125 = vpop.xlane.xlu0 %5124
        %v5126 = vmax.f32 %v5052, %v5053
        %5127 = vmax.xlane.f32.xlu0 %v5126
        %v5128 = vpop.xlane.xlu0 %5127
        %v5129 = vmax.f32 %v5054, %v5055
        %5130 = vmax.xlane.f32.xlu0 %v5129
        %v5131 = vpop.xlane.xlu0 %5130
        %v5132 = vmax.f32 %v5056, %v5057
        %5133 = vmax.xlane.f32.xlu0 %v5132
        %v5134 = vpop.xlane.xlu0 %5133
        %v5135 = vmax.f32 %v5058, %v5059
        %5136 = vmax.xlane.f32.xlu0 %v5135
        %v5137 = vpop.xlane.xlu0 %5136
        %v5138 = vmax.f32 %v5060, %v5061
        %5139 = vmax.xlane.f32.xlu0 %v5138
        %v5140 = vpop.xlane.xlu0 %5139
        %v5141 = vmax.f32 %v5062, %v5063
        %5142 = vmax.xlane.f32.xlu0 %v5141
        %v5143 = vpop.xlane.xlu0 %5142
        %v5144 = vmax.f32 %v5064, %v5065
        %5145 = vmax.xlane.f32.xlu0 %v5144
        %v5146 = vpop.xlane.xlu0 %5145
        %v5147 = vmax.f32 %v5066, %v5067
        %5148 = vmax.xlane.f32.xlu0 %v5147
        %v5149 = vpop.xlane.xlu0 %5148
        %v5150 = vmax.f32 %v5068, %v5069
        %5151 = vmax.xlane.f32.xlu0 %v5150
        %v5152 = vpop.xlane.xlu0 %5151
        %v5153 = vmax.f32 %v5070, %v5071
        %5154 = vmax.xlane.f32.xlu0 %v5153
        %v5155 = vpop.xlane.xlu0 %5154
        %v5156 = vmax.f32 %v5072, %v5073
        %5157 = vmax.xlane.f32.xlu0 %v5156
        %v5158 = vpop.xlane.xlu0 %5157
        %v5159 = vmax.f32 %v5074, %v5075
        %5160 = vmax.xlane.f32.xlu0 %v5159
        %v5161 = vpop.xlane.xlu0 %5160
        %v5162 = vmax.f32 %v5076, %v5077
        %5163 = vmax.xlane.f32.xlu0 %v5162
        %v5164 = vpop.xlane.xlu0 %5163
        %v5165 = vmax.f32 %v5078, %v5079
        %5166 = vmax.xlane.f32.xlu0 %v5165
        %v5167 = vpop.xlane.xlu0 %5166
        %v5168 = vmax.f32 %v5080, %v5081
        %5169 = vmax.xlane.f32.xlu0 %v5168
        %v5170 = vpop.xlane.xlu0 %5169
        %v5171 = vmax.f32 %v5082, %v5083
        %5172 = vmax.xlane.f32.xlu0 %v5171
        %v5173 = vpop.xlane.xlu0 %5172
        %v5174 = vmax.f32 %v5084, %v5085
        %5175 = vmax.xlane.f32.xlu0 %v5174
        %v5176 = vpop.xlane.xlu0 %5175
        %v5177 = vmax.f32 %v5086, %v5087
        %5178 = vmax.xlane.f32.xlu0 %v5177
        %v5179 = vpop.xlane.xlu0 %5178
        %v5180 = vmax.f32 %v5088, %v5089
        %5181 = vmax.xlane.f32.xlu0 %v5180
        %v5182 = vpop.xlane.xlu0 %5181
        %v5183 = vmax.f32 %v5090, %v5091
        %5184 = vmax.xlane.f32.xlu0 %v5183
        %v5185 = vpop.xlane.xlu0 %5184
        %v5186 = vmax.f32 %v5092, %v5093
        %5187 = vmax.xlane.f32.xlu0 %v5186
        %v5188 = vpop.xlane.xlu0 %5187
        %v5189 = vmax.f32 %v5094, %v5095
        %5190 = vmax.xlane.f32.xlu0 %v5189
        %v5191 = vpop.xlane.xlu0 %5190
        %v5192 = vsub.f32 %v5032, %v5098
        %v5193 = vsub.f32 %v5033, %v5098
        %v5194 = vsub.f32 %v5034, %v5101
        %v5195 = vsub.f32 %v5035, %v5101
        %v5196 = vsub.f32 %v5036, %v5104
        %v5197 = vsub.f32 %v5037, %v5104
        %v5198 = vsub.f32 %v5038, %v5107
        %v5199 = vsub.f32 %v5039, %v5107
        %v5200 = vsub.f32 %v5040, %v5110
        %v5201 = vsub.f32 %v5041, %v5110
        %v5202 = vsub.f32 %v5042, %v5113
        %v5203 = vsub.f32 %v5043, %v5113
        %v5204 = vsub.f32 %v5044, %v5116
        %v5205 = vsub.f32 %v5045, %v5116
        %v5206 = vsub.f32 %v5046, %v5119
        %v5207 = vsub.f32 %v5047, %v5119
        %v5208 = vsub.f32 %v5048, %v5122
        %v5209 = vsub.f32 %v5049, %v5122
        %v5210 = vsub.f32 %v5050, %v5125
        %v5211 = vsub.f32 %v5051, %v5125
        %v5212 = vsub.f32 %v5052, %v5128
        %v5213 = vsub.f32 %v5053, %v5128
        %v5214 = vsub.f32 %v5054, %v5131
        %v5215 = vsub.f32 %v5055, %v5131
        %v5216 = vsub.f32 %v5056, %v5134
        %v5217 = vsub.f32 %v5057, %v5134
        %v5218 = vsub.f32 %v5058, %v5137
        %v5219 = vsub.f32 %v5059, %v5137
        %v5220 = vsub.f32 %v5060, %v5140
        %v5221 = vsub.f32 %v5061, %v5140
        %v5222 = vsub.f32 %v5062, %v5143
        %v5223 = vsub.f32 %v5063, %v5143
        %v5224 = vsub.f32 %v5064, %v5146
        %v5225 = vsub.f32 %v5065, %v5146
        %v5226 = vsub.f32 %v5066, %v5149
        %v5227 = vsub.f32 %v5067, %v5149
        %v5228 = vsub.f32 %v5068, %v5152
        %v5229 = vsub.f32 %v5069, %v5152
        %v5230 = vsub.f32 %v5070, %v5155
        %v5231 = vsub.f32 %v5071, %v5155
        %v5232 = vsub.f32 %v5072, %v5158
        %v5233 = vsub.f32 %v5073, %v5158
        %v5234 = vsub.f32 %v5074, %v5161
        %v5235 = vsub.f32 %v5075, %v5161
        %v5236 = vsub.f32 %v5076, %v5164
        %v5237 = vsub.f32 %v5077, %v5164
        %v5238 = vsub.f32 %v5078, %v5167
        %v5239 = vsub.f32 %v5079, %v5167
        %v5240 = vsub.f32 %v5080, %v5170
        %v5241 = vsub.f32 %v5081, %v5170
        %v5242 = vsub.f32 %v5082, %v5173
        %v5243 = vsub.f32 %v5083, %v5173
        %v5244 = vsub.f32 %v5084, %v5176
        %v5245 = vsub.f32 %v5085, %v5176
        %v5246 = vsub.f32 %v5086, %v5179
        %v5247 = vsub.f32 %v5087, %v5179
        %v5248 = vsub.f32 %v5088, %v5182
        %v5249 = vsub.f32 %v5089, %v5182
        %v5250 = vsub.f32 %v5090, %v5185
        %v5251 = vsub.f32 %v5091, %v5185
        %v5252 = vsub.f32 %v5092, %v5188
        %v5253 = vsub.f32 %v5093, %v5188
        %v5254 = vsub.f32 %v5094, %v5191
        %v5255 = vsub.f32 %v5095, %v5191
        %v5256 = vmul.f32 %v5192, 1.442695
        %v5257 = vpow.pop %v5256
        %v5258 = vmul.f32 %v5193, 1.442695
        %v5259 = vpow.pop %v5258
        %v5260 = vmul.f32 %v5194, 1.442695
        %v5261 = vpow.pop %v5260
        %v5262 = vmul.f32 %v5195, 1.442695
        %v5263 = vpow.pop %v5262
        %v5264 = vmul.f32 %v5196, 1.442695
        %v5265 = vpow.pop %v5264
        %v5266 = vmul.f32 %v5197, 1.442695
        %v5267 = vpow.pop %v5266
        %v5268 = vmul.f32 %v5198, 1.442695
        %v5269 = vpow.pop %v5268
        %v5270 = vmul.f32 %v5199, 1.442695
        %v5271 = vpow.pop %v5270
        %v5272 = vmul.f32 %v5200, 1.442695
        %v5273 = vpow.pop %v5272
        %v5274 = vmul.f32 %v5201, 1.442695
        %v5275 = vpow.pop %v5274
        %v5276 = vmul.f32 %v5202, 1.442695
        %v5277 = vpow.pop %v5276
        %v5278 = vmul.f32 %v5203, 1.442695
        %v5279 = vpow.pop %v5278
        %v5280 = vmul.f32 %v5204, 1.442695
        %v5281 = vpow.pop %v5280
        %v5282 = vmul.f32 %v5205, 1.442695
        %v5283 = vpow.pop %v5282
        %v5284 = vmul.f32 %v5206, 1.442695
        %v5285 = vpow.pop %v5284
        %v5286 = vmul.f32 %v5207, 1.442695
        %v5287 = vpow.pop %v5286
        %v5288 = vmul.f32 %v5208, 1.442695
        %v5289 = vpow.pop %v5288
        %v5290 = vmul.f32 %v5209, 1.442695
        %v5291 = vpow.pop %v5290
        %v5292 = vmul.f32 %v5210, 1.442695
        %v5293 = vpow.pop %v5292
        %v5294 = vmul.f32 %v5211, 1.442695
        %v5295 = vpow.pop %v5294
        %v5296 = vmul.f32 %v5212, 1.442695
        %v5297 = vpow.pop %v5296
        %v5298 = vmul.f32 %v5213, 1.442695
        %v5299 = vpow.pop %v5298
        %v5300 = vmul.f32 %v5214, 1.442695
        %v5301 = vpow.pop %v5300
        %v5302 = vmul.f32 %v5215, 1.442695
        %v5303 = vpow.pop %v5302
        %v5304 = vmul.f32 %v5216, 1.442695
        %v5305 = vpow.pop %v5304
        %v5306 = vmul.f32 %v5217, 1.442695
        %v5307 = vpow.pop %v5306
        %v5308 = vmul.f32 %v5218, 1.442695
        %v5309 = vpow.pop %v5308
        %v5310 = vmul.f32 %v5219, 1.442695
        %v5311 = vpow.pop %v5310
        %v5312 = vmul.f32 %v5220, 1.442695
        %v5313 = vpow.pop %v5312
        %v5314 = vmul.f32 %v5221, 1.442695
        %v5315 = vpow.pop %v5314
        %v5316 = vmul.f32 %v5222, 1.442695
        %v5317 = vpow.pop %v5316
        %v5318 = vmul.f32 %v5223, 1.442695
        %v5319 = vpow.pop %v5318
        %v5320 = vmul.f32 %v5224, 1.442695
        %v5321 = vpow.pop %v5320
        %v5322 = vmul.f32 %v5225, 1.442695
        %v5323 = vpow.pop %v5322
        %v5324 = vmul.f32 %v5226, 1.442695
        %v5325 = vpow.pop %v5324
        %v5326 = vmul.f32 %v5227, 1.442695
        %v5327 = vpow.pop %v5326
        %v5328 = vmul.f32 %v5228, 1.442695
        %v5329 = vpow.pop %v5328
        %v5330 = vmul.f32 %v5229, 1.442695
        %v5331 = vpow.pop %v5330
        %v5332 = vmul.f32 %v5230, 1.442695
        %v5333 = vpow.pop %v5332
        %v5334 = vmul.f32 %v5231, 1.442695
        %v5335 = vpow.pop %v5334
        %v5336 = vmul.f32 %v5232, 1.442695
        %v5337 = vpow.pop %v5336
        %v5338 = vmul.f32 %v5233, 1.442695
        %v5339 = vpow.pop %v5338
        %v5340 = vmul.f32 %v5234, 1.442695
        %v5341 = vpow.pop %v5340
        %v5342 = vmul.f32 %v5235, 1.442695
        %v5343 = vpow.pop %v5342
        %v5344 = vmul.f32 %v5236, 1.442695
        %v5345 = vpow.pop %v5344
        %v5346 = vmul.f32 %v5237, 1.442695
        %v5347 = vpow.pop %v5346
        %v5348 = vmul.f32 %v5238, 1.442695
        %v5349 = vpow.pop %v5348
        %v5350 = vmul.f32 %v5239, 1.442695
        %v5351 = vpow.pop %v5350
        %v5352 = vmul.f32 %v5240, 1.442695
        %v5353 = vpow.pop %v5352
        %v5354 = vmul.f32 %v5241, 1.442695
        %v5355 = vpow.pop %v5354
        %v5356 = vmul.f32 %v5242, 1.442695
        %v5357 = vpow.pop %v5356
        %v5358 = vmul.f32 %v5243, 1.442695
        %v5359 = vpow.pop %v5358
        %v5360 = vmul.f32 %v5244, 1.442695
        %v5361 = vpow.pop %v5360
        %v5362 = vmul.f32 %v5245, 1.442695
        %v5363 = vpow.pop %v5362
        %v5364 = vmul.f32 %v5246, 1.442695
        %v5365 = vpow.pop %v5364
        %v5366 = vmul.f32 %v5247, 1.442695
        %v5367 = vpow.pop %v5366
        %v5368 = vmul.f32 %v5248, 1.442695
        %v5369 = vpow.pop %v5368
        %v5370 = vmul.f32 %v5249, 1.442695
        %v5371 = vpow.pop %v5370
        %v5372 = vmul.f32 %v5250, 1.442695
        %v5373 = vpow.pop %v5372
        %v5374 = vmul.f32 %v5251, 1.442695
        %v5375 = vpow.pop %v5374
        %v5376 = vmul.f32 %v5252, 1.442695
        %v5377 = vpow.pop %v5376
        %v5378 = vmul.f32 %v5253, 1.442695
        %v5379 = vpow.pop %v5378
        %v5380 = vmul.f32 %v5254, 1.442695
        %v5381 = vpow.pop %v5380
        %v5382 = vmul.f32 %v5255, 1.442695
        %v5383 = vpow.pop %v5382
        %v5384 = vadd.f32 %v5257, %v5259
        %5385 = vadd.xlane.f32.xlu0 %v5384
        %v5386 = vpop.xlane.xlu0 %5385
        %v5387 = vadd.f32 %v5261, %v5263
        %5388 = vadd.xlane.f32.xlu0 %v5387
        %v5389 = vpop.xlane.xlu0 %5388
        %v5390 = vadd.f32 %v5265, %v5267
        %5391 = vadd.xlane.f32.xlu0 %v5390
        %v5392 = vpop.xlane.xlu0 %5391
        %v5393 = vadd.f32 %v5269, %v5271
        %5394 = vadd.xlane.f32.xlu0 %v5393
        %v5395 = vpop.xlane.xlu0 %5394
        %v5396 = vadd.f32 %v5273, %v5275
        %5397 = vadd.xlane.f32.xlu0 %v5396
        %v5398 = vpop.xlane.xlu0 %5397
        %v5399 = vadd.f32 %v5277, %v5279
        %5400 = vadd.xlane.f32.xlu0 %v5399
        %v5401 = vpop.xlane.xlu0 %5400
        %v5402 = vadd.f32 %v5281, %v5283
        %5403 = vadd.xlane.f32.xlu0 %v5402
        %v5404 = vpop.xlane.xlu0 %5403
        %v5405 = vadd.f32 %v5285, %v5287
        %5406 = vadd.xlane.f32.xlu0 %v5405
        %v5407 = vpop.xlane.xlu0 %5406
        %v5408 = vadd.f32 %v5289, %v5291
        %5409 = vadd.xlane.f32.xlu0 %v5408
        %v5410 = vpop.xlane.xlu0 %5409
        %v5411 = vadd.f32 %v5293, %v5295
        %5412 = vadd.xlane.f32.xlu0 %v5411
        %v5413 = vpop.xlane.xlu0 %5412
        %v5414 = vadd.f32 %v5297, %v5299
        %5415 = vadd.xlane.f32.xlu0 %v5414
        %v5416 = vpop.xlane.xlu0 %5415
        %v5417 = vadd.f32 %v5301, %v5303
        %5418 = vadd.xlane.f32.xlu0 %v5417
        %v5419 = vpop.xlane.xlu0 %5418
        %v5420 = vadd.f32 %v5305, %v5307
        %5421 = vadd.xlane.f32.xlu0 %v5420
        %v5422 = vpop.xlane.xlu0 %5421
        %v5423 = vadd.f32 %v5309, %v5311
        %5424 = vadd.xlane.f32.xlu0 %v5423
        %v5425 = vpop.xlane.xlu0 %5424
        %v5426 = vadd.f32 %v5313, %v5315
        %5427 = vadd.xlane.f32.xlu0 %v5426
        %v5428 = vpop.xlane.xlu0 %5427
        %v5429 = vadd.f32 %v5317, %v5319
        %5430 = vadd.xlane.f32.xlu0 %v5429
        %v5431 = vpop.xlane.xlu0 %5430
        %v5432 = vadd.f32 %v5321, %v5323
        %5433 = vadd.xlane.f32.xlu0 %v5432
        %v5434 = vpop.xlane.xlu0 %5433
        %v5435 = vadd.f32 %v5325, %v5327
        %5436 = vadd.xlane.f32.xlu0 %v5435
        %v5437 = vpop.xlane.xlu0 %5436
        %v5438 = vadd.f32 %v5329, %v5331
        %5439 = vadd.xlane.f32.xlu0 %v5438
        %v5440 = vpop.xlane.xlu0 %5439
        %v5441 = vadd.f32 %v5333, %v5335
        %5442 = vadd.xlane.f32.xlu0 %v5441
        %v5443 = vpop.xlane.xlu0 %5442
        %v5444 = vadd.f32 %v5337, %v5339
        %5445 = vadd.xlane.f32.xlu0 %v5444
        %v5446 = vpop.xlane.xlu0 %5445
        %v5447 = vadd.f32 %v5341, %v5343
        %5448 = vadd.xlane.f32.xlu0 %v5447
        %v5449 = vpop.xlane.xlu0 %5448
        %v5450 = vadd.f32 %v5345, %v5347
        %5451 = vadd.xlane.f32.xlu0 %v5450
        %v5452 = vpop.xlane.xlu0 %5451
        %v5453 = vadd.f32 %v5349, %v5351
        %5454 = vadd.xlane.f32.xlu0 %v5453
        %v5455 = vpop.xlane.xlu0 %5454
        %v5456 = vadd.f32 %v5353, %v5355
        %5457 = vadd.xlane.f32.xlu0 %v5456
        %v5458 = vpop.xlane.xlu0 %5457
        %v5459 = vadd.f32 %v5357, %v5359
        %5460 = vadd.xlane.f32.xlu0 %v5459
        %v5461 = vpop.xlane.xlu0 %5460
        %v5462 = vadd.f32 %v5361, %v5363
        %5463 = vadd.xlane.f32.xlu0 %v5462
        %v5464 = vpop.xlane.xlu0 %5463
        %v5465 = vadd.f32 %v5365, %v5367
        %5466 = vadd.xlane.f32.xlu0 %v5465
        %v5467 = vpop.xlane.xlu0 %5466
        %v5468 = vadd.f32 %v5369, %v5371
        %5469 = vadd.xlane.f32.xlu0 %v5468
        %v5470 = vpop.xlane.xlu0 %5469
        %v5471 = vadd.f32 %v5373, %v5375
        %5472 = vadd.xlane.f32.xlu0 %v5471
        %v5473 = vpop.xlane.xlu0 %5472
        %v5474 = vadd.f32 %v5377, %v5379
        %5475 = vadd.xlane.f32.xlu0 %v5474
        %v5476 = vpop.xlane.xlu0 %5475
        %v5477 = vadd.f32 %v5381, %v5383
        %5478 = vadd.xlane.f32.xlu0 %v5477
        %v5479 = vpop.xlane.xlu0 %5478
        %5480 = vrot.lane.b32.xlu0 %v1347, 64
        %v5481 = vpop.permute.xlu0 %5480
        %5482 = vrot.lane.b32.xlu0 %v1352, 64
        %v5483 = vpop.permute.xlu0 %5482
        %5484 = vrot.lane.b32.xlu0 %v1357, 64
        %v5485 = vpop.permute.xlu0 %5484
        %5486 = vrot.lane.b32.xlu0 %v1362, 64
        %v5487 = vpop.permute.xlu0 %5486
        %5488 = vrot.lane.b32.xlu0 %v1367, 64
        %v5489 = vpop.permute.xlu0 %5488
        %5490 = vrot.lane.b32.xlu0 %v1372, 64
        %v5491 = vpop.permute.xlu0 %5490
        %5492 = vrot.lane.b32.xlu0 %v1377, 64
        %v5493 = vpop.permute.xlu0 %5492
        %5494 = vrot.lane.b32.xlu0 %v1382, 64
        %v5495 = vpop.permute.xlu0 %5494
        %5496 = vrot.lane.b32.xlu0 %v1387, 64
        %v5497 = vpop.permute.xlu0 %5496
        %5498 = vrot.lane.b32.xlu0 %v1392, 64
        %v5499 = vpop.permute.xlu0 %5498
        %5500 = vrot.lane.b32.xlu0 %v1397, 64
        %v5501 = vpop.permute.xlu0 %5500
        %5502 = vrot.lane.b32.xlu0 %v1402, 64
        %v5503 = vpop.permute.xlu0 %5502
        %5504 = vrot.lane.b32.xlu0 %v1407, 64
        %v5505 = vpop.permute.xlu0 %5504
        %5506 = vrot.lane.b32.xlu0 %v1412, 64
        %v5507 = vpop.permute.xlu0 %5506
        %5508 = vrot.lane.b32.xlu0 %v1417, 64
        %v5509 = vpop.permute.xlu0 %5508
        %5510 = vrot.lane.b32.xlu0 %v1422, 64
        %v5511 = vpop.permute.xlu0 %5510
        %5512 = vrot.lane.b32.xlu0 %v1427, 64
        %v5513 = vpop.permute.xlu0 %5512
        %5514 = vrot.lane.b32.xlu0 %v1432, 64
        %v5515 = vpop.permute.xlu0 %5514
        %5516 = vrot.lane.b32.xlu0 %v1437, 64
        %v5517 = vpop.permute.xlu0 %5516
        %5518 = vrot.lane.b32.xlu0 %v1442, 64
        %v5519 = vpop.permute.xlu0 %5518
        %5520 = vrot.lane.b32.xlu0 %v1447, 64
        %v5521 = vpop.permute.xlu0 %5520
        %5522 = vrot.lane.b32.xlu0 %v1452, 64
        %v5523 = vpop.permute.xlu0 %5522
        %5524 = vrot.lane.b32.xlu0 %v1457, 64
        %v5525 = vpop.permute.xlu0 %5524
        %5526 = vrot.lane.b32.xlu0 %v1462, 64
        %v5527 = vpop.permute.xlu0 %5526
        %5528 = vrot.lane.b32.xlu0 %v1467, 64
        %v5529 = vpop.permute.xlu0 %5528
        %5530 = vrot.lane.b32.xlu0 %v1472, 64
        %v5531 = vpop.permute.xlu0 %5530
        %5532 = vrot.lane.b32.xlu0 %v1477, 64
        %v5533 = vpop.permute.xlu0 %5532
        %5534 = vrot.lane.b32.xlu0 %v1482, 64
        %v5535 = vpop.permute.xlu0 %5534
        %5536 = vrot.lane.b32.xlu0 %v1487, 64
        %v5537 = vpop.permute.xlu0 %5536
        %5538 = vrot.lane.b32.xlu0 %v1492, 64
        %v5539 = vpop.permute.xlu0 %5538
        %5540 = vrot.lane.b32.xlu0 %v1497, 64
        %v5541 = vpop.permute.xlu0 %5540
        %5542 = vrot.lane.b32.xlu0 %v1502, 64
        %v5543 = vpop.permute.xlu0 %5542
        %5576 = vmatprep.subr.mxu0 0.0
        %5577 = vmatpush1.msra.mxu0 %v5481
        %5578 = vmatprep.subr.mxu0 0.0
        %5579 = vmatpush1.msra.mxu0 %v5483
        %5580 = vmatprep.subr.mxu0 0.0
        %5581 = vmatpush1.msra.mxu0 %v5485
        %5582 = vmatprep.subr.mxu0 0.0
        %5583 = vmatpush1.msra.mxu0 %v5487
        %5584 = vmatprep.subr.mxu0 0.0
        %5585 = vmatpush1.msra.mxu0 %v5489
        %5586 = vmatprep.subr.mxu0 0.0
        %5587 = vmatpush1.msra.mxu0 %v5491
        %5588 = vmatprep.subr.mxu0 0.0
        %5589 = vmatpush1.msra.mxu0 %v5493
        %5590 = vmatprep.subr.mxu0 0.0
        %5591 = vmatpush1.msra.mxu0 %v5495
        %5592 = vmatprep.subr.mxu0 0.0
        %5593 = vmatpush1.msra.mxu0 %v5497
        %5594 = vmatprep.subr.mxu0 0.0
        %5595 = vmatpush1.msra.mxu0 %v5499
        %5596 = vmatprep.subr.mxu0 0.0
        %5597 = vmatpush1.msra.mxu0 %v5501
        %5598 = vmatprep.subr.mxu0 0.0
        %5599 = vmatpush1.msra.mxu0 %v5503
        %5600 = vmatprep.subr.mxu0 0.0
        %5601 = vmatpush1.msra.mxu0 %v5505
        %5602 = vmatprep.subr.mxu0 0.0
        %5603 = vmatpush1.msra.mxu0 %v5507
        %5604 = vmatprep.subr.mxu0 0.0
        %5605 = vmatpush1.msra.mxu0 %v5509
        %5606 = vmatprep.subr.mxu0 0.0
        %5607 = vmatpush1.msra.mxu0 %v5511
        %5608 = vmatprep.subr.mxu0 0.0
        %5609 = vmatpush1.msra.mxu0 %v5513
        %5610 = vmatprep.subr.mxu0 0.0
        %5611 = vmatpush1.msra.mxu0 %v5515
        %5612 = vmatprep.subr.mxu0 0.0
        %5613 = vmatpush1.msra.mxu0 %v5517
        %5614 = vmatprep.subr.mxu0 0.0
        %5615 = vmatpush1.msra.mxu0 %v5519
        %5616 = vmatprep.subr.mxu0 0.0
        %5617 = vmatpush1.msra.mxu0 %v5521
        %5618 = vmatprep.subr.mxu0 0.0
        %5619 = vmatpush1.msra.mxu0 %v5523
        %5620 = vmatprep.subr.mxu0 0.0
        %5621 = vmatpush1.msra.mxu0 %v5525
        %5622 = vmatprep.subr.mxu0 0.0
        %5623 = vmatpush1.msra.mxu0 %v5527
        %5624 = vmatprep.subr.mxu0 0.0
        %5625 = vmatpush1.msra.mxu0 %v5529
        %5626 = vmatprep.subr.mxu0 0.0
        %5627 = vmatpush1.msra.mxu0 %v5531
        %5628 = vmatprep.subr.mxu0 0.0
        %5629 = vmatpush1.msra.mxu0 %v5533
        %5630 = vmatprep.subr.mxu0 0.0
        %5631 = vmatpush1.msra.mxu0 %v5535
        %5632 = vmatprep.subr.mxu0 0.0
        %5633 = vmatpush1.msra.mxu0 %v5537
        %5634 = vmatprep.subr.mxu0 0.0
        %5635 = vmatpush1.msra.mxu0 %v5539
        %5636 = vmatprep.subr.mxu0 0.0
        %5637 = vmatpush1.msra.mxu0 %v5541
        %5638 = vmatprep.subr.mxu0 0.0
        %5639 = vmatpush1.msra.mxu0 %v5543
        %5640 = vmatprep.mubr.f32.mxu0 %v5259
        %5641 = vmatmul.mubr.f32.gmra.mrb[0].mxu0 %v5257
        %v5642 = vpop.f32.mrb[0].mxu0
        %v5643 = vadd.f32 0.0, %v5642
        %v5644 = vpop.f32.mrb[0].mxu0
        %5645 = vmatprep.mubr.f32.mxu0 %v5263
        %5646 = vmatmul.mubr.f32.gmra.mrb[0].mxu0 %v5261
        %v5647 = vpop.f32.mrb[0].mxu0
        %v5648 = vadd.f32 0.0, %v5647
        %v5649 = vpop.f32.mrb[0].mxu0
        %5650 = vmatprep.mubr.f32.mxu0 %v5267
        %5651 = vmatmul.mubr.f32.gmra.mrb[0].mxu0 %v5265
        %v5652 = vpop.f32.mrb[0].mxu0
        %v5653 = vadd.f32 0.0, %v5652
        %v5654 = vpop.f32.mrb[0].mxu0
        %5655 = vmatprep.mubr.f32.mxu0 %v5271
        %5656 = vmatmul.mubr.f32.gmra.mrb[0].mxu0 %v5269
        %v5657 = vpop.f32.mrb[0].mxu0
        %v5658 = vadd.f32 0.0, %v5657
        %v5659 = vpop.f32.mrb[0].mxu0
        %5660 = vmatprep.mubr.f32.mxu0 %v5275
        %5661 = vmatmul.mubr.f32.gmra.mrb[0].mxu0 %v5273
        %v5662 = vpop.f32.mrb[0].mxu0
        %v5663 = vadd.f32 0.0, %v5662
        %v5664 = vpop.f32.mrb[0].mxu0
        %5665 = vmatprep.mubr.f32.mxu0 %v5279
        %5666 = vmatmul.mubr.f32.gmra.mrb[0].mxu0 %v5277
        %v5667 = vpop.f32.mrb[0].mxu0
        %v5668 = vadd.f32 0.0, %v5667
        %v5669 = vpop.f32.mrb[0].mxu0
        %5670 = vmatprep.mubr.f32.mxu0 %v5283
        %5671 = vmatmul.mubr.f32.gmra.mrb[0].mxu0 %v5281
        %v5672 = vpop.f32.mrb[0].mxu0
        %v5673 = vadd.f32 0.0, %v5672
        %v5674 = vpop.f32.mrb[0].mxu0
        %5675 = vmatprep.mubr.f32.mxu0 %v5287
        %5676 = vmatmul.mubr.f32.gmra.mrb[0].mxu0 %v5285
        %v5677 = vpop.f32.mrb[0].mxu0
        %v5678 = vadd.f32 0.0, %v5677
        %v5679 = vpop.f32.mrb[0].mxu0
        %5680 = vmatprep.mubr.f32.mxu0 %v5291
        %5681 = vmatmul.mubr.f32.gmra.mrb[0].mxu0 %v5289
        %v5682 = vpop.f32.mrb[0].mxu0
        %v5683 = vadd.f32 0.0, %v5682
        %v5684 = vpop.f32.mrb[0].mxu0
        %5685 = vmatprep.mubr.f32.mxu0 %v5295
        %5686 = vmatmul.mubr.f32.gmra.mrb[0].mxu0 %v5293
        %v5687 = vpop.f32.mrb[0].mxu0
        %v5688 = vadd.f32 0.0, %v5687
        %v5689 = vpop.f32.mrb[0].mxu0
        %5690 = vmatprep.mubr.f32.mxu0 %v5299
        %5691 = vmatmul.mubr.f32.gmra.mrb[0].mxu0 %v5297
        %v5692 = vpop.f32.mrb[0].mxu0
        %v5693 = vadd.f32 0.0, %v5692
        %v5694 = vpop.f32.mrb[0].mxu0
        %5695 = vmatprep.mubr.f32.mxu0 %v5303
        %5696 = vmatmul.mubr.f32.gmra.mrb[0].mxu0 %v5301
        %v5697 = vpop.f32.mrb[0].mxu0
        %v5698 = vadd.f32 0.0, %v5697
        %v5699 = vpop.f32.mrb[0].mxu0
        %5700 = vmatprep.mubr.f32.mxu0 %v5307
        %5701 = vmatmul.mubr.f32.gmra.mrb[0].mxu0 %v5305
        %v5702 = vpop.f32.mrb[0].mxu0
        %v5703 = vadd.f32 0.0, %v5702
        %v5704 = vpop.f32.mrb[0].mxu0
        %5705 = vmatprep.mubr.f32.mxu0 %v5311
        %5706 = vmatmul.mubr.f32.gmra.mrb[0].mxu0 %v5309
        %v5707 = vpop.f32.mrb[0].mxu0
        %v5708 = vadd.f32 0.0, %v5707
        %v5709 = vpop.f32.mrb[0].mxu0
        %5710 = vmatprep.mubr.f32.mxu0 %v5315
        %5711 = vmatmul.mubr.f32.gmra.mrb[0].mxu0 %v5313
        %v5712 = vpop.f32.mrb[0].mxu0
        %v5713 = vadd.f32 0.0, %v5712
        %v5714 = vpop.f32.mrb[0].mxu0
        %5715 = vmatprep.mubr.f32.mxu0 %v5319
        %5716 = vmatmul.mubr.f32.gmra.mrb[0].mxu0 %v5317
        %v5717 = vpop.f32.mrb[0].mxu0
        %v5718 = vadd.f32 0.0, %v5717
        %v5719 = vpop.f32.mrb[0].mxu0
        %5720 = vmatprep.mubr.f32.mxu0 %v5323
        %5721 = vmatmul.mubr.f32.gmra.mrb[0].mxu0 %v5321
        %v5722 = vpop.f32.mrb[0].mxu0
        %v5723 = vadd.f32 0.0, %v5722
        %v5724 = vpop.f32.mrb[0].mxu0
        %5725 = vmatprep.mubr.f32.mxu0 %v5327
        %5726 = vmatmul.mubr.f32.gmra.mrb[0].mxu0 %v5325
        %v5727 = vpop.f32.mrb[0].mxu0
        %v5728 = vadd.f32 0.0, %v5727
        %v5729 = vpop.f32.mrb[0].mxu0
        %5730 = vmatprep.mubr.f32.mxu0 %v5331
        %5731 = vmatmul.mubr.f32.gmra.mrb[0].mxu0 %v5329
        %v5732 = vpop.f32.mrb[0].mxu0
        %v5733 = vadd.f32 0.0, %v5732
        %v5734 = vpop.f32.mrb[0].mxu0
        %5735 = vmatprep.mubr.f32.mxu0 %v5335
        %5736 = vmatmul.mubr.f32.gmra.mrb[0].mxu0 %v5333
        %v5737 = vpop.f32.mrb[0].mxu0
        %v5738 = vadd.f32 0.0, %v5737
        %v5739 = vpop.f32.mrb[0].mxu0
        %5740 = vmatprep.mubr.f32.mxu0 %v5339
        %5741 = vmatmul.mubr.f32.gmra.mrb[0].mxu0 %v5337
        %v5742 = vpop.f32.mrb[0].mxu0
        %v5743 = vadd.f32 0.0, %v5742
        %v5744 = vpop.f32.mrb[0].mxu0
        %5745 = vmatprep.mubr.f32.mxu0 %v5343
        %5746 = vmatmul.mubr.f32.gmra.mrb[0].mxu0 %v5341
        %v5747 = vpop.f32.mrb[0].mxu0
        %v5748 = vadd.f32 0.0, %v5747
        %v5749 = vpop.f32.mrb[0].mxu0
        %5750 = vmatprep.mubr.f32.mxu0 %v5347
        %5751 = vmatmul.mubr.f32.gmra.mrb[0].mxu0 %v5345
        %v5752 = vpop.f32.mrb[0].mxu0
        %v5753 = vadd.f32 0.0, %v5752
        %v5754 = vpop.f32.mrb[0].mxu0
        %5755 = vmatprep.mubr.f32.mxu0 %v5351
        %5756 = vmatmul.mubr.f32.gmra.mrb[0].mxu0 %v5349
        %v5757 = vpop.f32.mrb[0].mxu0
        %v5758 = vadd.f32 0.0, %v5757
        %v5759 = vpop.f32.mrb[0].mxu0
        %5760 = vmatprep.mubr.f32.mxu0 %v5355
        %5761 = vmatmul.mubr.f32.gmra.mrb[0].mxu0 %v5353
        %v5762 = vpop.f32.mrb[0].mxu0
        %v5763 = vadd.f32 0.0, %v5762
        %v5764 = vpop.f32.mrb[0].mxu0
        %5765 = vmatprep.mubr.f32.mxu0 %v5359
        %5766 = vmatmul.mubr.f32.gmra.mrb[0].mxu0 %v5357
        %v5767 = vpop.f32.mrb[0].mxu0
        %v5768 = vadd.f32 0.0, %v5767
        %v5769 = vpop.f32.mrb[0].mxu0
        %5770 = vmatprep.mubr.f32.mxu0 %v5363
        %5771 = vmatmul.mubr.f32.gmra.mrb[0].mxu0 %v5361
        %v5772 = vpop.f32.mrb[0].mxu0
        %v5773 = vadd.f32 0.0, %v5772
        %v5774 = vpop.f32.mrb[0].mxu0
        %5775 = vmatprep.mubr.f32.mxu0 %v5367
        %5776 = vmatmul.mubr.f32.gmra.mrb[0].mxu0 %v5365
        %v5777 = vpop.f32.mrb[0].mxu0
        %v5778 = vadd.f32 0.0, %v5777
        %v5779 = vpop.f32.mrb[0].mxu0
        %5780 = vmatprep.mubr.f32.mxu0 %v5371
        %5781 = vmatmul.mubr.f32.gmra.mrb[0].mxu0 %v5369
        %v5782 = vpop.f32.mrb[0].mxu0
        %v5783 = vadd.f32 0.0, %v5782
        %v5784 = vpop.f32.mrb[0].mxu0
        %5785 = vmatprep.mubr.f32.mxu0 %v5375
        %5786 = vmatmul.mubr.f32.gmra.mrb[0].mxu0 %v5373
        %v5787 = vpop.f32.mrb[0].mxu0
        %v5788 = vadd.f32 0.0, %v5787
        %v5789 = vpop.f32.mrb[0].mxu0
        %5790 = vmatprep.mubr.f32.mxu0 %v5379
        %5791 = vmatmul.mubr.f32.gmra.mrb[0].mxu0 %v5377
        %v5792 = vpop.f32.mrb[0].mxu0
        %v5793 = vadd.f32 0.0, %v5792
        %v5794 = vpop.f32.mrb[0].mxu0
        %5795 = vmatprep.mubr.f32.mxu0 %v5383
        %5796 = vmatmul.mubr.f32.gmra.mrb[0].mxu0 %v5381
        %v5797 = vpop.f32.mrb[0].mxu0
        %v5798 = vadd.f32 0.0, %v5797
        %v5799 = vpop.f32.mrb[0].mxu0
        %5800 = vdwg.mxu0
        %v5801 = vrcp.pop %v5386
        %v5802 = vrcp.pop %v5389
        %v5803 = vrcp.pop %v5392
        %v5804 = vrcp.pop %v5395
        %v5805 = vrcp.pop %v5398
        %v5806 = vrcp.pop %v5401
        %v5807 = vrcp.pop %v5404
        %v5808 = vrcp.pop %v5407
        %v5809 = vrcp.pop %v5410
        %v5810 = vrcp.pop %v5413
        %v5811 = vrcp.pop %v5416
        %v5812 = vrcp.pop %v5419
        %v5813 = vrcp.pop %v5422
        %v5814 = vrcp.pop %v5425
        %v5815 = vrcp.pop %v5428
        %v5816 = vrcp.pop %v5431
        %v5817 = vrcp.pop %v5434
        %v5818 = vrcp.pop %v5437
        %v5819 = vrcp.pop %v5440
        %v5820 = vrcp.pop %v5443
        %v5821 = vrcp.pop %v5446
        %v5822 = vrcp.pop %v5449
        %v5823 = vrcp.pop %v5452
        %v5824 = vrcp.pop %v5455
        %v5825 = vrcp.pop %v5458
        %v5826 = vrcp.pop %v5461
        %v5827 = vrcp.pop %v5464
        %v5828 = vrcp.pop %v5467
        %v5829 = vrcp.pop %v5470
        %v5830 = vrcp.pop %v5473
        %v5831 = vrcp.pop %v5476
        %v5832 = vrcp.pop %v5479
        %v5833 = vmul.f32 %v5643, %v5801
        %v5834 = vmul.f32 %v5648, %v5802
        %v5835 = vmul.f32 %v5653, %v5803
        %v5836 = vmul.f32 %v5658, %v5804
        %v5837 = vmul.f32 %v5663, %v5805
        %v5838 = vmul.f32 %v5668, %v5806
        %v5839 = vmul.f32 %v5673, %v5807
        %v5840 = vmul.f32 %v5678, %v5808
        %v5841 = vmul.f32 %v5683, %v5809
        %v5842 = vmul.f32 %v5688, %v5810
        %v5843 = vmul.f32 %v5693, %v5811
        %v5844 = vmul.f32 %v5698, %v5812
        %v5845 = vmul.f32 %v5703, %v5813
        %v5846 = vmul.f32 %v5708, %v5814
        %v5847 = vmul.f32 %v5713, %v5815
        %v5848 = vmul.f32 %v5718, %v5816
        %v5849 = vmul.f32 %v5723, %v5817
        %v5850 = vmul.f32 %v5728, %v5818
        %v5851 = vmul.f32 %v5733, %v5819
        %v5852 = vmul.f32 %v5738, %v5820
        %v5853 = vmul.f32 %v5743, %v5821
        %v5854 = vmul.f32 %v5748, %v5822
        %v5855 = vmul.f32 %v5753, %v5823
        %v5856 = vmul.f32 %v5758, %v5824
        %v5857 = vmul.f32 %v5763, %v5825
        %v5858 = vmul.f32 %v5768, %v5826
        %v5859 = vmul.f32 %v5773, %v5827
        %v5860 = vmul.f32 %v5778, %v5828
        %v5861 = vmul.f32 %v5783, %v5829
        %v5862 = vmul.f32 %v5788, %v5830
        %v5863 = vmul.f32 %v5793, %v5831
        %v5864 = vmul.f32 %v5798, %v5832
        %5897 = vrot.lane.b32.xlu0 %v5833, 64
        %v5898 = vpop.permute.xlu0 %5897
        %5899 = vrot.lane.b32.xlu0 %v5834, 64
        %v5900 = vpop.permute.xlu0 %5899
        %5901 = vrot.lane.b32.xlu0 %v5835, 64
        %v5902 = vpop.permute.xlu0 %5901
        %5903 = vrot.lane.b32.xlu0 %v5836, 64
        %v5904 = vpop.permute.xlu0 %5903
        %5905 = vrot.lane.b32.xlu0 %v5837, 64
        %v5906 = vpop.permute.xlu0 %5905
        %5907 = vrot.lane.b32.xlu0 %v5838, 64
        %v5908 = vpop.permute.xlu0 %5907
        %5909 = vrot.lane.b32.xlu0 %v5839, 64
        %v5910 = vpop.permute.xlu0 %5909
        %5911 = vrot.lane.b32.xlu0 %v5840, 64
        %v5912 = vpop.permute.xlu0 %5911
        %5913 = vrot.lane.b32.xlu0 %v5841, 64
        %v5914 = vpop.permute.xlu0 %5913
        %5915 = vrot.lane.b32.xlu0 %v5842, 64
        %v5916 = vpop.permute.xlu0 %5915
        %5917 = vrot.lane.b32.xlu0 %v5843, 64
        %v5918 = vpop.permute.xlu0 %5917
        %5919 = vrot.lane.b32.xlu0 %v5844, 64
        %v5920 = vpop.permute.xlu0 %5919
        %5921 = vrot.lane.b32.xlu0 %v5845, 64
        %v5922 = vpop.permute.xlu0 %5921
        %5923 = vrot.lane.b32.xlu0 %v5846, 64
        %v5924 = vpop.permute.xlu0 %5923
        %5925 = vrot.lane.b32.xlu0 %v5847, 64
        %v5926 = vpop.permute.xlu0 %5925
        %5927 = vrot.lane.b32.xlu0 %v5848, 64
        %v5928 = vpop.permute.xlu0 %5927
        %5929 = vrot.lane.b32.xlu0 %v5849, 64
        %v5930 = vpop.permute.xlu0 %5929
        %5931 = vrot.lane.b32.xlu0 %v5850, 64
        %v5932 = vpop.permute.xlu0 %5931
        %5933 = vrot.lane.b32.xlu0 %v5851, 64
        %v5934 = vpop.permute.xlu0 %5933
        %5935 = vrot.lane.b32.xlu0 %v5852, 64
        %v5936 = vpop.permute.xlu0 %5935
        %5937 = vrot.lane.b32.xlu0 %v5853, 64
        %v5938 = vpop.permute.xlu0 %5937
        %5939 = vrot.lane.b32.xlu0 %v5854, 64
        %v5940 = vpop.permute.xlu0 %5939
        %5941 = vrot.lane.b32.xlu0 %v5855, 64
        %v5942 = vpop.permute.xlu0 %5941
        %5943 = vrot.lane.b32.xlu0 %v5856, 64
        %v5944 = vpop.permute.xlu0 %5943
        %5945 = vrot.lane.b32.xlu0 %v5857, 64
        %v5946 = vpop.permute.xlu0 %5945
        %5947 = vrot.lane.b32.xlu0 %v5858, 64
        %v5948 = vpop.permute.xlu0 %5947
        %5949 = vrot.lane.b32.xlu0 %v5859, 64
        %v5950 = vpop.permute.xlu0 %5949
        %5951 = vrot.lane.b32.xlu0 %v5860, 64
        %v5952 = vpop.permute.xlu0 %5951
        %5953 = vrot.lane.b32.xlu0 %v5861, 64
        %v5954 = vpop.permute.xlu0 %5953
        %5955 = vrot.lane.b32.xlu0 %v5862, 64
        %v5956 = vpop.permute.xlu0 %5955
        %5957 = vrot.lane.b32.xlu0 %v5863, 64
        %v5958 = vpop.permute.xlu0 %5957
        %5959 = vrot.lane.b32.xlu0 %v5864, 64
        %v5960 = vpop.permute.xlu0 %5959
        %vm5993 = vcmask 785920
        %5994 = vst.msk [vmem:[#allocation2] sm:$0xff] %vm5993, %v5898
        %5995 = vst.msk [vmem:[#allocation2 + $0x8] sm:$0xff] %vm5993, %v5900
        %5996 = vst.msk [vmem:[#allocation2 + $0x10] sm:$0xff] %vm5993, %v5902
        %5997 = vst.msk [vmem:[#allocation2 + $0x18] sm:$0xff] %vm5993, %v5904
        %5998 = vst.msk [vmem:[#allocation2 + $0x20] sm:$0xff] %vm5993, %v5906
        %5999 = vst.msk [vmem:[#allocation2 + $0x28] sm:$0xff] %vm5993, %v5908
        %6000 = vst.msk [vmem:[#allocation2 + $0x30] sm:$0xff] %vm5993, %v5910
        %6001 = vst.msk [vmem:[#allocation2 + $0x38] sm:$0xff] %vm5993, %v5912
        %6002 = vst.msk [vmem:[#allocation2 + $0x40] sm:$0xff] %vm5993, %v5914
        %6003 = vst.msk [vmem:[#allocation2 + $0x48] sm:$0xff] %vm5993, %v5916
        %6004 = vst.msk [vmem:[#allocation2 + $0x50] sm:$0xff] %vm5993, %v5918
        %6005 = vst.msk [vmem:[#allocation2 + $0x58] sm:$0xff] %vm5993, %v5920
        %6006 = vst.msk [vmem:[#allocation2 + $0x60] sm:$0xff] %vm5993, %v5922
        %6007 = vst.msk [vmem:[#allocation2 + $0x68] sm:$0xff] %vm5993, %v5924
        %6008 = vst.msk [vmem:[#allocation2 + $0x70] sm:$0xff] %vm5993, %v5926
        %6009 = vst.msk [vmem:[#allocation2 + $0x78] sm:$0xff] %vm5993, %v5928
        %6010 = vst.msk [vmem:[#allocation2 + $0x80] sm:$0xff] %vm5993, %v5930
        %6011 = vst.msk [vmem:[#allocation2 + $0x88] sm:$0xff] %vm5993, %v5932
        %6012 = vst.msk [vmem:[#allocation2 + $0x90] sm:$0xff] %vm5993, %v5934
        %6013 = vst.msk [vmem:[#allocation2 + $0x98] sm:$0xff] %vm5993, %v5936
        %6014 = vst.msk [vmem:[#allocation2 + $0xa0] sm:$0xff] %vm5993, %v5938
        %6015 = vst.msk [vmem:[#allocation2 + $0xa8] sm:$0xff] %vm5993, %v5940
        %6016 = vst.msk [vmem:[#allocation2 + $0xb0] sm:$0xff] %vm5993, %v5942
        %6017 = vst.msk [vmem:[#allocation2 + $0xb8] sm:$0xff] %vm5993, %v5944
        %6018 = vst.msk [vmem:[#allocation2 + $0xc0] sm:$0xff] %vm5993, %v5946
        %6019 = vst.msk [vmem:[#allocation2 + $0xc8] sm:$0xff] %vm5993, %v5948
        %6020 = vst.msk [vmem:[#allocation2 + $0xd0] sm:$0xff] %vm5993, %v5950
        %6021 = vst.msk [vmem:[#allocation2 + $0xd8] sm:$0xff] %vm5993, %v5952
        %6022 = vst.msk [vmem:[#allocation2 + $0xe0] sm:$0xff] %vm5993, %v5954
        %6023 = vst.msk [vmem:[#allocation2 + $0xe8] sm:$0xff] %vm5993, %v5956
        %6024 = vst.msk [vmem:[#allocation2 + $0xf0] sm:$0xff] %vm5993, %v5958
        %6025 = vst.msk [vmem:[#allocation2 + $0xf8] sm:$0xff] %vm5993, %v5960
        %6026 = vrot.lane.b32.xlu0 %v851, 32
        %v6027 = vpop.permute.xlu0 %6026
        %6028 = vrot.lane.b32.xlu0 %v856, 32
        %v6029 = vpop.permute.xlu0 %6028
        %6030 = vrot.lane.b32.xlu0 %v861, 32
        %v6031 = vpop.permute.xlu0 %6030
        %6032 = vrot.lane.b32.xlu0 %v866, 32
        %v6033 = vpop.permute.xlu0 %6032
        %6034 = vrot.lane.b32.xlu0 %v871, 32
        %v6035 = vpop.permute.xlu0 %6034
        %6036 = vrot.lane.b32.xlu0 %v876, 32
        %v6037 = vpop.permute.xlu0 %6036
        %6038 = vrot.lane.b32.xlu0 %v881, 32
        %v6039 = vpop.permute.xlu0 %6038
        %6040 = vrot.lane.b32.xlu0 %v886, 32
        %v6041 = vpop.permute.xlu0 %6040
        %6042 = vrot.lane.b32.xlu0 %v891, 32
        %v6043 = vpop.permute.xlu0 %6042
        %6044 = vrot.lane.b32.xlu0 %v896, 32
        %v6045 = vpop.permute.xlu0 %6044
        %6046 = vrot.lane.b32.xlu0 %v901, 32
        %v6047 = vpop.permute.xlu0 %6046
        %6048 = vrot.lane.b32.xlu0 %v906, 32
        %v6049 = vpop.permute.xlu0 %6048
        %6050 = vrot.lane.b32.xlu0 %v911, 32
        %v6051 = vpop.permute.xlu0 %6050
        %6052 = vrot.lane.b32.xlu0 %v916, 32
        %v6053 = vpop.permute.xlu0 %6052
        %6054 = vrot.lane.b32.xlu0 %v921, 32
        %v6055 = vpop.permute.xlu0 %6054
        %6056 = vrot.lane.b32.xlu0 %v926, 32
        %v6057 = vpop.permute.xlu0 %6056
        %6058 = vrot.lane.b32.xlu0 %v931, 32
        %v6059 = vpop.permute.xlu0 %6058
        %6060 = vrot.lane.b32.xlu0 %v936, 32
        %v6061 = vpop.permute.xlu0 %6060
        %6062 = vrot.lane.b32.xlu0 %v941, 32
        %v6063 = vpop.permute.xlu0 %6062
        %6064 = vrot.lane.b32.xlu0 %v946, 32
        %v6065 = vpop.permute.xlu0 %6064
        %6066 = vrot.lane.b32.xlu0 %v951, 32
        %v6067 = vpop.permute.xlu0 %6066
        %6068 = vrot.lane.b32.xlu0 %v956, 32
        %v6069 = vpop.permute.xlu0 %6068
        %6070 = vrot.lane.b32.xlu0 %v961, 32
        %v6071 = vpop.permute.xlu0 %6070
        %6072 = vrot.lane.b32.xlu0 %v966, 32
        %v6073 = vpop.permute.xlu0 %6072
        %6074 = vrot.lane.b32.xlu0 %v971, 32
        %v6075 = vpop.permute.xlu0 %6074
        %6076 = vrot.lane.b32.xlu0 %v976, 32
        %v6077 = vpop.permute.xlu0 %6076
        %6078 = vrot.lane.b32.xlu0 %v981, 32
        %v6079 = vpop.permute.xlu0 %6078
        %6080 = vrot.lane.b32.xlu0 %v986, 32
        %v6081 = vpop.permute.xlu0 %6080
        %6082 = vrot.lane.b32.xlu0 %v991, 32
        %v6083 = vpop.permute.xlu0 %6082
        %6084 = vrot.lane.b32.xlu0 %v996, 32
        %v6085 = vpop.permute.xlu0 %6084
        %6086 = vrot.lane.b32.xlu0 %v1001, 32
        %v6087 = vpop.permute.xlu0 %6086
        %6088 = vrot.lane.b32.xlu0 %v1006, 32
        %v6089 = vpop.permute.xlu0 %6088
        %6090 = vrot.lane.b32.xlu0 %v1099, 32
        %v6091 = vpop.permute.xlu0 %6090
        %6092 = vrot.lane.b32.xlu0 %v1104, 32
        %v6093 = vpop.permute.xlu0 %6092
        %6094 = vrot.lane.b32.xlu0 %v1109, 32
        %v6095 = vpop.permute.xlu0 %6094
        %6096 = vrot.lane.b32.xlu0 %v1114, 32
        %v6097 = vpop.permute.xlu0 %6096
        %6098 = vrot.lane.b32.xlu0 %v1119, 32
        %v6099 = vpop.permute.xlu0 %6098
        %6100 = vrot.lane.b32.xlu0 %v1124, 32
        %v6101 = vpop.permute.xlu0 %6100
        %6102 = vrot.lane.b32.xlu0 %v1129, 32
        %v6103 = vpop.permute.xlu0 %6102
        %6104 = vrot.lane.b32.xlu0 %v1134, 32
        %v6105 = vpop.permute.xlu0 %6104
        %6106 = vrot.lane.b32.xlu0 %v1139, 32
        %v6107 = vpop.permute.xlu0 %6106
        %6108 = vrot.lane.b32.xlu0 %v1144, 32
        %v6109 = vpop.permute.xlu0 %6108
        %6110 = vrot.lane.b32.xlu0 %v1149, 32
        %v6111 = vpop.permute.xlu0 %6110
        %6112 = vrot.lane.b32.xlu0 %v1154, 32
        %v6113 = vpop.permute.xlu0 %6112
        %6114 = vrot.lane.b32.xlu0 %v1159, 32
        %v6115 = vpop.permute.xlu0 %6114
        %6116 = vrot.lane.b32.xlu0 %v1164, 32
        %v6117 = vpop.permute.xlu0 %6116
        %6118 = vrot.lane.b32.xlu0 %v1169, 32
        %v6119 = vpop.permute.xlu0 %6118
        %6120 = vrot.lane.b32.xlu0 %v1174, 32
        %v6121 = vpop.permute.xlu0 %6120
        %6122 = vrot.lane.b32.xlu0 %v1179, 32
        %v6123 = vpop.permute.xlu0 %6122
        %6124 = vrot.lane.b32.xlu0 %v1184, 32
        %v6125 = vpop.permute.xlu0 %6124
        %6126 = vrot.lane.b32.xlu0 %v1189, 32
        %v6127 = vpop.permute.xlu0 %6126
        %6128 = vrot.lane.b32.xlu0 %v1194, 32
        %v6129 = vpop.permute.xlu0 %6128
        %6130 = vrot.lane.b32.xlu0 %v1199, 32
        %v6131 = vpop.permute.xlu0 %6130
        %6132 = vrot.lane.b32.xlu0 %v1204, 32
        %v6133 = vpop.permute.xlu0 %6132
        %6134 = vrot.lane.b32.xlu0 %v1209, 32
        %v6135 = vpop.permute.xlu0 %6134
        %6136 = vrot.lane.b32.xlu0 %v1214, 32
        %v6137 = vpop.permute.xlu0 %6136
        %6138 = vrot.lane.b32.xlu0 %v1219, 32
        %v6139 = vpop.permute.xlu0 %6138
        %6140 = vrot.lane.b32.xlu0 %v1224, 32
        %v6141 = vpop.permute.xlu0 %6140
        %6142 = vrot.lane.b32.xlu0 %v1229, 32
        %v6143 = vpop.permute.xlu0 %6142
        %6144 = vrot.lane.b32.xlu0 %v1234, 32
        %v6145 = vpop.permute.xlu0 %6144
        %6146 = vrot.lane.b32.xlu0 %v1239, 32
        %v6147 = vpop.permute.xlu0 %6146
        %6148 = vrot.lane.b32.xlu0 %v1244, 32
        %v6149 = vpop.permute.xlu0 %6148
        %6150 = vrot.lane.b32.xlu0 %v1249, 32
        %v6151 = vpop.permute.xlu0 %6150
        %6152 = vrot.lane.b32.xlu0 %v1254, 32
        %v6153 = vpop.permute.xlu0 %6152
        %v6154 = vsel %vm1505, %v6027, 0
        %v6156 = vsel %vm1505, %v6029, 0
        %v6158 = vsel %vm1505, %v6031, 0
        %v6160 = vsel %vm1505, %v6033, 0
        %v6162 = vsel %vm1505, %v6035, 0
        %v6164 = vsel %vm1505, %v6037, 0
        %v6166 = vsel %vm1505, %v6039, 0
        %v6168 = vsel %vm1505, %v6041, 0
        %v6170 = vsel %vm1505, %v6043, 0
        %v6172 = vsel %vm1505, %v6045, 0
        %v6174 = vsel %vm1505, %v6047, 0
        %v6176 = vsel %vm1505, %v6049, 0
        %v6178 = vsel %vm1505, %v6051, 0
        %v6180 = vsel %vm1505, %v6053, 0
        %v6182 = vsel %vm1505, %v6055, 0
        %v6184 = vsel %vm1505, %v6057, 0
        %v6186 = vsel %vm1505, %v6059, 0
        %v6188 = vsel %vm1505, %v6061, 0
        %v6190 = vsel %vm1505, %v6063, 0
        %v6192 = vsel %vm1505, %v6065, 0
        %v6194 = vsel %vm1505, %v6067, 0
        %v6196 = vsel %vm1505, %v6069, 0
        %v6198 = vsel %vm1505, %v6071, 0
        %v6200 = vsel %vm1505, %v6073, 0
        %v6202 = vsel %vm1505, %v6075, 0
        %v6204 = vsel %vm1505, %v6077, 0
        %v6206 = vsel %vm1505, %v6079, 0
        %v6208 = vsel %vm1505, %v6081, 0
        %v6210 = vsel %vm1505, %v6083, 0
        %v6212 = vsel %vm1505, %v6085, 0
        %v6214 = vsel %vm1505, %v6087, 0
        %v6216 = vsel %vm1505, %v6089, 0
        %v6218 = vsel %vm1505, %v6091, 0
        %v6220 = vsel %vm1505, %v6093, 0
        %v6222 = vsel %vm1505, %v6095, 0
        %v6224 = vsel %vm1505, %v6097, 0
        %v6226 = vsel %vm1505, %v6099, 0
        %v6228 = vsel %vm1505, %v6101, 0
        %v6230 = vsel %vm1505, %v6103, 0
        %v6232 = vsel %vm1505, %v6105, 0
        %v6234 = vsel %vm1505, %v6107, 0
        %v6236 = vsel %vm1505, %v6109, 0
        %v6238 = vsel %vm1505, %v6111, 0
        %v6240 = vsel %vm1505, %v6113, 0
        %v6242 = vsel %vm1505, %v6115, 0
        %v6244 = vsel %vm1505, %v6117, 0
        %v6246 = vsel %vm1505, %v6119, 0
        %v6248 = vsel %vm1505, %v6121, 0
        %v6250 = vsel %vm1505, %v6123, 0
        %v6252 = vsel %vm1505, %v6125, 0
        %v6254 = vsel %vm1505, %v6127, 0
        %v6256 = vsel %vm1505, %v6129, 0
        %v6258 = vsel %vm1505, %v6131, 0
        %v6260 = vsel %vm1505, %v6133, 0
        %v6262 = vsel %vm1505, %v6135, 0
        %v6264 = vsel %vm1505, %v6137, 0
        %v6266 = vsel %vm1505, %v6139, 0
        %v6268 = vsel %vm1505, %v6141, 0
        %v6270 = vsel %vm1505, %v6143, 0
        %v6272 = vsel %vm1505, %v6145, 0
        %v6274 = vsel %vm1505, %v6147, 0
        %v6276 = vsel %vm1505, %v6149, 0
        %v6278 = vsel %vm1505, %v6151, 0
        %v6280 = vsel %vm1505, %v6153, 0
        %6282 = vmatprep.subr.mxu0 0.0
        %6283 = vmatpush1.xpose.msra.mxu0 %v6218
        %6284 = vmatprep.subr.mxu0 0.0
        %6285 = vmatpush1.xpose.msra.mxu0 %v6220
        %6286 = vmatprep.subr.mxu0 0.0
        %6287 = vmatpush1.xpose.msra.mxu0 %v6222
        %6288 = vmatprep.subr.mxu0 0.0
        %6289 = vmatpush1.xpose.msra.mxu0 %v6224
        %6290 = vmatprep.subr.mxu0 0.0
        %6291 = vmatpush1.xpose.msra.mxu0 %v6226
        %6292 = vmatprep.subr.mxu0 0.0
        %6293 = vmatpush1.xpose.msra.mxu0 %v6228
        %6294 = vmatprep.subr.mxu0 0.0
        %6295 = vmatpush1.xpose.msra.mxu0 %v6230
        %6296 = vmatprep.subr.mxu0 0.0
        %6297 = vmatpush1.xpose.msra.mxu0 %v6232
        %6298 = vmatprep.subr.mxu0 0.0
        %6299 = vmatpush1.xpose.msra.mxu0 %v6234
        %6300 = vmatprep.subr.mxu0 0.0
        %6301 = vmatpush1.xpose.msra.mxu0 %v6236
        %6302 = vmatprep.subr.mxu0 0.0
        %6303 = vmatpush1.xpose.msra.mxu0 %v6238
        %6304 = vmatprep.subr.mxu0 0.0
        %6305 = vmatpush1.xpose.msra.mxu0 %v6240
        %6306 = vmatprep.subr.mxu0 0.0
        %6307 = vmatpush1.xpose.msra.mxu0 %v6242
        %6308 = vmatprep.subr.mxu0 0.0
        %6309 = vmatpush1.xpose.msra.mxu0 %v6244
        %6310 = vmatprep.subr.mxu0 0.0
        %6311 = vmatpush1.xpose.msra.mxu0 %v6246
        %6312 = vmatprep.subr.mxu0 0.0
        %6313 = vmatpush1.xpose.msra.mxu0 %v6248
        %6314 = vmatprep.subr.mxu0 0.0
        %6315 = vmatpush1.xpose.msra.mxu0 %v6250
        %6316 = vmatprep.subr.mxu0 0.0
        %6317 = vmatpush1.xpose.msra.mxu0 %v6252
        %6318 = vmatprep.subr.mxu0 0.0
        %6319 = vmatpush1.xpose.msra.mxu0 %v6254
        %6320 = vmatprep.subr.mxu0 0.0
        %6321 = vmatpush1.xpose.msra.mxu0 %v6256
        %6322 = vmatprep.subr.mxu0 0.0
        %6323 = vmatpush1.xpose.msra.mxu0 %v6258
        %6324 = vmatprep.subr.mxu0 0.0
        %6325 = vmatpush1.xpose.msra.mxu0 %v6260
        %6326 = vmatprep.subr.mxu0 0.0
        %6327 = vmatpush1.xpose.msra.mxu0 %v6262
        %6328 = vmatprep.subr.mxu0 0.0
        %6329 = vmatpush1.xpose.msra.mxu0 %v6264
        %6330 = vmatprep.subr.mxu0 0.0
        %6331 = vmatpush1.xpose.msra.mxu0 %v6266
        %6332 = vmatprep.subr.mxu0 0.0
        %6333 = vmatpush1.xpose.msra.mxu0 %v6268
        %6334 = vmatprep.subr.mxu0 0.0
        %6335 = vmatpush1.xpose.msra.mxu0 %v6270
        %6336 = vmatprep.subr.mxu0 0.0
        %6337 = vmatpush1.xpose.msra.mxu0 %v6272
        %6338 = vmatprep.subr.mxu0 0.0
        %6339 = vmatpush1.xpose.msra.mxu0 %v6274
        %6340 = vmatprep.subr.mxu0 0.0
        %6341 = vmatpush1.xpose.msra.mxu0 %v6276
        %6342 = vmatprep.subr.mxu0 0.0
        %6343 = vmatpush1.xpose.msra.mxu0 %v6278
        %6344 = vmatprep.subr.mxu0 0.0
        %6345 = vmatpush1.xpose.msra.mxu0 %v6280
        %6346 = vmatprep.mubr.f32.mxu0 0.0
        %6347 = vmatmul.mubr.f32.gmra.mrb[0].mxu0 %v6154
        %v6348 = vpop.f32.mrb[0].mxu0
        %v6349 = vadd.f32 0.0, %v6348
        %v6350 = vpop.f32.mrb[0].mxu0
        %v6351 = vadd.f32 0.0, %v6350
        %6352 = vmatprep.mubr.f32.mxu0 0.0
        %6353 = vmatmul.mubr.f32.gmra.mrb[0].mxu0 %v6156
        %v6354 = vpop.f32.mrb[0].mxu0
        %v6355 = vadd.f32 0.0, %v6354
        %v6356 = vpop.f32.mrb[0].mxu0
        %v6357 = vadd.f32 0.0, %v6356
        %6358 = vmatprep.mubr.f32.mxu0 0.0
        %6359 = vmatmul.mubr.f32.gmra.mrb[0].mxu0 %v6158
        %v6360 = vpop.f32.mrb[0].mxu0
        %v6361 = vadd.f32 0.0, %v6360
        %v6362 = vpop.f32.mrb[0].mxu0
        %v6363 = vadd.f32 0.0, %v6362
        %6364 = vmatprep.mubr.f32.mxu0 0.0
        %6365 = vmatmul.mubr.f32.gmra.mrb[0].mxu0 %v6160
        %v6366 = vpop.f32.mrb[0].mxu0
        %v6367 = vadd.f32 0.0, %v6366
        %v6368 = vpop.f32.mrb[0].mxu0
        %v6369 = vadd.f32 0.0, %v6368
        %6370 = vmatprep.mubr.f32.mxu0 0.0
        %6371 = vmatmul.mubr.f32.gmra.mrb[0].mxu0 %v6162
        %v6372 = vpop.f32.mrb[0].mxu0
        %v6373 = vadd.f32 0.0, %v6372
        %v6374 = vpop.f32.mrb[0].mxu0
        %v6375 = vadd.f32 0.0, %v6374
        %6376 = vmatprep.mubr.f32.mxu0 0.0
        %6377 = vmatmul.mubr.f32.gmra.mrb[0].mxu0 %v6164
        %v6378 = vpop.f32.mrb[0].mxu0
        %v6379 = vadd.f32 0.0, %v6378
        %v6380 = vpop.f32.mrb[0].mxu0
        %v6381 = vadd.f32 0.0, %v6380
        %6382 = vmatprep.mubr.f32.mxu0 0.0
        %6383 = vmatmul.mubr.f32.gmra.mrb[0].mxu0 %v6166
        %v6384 = vpop.f32.mrb[0].mxu0
        %v6385 = vadd.f32 0.0, %v6384
        %v6386 = vpop.f32.mrb[0].mxu0
        %v6387 = vadd.f32 0.0, %v6386
        %6388 = vmatprep.mubr.f32.mxu0 0.0
        %6389 = vmatmul.mubr.f32.gmra.mrb[0].mxu0 %v6168
        %v6390 = vpop.f32.mrb[0].mxu0
        %v6391 = vadd.f32 0.0, %v6390
        %v6392 = vpop.f32.mrb[0].mxu0
        %v6393 = vadd.f32 0.0, %v6392
        %6394 = vmatprep.mubr.f32.mxu0 0.0
        %6395 = vmatmul.mubr.f32.gmra.mrb[0].mxu0 %v6170
        %v6396 = vpop.f32.mrb[0].mxu0
        %v6397 = vadd.f32 0.0, %v6396
        %v6398 = vpop.f32.mrb[0].mxu0
        %v6399 = vadd.f32 0.0, %v6398
        %6400 = vmatprep.mubr.f32.mxu0 0.0
        %6401 = vmatmul.mubr.f32.gmra.mrb[0].mxu0 %v6172
        %v6402 = vpop.f32.mrb[0].mxu0
        %v6403 = vadd.f32 0.0, %v6402
        %v6404 = vpop.f32.mrb[0].mxu0
        %v6405 = vadd.f32 0.0, %v6404
        %6406 = vmatprep.mubr.f32.mxu0 0.0
        %6407 = vmatmul.mubr.f32.gmra.mrb[0].mxu0 %v6174
        %v6408 = vpop.f32.mrb[0].mxu0
        %v6409 = vadd.f32 0.0, %v6408
        %v6410 = vpop.f32.mrb[0].mxu0
        %v6411 = vadd.f32 0.0, %v6410
        %6412 = vmatprep.mubr.f32.mxu0 0.0
        %6413 = vmatmul.mubr.f32.gmra.mrb[0].mxu0 %v6176
        %v6414 = vpop.f32.mrb[0].mxu0
        %v6415 = vadd.f32 0.0, %v6414
        %v6416 = vpop.f32.mrb[0].mxu0
        %v6417 = vadd.f32 0.0, %v6416
        %6418 = vmatprep.mubr.f32.mxu0 0.0
        %6419 = vmatmul.mubr.f32.gmra.mrb[0].mxu0 %v6178
        %v6420 = vpop.f32.mrb[0].mxu0
        %v6421 = vadd.f32 0.0, %v6420
        %v6422 = vpop.f32.mrb[0].mxu0
        %v6423 = vadd.f32 0.0, %v6422
        %6424 = vmatprep.mubr.f32.mxu0 0.0
        %6425 = vmatmul.mubr.f32.gmra.mrb[0].mxu0 %v6180
        %v6426 = vpop.f32.mrb[0].mxu0
        %v6427 = vadd.f32 0.0, %v6426
        %v6428 = vpop.f32.mrb[0].mxu0
        %v6429 = vadd.f32 0.0, %v6428
        %6430 = vmatprep.mubr.f32.mxu0 0.0
        %6431 = vmatmul.mubr.f32.gmra.mrb[0].mxu0 %v6182
        %v6432 = vpop.f32.mrb[0].mxu0
        %v6433 = vadd.f32 0.0, %v6432
        %v6434 = vpop.f32.mrb[0].mxu0
        %v6435 = vadd.f32 0.0, %v6434
        %6436 = vmatprep.mubr.f32.mxu0 0.0
        %6437 = vmatmul.mubr.f32.gmra.mrb[0].mxu0 %v6184
        %v6438 = vpop.f32.mrb[0].mxu0
        %v6439 = vadd.f32 0.0, %v6438
        %v6440 = vpop.f32.mrb[0].mxu0
        %v6441 = vadd.f32 0.0, %v6440
        %6442 = vmatprep.mubr.f32.mxu0 0.0
        %6443 = vmatmul.mubr.f32.gmra.mrb[0].mxu0 %v6186
        %v6444 = vpop.f32.mrb[0].mxu0
        %v6445 = vadd.f32 0.0, %v6444
        %v6446 = vpop.f32.mrb[0].mxu0
        %v6447 = vadd.f32 0.0, %v6446
        %6448 = vmatprep.mubr.f32.mxu0 0.0
        %6449 = vmatmul.mubr.f32.gmra.mrb[0].mxu0 %v6188
        %v6450 = vpop.f32.mrb[0].mxu0
        %v6451 = vadd.f32 0.0, %v6450
        %v6452 = vpop.f32.mrb[0].mxu0
        %v6453 = vadd.f32 0.0, %v6452
        %6454 = vmatprep.mubr.f32.mxu0 0.0
        %6455 = vmatmul.mubr.f32.gmra.mrb[0].mxu0 %v6190
        %v6456 = vpop.f32.mrb[0].mxu0
        %v6457 = vadd.f32 0.0, %v6456
        %v6458 = vpop.f32.mrb[0].mxu0
        %v6459 = vadd.f32 0.0, %v6458
        %6460 = vmatprep.mubr.f32.mxu0 0.0
        %6461 = vmatmul.mubr.f32.gmra.mrb[0].mxu0 %v6192
        %v6462 = vpop.f32.mrb[0].mxu0
        %v6463 = vadd.f32 0.0, %v6462
        %v6464 = vpop.f32.mrb[0].mxu0
        %v6465 = vadd.f32 0.0, %v6464
        %6466 = vmatprep.mubr.f32.mxu0 0.0
        %6467 = vmatmul.mubr.f32.gmra.mrb[0].mxu0 %v6194
        %v6468 = vpop.f32.mrb[0].mxu0
        %v6469 = vadd.f32 0.0, %v6468
        %v6470 = vpop.f32.mrb[0].mxu0
        %v6471 = vadd.f32 0.0, %v6470
        %6472 = vmatprep.mubr.f32.mxu0 0.0
        %6473 = vmatmul.mubr.f32.gmra.mrb[0].mxu0 %v6196
        %v6474 = vpop.f32.mrb[0].mxu0
        %v6475 = vadd.f32 0.0, %v6474
        %v6476 = vpop.f32.mrb[0].mxu0
        %v6477 = vadd.f32 0.0, %v6476
        %6478 = vmatprep.mubr.f32.mxu0 0.0
        %6479 = vmatmul.mubr.f32.gmra.mrb[0].mxu0 %v6198
        %v6480 = vpop.f32.mrb[0].mxu0
        %v6481 = vadd.f32 0.0, %v6480
        %v6482 = vpop.f32.mrb[0].mxu0
        %v6483 = vadd.f32 0.0, %v6482
        %6484 = vmatprep.mubr.f32.mxu0 0.0
        %6485 = vmatmul.mubr.f32.gmra.mrb[0].mxu0 %v6200
        %v6486 = vpop.f32.mrb[0].mxu0
        %v6487 = vadd.f32 0.0, %v6486
        %v6488 = vpop.f32.mrb[0].mxu0
        %v6489 = vadd.f32 0.0, %v6488
        %6490 = vmatprep.mubr.f32.mxu0 0.0
        %6491 = vmatmul.mubr.f32.gmra.mrb[0].mxu0 %v6202
        %v6492 = vpop.f32.mrb[0].mxu0
        %v6493 = vadd.f32 0.0, %v6492
        %v6494 = vpop.f32.mrb[0].mxu0
        %v6495 = vadd.f32 0.0, %v6494
        %6496 = vmatprep.mubr.f32.mxu0 0.0
        %6497 = vmatmul.mubr.f32.gmra.mrb[0].mxu0 %v6204
        %v6498 = vpop.f32.mrb[0].mxu0
        %v6499 = vadd.f32 0.0, %v6498
        %v6500 = vpop.f32.mrb[0].mxu0
        %v6501 = vadd.f32 0.0, %v6500
        %6502 = vmatprep.mubr.f32.mxu0 0.0
        %6503 = vmatmul.mubr.f32.gmra.mrb[0].mxu0 %v6206
        %v6504 = vpop.f32.mrb[0].mxu0
        %v6505 = vadd.f32 0.0, %v6504
        %v6506 = vpop.f32.mrb[0].mxu0
        %v6507 = vadd.f32 0.0, %v6506
        %6508 = vmatprep.mubr.f32.mxu0 0.0
        %6509 = vmatmul.mubr.f32.gmra.mrb[0].mxu0 %v6208
        %v6510 = vpop.f32.mrb[0].mxu0
        %v6511 = vadd.f32 0.0, %v6510
        %v6512 = vpop.f32.mrb[0].mxu0
        %v6513 = vadd.f32 0.0, %v6512
        %6514 = vmatprep.mubr.f32.mxu0 0.0
        %6515 = vmatmul.mubr.f32.gmra.mrb[0].mxu0 %v6210
        %v6516 = vpop.f32.mrb[0].mxu0
        %v6517 = vadd.f32 0.0, %v6516
        %v6518 = vpop.f32.mrb[0].mxu0
        %v6519 = vadd.f32 0.0, %v6518
        %6520 = vmatprep.mubr.f32.mxu0 0.0
        %6521 = vmatmul.mubr.f32.gmra.mrb[0].mxu0 %v6212
        %v6522 = vpop.f32.mrb[0].mxu0
        %v6523 = vadd.f32 0.0, %v6522
        %v6524 = vpop.f32.mrb[0].mxu0
        %v6525 = vadd.f32 0.0, %v6524
        %6526 = vmatprep.mubr.f32.mxu0 0.0
        %6527 = vmatmul.mubr.f32.gmra.mrb[0].mxu0 %v6214
        %v6528 = vpop.f32.mrb[0].mxu0
        %v6529 = vadd.f32 0.0, %v6528
        %v6530 = vpop.f32.mrb[0].mxu0
        %v6531 = vadd.f32 0.0, %v6530
        %6532 = vmatprep.mubr.f32.mxu0 0.0
        %6533 = vmatmul.mubr.f32.gmra.mrb[0].mxu0 %v6216
        %v6534 = vpop.f32.mrb[0].mxu0
        %v6535 = vadd.f32 0.0, %v6534
        %v6536 = vpop.f32.mrb[0].mxu0
        %v6537 = vadd.f32 0.0, %v6536
        %6538 = vdwg.mxu0
        %v6539 = vmul.f32 %v6349, 0.17677669
        %v6540 = vmul.f32 %v6351, 0.17677669
        %v6541 = vmul.f32 %v6355, 0.17677669
        %v6542 = vmul.f32 %v6357, 0.17677669
        %v6543 = vmul.f32 %v6361, 0.17677669
        %v6544 = vmul.f32 %v6363, 0.17677669
        %v6545 = vmul.f32 %v6367, 0.17677669
        %v6546 = vmul.f32 %v6369, 0.17677669
        %v6547 = vmul.f32 %v6373, 0.17677669
        %v6548 = vmul.f32 %v6375, 0.17677669
        %v6549 = vmul.f32 %v6379, 0.17677669
        %v6550 = vmul.f32 %v6381, 0.17677669
        %v6551 = vmul.f32 %v6385, 0.17677669
        %v6552 = vmul.f32 %v6387, 0.17677669
        %v6553 = vmul.f32 %v6391, 0.17677669
        %v6554 = vmul.f32 %v6393, 0.17677669
        %v6555 = vmul.f32 %v6397, 0.17677669
        %v6556 = vmul.f32 %v6399, 0.17677669
        %v6557 = vmul.f32 %v6403, 0.17677669
        %v6558 = vmul.f32 %v6405, 0.17677669
        %v6559 = vmul.f32 %v6409, 0.17677669
        %v6560 = vmul.f32 %v6411, 0.17677669
        %v6561 = vmul.f32 %v6415, 0.17677669
        %v6562 = vmul.f32 %v6417, 0.17677669
        %v6563 = vmul.f32 %v6421, 0.17677669
        %v6564 = vmul.f32 %v6423, 0.17677669
        %v6565 = vmul.f32 %v6427, 0.17677669
        %v6566 = vmul.f32 %v6429, 0.17677669
        %v6567 = vmul.f32 %v6433, 0.17677669
        %v6568 = vmul.f32 %v6435, 0.17677669
        %v6569 = vmul.f32 %v6439, 0.17677669
        %v6570 = vmul.f32 %v6441, 0.17677669
        %v6571 = vmul.f32 %v6445, 0.17677669
        %v6572 = vmul.f32 %v6447, 0.17677669
        %v6573 = vmul.f32 %v6451, 0.17677669
        %v6574 = vmul.f32 %v6453, 0.17677669
        %v6575 = vmul.f32 %v6457, 0.17677669
        %v6576 = vmul.f32 %v6459, 0.17677669
        %v6577 = vmul.f32 %v6463, 0.17677669
        %v6578 = vmul.f32 %v6465, 0.17677669
        %v6579 = vmul.f32 %v6469, 0.17677669
        %v6580 = vmul.f32 %v6471, 0.17677669
        %v6581 = vmul.f32 %v6475, 0.17677669
        %v6582 = vmul.f32 %v6477, 0.17677669
        %v6583 = vmul.f32 %v6481, 0.17677669
        %v6584 = vmul.f32 %v6483, 0.17677669
        %v6585 = vmul.f32 %v6487, 0.17677669
        %v6586 = vmul.f32 %v6489, 0.17677669
        %v6587 = vmul.f32 %v6493, 0.17677669
        %v6588 = vmul.f32 %v6495, 0.17677669
        %v6589 = vmul.f32 %v6499, 0.17677669
        %v6590 = vmul.f32 %v6501, 0.17677669
        %v6591 = vmul.f32 %v6505, 0.17677669
        %v6592 = vmul.f32 %v6507, 0.17677669
        %v6593 = vmul.f32 %v6511, 0.17677669
        %v6594 = vmul.f32 %v6513, 0.17677669
        %v6595 = vmul.f32 %v6517, 0.17677669
        %v6596 = vmul.f32 %v6519, 0.17677669
        %v6597 = vmul.f32 %v6523, 0.17677669
        %v6598 = vmul.f32 %v6525, 0.17677669
        %v6599 = vmul.f32 %v6529, 0.17677669
        %v6600 = vmul.f32 %v6531, 0.17677669
        %v6601 = vmul.f32 %v6535, 0.17677669
        %v6602 = vmul.f32 %v6537, 0.17677669
        %v6603 = vadd.f32 %v6539, %v2019
        %v6604 = vadd.f32 %v6540, %v2020
        %v6605 = vadd.f32 %v6541, %v2021
        %v6606 = vadd.f32 %v6542, %v2022
        %v6607 = vadd.f32 %v6543, %v2023
        %v6608 = vadd.f32 %v6544, %v2024
        %v6609 = vadd.f32 %v6545, %v2025
        %v6610 = vadd.f32 %v6546, %v2026
        %v6611 = vadd.f32 %v6547, %v2027
        %v6612 = vadd.f32 %v6548, %v2028
        %v6613 = vadd.f32 %v6549, %v2029
        %v6614 = vadd.f32 %v6550, %v2030
        %v6615 = vadd.f32 %v6551, %v2031
        %v6616 = vadd.f32 %v6552, %v2032
        %v6617 = vadd.f32 %v6553, %v2033
        %v6618 = vadd.f32 %v6554, %v2034
        %v6619 = vadd.f32 %v6555, %v2035
        %v6620 = vadd.f32 %v6556, %v2036
        %v6621 = vadd.f32 %v6557, %v2037
        %v6622 = vadd.f32 %v6558, %v2038
        %v6623 = vadd.f32 %v6559, %v2039
        %v6624 = vadd.f32 %v6560, %v2040
        %v6625 = vadd.f32 %v6561, %v2041
        %v6626 = vadd.f32 %v6562, %v2042
        %v6627 = vadd.f32 %v6563, %v2043
        %v6628 = vadd.f32 %v6564, %v2044
        %v6629 = vadd.f32 %v6565, %v2045
        %v6630 = vadd.f32 %v6566, %v2046
        %v6631 = vadd.f32 %v6567, %v2047
        %v6632 = vadd.f32 %v6568, %v2048
        %v6633 = vadd.f32 %v6569, %v2049
        %v6634 = vadd.f32 %v6570, %v2050
        %v6635 = vadd.f32 %v6571, %v2051
        %v6636 = vadd.f32 %v6572, %v2052
        %v6637 = vadd.f32 %v6573, %v2053
        %v6638 = vadd.f32 %v6574, %v2054
        %v6639 = vadd.f32 %v6575, %v2055
        %v6640 = vadd.f32 %v6576, %v2056
        %v6641 = vadd.f32 %v6577, %v2057
        %v6642 = vadd.f32 %v6578, %v2058
        %v6643 = vadd.f32 %v6579, %v2059
        %v6644 = vadd.f32 %v6580, %v2060
        %v6645 = vadd.f32 %v6581, %v2061
        %v6646 = vadd.f32 %v6582, %v2062
        %v6647 = vadd.f32 %v6583, %v2063
        %v6648 = vadd.f32 %v6584, %v2064
        %v6649 = vadd.f32 %v6585, %v2065
        %v6650 = vadd.f32 %v6586, %v2066
        %v6651 = vadd.f32 %v6587, %v2067
        %v6652 = vadd.f32 %v6588, %v2068
        %v6653 = vadd.f32 %v6589, %v2069
        %v6654 = vadd.f32 %v6590, %v2070
        %v6655 = vadd.f32 %v6591, %v2071
        %v6656 = vadd.f32 %v6592, %v2072
        %v6657 = vadd.f32 %v6593, %v2073
        %v6658 = vadd.f32 %v6594, %v2074
        %v6659 = vadd.f32 %v6595, %v2075
        %v6660 = vadd.f32 %v6596, %v2076
        %v6661 = vadd.f32 %v6597, %v2077
        %v6662 = vadd.f32 %v6598, %v2078
        %v6663 = vadd.f32 %v6599, %v2079
        %v6664 = vadd.f32 %v6600, %v2080
        %v6665 = vadd.f32 %v6601, %v2081
        %v6666 = vadd.f32 %v6602, %v2082
        %v6667 = vmax.f32 %v6603, %v6604
        %6668 = vmax.xlane.f32.xlu0 %v6667
        %v6669 = vpop.xlane.xlu0 %6668
        %v6670 = vmax.f32 %v6605, %v6606
        %6671 = vmax.xlane.f32.xlu0 %v6670
        %v6672 = vpop.xlane.xlu0 %6671
        %v6673 = vmax.f32 %v6607, %v6608
        %6674 = vmax.xlane.f32.xlu0 %v6673
        %v6675 = vpop.xlane.xlu0 %6674
        %v6676 = vmax.f32 %v6609, %v6610
        %6677 = vmax.xlane.f32.xlu0 %v6676
        %v6678 = vpop.xlane.xlu0 %6677
        %v6679 = vmax.f32 %v6611, %v6612
        %6680 = vmax.xlane.f32.xlu0 %v6679
        %v6681 = vpop.xlane.xlu0 %6680
        %v6682 = vmax.f32 %v6613, %v6614
        %6683 = vmax.xlane.f32.xlu0 %v6682
        %v6684 = vpop.xlane.xlu0 %6683
        %v6685 = vmax.f32 %v6615, %v6616
        %6686 = vmax.xlane.f32.xlu0 %v6685
        %v6687 = vpop.xlane.xlu0 %6686
        %v6688 = vmax.f32 %v6617, %v6618
        %6689 = vmax.xlane.f32.xlu0 %v6688
        %v6690 = vpop.xlane.xlu0 %6689
        %v6691 = vmax.f32 %v6619, %v6620
        %6692 = vmax.xlane.f32.xlu0 %v6691
        %v6693 = vpop.xlane.xlu0 %6692
        %v6694 = vmax.f32 %v6621, %v6622
        %6695 = vmax.xlane.f32.xlu0 %v6694
        %v6696 = vpop.xlane.xlu0 %6695
        %v6697 = vmax.f32 %v6623, %v6624
        %6698 = vmax.xlane.f32.xlu0 %v6697
        %v6699 = vpop.xlane.xlu0 %6698
        %v6700 = vmax.f32 %v6625, %v6626
        %6701 = vmax.xlane.f32.xlu0 %v6700
        %v6702 = vpop.xlane.xlu0 %6701
        %v6703 = vmax.f32 %v6627, %v6628
        %6704 = vmax.xlane.f32.xlu0 %v6703
        %v6705 = vpop.xlane.xlu0 %6704
        %v6706 = vmax.f32 %v6629, %v6630
        %6707 = vmax.xlane.f32.xlu0 %v6706
        %v6708 = vpop.xlane.xlu0 %6707
        %v6709 = vmax.f32 %v6631, %v6632
        %6710 = vmax.xlane.f32.xlu0 %v6709
        %v6711 = vpop.xlane.xlu0 %6710
        %v6712 = vmax.f32 %v6633, %v6634
        %6713 = vmax.xlane.f32.xlu0 %v6712
        %v6714 = vpop.xlane.xlu0 %6713
        %v6715 = vmax.f32 %v6635, %v6636
        %6716 = vmax.xlane.f32.xlu0 %v6715
        %v6717 = vpop.xlane.xlu0 %6716
        %v6718 = vmax.f32 %v6637, %v6638
        %6719 = vmax.xlane.f32.xlu0 %v6718
        %v6720 = vpop.xlane.xlu0 %6719
        %v6721 = vmax.f32 %v6639, %v6640
        %6722 = vmax.xlane.f32.xlu0 %v6721
        %v6723 = vpop.xlane.xlu0 %6722
        %v6724 = vmax.f32 %v6641, %v6642
        %6725 = vmax.xlane.f32.xlu0 %v6724
        %v6726 = vpop.xlane.xlu0 %6725
        %v6727 = vmax.f32 %v6643, %v6644
        %6728 = vmax.xlane.f32.xlu0 %v6727
        %v6729 = vpop.xlane.xlu0 %6728
        %v6730 = vmax.f32 %v6645, %v6646
        %6731 = vmax.xlane.f32.xlu0 %v6730
        %v6732 = vpop.xlane.xlu0 %6731
        %v6733 = vmax.f32 %v6647, %v6648
        %6734 = vmax.xlane.f32.xlu0 %v6733
        %v6735 = vpop.xlane.xlu0 %6734
        %v6736 = vmax.f32 %v6649, %v6650
        %6737 = vmax.xlane.f32.xlu0 %v6736
        %v6738 = vpop.xlane.xlu0 %6737
        %v6739 = vmax.f32 %v6651, %v6652
        %6740 = vmax.xlane.f32.xlu0 %v6739
        %v6741 = vpop.xlane.xlu0 %6740
        %v6742 = vmax.f32 %v6653, %v6654
        %6743 = vmax.xlane.f32.xlu0 %v6742
        %v6744 = vpop.xlane.xlu0 %6743
        %v6745 = vmax.f32 %v6655, %v6656
        %6746 = vmax.xlane.f32.xlu0 %v6745
        %v6747 = vpop.xlane.xlu0 %6746
        %v6748 = vmax.f32 %v6657, %v6658
        %6749 = vmax.xlane.f32.xlu0 %v6748
        %v6750 = vpop.xlane.xlu0 %6749
        %v6751 = vmax.f32 %v6659, %v6660
        %6752 = vmax.xlane.f32.xlu0 %v6751
        %v6753 = vpop.xlane.xlu0 %6752
        %v6754 = vmax.f32 %v6661, %v6662
        %6755 = vmax.xlane.f32.xlu0 %v6754
        %v6756 = vpop.xlane.xlu0 %6755
        %v6757 = vmax.f32 %v6663, %v6664
        %6758 = vmax.xlane.f32.xlu0 %v6757
        %v6759 = vpop.xlane.xlu0 %6758
        %v6760 = vmax.f32 %v6665, %v6666
        %6761 = vmax.xlane.f32.xlu0 %v6760
        %v6762 = vpop.xlane.xlu0 %6761
        %v6763 = vsub.f32 %v6603, %v6669
        %v6764 = vsub.f32 %v6604, %v6669
        %v6765 = vsub.f32 %v6605, %v6672
        %v6766 = vsub.f32 %v6606, %v6672
        %v6767 = vsub.f32 %v6607, %v6675
        %v6768 = vsub.f32 %v6608, %v6675
        %v6769 = vsub.f32 %v6609, %v6678
        %v6770 = vsub.f32 %v6610, %v6678
        %v6771 = vsub.f32 %v6611, %v6681
        %v6772 = vsub.f32 %v6612, %v6681
        %v6773 = vsub.f32 %v6613, %v6684
        %v6774 = vsub.f32 %v6614, %v6684
        %v6775 = vsub.f32 %v6615, %v6687
        %v6776 = vsub.f32 %v6616, %v6687
        %v6777 = vsub.f32 %v6617, %v6690
        %v6778 = vsub.f32 %v6618, %v6690
        %v6779 = vsub.f32 %v6619, %v6693
        %v6780 = vsub.f32 %v6620, %v6693
        %v6781 = vsub.f32 %v6621, %v6696
        %v6782 = vsub.f32 %v6622, %v6696
        %v6783 = vsub.f32 %v6623, %v6699
        %v6784 = vsub.f32 %v6624, %v6699
        %v6785 = vsub.f32 %v6625, %v6702
        %v6786 = vsub.f32 %v6626, %v6702
        %v6787 = vsub.f32 %v6627, %v6705
        %v6788 = vsub.f32 %v6628, %v6705
        %v6789 = vsub.f32 %v6629, %v6708
        %v6790 = vsub.f32 %v6630, %v6708
        %v6791 = vsub.f32 %v6631, %v6711
        %v6792 = vsub.f32 %v6632, %v6711
        %v6793 = vsub.f32 %v6633, %v6714
        %v6794 = vsub.f32 %v6634, %v6714
        %v6795 = vsub.f32 %v6635, %v6717
        %v6796 = vsub.f32 %v6636, %v6717
        %v6797 = vsub.f32 %v6637, %v6720
        %v6798 = vsub.f32 %v6638, %v6720
        %v6799 = vsub.f32 %v6639, %v6723
        %v6800 = vsub.f32 %v6640, %v6723
        %v6801 = vsub.f32 %v6641, %v6726
        %v6802 = vsub.f32 %v6642, %v6726
        %v6803 = vsub.f32 %v6643, %v6729
        %v6804 = vsub.f32 %v6644, %v6729
        %v6805 = vsub.f32 %v6645, %v6732
        %v6806 = vsub.f32 %v6646, %v6732
        %v6807 = vsub.f32 %v6647, %v6735
        %v6808 = vsub.f32 %v6648, %v6735
        %v6809 = vsub.f32 %v6649, %v6738
        %v6810 = vsub.f32 %v6650, %v6738
        %v6811 = vsub.f32 %v6651, %v6741
        %v6812 = vsub.f32 %v6652, %v6741
        %v6813 = vsub.f32 %v6653, %v6744
        %v6814 = vsub.f32 %v6654, %v6744
        %v6815 = vsub.f32 %v6655, %v6747
        %v6816 = vsub.f32 %v6656, %v6747
        %v6817 = vsub.f32 %v6657, %v6750
        %v6818 = vsub.f32 %v6658, %v6750
        %v6819 = vsub.f32 %v6659, %v6753
        %v6820 = vsub.f32 %v6660, %v6753
        %v6821 = vsub.f32 %v6661, %v6756
        %v6822 = vsub.f32 %v6662, %v6756
        %v6823 = vsub.f32 %v6663, %v6759
        %v6824 = vsub.f32 %v6664, %v6759
        %v6825 = vsub.f32 %v6665, %v6762
        %v6826 = vsub.f32 %v6666, %v6762
        %v6827 = vmul.f32 %v6763, 1.442695
        %v6828 = vpow.pop %v6827
        %v6829 = vmul.f32 %v6764, 1.442695
        %v6830 = vpow.pop %v6829
        %v6831 = vmul.f32 %v6765, 1.442695
        %v6832 = vpow.pop %v6831
        %v6833 = vmul.f32 %v6766, 1.442695
        %v6834 = vpow.pop %v6833
        %v6835 = vmul.f32 %v6767, 1.442695
        %v6836 = vpow.pop %v6835
        %v6837 = vmul.f32 %v6768, 1.442695
        %v6838 = vpow.pop %v6837
        %v6839 = vmul.f32 %v6769, 1.442695
        %v6840 = vpow.pop %v6839
        %v6841 = vmul.f32 %v6770, 1.442695
        %v6842 = vpow.pop %v6841
        %v6843 = vmul.f32 %v6771, 1.442695
        %v6844 = vpow.pop %v6843
        %v6845 = vmul.f32 %v6772, 1.442695
        %v6846 = vpow.pop %v6845
        %v6847 = vmul.f32 %v6773, 1.442695
        %v6848 = vpow.pop %v6847
        %v6849 = vmul.f32 %v6774, 1.442695
        %v6850 = vpow.pop %v6849
        %v6851 = vmul.f32 %v6775, 1.442695
        %v6852 = vpow.pop %v6851
        %v6853 = vmul.f32 %v6776, 1.442695
        %v6854 = vpow.pop %v6853
        %v6855 = vmul.f32 %v6777, 1.442695
        %v6856 = vpow.pop %v6855
        %v6857 = vmul.f32 %v6778, 1.442695
        %v6858 = vpow.pop %v6857
        %v6859 = vmul.f32 %v6779, 1.442695
        %v6860 = vpow.pop %v6859
        %v6861 = vmul.f32 %v6780, 1.442695
        %v6862 = vpow.pop %v6861
        %v6863 = vmul.f32 %v6781, 1.442695
        %v6864 = vpow.pop %v6863
        %v6865 = vmul.f32 %v6782, 1.442695
        %v6866 = vpow.pop %v6865
        %v6867 = vmul.f32 %v6783, 1.442695
        %v6868 = vpow.pop %v6867
        %v6869 = vmul.f32 %v6784, 1.442695
        %v6870 = vpow.pop %v6869
        %v6871 = vmul.f32 %v6785, 1.442695
        %v6872 = vpow.pop %v6871
        %v6873 = vmul.f32 %v6786, 1.442695
        %v6874 = vpow.pop %v6873
        %v6875 = vmul.f32 %v6787, 1.442695
        %v6876 = vpow.pop %v6875
        %v6877 = vmul.f32 %v6788, 1.442695
        %v6878 = vpow.pop %v6877
        %v6879 = vmul.f32 %v6789, 1.442695
        %v6880 = vpow.pop %v6879
        %v6881 = vmul.f32 %v6790, 1.442695
        %v6882 = vpow.pop %v6881
        %v6883 = vmul.f32 %v6791, 1.442695
        %v6884 = vpow.pop %v6883
        %v6885 = vmul.f32 %v6792, 1.442695
        %v6886 = vpow.pop %v6885
        %v6887 = vmul.f32 %v6793, 1.442695
        %v6888 = vpow.pop %v6887
        %v6889 = vmul.f32 %v6794, 1.442695
        %v6890 = vpow.pop %v6889
        %v6891 = vmul.f32 %v6795, 1.442695
        %v6892 = vpow.pop %v6891
        %v6893 = vmul.f32 %v6796, 1.442695
        %v6894 = vpow.pop %v6893
        %v6895 = vmul.f32 %v6797, 1.442695
        %v6896 = vpow.pop %v6895
        %v6897 = vmul.f32 %v6798, 1.442695
        %v6898 = vpow.pop %v6897
        %v6899 = vmul.f32 %v6799, 1.442695
        %v6900 = vpow.pop %v6899
        %v6901 = vmul.f32 %v6800, 1.442695
        %v6902 = vpow.pop %v6901
        %v6903 = vmul.f32 %v6801, 1.442695
        %v6904 = vpow.pop %v6903
        %v6905 = vmul.f32 %v6802, 1.442695
        %v6906 = vpow.pop %v6905
        %v6907 = vmul.f32 %v6803, 1.442695
        %v6908 = vpow.pop %v6907
        %v6909 = vmul.f32 %v6804, 1.442695
        %v6910 = vpow.pop %v6909
        %v6911 = vmul.f32 %v6805, 1.442695
        %v6912 = vpow.pop %v6911
        %v6913 = vmul.f32 %v6806, 1.442695
        %v6914 = vpow.pop %v6913
        %v6915 = vmul.f32 %v6807, 1.442695
        %v6916 = vpow.pop %v6915
        %v6917 = vmul.f32 %v6808, 1.442695
        %v6918 = vpow.pop %v6917
        %v6919 = vmul.f32 %v6809, 1.442695
        %v6920 = vpow.pop %v6919
        %v6921 = vmul.f32 %v6810, 1.442695
        %v6922 = vpow.pop %v6921
        %v6923 = vmul.f32 %v6811, 1.442695
        %v6924 = vpow.pop %v6923
        %v6925 = vmul.f32 %v6812, 1.442695
        %v6926 = vpow.pop %v6925
        %v6927 = vmul.f32 %v6813, 1.442695
        %v6928 = vpow.pop %v6927
        %v6929 = vmul.f32 %v6814, 1.442695
        %v6930 = vpow.pop %v6929
        %v6931 = vmul.f32 %v6815, 1.442695
        %v6932 = vpow.pop %v6931
        %v6933 = vmul.f32 %v6816, 1.442695
        %v6934 = vpow.pop %v6933
        %v6935 = vmul.f32 %v6817, 1.442695
        %v6936 = vpow.pop %v6935
        %v6937 = vmul.f32 %v6818, 1.442695
        %v6938 = vpow.pop %v6937
        %v6939 = vmul.f32 %v6819, 1.442695
        %v6940 = vpow.pop %v6939
        %v6941 = vmul.f32 %v6820, 1.442695
        %v6942 = vpow.pop %v6941
        %v6943 = vmul.f32 %v6821, 1.442695
        %v6944 = vpow.pop %v6943
        %v6945 = vmul.f32 %v6822, 1.442695
        %v6946 = vpow.pop %v6945
        %v6947 = vmul.f32 %v6823, 1.442695
        %v6948 = vpow.pop %v6947
        %v6949 = vmul.f32 %v6824, 1.442695
        %v6950 = vpow.pop %v6949
        %v6951 = vmul.f32 %v6825, 1.442695
        %v6952 = vpow.pop %v6951
        %v6953 = vmul.f32 %v6826, 1.442695
        %v6954 = vpow.pop %v6953
        %v6955 = vadd.f32 %v6828, %v6830
        %6956 = vadd.xlane.f32.xlu0 %v6955
        %v6957 = vpop.xlane.xlu0 %6956
        %v6958 = vadd.f32 %v6832, %v6834
        %6959 = vadd.xlane.f32.xlu0 %v6958
        %v6960 = vpop.xlane.xlu0 %6959
        %v6961 = vadd.f32 %v6836, %v6838
        %6962 = vadd.xlane.f32.xlu0 %v6961
        %v6963 = vpop.xlane.xlu0 %6962
        %v6964 = vadd.f32 %v6840, %v6842
        %6965 = vadd.xlane.f32.xlu0 %v6964
        %v6966 = vpop.xlane.xlu0 %6965
        %v6967 = vadd.f32 %v6844, %v6846
        %6968 = vadd.xlane.f32.xlu0 %v6967
        %v6969 = vpop.xlane.xlu0 %6968
        %v6970 = vadd.f32 %v6848, %v6850
        %6971 = vadd.xlane.f32.xlu0 %v6970
        %v6972 = vpop.xlane.xlu0 %6971
        %v6973 = vadd.f32 %v6852, %v6854
        %6974 = vadd.xlane.f32.xlu0 %v6973
        %v6975 = vpop.xlane.xlu0 %6974
        %v6976 = vadd.f32 %v6856, %v6858
        %6977 = vadd.xlane.f32.xlu0 %v6976
        %v6978 = vpop.xlane.xlu0 %6977
        %v6979 = vadd.f32 %v6860, %v6862
        %6980 = vadd.xlane.f32.xlu0 %v6979
        %v6981 = vpop.xlane.xlu0 %6980
        %v6982 = vadd.f32 %v6864, %v6866
        %6983 = vadd.xlane.f32.xlu0 %v6982
        %v6984 = vpop.xlane.xlu0 %6983
        %v6985 = vadd.f32 %v6868, %v6870
        %6986 = vadd.xlane.f32.xlu0 %v6985
        %v6987 = vpop.xlane.xlu0 %6986
        %v6988 = vadd.f32 %v6872, %v6874
        %6989 = vadd.xlane.f32.xlu0 %v6988
        %v6990 = vpop.xlane.xlu0 %6989
        %v6991 = vadd.f32 %v6876, %v6878
        %6992 = vadd.xlane.f32.xlu0 %v6991
        %v6993 = vpop.xlane.xlu0 %6992
        %v6994 = vadd.f32 %v6880, %v6882
        %6995 = vadd.xlane.f32.xlu0 %v6994
        %v6996 = vpop.xlane.xlu0 %6995
        %v6997 = vadd.f32 %v6884, %v6886
        %6998 = vadd.xlane.f32.xlu0 %v6997
        %v6999 = vpop.xlane.xlu0 %6998
        %v7000 = vadd.f32 %v6888, %v6890
        %7001 = vadd.xlane.f32.xlu0 %v7000
        %v7002 = vpop.xlane.xlu0 %7001
        %v7003 = vadd.f32 %v6892, %v6894
        %7004 = vadd.xlane.f32.xlu0 %v7003
        %v7005 = vpop.xlane.xlu0 %7004
        %v7006 = vadd.f32 %v6896, %v6898
        %7007 = vadd.xlane.f32.xlu0 %v7006
        %v7008 = vpop.xlane.xlu0 %7007
        %v7009 = vadd.f32 %v6900, %v6902
        %7010 = vadd.xlane.f32.xlu0 %v7009
        %v7011 = vpop.xlane.xlu0 %7010
        %v7012 = vadd.f32 %v6904, %v6906
        %7013 = vadd.xlane.f32.xlu0 %v7012
        %v7014 = vpop.xlane.xlu0 %7013
        %v7015 = vadd.f32 %v6908, %v6910
        %7016 = vadd.xlane.f32.xlu0 %v7015
        %v7017 = vpop.xlane.xlu0 %7016
        %v7018 = vadd.f32 %v6912, %v6914
        %7019 = vadd.xlane.f32.xlu0 %v7018
        %v7020 = vpop.xlane.xlu0 %7019
        %v7021 = vadd.f32 %v6916, %v6918
        %7022 = vadd.xlane.f32.xlu0 %v7021
        %v7023 = vpop.xlane.xlu0 %7022
        %v7024 = vadd.f32 %v6920, %v6922
        %7025 = vadd.xlane.f32.xlu0 %v7024
        %v7026 = vpop.xlane.xlu0 %7025
        %v7027 = vadd.f32 %v6924, %v6926
        %7028 = vadd.xlane.f32.xlu0 %v7027
        %v7029 = vpop.xlane.xlu0 %7028
        %v7030 = vadd.f32 %v6928, %v6930
        %7031 = vadd.xlane.f32.xlu0 %v7030
        %v7032 = vpop.xlane.xlu0 %7031
        %v7033 = vadd.f32 %v6932, %v6934
        %7034 = vadd.xlane.f32.xlu0 %v7033
        %v7035 = vpop.xlane.xlu0 %7034
        %v7036 = vadd.f32 %v6936, %v6938
        %7037 = vadd.xlane.f32.xlu0 %v7036
        %v7038 = vpop.xlane.xlu0 %7037
        %v7039 = vadd.f32 %v6940, %v6942
        %7040 = vadd.xlane.f32.xlu0 %v7039
        %v7041 = vpop.xlane.xlu0 %7040
        %v7042 = vadd.f32 %v6944, %v6946
        %7043 = vadd.xlane.f32.xlu0 %v7042
        %v7044 = vpop.xlane.xlu0 %7043
        %v7045 = vadd.f32 %v6948, %v6950
        %7046 = vadd.xlane.f32.xlu0 %v7045
        %v7047 = vpop.xlane.xlu0 %7046
        %v7048 = vadd.f32 %v6952, %v6954
        %7049 = vadd.xlane.f32.xlu0 %v7048
        %v7050 = vpop.xlane.xlu0 %7049
        %7051 = vrot.lane.b32.xlu0 %v1347, 32
        %v7052 = vpop.permute.xlu0 %7051
        %7053 = vrot.lane.b32.xlu0 %v1352, 32
        %v7054 = vpop.permute.xlu0 %7053
        %7055 = vrot.lane.b32.xlu0 %v1357, 32
        %v7056 = vpop.permute.xlu0 %7055
        %7057 = vrot.lane.b32.xlu0 %v1362, 32
        %v7058 = vpop.permute.xlu0 %7057
        %7059 = vrot.lane.b32.xlu0 %v1367, 32
        %v7060 = vpop.permute.xlu0 %7059
        %7061 = vrot.lane.b32.xlu0 %v1372, 32
        %v7062 = vpop.permute.xlu0 %7061
        %7063 = vrot.lane.b32.xlu0 %v1377, 32
        %v7064 = vpop.permute.xlu0 %7063
        %7065 = vrot.lane.b32.xlu0 %v1382, 32
        %v7066 = vpop.permute.xlu0 %7065
        %7067 = vrot.lane.b32.xlu0 %v1387, 32
        %v7068 = vpop.permute.xlu0 %7067
        %7069 = vrot.lane.b32.xlu0 %v1392, 32
        %v7070 = vpop.permute.xlu0 %7069
        %7071 = vrot.lane.b32.xlu0 %v1397, 32
        %v7072 = vpop.permute.xlu0 %7071
        %7073 = vrot.lane.b32.xlu0 %v1402, 32
        %v7074 = vpop.permute.xlu0 %7073
        %7075 = vrot.lane.b32.xlu0 %v1407, 32
        %v7076 = vpop.permute.xlu0 %7075
        %7077 = vrot.lane.b32.xlu0 %v1412, 32
        %v7078 = vpop.permute.xlu0 %7077
        %7079 = vrot.lane.b32.xlu0 %v1417, 32
        %v7080 = vpop.permute.xlu0 %7079
        %7081 = vrot.lane.b32.xlu0 %v1422, 32
        %v7082 = vpop.permute.xlu0 %7081
        %7083 = vrot.lane.b32.xlu0 %v1427, 32
        %v7084 = vpop.permute.xlu0 %7083
        %7085 = vrot.lane.b32.xlu0 %v1432, 32
        %v7086 = vpop.permute.xlu0 %7085
        %7087 = vrot.lane.b32.xlu0 %v1437, 32
        %v7088 = vpop.permute.xlu0 %7087
        %7089 = vrot.lane.b32.xlu0 %v1442, 32
        %v7090 = vpop.permute.xlu0 %7089
        %7091 = vrot.lane.b32.xlu0 %v1447, 32
        %v7092 = vpop.permute.xlu0 %7091
        %7093 = vrot.lane.b32.xlu0 %v1452, 32
        %v7094 = vpop.permute.xlu0 %7093
        %7095 = vrot.lane.b32.xlu0 %v1457, 32
        %v7096 = vpop.permute.xlu0 %7095
        %7097 = vrot.lane.b32.xlu0 %v1462, 32
        %v7098 = vpop.permute.xlu0 %7097
        %7099 = vrot.lane.b32.xlu0 %v1467, 32
        %v7100 = vpop.permute.xlu0 %7099
        %7101 = vrot.lane.b32.xlu0 %v1472, 32
        %v7102 = vpop.permute.xlu0 %7101
        %7103 = vrot.lane.b32.xlu0 %v1477, 32
        %v7104 = vpop.permute.xlu0 %7103
        %7105 = vrot.lane.b32.xlu0 %v1482, 32
        %v7106 = vpop.permute.xlu0 %7105
        %7107 = vrot.lane.b32.xlu0 %v1487, 32
        %v7108 = vpop.permute.xlu0 %7107
        %7109 = vrot.lane.b32.xlu0 %v1492, 32
        %v7110 = vpop.permute.xlu0 %7109
        %7111 = vrot.lane.b32.xlu0 %v1497, 32
        %v7112 = vpop.permute.xlu0 %7111
        %7113 = vrot.lane.b32.xlu0 %v1502, 32
        %v7114 = vpop.permute.xlu0 %7113
        %7147 = vmatprep.subr.mxu0 0.0
        %7148 = vmatpush1.msra.mxu0 %v7052
        %7149 = vmatprep.subr.mxu0 0.0
        %7150 = vmatpush1.msra.mxu0 %v7054
        %7151 = vmatprep.subr.mxu0 0.0
        %7152 = vmatpush1.msra.mxu0 %v7056
        %7153 = vmatprep.subr.mxu0 0.0
        %7154 = vmatpush1.msra.mxu0 %v7058
        %7155 = vmatprep.subr.mxu0 0.0
        %7156 = vmatpush1.msra.mxu0 %v7060
        %7157 = vmatprep.subr.mxu0 0.0
        %7158 = vmatpush1.msra.mxu0 %v7062
        %7159 = vmatprep.subr.mxu0 0.0
        %7160 = vmatpush1.msra.mxu0 %v7064
        %7161 = vmatprep.subr.mxu0 0.0
        %7162 = vmatpush1.msra.mxu0 %v7066
        %7163 = vmatprep.subr.mxu0 0.0
        %7164 = vmatpush1.msra.mxu0 %v7068
        %7165 = vmatprep.subr.mxu0 0.0
        %7166 = vmatpush1.msra.mxu0 %v7070
        %7167 = vmatprep.subr.mxu0 0.0
        %7168 = vmatpush1.msra.mxu0 %v7072
        %7169 = vmatprep.subr.mxu0 0.0
        %7170 = vmatpush1.msra.mxu0 %v7074
        %7171 = vmatprep.subr.mxu0 0.0
        %7172 = vmatpush1.msra.mxu0 %v7076
        %7173 = vmatprep.subr.mxu0 0.0
        %7174 = vmatpush1.msra.mxu0 %v7078
        %7175 = vmatprep.subr.mxu0 0.0
        %7176 = vmatpush1.msra.mxu0 %v7080
        %7177 = vmatprep.subr.mxu0 0.0
        %7178 = vmatpush1.msra.mxu0 %v7082
        %7179 = vmatprep.subr.mxu0 0.0
        %7180 = vmatpush1.msra.mxu0 %v7084
        %7181 = vmatprep.subr.mxu0 0.0
        %7182 = vmatpush1.msra.mxu0 %v7086
        %7183 = vmatprep.subr.mxu0 0.0
        %7184 = vmatpush1.msra.mxu0 %v7088
        %7185 = vmatprep.subr.mxu0 0.0
        %7186 = vmatpush1.msra.mxu0 %v7090
        %7187 = vmatprep.subr.mxu0 0.0
        %7188 = vmatpush1.msra.mxu0 %v7092
        %7189 = vmatprep.subr.mxu0 0.0
        %7190 = vmatpush1.msra.mxu0 %v7094
        %7191 = vmatprep.subr.mxu0 0.0
        %7192 = vmatpush1.msra.mxu0 %v7096
        %7193 = vmatprep.subr.mxu0 0.0
        %7194 = vmatpush1.msra.mxu0 %v7098
        %7195 = vmatprep.subr.mxu0 0.0
        %7196 = vmatpush1.msra.mxu0 %v7100
        %7197 = vmatprep.subr.mxu0 0.0
        %7198 = vmatpush1.msra.mxu0 %v7102
        %7199 = vmatprep.subr.mxu0 0.0
        %7200 = vmatpush1.msra.mxu0 %v7104
        %7201 = vmatprep.subr.mxu0 0.0
        %7202 = vmatpush1.msra.mxu0 %v7106
        %7203 = vmatprep.subr.mxu0 0.0
        %7204 = vmatpush1.msra.mxu0 %v7108
        %7205 = vmatprep.subr.mxu0 0.0
        %7206 = vmatpush1.msra.mxu0 %v7110
        %7207 = vmatprep.subr.mxu0 0.0
        %7208 = vmatpush1.msra.mxu0 %v7112
        %7209 = vmatprep.subr.mxu0 0.0
        %7210 = vmatpush1.msra.mxu0 %v7114
        %7211 = vmatprep.mubr.f32.mxu0 %v6830
        %7212 = vmatmul.mubr.f32.gmra.mrb[0].mxu0 %v6828
        %v7213 = vpop.f32.mrb[0].mxu0
        %v7214 = vadd.f32 0.0, %v7213
        %v7215 = vpop.f32.mrb[0].mxu0
        %7216 = vmatprep.mubr.f32.mxu0 %v6834
        %7217 = vmatmul.mubr.f32.gmra.mrb[0].mxu0 %v6832
        %v7218 = vpop.f32.mrb[0].mxu0
        %v7219 = vadd.f32 0.0, %v7218
        %v7220 = vpop.f32.mrb[0].mxu0
        %7221 = vmatprep.mubr.f32.mxu0 %v6838
        %7222 = vmatmul.mubr.f32.gmra.mrb[0].mxu0 %v6836
        %v7223 = vpop.f32.mrb[0].mxu0
        %v7224 = vadd.f32 0.0, %v7223
        %v7225 = vpop.f32.mrb[0].mxu0
        %7226 = vmatprep.mubr.f32.mxu0 %v6842
        %7227 = vmatmul.mubr.f32.gmra.mrb[0].mxu0 %v6840
        %v7228 = vpop.f32.mrb[0].mxu0
        %v7229 = vadd.f32 0.0, %v7228
        %v7230 = vpop.f32.mrb[0].mxu0
        %7231 = vmatprep.mubr.f32.mxu0 %v6846
        %7232 = vmatmul.mubr.f32.gmra.mrb[0].mxu0 %v6844
        %v7233 = vpop.f32.mrb[0].mxu0
        %v7234 = vadd.f32 0.0, %v7233
        %v7235 = vpop.f32.mrb[0].mxu0
        %7236 = vmatprep.mubr.f32.mxu0 %v6850
        %7237 = vmatmul.mubr.f32.gmra.mrb[0].mxu0 %v6848
        %v7238 = vpop.f32.mrb[0].mxu0
        %v7239 = vadd.f32 0.0, %v7238
        %v7240 = vpop.f32.mrb[0].mxu0
        %7241 = vmatprep.mubr.f32.mxu0 %v6854
        %7242 = vmatmul.mubr.f32.gmra.mrb[0].mxu0 %v6852
        %v7243 = vpop.f32.mrb[0].mxu0
        %v7244 = vadd.f32 0.0, %v7243
        %v7245 = vpop.f32.mrb[0].mxu0
        %7246 = vmatprep.mubr.f32.mxu0 %v6858
        %7247 = vmatmul.mubr.f32.gmra.mrb[0].mxu0 %v6856
        %v7248 = vpop.f32.mrb[0].mxu0
        %v7249 = vadd.f32 0.0, %v7248
        %v7250 = vpop.f32.mrb[0].mxu0
        %7251 = vmatprep.mubr.f32.mxu0 %v6862
        %7252 = vmatmul.mubr.f32.gmra.mrb[0].mxu0 %v6860
        %v7253 = vpop.f32.mrb[0].mxu0
        %v7254 = vadd.f32 0.0, %v7253
        %v7255 = vpop.f32.mrb[0].mxu0
        %7256 = vmatprep.mubr.f32.mxu0 %v6866
        %7257 = vmatmul.mubr.f32.gmra.mrb[0].mxu0 %v6864
        %v7258 = vpop.f32.mrb[0].mxu0
        %v7259 = vadd.f32 0.0, %v7258
        %v7260 = vpop.f32.mrb[0].mxu0
        %7261 = vmatprep.mubr.f32.mxu0 %v6870
        %7262 = vmatmul.mubr.f32.gmra.mrb[0].mxu0 %v6868
        %v7263 = vpop.f32.mrb[0].mxu0
        %v7264 = vadd.f32 0.0, %v7263
        %v7265 = vpop.f32.mrb[0].mxu0
        %7266 = vmatprep.mubr.f32.mxu0 %v6874
        %7267 = vmatmul.mubr.f32.gmra.mrb[0].mxu0 %v6872
        %v7268 = vpop.f32.mrb[0].mxu0
        %v7269 = vadd.f32 0.0, %v7268
        %v7270 = vpop.f32.mrb[0].mxu0
        %7271 = vmatprep.mubr.f32.mxu0 %v6878
        %7272 = vmatmul.mubr.f32.gmra.mrb[0].mxu0 %v6876
        %v7273 = vpop.f32.mrb[0].mxu0
        %v7274 = vadd.f32 0.0, %v7273
        %v7275 = vpop.f32.mrb[0].mxu0
        %7276 = vmatprep.mubr.f32.mxu0 %v6882
        %7277 = vmatmul.mubr.f32.gmra.mrb[0].mxu0 %v6880
        %v7278 = vpop.f32.mrb[0].mxu0
        %v7279 = vadd.f32 0.0, %v7278
        %v7280 = vpop.f32.mrb[0].mxu0
        %7281 = vmatprep.mubr.f32.mxu0 %v6886
        %7282 = vmatmul.mubr.f32.gmra.mrb[0].mxu0 %v6884
        %v7283 = vpop.f32.mrb[0].mxu0
        %v7284 = vadd.f32 0.0, %v7283
        %v7285 = vpop.f32.mrb[0].mxu0
        %7286 = vmatprep.mubr.f32.mxu0 %v6890
        %7287 = vmatmul.mubr.f32.gmra.mrb[0].mxu0 %v6888
        %v7288 = vpop.f32.mrb[0].mxu0
        %v7289 = vadd.f32 0.0, %v7288
        %v7290 = vpop.f32.mrb[0].mxu0
        %7291 = vmatprep.mubr.f32.mxu0 %v6894
        %7292 = vmatmul.mubr.f32.gmra.mrb[0].mxu0 %v6892
        %v7293 = vpop.f32.mrb[0].mxu0
        %v7294 = vadd.f32 0.0, %v7293
        %v7295 = vpop.f32.mrb[0].mxu0
        %7296 = vmatprep.mubr.f32.mxu0 %v6898
        %7297 = vmatmul.mubr.f32.gmra.mrb[0].mxu0 %v6896
        %v7298 = vpop.f32.mrb[0].mxu0
        %v7299 = vadd.f32 0.0, %v7298
        %v7300 = vpop.f32.mrb[0].mxu0
        %7301 = vmatprep.mubr.f32.mxu0 %v6902
        %7302 = vmatmul.mubr.f32.gmra.mrb[0].mxu0 %v6900
        %v7303 = vpop.f32.mrb[0].mxu0
        %v7304 = vadd.f32 0.0, %v7303
        %v7305 = vpop.f32.mrb[0].mxu0
        %7306 = vmatprep.mubr.f32.mxu0 %v6906
        %7307 = vmatmul.mubr.f32.gmra.mrb[0].mxu0 %v6904
        %v7308 = vpop.f32.mrb[0].mxu0
        %v7309 = vadd.f32 0.0, %v7308
        %v7310 = vpop.f32.mrb[0].mxu0
        %7311 = vmatprep.mubr.f32.mxu0 %v6910
        %7312 = vmatmul.mubr.f32.gmra.mrb[0].mxu0 %v6908
        %v7313 = vpop.f32.mrb[0].mxu0
        %v7314 = vadd.f32 0.0, %v7313
        %v7315 = vpop.f32.mrb[0].mxu0
        %7316 = vmatprep.mubr.f32.mxu0 %v6914
        %7317 = vmatmul.mubr.f32.gmra.mrb[0].mxu0 %v6912
        %v7318 = vpop.f32.mrb[0].mxu0
        %v7319 = vadd.f32 0.0, %v7318
        %v7320 = vpop.f32.mrb[0].mxu0
        %7321 = vmatprep.mubr.f32.mxu0 %v6918
        %7322 = vmatmul.mubr.f32.gmra.mrb[0].mxu0 %v6916
        %v7323 = vpop.f32.mrb[0].mxu0
        %v7324 = vadd.f32 0.0, %v7323
        %v7325 = vpop.f32.mrb[0].mxu0
        %7326 = vmatprep.mubr.f32.mxu0 %v6922
        %7327 = vmatmul.mubr.f32.gmra.mrb[0].mxu0 %v6920
        %v7328 = vpop.f32.mrb[0].mxu0
        %v7329 = vadd.f32 0.0, %v7328
        %v7330 = vpop.f32.mrb[0].mxu0
        %7331 = vmatprep.mubr.f32.mxu0 %v6926
        %7332 = vmatmul.mubr.f32.gmra.mrb[0].mxu0 %v6924
        %v7333 = vpop.f32.mrb[0].mxu0
        %v7334 = vadd.f32 0.0, %v7333
        %v7335 = vpop.f32.mrb[0].mxu0
        %7336 = vmatprep.mubr.f32.mxu0 %v6930
        %7337 = vmatmul.mubr.f32.gmra.mrb[0].mxu0 %v6928
        %v7338 = vpop.f32.mrb[0].mxu0
        %v7339 = vadd.f32 0.0, %v7338
        %v7340 = vpop.f32.mrb[0].mxu0
        %7341 = vmatprep.mubr.f32.mxu0 %v6934
        %7342 = vmatmul.mubr.f32.gmra.mrb[0].mxu0 %v6932
        %v7343 = vpop.f32.mrb[0].mxu0
        %v7344 = vadd.f32 0.0, %v7343
        %v7345 = vpop.f32.mrb[0].mxu0
        %7346 = vmatprep.mubr.f32.mxu0 %v6938
        %7347 = vmatmul.mubr.f32.gmra.mrb[0].mxu0 %v6936
        %v7348 = vpop.f32.mrb[0].mxu0
        %v7349 = vadd.f32 0.0, %v7348
        %v7350 = vpop.f32.mrb[0].mxu0
        %7351 = vmatprep.mubr.f32.mxu0 %v6942
        %7352 = vmatmul.mubr.f32.gmra.mrb[0].mxu0 %v6940
        %v7353 = vpop.f32.mrb[0].mxu0
        %v7354 = vadd.f32 0.0, %v7353
        %v7355 = vpop.f32.mrb[0].mxu0
        %7356 = vmatprep.mubr.f32.mxu0 %v6946
        %7357 = vmatmul.mubr.f32.gmra.mrb[0].mxu0 %v6944
        %v7358 = vpop.f32.mrb[0].mxu0
        %v7359 = vadd.f32 0.0, %v7358
        %v7360 = vpop.f32.mrb[0].mxu0
        %7361 = vmatprep.mubr.f32.mxu0 %v6950
        %7362 = vmatmul.mubr.f32.gmra.mrb[0].mxu0 %v6948
        %v7363 = vpop.f32.mrb[0].mxu0
        %v7364 = vadd.f32 0.0, %v7363
        %v7365 = vpop.f32.mrb[0].mxu0
        %7366 = vmatprep.mubr.f32.mxu0 %v6954
        %7367 = vmatmul.mubr.f32.gmra.mrb[0].mxu0 %v6952
        %v7368 = vpop.f32.mrb[0].mxu0
        %v7369 = vadd.f32 0.0, %v7368
        %v7370 = vpop.f32.mrb[0].mxu0
        %7371 = vdwg.mxu0
        %v7372 = vrcp.pop %v6957
        %v7373 = vrcp.pop %v6960
        %v7374 = vrcp.pop %v6963
        %v7375 = vrcp.pop %v6966
        %v7376 = vrcp.pop %v6969
        %v7377 = vrcp.pop %v6972
        %v7378 = vrcp.pop %v6975
        %v7379 = vrcp.pop %v6978
        %v7380 = vrcp.pop %v6981
        %v7381 = vrcp.pop %v6984
        %v7382 = vrcp.pop %v6987
        %v7383 = vrcp.pop %v6990
        %v7384 = vrcp.pop %v6993
        %v7385 = vrcp.pop %v6996
        %v7386 = vrcp.pop %v6999
        %v7387 = vrcp.pop %v7002
        %v7388 = vrcp.pop %v7005
        %v7389 = vrcp.pop %v7008
        %v7390 = vrcp.pop %v7011
        %v7391 = vrcp.pop %v7014
        %v7392 = vrcp.pop %v7017
        %v7393 = vrcp.pop %v7020
        %v7394 = vrcp.pop %v7023
        %v7395 = vrcp.pop %v7026
        %v7396 = vrcp.pop %v7029
        %v7397 = vrcp.pop %v7032
        %v7398 = vrcp.pop %v7035
        %v7399 = vrcp.pop %v7038
        %v7400 = vrcp.pop %v7041
        %v7401 = vrcp.pop %v7044
        %v7402 = vrcp.pop %v7047
        %v7403 = vrcp.pop %v7050
        %v7404 = vmul.f32 %v7214, %v7372
        %v7405 = vmul.f32 %v7219, %v7373
        %v7406 = vmul.f32 %v7224, %v7374
        %v7407 = vmul.f32 %v7229, %v7375
        %v7408 = vmul.f32 %v7234, %v7376
        %v7409 = vmul.f32 %v7239, %v7377
        %v7410 = vmul.f32 %v7244, %v7378
        %v7411 = vmul.f32 %v7249, %v7379
        %v7412 = vmul.f32 %v7254, %v7380
        %v7413 = vmul.f32 %v7259, %v7381
        %v7414 = vmul.f32 %v7264, %v7382
        %v7415 = vmul.f32 %v7269, %v7383
        %v7416 = vmul.f32 %v7274, %v7384
        %v7417 = vmul.f32 %v7279, %v7385
        %v7418 = vmul.f32 %v7284, %v7386
        %v7419 = vmul.f32 %v7289, %v7387
        %v7420 = vmul.f32 %v7294, %v7388
        %v7421 = vmul.f32 %v7299, %v7389
        %v7422 = vmul.f32 %v7304, %v7390
        %v7423 = vmul.f32 %v7309, %v7391
        %v7424 = vmul.f32 %v7314, %v7392
        %v7425 = vmul.f32 %v7319, %v7393
        %v7426 = vmul.f32 %v7324, %v7394
        %v7427 = vmul.f32 %v7329, %v7395
        %v7428 = vmul.f32 %v7334, %v7396
        %v7429 = vmul.f32 %v7339, %v7397
        %v7430 = vmul.f32 %v7344, %v7398
        %v7431 = vmul.f32 %v7349, %v7399
        %v7432 = vmul.f32 %v7354, %v7400
        %v7433 = vmul.f32 %v7359, %v7401
        %v7434 = vmul.f32 %v7364, %v7402
        %v7435 = vmul.f32 %v7369, %v7403
        %7468 = vrot.lane.b32.xlu0 %v7404, 96
        %v7469 = vpop.permute.xlu0 %7468
        %7470 = vrot.lane.b32.xlu0 %v7405, 96
        %v7471 = vpop.permute.xlu0 %7470
        %7472 = vrot.lane.b32.xlu0 %v7406, 96
        %v7473 = vpop.permute.xlu0 %7472
        %7474 = vrot.lane.b32.xlu0 %v7407, 96
        %v7475 = vpop.permute.xlu0 %7474
        %7476 = vrot.lane.b32.xlu0 %v7408, 96
        %v7477 = vpop.permute.xlu0 %7476
        %7478 = vrot.lane.b32.xlu0 %v7409, 96
        %v7479 = vpop.permute.xlu0 %7478
        %7480 = vrot.lane.b32.xlu0 %v7410, 96
        %v7481 = vpop.permute.xlu0 %7480
        %7482 = vrot.lane.b32.xlu0 %v7411, 96
        %v7483 = vpop.permute.xlu0 %7482
        %7484 = vrot.lane.b32.xlu0 %v7412, 96
        %v7485 = vpop.permute.xlu0 %7484
        %7486 = vrot.lane.b32.xlu0 %v7413, 96
        %v7487 = vpop.permute.xlu0 %7486
        %7488 = vrot.lane.b32.xlu0 %v7414, 96
        %v7489 = vpop.permute.xlu0 %7488
        %7490 = vrot.lane.b32.xlu0 %v7415, 96
        %v7491 = vpop.permute.xlu0 %7490
        %7492 = vrot.lane.b32.xlu0 %v7416, 96
        %v7493 = vpop.permute.xlu0 %7492
        %7494 = vrot.lane.b32.xlu0 %v7417, 96
        %v7495 = vpop.permute.xlu0 %7494
        %7496 = vrot.lane.b32.xlu0 %v7418, 96
        %v7497 = vpop.permute.xlu0 %7496
        %7498 = vrot.lane.b32.xlu0 %v7419, 96
        %v7499 = vpop.permute.xlu0 %7498
        %7500 = vrot.lane.b32.xlu0 %v7420, 96
        %v7501 = vpop.permute.xlu0 %7500
        %7502 = vrot.lane.b32.xlu0 %v7421, 96
        %v7503 = vpop.permute.xlu0 %7502
        %7504 = vrot.lane.b32.xlu0 %v7422, 96
        %v7505 = vpop.permute.xlu0 %7504
        %7506 = vrot.lane.b32.xlu0 %v7423, 96
        %v7507 = vpop.permute.xlu0 %7506
        %7508 = vrot.lane.b32.xlu0 %v7424, 96
        %v7509 = vpop.permute.xlu0 %7508
        %7510 = vrot.lane.b32.xlu0 %v7425, 96
        %v7511 = vpop.permute.xlu0 %7510
        %7512 = vrot.lane.b32.xlu0 %v7426, 96
        %v7513 = vpop.permute.xlu0 %7512
        %7514 = vrot.lane.b32.xlu0 %v7427, 96
        %v7515 = vpop.permute.xlu0 %7514
        %7516 = vrot.lane.b32.xlu0 %v7428, 96
        %v7517 = vpop.permute.xlu0 %7516
        %7518 = vrot.lane.b32.xlu0 %v7429, 96
        %v7519 = vpop.permute.xlu0 %7518
        %7520 = vrot.lane.b32.xlu0 %v7430, 96
        %v7521 = vpop.permute.xlu0 %7520
        %7522 = vrot.lane.b32.xlu0 %v7431, 96
        %v7523 = vpop.permute.xlu0 %7522
        %7524 = vrot.lane.b32.xlu0 %v7432, 96
        %v7525 = vpop.permute.xlu0 %7524
        %7526 = vrot.lane.b32.xlu0 %v7433, 96
        %v7527 = vpop.permute.xlu0 %7526
        %7528 = vrot.lane.b32.xlu0 %v7434, 96
        %v7529 = vpop.permute.xlu0 %7528
        %7530 = vrot.lane.b32.xlu0 %v7435, 96
        %v7531 = vpop.permute.xlu0 %7530
        %vm7564 = vcmask 1048320
        %7565 = vst.msk [vmem:[#allocation2] sm:$0xff] %vm7564, %v7469
        %7566 = vst.msk [vmem:[#allocation2 + $0x8] sm:$0xff] %vm7564, %v7471
        %7567 = vst.msk [vmem:[#allocation2 + $0x10] sm:$0xff] %vm7564, %v7473
        %7568 = vst.msk [vmem:[#allocation2 + $0x18] sm:$0xff] %vm7564, %v7475
        %7569 = vst.msk [vmem:[#allocation2 + $0x20] sm:$0xff] %vm7564, %v7477
        %7570 = vst.msk [vmem:[#allocation2 + $0x28] sm:$0xff] %vm7564, %v7479
        %7571 = vst.msk [vmem:[#allocation2 + $0x30] sm:$0xff] %vm7564, %v7481
        %7572 = vst.msk [vmem:[#allocation2 + $0x38] sm:$0xff] %vm7564, %v7483
        %7573 = vst.msk [vmem:[#allocation2 + $0x40] sm:$0xff] %vm7564, %v7485
        %7574 = vst.msk [vmem:[#allocation2 + $0x48] sm:$0xff] %vm7564, %v7487
        %7575 = vst.msk [vmem:[#allocation2 + $0x50] sm:$0xff] %vm7564, %v7489
        %7576 = vst.msk [vmem:[#allocation2 + $0x58] sm:$0xff] %vm7564, %v7491
        %7577 = vst.msk [vmem:[#allocation2 + $0x60] sm:$0xff] %vm7564, %v7493
        %7578 = vst.msk [vmem:[#allocation2 + $0x68] sm:$0xff] %vm7564, %v7495
        %7579 = vst.msk [vmem:[#allocation2 + $0x70] sm:$0xff] %vm7564, %v7497
        %7580 = vst.msk [vmem:[#allocation2 + $0x78] sm:$0xff] %vm7564, %v7499
        %7581 = vst.msk [vmem:[#allocation2 + $0x80] sm:$0xff] %vm7564, %v7501
        %7582 = vst.msk [vmem:[#allocation2 + $0x88] sm:$0xff] %vm7564, %v7503
        %7583 = vst.msk [vmem:[#allocation2 + $0x90] sm:$0xff] %vm7564, %v7505
        %7584 = vst.msk [vmem:[#allocation2 + $0x98] sm:$0xff] %vm7564, %v7507
        %7585 = vst.msk [vmem:[#allocation2 + $0xa0] sm:$0xff] %vm7564, %v7509
        %7586 = vst.msk [vmem:[#allocation2 + $0xa8] sm:$0xff] %vm7564, %v7511
        %7587 = vst.msk [vmem:[#allocation2 + $0xb0] sm:$0xff] %vm7564, %v7513
        %7588 = vst.msk [vmem:[#allocation2 + $0xb8] sm:$0xff] %vm7564, %v7515
        %7589 = vst.msk [vmem:[#allocation2 + $0xc0] sm:$0xff] %vm7564, %v7517
        %7590 = vst.msk [vmem:[#allocation2 + $0xc8] sm:$0xff] %vm7564, %v7519
        %7591 = vst.msk [vmem:[#allocation2 + $0xd0] sm:$0xff] %vm7564, %v7521
        %7592 = vst.msk [vmem:[#allocation2 + $0xd8] sm:$0xff] %vm7564, %v7523
        %7593 = vst.msk [vmem:[#allocation2 + $0xe0] sm:$0xff] %vm7564, %v7525
        %7594 = vst.msk [vmem:[#allocation2 + $0xe8] sm:$0xff] %vm7564, %v7527
        %7595 = vst.msk [vmem:[#allocation2 + $0xf0] sm:$0xff] %vm7564, %v7529
        %7596 = vst.msk [vmem:[#allocation2 + $0xf8] sm:$0xff] %vm7564, %v7531
        %v7597 = vld [vmem:[#allocation2] sm:$0xff]
        %v7598 = vld [vmem:[#allocation2 + $0x8] sm:$0xff]
        %v7599 = vld [vmem:[#allocation2 + $0x10] sm:$0xff]
        %v7600 = vld [vmem:[#allocation2 + $0x18] sm:$0xff]
        %v7601 = vld [vmem:[#allocation2 + $0x20] sm:$0xff]
        %v7602 = vld [vmem:[#allocation2 + $0x28] sm:$0xff]
        %v7603 = vld [vmem:[#allocation2 + $0x30] sm:$0xff]
        %v7604 = vld [vmem:[#allocation2 + $0x38] sm:$0xff]
        %v7605 = vld [vmem:[#allocation2 + $0x40] sm:$0xff]
        %v7606 = vld [vmem:[#allocation2 + $0x48] sm:$0xff]
        %v7607 = vld [vmem:[#allocation2 + $0x50] sm:$0xff]
        %v7608 = vld [vmem:[#allocation2 + $0x58] sm:$0xff]
        %v7609 = vld [vmem:[#allocation2 + $0x60] sm:$0xff]
        %v7610 = vld [vmem:[#allocation2 + $0x68] sm:$0xff]
        %v7611 = vld [vmem:[#allocation2 + $0x70] sm:$0xff]
        %v7612 = vld [vmem:[#allocation2 + $0x78] sm:$0xff]
        %v7613 = vld [vmem:[#allocation2 + $0x80] sm:$0xff]
        %v7614 = vld [vmem:[#allocation2 + $0x88] sm:$0xff]
        %v7615 = vld [vmem:[#allocation2 + $0x90] sm:$0xff]
        %v7616 = vld [vmem:[#allocation2 + $0x98] sm:$0xff]
        %v7617 = vld [vmem:[#allocation2 + $0xa0] sm:$0xff]
        %v7618 = vld [vmem:[#allocation2 + $0xa8] sm:$0xff]
        %v7619 = vld [vmem:[#allocation2 + $0xb0] sm:$0xff]
        %v7620 = vld [vmem:[#allocation2 + $0xb8] sm:$0xff]
        %v7621 = vld [vmem:[#allocation2 + $0xc0] sm:$0xff]
        %v7622 = vld [vmem:[#allocation2 + $0xc8] sm:$0xff]
        %v7623 = vld [vmem:[#allocation2 + $0xd0] sm:$0xff]
        %v7624 = vld [vmem:[#allocation2 + $0xd8] sm:$0xff]
        %v7625 = vld [vmem:[#allocation2 + $0xe0] sm:$0xff]
        %v7626 = vld [vmem:[#allocation2 + $0xe8] sm:$0xff]
        %v7627 = vld [vmem:[#allocation2 + $0xf0] sm:$0xff]
        %v7628 = vld [vmem:[#allocation2 + $0xf8] sm:$0xff]
        %v7629 = vld [vmem:[#allocation15] sm:$0xff]
        %v7630 = vld [vmem:[#allocation15 + $0x8] sm:$0xff]
        %v7631 = vld [vmem:[#allocation15 + $0x10] sm:$0xff]
        %v7632 = vld [vmem:[#allocation15 + $0x18] sm:$0xff]
        %v7633 = vld [vmem:[#allocation15 + $0x20] sm:$0xff]
        %v7634 = vld [vmem:[#allocation15 + $0x28] sm:$0xff]
        %v7635 = vld [vmem:[#allocation15 + $0x30] sm:$0xff]
        %v7636 = vld [vmem:[#allocation15 + $0x38] sm:$0xff]
        %v7637 = vld [vmem:[#allocation15 + $0x40] sm:$0xff]
        %v7638 = vld [vmem:[#allocation15 + $0x48] sm:$0xff]
        %v7639 = vld [vmem:[#allocation15 + $0x50] sm:$0xff]
        %v7640 = vld [vmem:[#allocation15 + $0x58] sm:$0xff]
        %v7641 = vld [vmem:[#allocation15 + $0x60] sm:$0xff]
        %v7642 = vld [vmem:[#allocation15 + $0x68] sm:$0xff]
        %v7643 = vld [vmem:[#allocation15 + $0x70] sm:$0xff]
        %v7644 = vld [vmem:[#allocation15 + $0x78] sm:$0xff]
        %v7645 = vld [vmem:[%s11] sm:$0x1]
        %v7647 = vlaneseq
        %v7648 = vshrl.u32 %v7647, 7
        %v7649 = vsub.s32 0, %v7648
        %v7650 = vrot.slane %v7645, %v7649
        %7652 = vmatprep.subr.mxu0 0.0
        %7653 = vmatpush1.msra.mxu0 %v7629
        %7654 = vmatprep.subr.mxu0 0.0
        %7655 = vmatpush1.msra.mxu0 %v7630
        %7656 = vmatprep.subr.mxu0 0.0
        %7657 = vmatpush1.msra.mxu0 %v7631
        %7658 = vmatprep.subr.mxu0 0.0
        %7659 = vmatpush1.msra.mxu0 %v7632
        %7660 = vmatprep.subr.mxu0 0.0
        %7661 = vmatpush1.msra.mxu0 %v7633
        %7662 = vmatprep.subr.mxu0 0.0
        %7663 = vmatpush1.msra.mxu0 %v7634
        %7664 = vmatprep.subr.mxu0 0.0
        %7665 = vmatpush1.msra.mxu0 %v7635
        %7666 = vmatprep.subr.mxu0 0.0
        %7667 = vmatpush1.msra.mxu0 %v7636
        %7668 = vmatprep.subr.mxu0 0.0
        %7669 = vmatpush1.msra.mxu0 %v7637
        %7670 = vmatprep.subr.mxu0 0.0
        %7671 = vmatpush1.msra.mxu0 %v7638
        %7672 = vmatprep.subr.mxu0 0.0
        %7673 = vmatpush1.msra.mxu0 %v7639
        %7674 = vmatprep.subr.mxu0 0.0
        %7675 = vmatpush1.msra.mxu0 %v7640
        %7676 = vmatprep.subr.mxu0 0.0
        %7677 = vmatpush1.msra.mxu0 %v7641
        %7678 = vmatprep.subr.mxu0 0.0
        %7679 = vmatpush1.msra.mxu0 %v7642
        %7680 = vmatprep.subr.mxu0 0.0
        %7681 = vmatpush1.msra.mxu0 %v7643
        %7682 = vmatprep.subr.mxu0 0.0
        %7683 = vmatpush1.msra.mxu0 %v7644
        %7684 = vmatprep.subr.mxu0 0.0
        %7685 = vmatpush1.msra.mxu0 0.0
        %7686 = vmatprep.subr.mxu0 0.0
        %7687 = vmatpush1.msra.mxu0 0.0
        %7688 = vmatprep.subr.mxu0 0.0
        %7689 = vmatpush1.msra.mxu0 0.0
        %7690 = vmatprep.subr.mxu0 0.0
        %7691 = vmatpush1.msra.mxu0 0.0
        %7692 = vmatprep.subr.mxu0 0.0
        %7693 = vmatpush1.msra.mxu0 0.0
        %7694 = vmatprep.subr.mxu0 0.0
        %7695 = vmatpush1.msra.mxu0 0.0
        %7696 = vmatprep.subr.mxu0 0.0
        %7697 = vmatpush1.msra.mxu0 0.0
        %7698 = vmatprep.subr.mxu0 0.0
        %7699 = vmatpush1.msra.mxu0 0.0
        %7700 = vmatprep.subr.mxu0 0.0
        %7701 = vmatpush1.msra.mxu0 0.0
        %7702 = vmatprep.subr.mxu0 0.0
        %7703 = vmatpush1.msra.mxu0 0.0
        %7704 = vmatprep.subr.mxu0 0.0
        %7705 = vmatpush1.msra.mxu0 0.0
        %7706 = vmatprep.subr.mxu0 0.0
        %7707 = vmatpush1.msra.mxu0 0.0
        %7708 = vmatprep.subr.mxu0 0.0
        %7709 = vmatpush1.msra.mxu0 0.0
        %7710 = vmatprep.subr.mxu0 0.0
        %7711 = vmatpush1.msra.mxu0 0.0
        %7712 = vmatprep.subr.mxu0 0.0
        %7713 = vmatpush1.msra.mxu0 0.0
        %7714 = vmatprep.subr.mxu0 0.0
        %7715 = vmatpush1.msra.mxu0 0.0
        %7716 = vmatprep.mubr.f32.mxu0 0.0
        %7717 = vmatmul.mubr.f32.gmra.mrb[0].mxu0 %v7597
        %v7718 = vpop.f32.mrb[0].mxu0
        %v7719 = vadd.f32 %v7650, %v7718
        %v7720 = vpop.f32.mrb[0].mxu0
        %7721 = vmatprep.mubr.f32.mxu0 0.0
        %7722 = vmatmul.mubr.f32.gmra.mrb[0].mxu0 %v7598
        %v7723 = vpop.f32.mrb[0].mxu0
        %v7724 = vadd.f32 %v7650, %v7723
        %v7725 = vpop.f32.mrb[0].mxu0
        %7726 = vmatprep.mubr.f32.mxu0 0.0
        %7727 = vmatmul.mubr.f32.gmra.mrb[0].mxu0 %v7599
        %v7728 = vpop.f32.mrb[0].mxu0
        %v7729 = vadd.f32 %v7650, %v7728
        %v7730 = vpop.f32.mrb[0].mxu0
        %7731 = vmatprep.mubr.f32.mxu0 0.0
        %7732 = vmatmul.mubr.f32.gmra.mrb[0].mxu0 %v7600
        %v7733 = vpop.f32.mrb[0].mxu0
        %v7734 = vadd.f32 %v7650, %v7733
        %v7735 = vpop.f32.mrb[0].mxu0
        %7736 = vmatprep.mubr.f32.mxu0 0.0
        %7737 = vmatmul.mubr.f32.gmra.mrb[0].mxu0 %v7601
        %v7738 = vpop.f32.mrb[0].mxu0
        %v7739 = vadd.f32 %v7650, %v7738
        %v7740 = vpop.f32.mrb[0].mxu0
        %7741 = vmatprep.mubr.f32.mxu0 0.0
        %7742 = vmatmul.mubr.f32.gmra.mrb[0].mxu0 %v7602
        %v7743 = vpop.f32.mrb[0].mxu0
        %v7744 = vadd.f32 %v7650, %v7743
        %v7745 = vpop.f32.mrb[0].mxu0
        %7746 = vmatprep.mubr.f32.mxu0 0.0
        %7747 = vmatmul.mubr.f32.gmra.mrb[0].mxu0 %v7603
        %v7748 = vpop.f32.mrb[0].mxu0
        %v7749 = vadd.f32 %v7650, %v7748
        %v7750 = vpop.f32.mrb[0].mxu0
        %7751 = vmatprep.mubr.f32.mxu0 0.0
        %7752 = vmatmul.mubr.f32.gmra.mrb[0].mxu0 %v7604
        %v7753 = vpop.f32.mrb[0].mxu0
        %v7754 = vadd.f32 %v7650, %v7753
        %v7755 = vpop.f32.mrb[0].mxu0
        %7756 = vmatprep.mubr.f32.mxu0 0.0
        %7757 = vmatmul.mubr.f32.gmra.mrb[0].mxu0 %v7605
        %v7758 = vpop.f32.mrb[0].mxu0
        %v7759 = vadd.f32 %v7650, %v7758
        %v7760 = vpop.f32.mrb[0].mxu0
        %7761 = vmatprep.mubr.f32.mxu0 0.0
        %7762 = vmatmul.mubr.f32.gmra.mrb[0].mxu0 %v7606
        %v7763 = vpop.f32.mrb[0].mxu0
        %v7764 = vadd.f32 %v7650, %v7763
        %v7765 = vpop.f32.mrb[0].mxu0
        %7766 = vmatprep.mubr.f32.mxu0 0.0
        %7767 = vmatmul.mubr.f32.gmra.mrb[0].mxu0 %v7607
        %v7768 = vpop.f32.mrb[0].mxu0
        %v7769 = vadd.f32 %v7650, %v7768
        %v7770 = vpop.f32.mrb[0].mxu0
        %7771 = vmatprep.mubr.f32.mxu0 0.0
        %7772 = vmatmul.mubr.f32.gmra.mrb[0].mxu0 %v7608
        %v7773 = vpop.f32.mrb[0].mxu0
        %v7774 = vadd.f32 %v7650, %v7773
        %v7775 = vpop.f32.mrb[0].mxu0
        %7776 = vmatprep.mubr.f32.mxu0 0.0
        %7777 = vmatmul.mubr.f32.gmra.mrb[0].mxu0 %v7609
        %v7778 = vpop.f32.mrb[0].mxu0
        %v7779 = vadd.f32 %v7650, %v7778
        %v7780 = vpop.f32.mrb[0].mxu0
        %7781 = vmatprep.mubr.f32.mxu0 0.0
        %7782 = vmatmul.mubr.f32.gmra.mrb[0].mxu0 %v7610
        %v7783 = vpop.f32.mrb[0].mxu0
        %v7784 = vadd.f32 %v7650, %v7783
        %v7785 = vpop.f32.mrb[0].mxu0
        %7786 = vmatprep.mubr.f32.mxu0 0.0
        %7787 = vmatmul.mubr.f32.gmra.mrb[0].mxu0 %v7611
        %v7788 = vpop.f32.mrb[0].mxu0
        %v7789 = vadd.f32 %v7650, %v7788
        %v7790 = vpop.f32.mrb[0].mxu0
        %7791 = vmatprep.mubr.f32.mxu0 0.0
        %7792 = vmatmul.mubr.f32.gmra.mrb[0].mxu0 %v7612
        %v7793 = vpop.f32.mrb[0].mxu0
        %v7794 = vadd.f32 %v7650, %v7793
        %v7795 = vpop.f32.mrb[0].mxu0
        %7796 = vmatprep.mubr.f32.mxu0 0.0
        %7797 = vmatmul.mubr.f32.gmra.mrb[0].mxu0 %v7613
        %v7798 = vpop.f32.mrb[0].mxu0
        %v7799 = vadd.f32 %v7650, %v7798
        %v7800 = vpop.f32.mrb[0].mxu0
        %7801 = vmatprep.mubr.f32.mxu0 0.0
        %7802 = vmatmul.mubr.f32.gmra.mrb[0].mxu0 %v7614
        %v7803 = vpop.f32.mrb[0].mxu0
        %v7804 = vadd.f32 %v7650, %v7803
        %v7805 = vpop.f32.mrb[0].mxu0
        %7806 = vmatprep.mubr.f32.mxu0 0.0
        %7807 = vmatmul.mubr.f32.gmra.mrb[0].mxu0 %v7615
        %v7808 = vpop.f32.mrb[0].mxu0
        %v7809 = vadd.f32 %v7650, %v7808
        %v7810 = vpop.f32.mrb[0].mxu0
        %7811 = vmatprep.mubr.f32.mxu0 0.0
        %7812 = vmatmul.mubr.f32.gmra.mrb[0].mxu0 %v7616
        %v7813 = vpop.f32.mrb[0].mxu0
        %v7814 = vadd.f32 %v7650, %v7813
        %v7815 = vpop.f32.mrb[0].mxu0
        %7816 = vmatprep.mubr.f32.mxu0 0.0
        %7817 = vmatmul.mubr.f32.gmra.mrb[0].mxu0 %v7617
        %v7818 = vpop.f32.mrb[0].mxu0
        %v7819 = vadd.f32 %v7650, %v7818
        %v7820 = vpop.f32.mrb[0].mxu0
        %7821 = vmatprep.mubr.f32.mxu0 0.0
        %7822 = vmatmul.mubr.f32.gmra.mrb[0].mxu0 %v7618
        %v7823 = vpop.f32.mrb[0].mxu0
        %v7824 = vadd.f32 %v7650, %v7823
        %v7825 = vpop.f32.mrb[0].mxu0
        %7826 = vmatprep.mubr.f32.mxu0 0.0
        %7827 = vmatmul.mubr.f32.gmra.mrb[0].mxu0 %v7619
        %v7828 = vpop.f32.mrb[0].mxu0
        %v7829 = vadd.f32 %v7650, %v7828
        %v7830 = vpop.f32.mrb[0].mxu0
        %7831 = vmatprep.mubr.f32.mxu0 0.0
        %7832 = vmatmul.mubr.f32.gmra.mrb[0].mxu0 %v7620
        %v7833 = vpop.f32.mrb[0].mxu0
        %v7834 = vadd.f32 %v7650, %v7833
        %v7835 = vpop.f32.mrb[0].mxu0
        %7836 = vmatprep.mubr.f32.mxu0 0.0
        %7837 = vmatmul.mubr.f32.gmra.mrb[0].mxu0 %v7621
        %v7838 = vpop.f32.mrb[0].mxu0
        %v7839 = vadd.f32 %v7650, %v7838
        %v7840 = vpop.f32.mrb[0].mxu0
        %7841 = vmatprep.mubr.f32.mxu0 0.0
        %7842 = vmatmul.mubr.f32.gmra.mrb[0].mxu0 %v7622
        %v7843 = vpop.f32.mrb[0].mxu0
        %v7844 = vadd.f32 %v7650, %v7843
        %v7845 = vpop.f32.mrb[0].mxu0
        %7846 = vmatprep.mubr.f32.mxu0 0.0
        %7847 = vmatmul.mubr.f32.gmra.mrb[0].mxu0 %v7623
        %v7848 = vpop.f32.mrb[0].mxu0
        %v7849 = vadd.f32 %v7650, %v7848
        %v7850 = vpop.f32.mrb[0].mxu0
        %7851 = vmatprep.mubr.f32.mxu0 0.0
        %7852 = vmatmul.mubr.f32.gmra.mrb[0].mxu0 %v7624
        %v7853 = vpop.f32.mrb[0].mxu0
        %v7854 = vadd.f32 %v7650, %v7853
        %v7855 = vpop.f32.mrb[0].mxu0
        %7856 = vmatprep.mubr.f32.mxu0 0.0
        %7857 = vmatmul.mubr.f32.gmra.mrb[0].mxu0 %v7625
        %v7858 = vpop.f32.mrb[0].mxu0
        %v7859 = vadd.f32 %v7650, %v7858
        %v7860 = vpop.f32.mrb[0].mxu0
        %7861 = vmatprep.mubr.f32.mxu0 0.0
        %7862 = vmatmul.mubr.f32.gmra.mrb[0].mxu0 %v7626
        %v7863 = vpop.f32.mrb[0].mxu0
        %v7864 = vadd.f32 %v7650, %v7863
        %v7865 = vpop.f32.mrb[0].mxu0
        %7866 = vmatprep.mubr.f32.mxu0 0.0
        %7867 = vmatmul.mubr.f32.gmra.mrb[0].mxu0 %v7627
        %v7868 = vpop.f32.mrb[0].mxu0
        %v7869 = vadd.f32 %v7650, %v7868
        %v7870 = vpop.f32.mrb[0].mxu0
        %7871 = vmatprep.mubr.f32.mxu0 0.0
        %7872 = vmatmul.mubr.f32.gmra.mrb[0].mxu0 %v7628
        %v7873 = vpop.f32.mrb[0].mxu0
        %v7874 = vadd.f32 %v7650, %v7873
        %v7875 = vpop.f32.mrb[0].mxu0
        %7876 = vdwg.mxu0
        %7877 = vst [vmem:[%s629] sm:$0xff] %v7719
        %7878 = vst [vmem:[%s629 + $0x8] sm:$0xff] %v7724
        %7879 = vst [vmem:[%s629 + $0x10] sm:$0xff] %v7729
        %7880 = vst [vmem:[%s629 + $0x18] sm:$0xff] %v7734
        %7881 = vst [vmem:[%s629 + $0x20] sm:$0xff] %v7739
        %7882 = vst [vmem:[%s629 + $0x28] sm:$0xff] %v7744
        %7883 = vst [vmem:[%s629 + $0x30] sm:$0xff] %v7749
        %7884 = vst [vmem:[%s629 + $0x38] sm:$0xff] %v7754
        %7885 = vst [vmem:[%s629 + $0x40] sm:$0xff] %v7759
        %7886 = vst [vmem:[%s629 + $0x48] sm:$0xff] %v7764
        %7887 = vst [vmem:[%s629 + $0x50] sm:$0xff] %v7769
        %7888 = vst [vmem:[%s629 + $0x58] sm:$0xff] %v7774
        %7889 = vst [vmem:[%s629 + $0x60] sm:$0xff] %v7779
        %7890 = vst [vmem:[%s629 + $0x68] sm:$0xff] %v7784
        %7891 = vst [vmem:[%s629 + $0x70] sm:$0xff] %v7789
        %7892 = vst [vmem:[%s629 + $0x78] sm:$0xff] %v7794
        %7893 = vst [vmem:[%s629 + $0x80] sm:$0xff] %v7799
        %7894 = vst [vmem:[%s629 + $0x88] sm:$0xff] %v7804
        %7895 = vst [vmem:[%s629 + $0x90] sm:$0xff] %v7809
        %7896 = vst [vmem:[%s629 + $0x98] sm:$0xff] %v7814
        %7897 = vst [vmem:[%s629 + $0xa0] sm:$0xff] %v7819
        %7898 = vst [vmem:[%s629 + $0xa8] sm:$0xff] %v7824
        %7899 = vst [vmem:[%s629 + $0xb0] sm:$0xff] %v7829
        %7900 = vst [vmem:[%s629 + $0xb8] sm:$0xff] %v7834
        %7901 = vst [vmem:[%s629 + $0xc0] sm:$0xff] %v7839
        %7902 = vst [vmem:[%s629 + $0xc8] sm:$0xff] %v7844
        %7903 = vst [vmem:[%s629 + $0xd0] sm:$0xff] %v7849
        %7904 = vst [vmem:[%s629 + $0xd8] sm:$0xff] %v7854
        %7905 = vst [vmem:[%s629 + $0xe0] sm:$0xff] %v7859
        %7906 = vst [vmem:[%s629 + $0xe8] sm:$0xff] %v7864
        %7907 = vst [vmem:[%s629 + $0xf0] sm:$0xff] %v7869
        %7908 = vst [vmem:[%s629 + $0xf8] sm:$0xff] %v7874
        %s7909 = sand.u32 %s335, 1
        %s7910 = scalar_lea.sflag [#allocation5], %s7909
        %s7911 = sand.u32 %s335, 1
        %s7912 = smul.addr %s7911, 256
        %s7913 = scalar_lea.vmem [#allocation17], %s7912
        // Predicated region
        $region101: #{tpu_custom_call.1} parent=67 // pred_check
          %p7914 = pneg %p345
        $region102: #{tpu_custom_call.1} parent=67 // pred_check_branch
          %7916 = sbr.rel (%p7914) target = $region104
        $region103: #{tpu_custom_call.1} parent=67 // pred_region
          %s7917 = smul.u32 32, %s42
          %s7919 = ssub.s32 4096, 4096
          %7920 = vsyncadd %s7910, %s7919
          %s7921 = smul.addr %s41, 32
          %s7922 = sadd.s32 %s7917, %s7921
          %s7923 = smul.addr %s7922, 128
          %s7924 = scalar_lea.hbm %s12, %s7923
          %s7925 = sshll.u32 %s7913, 4
          %s7926 = int_to_ptr.vmem [resolvable:$true] %s7925
          %7931 = dma.vmem_to_hbm [thread:$0]  %s7926, 4096, %s7924, %s7910, 128, 128, 8
        $region104: #{tpu_custom_call.1} parent=67 // pred_fallthru
          _
      $region68: #{tpu_custom_call.1} parent=5 // pred_fallthru
        _
      %p7932 = scmp.le.s32.totalorder 2, %s32
      // Predicated region
      $region105: #{tpu_custom_call.1} parent=5 // pred_check
        %p7933 = pneg %p7932
      $region106: #{tpu_custom_call.1} parent=5 // pred_check_branch
        %7935 = sbr.rel (%p7933) target = $region108
      $region107: #{tpu_custom_call.1} parent=5 // pred_region
        %s7936 = ssub.s32 %s32, 2
        // Predicated region
        $region109: #{tpu_custom_call.1} parent=107 // pred_check
          %p7937 = pneg %p351
        $region110: #{tpu_custom_call.1} parent=107 // pred_check_branch
          %7939 = sbr.rel (%p7937) target = $region112
        $region111: #{tpu_custom_call.1} parent=107 // pred_region
          %s7940 = sand.u32 %s336, 1
          %s7941 = scalar_lea.sflag [#allocation5], %s7940
          %s7942 = sand.u32 %s336, 1
          %s7943 = smul.addr %s7942, 256
          %s7944 = scalar_lea.vmem [#allocation17], %s7943
          %7945 = dma.done %s7941, 4096
        $region112: #{tpu_custom_call.1} parent=107 // pred_fallthru
          _
      $region108: #{tpu_custom_call.1} parent=5 // pred_fallthru
        _
    $region6: #{tpu_custom_call.1} parent=1 // loop_footer
      %s36 = sadd.s32 1, %s32
    $region7: #{tpu_custom_call.1} parent=1 // loop_footer_branch
      %31 = sbr.rel target = $region3
    $region8: #{tpu_custom_call.1} parent=1 // loop_exit
      _
    %7946 = vsyncpa [#allocation4], 1
    %s7947 = scalar_lea.sflag [#allocation4], 1
    %7948 = vsyncpa %s7947, 1
    %7949 = vsyncpa [#allocation7], 1
    %s7950 = scalar_lea.sflag [#allocation7], 1
    %7951 = vsyncpa %s7950, 1
    %7952 = vsyncpa [#allocation10], 1
    %s7953 = scalar_lea.sflag [#allocation10], 1
    %7954 = vsyncpa %s7953, 1
    %7955 = vsyncpa [#allocation13], 1
    %7956 = vsyncpa [#allocation16], 1
    %7957 = vsyncpa [#allocation5], 1
    %s7958 = scalar_lea.sflag [#allocation5], 1
    %7959 = vsyncpa %s7958, 1

</llo_original>
